<compile_context>
chip_gen: v7x
topology: tpu7x:2x2x1
jax: 0.10.0
libtpu: 0.0.40
codegen_flags: <defaults>
</compile_context>

<pallas_src>
import jax
import jax.numpy as jnp
from jax import lax
from jax.experimental import pallas as pl
from jax.experimental.pallas import tpu as pltpu
import numpy as np

CIN, COUT, KH, KW = 256, 16, 7, 7
HIN, WIN = 14, 14
HP, WP = HIN + 4, WIN + 4          # 18, 18  zero-padded input (pad=2 each side)
HPOOL, WPOOL = 16, 16              # avg-pool output
HOUT, WOUT = 10, 10                # conv output
KTAP = KW * CIN                    # 1792  per-ki contraction width
NROW = HPOOL * WPOOL               # 256   im2col patch rows (stride-16 layout)
NLANE = HOUT * WPOOL               # 160   kernel-output lane width


def fused_kernel(xpad_ref, inv_ref, w_hbm_ref, b_ref, o_ref,
                 w_vmem, patch_ref, w_sem):
    # xpad_ref : (18, 18, 256) bf16  zero-padded HWC input
    # inv_ref  : (16, 16)      f32   precomputed 1/count (count_include_pad=False)
    # w_hbm_ref: (16, 12544)   bf16  weights in HBM, [co, ki*1792 + kj*256 + c]
    # b_ref    : (16, 1)       f32   bias
    # o_ref    : (16, 160)     f32   [co, oi*16 + oj], valid for oj < 10
    # w_vmem   : (16, 12544)   bf16  VMEM copy of the weights
    # patch_ref: (256, 1792)   bf16  lane-concatenated kj-shifted pooled rows
    # w_sem    : DMA semaphore

    # Kick off the weight DMA immediately; hide it behind pool + im2col.
    w_copy = pltpu.make_async_copy(w_hbm_ref, w_vmem, w_sem)
    w_copy.start()

    # ---- AvgPool2d(3, s=1, p=2, count_include_pad=False): separable 3x3 sum ----
    # Horizontal pass over all 18 padded rows (2 adds), then vertical (2 adds).
    x0 = xpad_ref[:, 0:WPOOL, :].astype(jnp.float32)
    x1 = xpad_ref[:, 1:WPOOL + 1, :].astype(jnp.float32)
    x2 = xpad_ref[:, 2:WPOOL + 2, :].astype(jnp.float32)
    hsum = x0 + x1 + x2                                           # (18, 16, 256) f32
    psum = hsum[0:HPOOL] + hsum[1:HPOOL + 1] + hsum[2:HPOOL + 2]  # (16, 16, 256) f32

    inv = inv_ref[...][:, :, None]                                # (16, 16, 1) f32
    pooled2d = ((psum * inv)
                .reshape(NROW, CIN)                               # 16x16 -> 256 (aligned)
                .astype(jnp.bfloat16))                            # (256, 256) bf16

    # ---- im2col along lanes:
    #   patch_ref[i*16 + j, kj*256 + c] = pooled[i, j + kj, c]   (for j + kj < 16)
    # Rows that would wrap (only j >= 10, i.e. discarded output lanes) are
    # either wrapped pooled data or the pre-zeroed tail rows below.
    patch_ref[NROW - 16:NROW, CIN:KTAP] = jnp.zeros((16, KTAP - CIN), jnp.bfloat16)
    patch_ref[:, 0:CIN] = pooled2d
    for kj in range(1, KW):
        patch_ref[0:NROW - kj, kj * CIN:(kj + 1) * CIN] = patch_ref[kj:NROW, 0:CIN]

    # ---- Conv2d(256 -> 16, 7x7, valid): 7 accumulated NT matmuls ----
    w_copy.wait()                     # weights are needed only from here on
    nt_dims = (((1,), (1,)), ((), ()))
    acc = jnp.zeros((COUT, NLANE), jnp.float32)
    for ki in range(KH):
        patch = patch_ref[ki * WPOOL:ki * WPOOL + NLANE, :]       # (160, 1792) bf16
        w_ki = w_vmem[:, ki * KTAP:(ki + 1) * KTAP]               # (16, 1792)  bf16
        acc = acc + lax.dot_general(w_ki, patch, nt_dims,
                                    preferred_element_type=jnp.float32)

    v3 = acc + b_ref[...]                                         # (16, 160)
    v5 = jnp.clip(v3 + 3.0, 0.0, 6.0)
    o_ref[...] = v3 * v5 * (1.0 / 6.0)


def model_forward(x_nchw, w_oihw, bias):
    # NCHW -> HWC, bf16 cast (halves HBM traffic), zero-pad spatial dims by 2.
    x_hwc = jnp.transpose(x_nchw[0], (1, 2, 0)).astype(jnp.bfloat16)   # (14, 14, 256)
    xpad = jnp.pad(x_hwc, ((2, 2), (2, 2), (0, 0)))                    # (18, 18, 256)
    # Weights laid out lane-dense: [co, ki*1792 + kj*256 + c].
    w2 = jnp.transpose(w_oihw, (0, 2, 3, 1)).reshape(COUT, KH * KTAP)
    w2 = w2.astype(jnp.bfloat16)                                       # (16, 12544)
    b2 = bias.reshape(COUT, 1).astype(jnp.float32)

    # Static count_include_pad=False divisor, precomputed at trace time.
    idx = np.arange(HPOOL)
    cnt_r = np.minimum(idx, HIN - 1) - np.maximum(idx - 2, 0) + 1
    cnt_c = np.minimum(idx, WIN - 1) - np.maximum(idx - 2, 0) + 1
    inv_cnt = jnp.asarray(1.0 / np.outer(cnt_r, cnt_c), jnp.float32)   # (16, 16)

    vmem = pl.BlockSpec(memory_space=pltpu.MemorySpace.VMEM)
    hbm = pl.BlockSpec(memory_space=pl.ANY)        # weights stay in HBM, manual DMA
    out2d = pl.pallas_call(
        fused_kernel,
        out_shape=jax.ShapeDtypeStruct((COUT, NLANE), jnp.float32),    # (16, 160)
        in_specs=[vmem, vmem, hbm, vmem],
        out_specs=vmem,
        scratch_shapes=[
            pltpu.VMEM((COUT, KH * KTAP), jnp.bfloat16),   # w_vmem   (~392 KiB)
            pltpu.VMEM((NROW, KTAP), jnp.bfloat16),        # patch_ref (~896 KiB)
            pltpu.SemaphoreType.DMA,
        ],
        compiler_params=pltpu.CompilerParams(
            vmem_limit_bytes=32 * 1024 * 1024),
    )(xpad, inv_cnt, w2, b2)

    # (16, 160) -> (16, 10, 16) -> drop the invalid oj >= 10 lanes -> NCHW
    out = out2d.reshape(COUT, HOUT, WPOOL)[:, :, :WOUT]                # (16, 10, 10)
    return out[None]


def reference(x, w, b):
    # Pure-JAX f32 reference (NCHW), used only for verification.
    xp = jnp.pad(x, ((0, 0), (0, 0), (2, 2), (2, 2)))
    ones = jnp.pad(jnp.ones((1, 1, HIN, WIN), jnp.float32),
                   ((0, 0), (0, 0), (2, 2), (2, 2)))
    psum = sum(xp[:, :, i:i + HPOOL, j:j + WPOOL]
               for i in range(3) for j in range(3))
    cnt = sum(ones[:, :, i:i + HPOOL, j:j + WPOOL]
              for i in range(3) for j in range(3))
    pooled = psum / cnt
    v3 = lax.conv_general_dilated(
        pooled, w, (1, 1), 'VALID',
        dimension_numbers=('NCHW', 'OIHW', 'NCHW'),
        precision=lax.Precision.HIGHEST) + b[None, :, None, None]
    v5 = jnp.clip(v3 + 3.0, 0.0, 6.0)
    return v3 * v5 / 6.0


if __name__ == "__main__":
    key = jax.random.PRNGKey(0)
    kx, kw, kb = jax.random.split(key, 3)
    x = jax.random.normal(kx, (1, CIN, HIN, WIN), jnp.float32)
    w = jax.random.normal(kw, (COUT, CIN, KH, KW), jnp.float32) * 0.02
    b = jax.random.normal(kb, (COUT,), jnp.float32) * 0.1

    out = jax.block_until_ready(model_forward(x, w, b))
    ref = jax.block_until_ready(reference(x, w, b))

    assert out.shape == (1, COUT, HOUT, WOUT), out.shape
    # bf16 input / pooled / weights vs f32 HIGHEST reference -> loosened atol
    np.testing.assert_allclose(np.asarray(out), np.asarray(ref),
                               rtol=2e-2, atol=3e-2)
    print("KERNEL_OK")
</pallas_src>

<mosaic_0001>
module attributes {stable_mosaic.version = 11 : i64} {
  func.func @fused_kernel(%arg0: memref<18x18x256xbf16, #tpu.memory_space<vmem>>, %arg1: memref<16x16xf32, #tpu.memory_space<vmem>>, %arg2: memref<16x12544xbf16, #tpu.memory_space<any>>, %arg3: memref<16x1xf32, #tpu.memory_space<vmem>>, %arg4: memref<16x160xf32, #tpu.memory_space<vmem>>, %arg5: memref<16x12544xbf16, #tpu.memory_space<vmem>>, %arg6: memref<256x1792xbf16, #tpu.memory_space<vmem>>, %arg7: memref<!tpu.dma_semaphore, #tpu.memory_space<semaphore_mem>>) attributes {dimension_semantics = [], scalar_prefetch = 0 : i64, scratch_operands = 3 : i64, tpu.core_type = #tpu.core_type<tc>} {
    tpu.enqueue_dma source(%arg2 : memref<16x12544xbf16, #tpu.memory_space<any>>) target(%arg5 : memref<16x12544xbf16, #tpu.memory_space<vmem>>) target_semaphore(%arg7 : memref<!tpu.dma_semaphore, #tpu.memory_space<semaphore_mem>>)
    %c0 = arith.constant 0 : index
    %c0_0 = arith.constant 0 : index
    %c0_1 = arith.constant 0 : index
    %0 = vector.load %arg0[%c0, %c0_0, %c0_1] : memref<18x18x256xbf16, #tpu.memory_space<vmem>>, vector<18x16x256xbf16>
    %1 = arith.extf %0 : vector<18x16x256xbf16> to vector<18x16x256xf32>
    %c0_2 = arith.constant 0 : index
    %c1 = arith.constant 1 : index
    %c0_3 = arith.constant 0 : index
    %2 = vector.load %arg0[%c0_2, %c1, %c0_3] : memref<18x18x256xbf16, #tpu.memory_space<vmem>>, vector<18x16x256xbf16>
    %3 = arith.extf %2 : vector<18x16x256xbf16> to vector<18x16x256xf32>
    %c0_4 = arith.constant 0 : index
    %c2 = arith.constant 2 : index
    %c0_5 = arith.constant 0 : index
    %4 = vector.load %arg0[%c0_4, %c2, %c0_5] : memref<18x18x256xbf16, #tpu.memory_space<vmem>>, vector<18x16x256xbf16>
    %5 = arith.extf %4 : vector<18x16x256xbf16> to vector<18x16x256xf32>
    %6 = arith.addf %1, %3 : vector<18x16x256xf32>
    %7 = arith.addf %6, %5 : vector<18x16x256xf32>
    %8 = vector.extract_strided_slice %7 {offsets = [0, 0, 0], sizes = [16, 16, 256], strides = [1, 1, 1]} : vector<18x16x256xf32> to vector<16x16x256xf32>
    %9 = vector.extract_strided_slice %7 {offsets = [1, 0, 0], sizes = [16, 16, 256], strides = [1, 1, 1]} : vector<18x16x256xf32> to vector<16x16x256xf32>
    %10 = arith.addf %8, %9 : vector<16x16x256xf32>
    %11 = vector.extract_strided_slice %7 {offsets = [2, 0, 0], sizes = [16, 16, 256], strides = [1, 1, 1]} : vector<18x16x256xf32> to vector<16x16x256xf32>
    %12 = arith.addf %10, %11 : vector<16x16x256xf32>
    %c0_6 = arith.constant 0 : index
    %c0_7 = arith.constant 0 : index
    %13 = vector.load %arg1[%c0_6, %c0_7] : memref<16x16xf32, #tpu.memory_space<vmem>>, vector<16x16xf32>
    %14 = vector.shape_cast %13 : vector<16x16xf32> to vector<16x16x1xf32>
    %15 = vector.broadcast %14 : vector<16x16x1xf32> to vector<16x16x256xf32>
    %16 = arith.mulf %12, %15 : vector<16x16x256xf32>
    %17 = vector.shape_cast %16 : vector<16x16x256xf32> to vector<256x256xf32>
    %18 = arith.truncf %17 : vector<256x256xf32> to vector<256x256xbf16>
    %cst = arith.constant 0.000000e+00 : bf16
    %19 = vector.broadcast %cst : bf16 to vector<16x1536xbf16>
    %c240 = arith.constant 240 : index
    %c256 = arith.constant 256 : index
    %20 = vector.load %arg6[%c240, %c256] : memref<256x1792xbf16, #tpu.memory_space<vmem>>, vector<16x1536xbf16>
    tpu.vector_store %arg6[%c240, %c256], %19 {strides = array<i32>} : memref<256x1792xbf16, #tpu.memory_space<vmem>>, vector<16x1536xbf16>,
    %c0_8 = arith.constant 0 : index
    %c0_9 = arith.constant 0 : index
    %21 = vector.load %arg6[%c0_8, %c0_9] : memref<256x1792xbf16, #tpu.memory_space<vmem>>, vector<256x256xbf16>
    tpu.vector_store %arg6[%c0_8, %c0_9], %18 {strides = array<i32>} : memref<256x1792xbf16, #tpu.memory_space<vmem>>, vector<256x256xbf16>,
    %c1_10 = arith.constant 1 : index
    %c0_11 = arith.constant 0 : index
    %22 = vector.load %arg6[%c1_10, %c0_11] : memref<256x1792xbf16, #tpu.memory_space<vmem>>, vector<255x256xbf16>
    %c0_12 = arith.constant 0 : index
    %c256_13 = arith.constant 256 : index
    %23 = vector.load %arg6[%c0_12, %c256_13] : memref<256x1792xbf16, #tpu.memory_space<vmem>>, vector<255x256xbf16>
    tpu.vector_store %arg6[%c0_12, %c256_13], %22 {strides = array<i32>} : memref<256x1792xbf16, #tpu.memory_space<vmem>>, vector<255x256xbf16>,
    %c2_14 = arith.constant 2 : index
    %c0_15 = arith.constant 0 : index
    %24 = vector.load %arg6[%c2_14, %c0_15] : memref<256x1792xbf16, #tpu.memory_space<vmem>>, vector<254x256xbf16>
    %c0_16 = arith.constant 0 : index
    %c512 = arith.constant 512 : index
    %25 = vector.load %arg6[%c0_16, %c512] : memref<256x1792xbf16, #tpu.memory_space<vmem>>, vector<254x256xbf16>
    tpu.vector_store %arg6[%c0_16, %c512], %24 {strides = array<i32>} : memref<256x1792xbf16, #tpu.memory_space<vmem>>, vector<254x256xbf16>,
    %c3 = arith.constant 3 : index
    %c0_17 = arith.constant 0 : index
    %26 = vector.load %arg6[%c3, %c0_17] : memref<256x1792xbf16, #tpu.memory_space<vmem>>, vector<253x256xbf16>
    %c0_18 = arith.constant 0 : index
    %c768 = arith.constant 768 : index
    %27 = vector.load %arg6[%c0_18, %c768] : memref<256x1792xbf16, #tpu.memory_space<vmem>>, vector<253x256xbf16>
    tpu.vector_store %arg6[%c0_18, %c768], %26 {strides = array<i32>} : memref<256x1792xbf16, #tpu.memory_space<vmem>>, vector<253x256xbf16>,
    %c4 = arith.constant 4 : index
    %c0_19 = arith.constant 0 : index
    %28 = vector.load %arg6[%c4, %c0_19] : memref<256x1792xbf16, #tpu.memory_space<vmem>>, vector<252x256xbf16>
    %c0_20 = arith.constant 0 : index
    %c1024 = arith.constant 1024 : index
    %29 = vector.load %arg6[%c0_20, %c1024] : memref<256x1792xbf16, #tpu.memory_space<vmem>>, vector<252x256xbf16>
    tpu.vector_store %arg6[%c0_20, %c1024], %28 {strides = array<i32>} : memref<256x1792xbf16, #tpu.memory_space<vmem>>, vector<252x256xbf16>,
    %c5 = arith.constant 5 : index
    %c0_21 = arith.constant 0 : index
    %30 = vector.load %arg6[%c5, %c0_21] : memref<256x1792xbf16, #tpu.memory_space<vmem>>, vector<251x256xbf16>
    %c0_22 = arith.constant 0 : index
    %c1280 = arith.constant 1280 : index
    %31 = vector.load %arg6[%c0_22, %c1280] : memref<256x1792xbf16, #tpu.memory_space<vmem>>, vector<251x256xbf16>
    tpu.vector_store %arg6[%c0_22, %c1280], %30 {strides = array<i32>} : memref<256x1792xbf16, #tpu.memory_space<vmem>>, vector<251x256xbf16>,
    %c6 = arith.constant 6 : index
    %c0_23 = arith.constant 0 : index
    %32 = vector.load %arg6[%c6, %c0_23] : memref<256x1792xbf16, #tpu.memory_space<vmem>>, vector<250x256xbf16>
    %c0_24 = arith.constant 0 : index
    %c1536 = arith.constant 1536 : index
    %33 = vector.load %arg6[%c0_24, %c1536] : memref<256x1792xbf16, #tpu.memory_space<vmem>>, vector<250x256xbf16>
    tpu.vector_store %arg6[%c0_24, %c1536], %32 {strides = array<i32>} : memref<256x1792xbf16, #tpu.memory_space<vmem>>, vector<250x256xbf16>,
    tpu.wait_dma2 semaphore(%arg7 : memref<!tpu.dma_semaphore, #tpu.memory_space<semaphore_mem>>) src(%arg2 : memref<16x12544xbf16, #tpu.memory_space<any>>) dst(%arg5 : memref<16x12544xbf16, #tpu.memory_space<vmem>>)
    %cst_25 = arith.constant 0.000000e+00 : f32
    %34 = vector.broadcast %cst_25 : f32 to vector<16x160xf32>
    %c0_26 = arith.constant 0 : index
    %c0_27 = arith.constant 0 : index
    %35 = vector.load %arg6[%c0_26, %c0_27] : memref<256x1792xbf16, #tpu.memory_space<vmem>>, vector<160x1792xbf16>
    %c0_28 = arith.constant 0 : index
    %c0_29 = arith.constant 0 : index
    %36 = vector.load %arg5[%c0_28, %c0_29] : memref<16x12544xbf16, #tpu.memory_space<vmem>>, vector<16x1792xbf16>
    %cst_30 = arith.constant dense<0.000000e+00> : vector<16x160xf32>
    %37 = tpu.matmul %36, %35, %cst_30 {dimension_numbers = #tpu.dot_dimension_numbers<[1], [1], [0], [0], [0, 0, 1, 0], [], []>} : vector<16x1792xbf16>, vector<160x1792xbf16>, vector<16x160xf32> -> vector<16x160xf32>
    %38 = arith.addf %34, %37 : vector<16x160xf32>
    %c16 = arith.constant 16 : index
    %c0_31 = arith.constant 0 : index
    %39 = vector.load %arg6[%c16, %c0_31] : memref<256x1792xbf16, #tpu.memory_space<vmem>>, vector<160x1792xbf16>
    %c0_32 = arith.constant 0 : index
    %c1792 = arith.constant 1792 : index
    %40 = vector.load %arg5[%c0_32, %c1792] : memref<16x12544xbf16, #tpu.memory_space<vmem>>, vector<16x1792xbf16>
    %cst_33 = arith.constant dense<0.000000e+00> : vector<16x160xf32>
    %41 = tpu.matmul %40, %39, %cst_33 {dimension_numbers = #tpu.dot_dimension_numbers<[1], [1], [0], [0], [0, 0, 1, 0], [], []>} : vector<16x1792xbf16>, vector<160x1792xbf16>, vector<16x160xf32> -> vector<16x160xf32>
    %42 = arith.addf %38, %41 : vector<16x160xf32>
    %c32 = arith.constant 32 : index
    %c0_34 = arith.constant 0 : index
    %43 = vector.load %arg6[%c32, %c0_34] : memref<256x1792xbf16, #tpu.memory_space<vmem>>, vector<160x1792xbf16>
    %c0_35 = arith.constant 0 : index
    %c3584 = arith.constant 3584 : index
    %44 = vector.load %arg5[%c0_35, %c3584] : memref<16x12544xbf16, #tpu.memory_space<vmem>>, vector<16x1792xbf16>
    %cst_36 = arith.constant dense<0.000000e+00> : vector<16x160xf32>
    %45 = tpu.matmul %44, %43, %cst_36 {dimension_numbers = #tpu.dot_dimension_numbers<[1], [1], [0], [0], [0, 0, 1, 0], [], []>} : vector<16x1792xbf16>, vector<160x1792xbf16>, vector<16x160xf32> -> vector<16x160xf32>
    %46 = arith.addf %42, %45 : vector<16x160xf32>
    %c48 = arith.constant 48 : index
    %c0_37 = arith.constant 0 : index
    %47 = vector.load %arg6[%c48, %c0_37] : memref<256x1792xbf16, #tpu.memory_space<vmem>>, vector<160x1792xbf16>
    %c0_38 = arith.constant 0 : index
    %c5376 = arith.constant 5376 : index
    %48 = vector.load %arg5[%c0_38, %c5376] : memref<16x12544xbf16, #tpu.memory_space<vmem>>, vector<16x1792xbf16>
    %cst_39 = arith.constant dense<0.000000e+00> : vector<16x160xf32>
    %49 = tpu.matmul %48, %47, %cst_39 {dimension_numbers = #tpu.dot_dimension_numbers<[1], [1], [0], [0], [0, 0, 1, 0], [], []>} : vector<16x1792xbf16>, vector<160x1792xbf16>, vector<16x160xf32> -> vector<16x160xf32>
    %50 = arith.addf %46, %49 : vector<16x160xf32>
    %c64 = arith.constant 64 : index
    %c0_40 = arith.constant 0 : index
    %51 = vector.load %arg6[%c64, %c0_40] : memref<256x1792xbf16, #tpu.memory_space<vmem>>, vector<160x1792xbf16>
    %c0_41 = arith.constant 0 : index
    %c7168 = arith.constant 7168 : index
    %52 = vector.load %arg5[%c0_41, %c7168] : memref<16x12544xbf16, #tpu.memory_space<vmem>>, vector<16x1792xbf16>
    %cst_42 = arith.constant dense<0.000000e+00> : vector<16x160xf32>
    %53 = tpu.matmul %52, %51, %cst_42 {dimension_numbers = #tpu.dot_dimension_numbers<[1], [1], [0], [0], [0, 0, 1, 0], [], []>} : vector<16x1792xbf16>, vector<160x1792xbf16>, vector<16x160xf32> -> vector<16x160xf32>
    %54 = arith.addf %50, %53 : vector<16x160xf32>
    %c80 = arith.constant 80 : index
    %c0_43 = arith.constant 0 : index
    %55 = vector.load %arg6[%c80, %c0_43] : memref<256x1792xbf16, #tpu.memory_space<vmem>>, vector<160x1792xbf16>
    %c0_44 = arith.constant 0 : index
    %c8960 = arith.constant 8960 : index
    %56 = vector.load %arg5[%c0_44, %c8960] : memref<16x12544xbf16, #tpu.memory_space<vmem>>, vector<16x1792xbf16>
    %cst_45 = arith.constant dense<0.000000e+00> : vector<16x160xf32>
    %57 = tpu.matmul %56, %55, %cst_45 {dimension_numbers = #tpu.dot_dimension_numbers<[1], [1], [0], [0], [0, 0, 1, 0], [], []>} : vector<16x1792xbf16>, vector<160x1792xbf16>, vector<16x160xf32> -> vector<16x160xf32>
    %58 = arith.addf %54, %57 : vector<16x160xf32>
    %c96 = arith.constant 96 : index
    %c0_46 = arith.constant 0 : index
    %59 = vector.load %arg6[%c96, %c0_46] : memref<256x1792xbf16, #tpu.memory_space<vmem>>, vector<160x1792xbf16>
    %c0_47 = arith.constant 0 : index
    %c10752 = arith.constant 10752 : index
    %60 = vector.load %arg5[%c0_47, %c10752] : memref<16x12544xbf16, #tpu.memory_space<vmem>>, vector<16x1792xbf16>
    %cst_48 = arith.constant dense<0.000000e+00> : vector<16x160xf32>
    %61 = tpu.matmul %60, %59, %cst_48 {dimension_numbers = #tpu.dot_dimension_numbers<[1], [1], [0], [0], [0, 0, 1, 0], [], []>} : vector<16x1792xbf16>, vector<160x1792xbf16>, vector<16x160xf32> -> vector<16x160xf32>
    %62 = arith.addf %58, %61 : vector<16x160xf32>
    %c0_49 = arith.constant 0 : index
    %c0_50 = arith.constant 0 : index
    %63 = vector.load %arg3[%c0_49, %c0_50] : memref<16x1xf32, #tpu.memory_space<vmem>>, vector<16x1xf32>
    %64 = vector.broadcast %63 : vector<16x1xf32> to vector<16x160xf32>
    %65 = arith.addf %62, %64 : vector<16x160xf32>
    %cst_51 = arith.constant 3.000000e+00 : f32
    %66 = vector.broadcast %cst_51 : f32 to vector<16x160xf32>
    %67 = arith.addf %65, %66 : vector<16x160xf32>
    %cst_52 = arith.constant 0.000000e+00 : f32
    %cst_53 = arith.constant 6.000000e+00 : f32
    %68 = vector.broadcast %cst_52 : f32 to vector<16x160xf32>
    %69 = arith.maximumf %68, %67 : vector<16x160xf32>
    %70 = vector.broadcast %cst_53 : f32 to vector<16x160xf32>
    %71 = arith.minimumf %70, %69 : vector<16x160xf32>
    %72 = arith.mulf %65, %71 : vector<16x160xf32>
    %cst_54 = arith.constant 0.166666672 : f32
    %73 = vector.broadcast %cst_54 : f32 to vector<16x160xf32>
    %74 = arith.mulf %72, %73 : vector<16x160xf32>
    %c0_55 = arith.constant 0 : index
    %c0_56 = arith.constant 0 : index
    %75 = vector.load %arg4[%c0_55, %c0_56] : memref<16x160xf32, #tpu.memory_space<vmem>>, vector<16x160xf32>
    tpu.vector_store %arg4[%c0_55, %c0_56], %74 {strides = array<i32>} : memref<16x160xf32, #tpu.memory_space<vmem>>, vector<16x160xf32>,
    return
  }
}

</mosaic_0001>

<llo_original>
// kernel: tpu_custom_call.1
$region0: #{tpu_custom_call.1}
  #allocation0 [shape = 'u32[]', space=smem, size = 0x4, offset = 0x4, fixed_abs, tag = 'smem constant byte address 0x4 - core index']
  #allocation1 [shape = 'u32[144,128]{1,0:T(1,128)}', space=vmem, size = 0x12000, scoped, tag = 'internal scratch']
  #allocation2 [shape = 'bf16[16,12544]{1,0:T(16,128)(2,1)}', space=vmem, size = 0x62000, scoped, tag = 'scratch operand']
  #allocation3 [shape = 'bf16[256,1792]{1,0:T(16,128)(2,1)}', space=vmem, size = 0xe0000, scoped, tag = 'scratch operand']
  #allocation4 [shape = 's32[1]{0}', space=sflag, size = 0x4, scoped, tag = 'scratch operand']
  #allocation9 [shape = 's32[]', space=sflag, size = 0x4, offset = 0, fixed_abs, tag = 'sflag constant byte address 0x0 - dummy sync flag']
  %s0 = inlined_call_operand.hbm [shape: bf16[18,18,256], index: 0, kind: input, shape index: {}]
  %s1 = inlined_call_operand.vmem [shape: f32[16,16], index: 1, kind: input, shape index: {}]
  %s2 = inlined_call_operand.hbm [shape: bf16[16,12544], index: 2, kind: input, shape index: {}]
  %s3 = inlined_call_operand.vmem [shape: f32[16,1], index: 3, kind: input, shape index: {}]
  %s4 = inlined_call_operand.hbm [shape: f32[16,160], index: 4, kind: output, shape index: {}]
  %s5 = sld [smem:[#allocation0]]
  $region26: #{tpu_custom_call.1} parent=0
    _
  %s7 = ssub.s32 1, %s5
  %s8 = scalar_select 0, %s7, %s5
  $region1: #{tpu_custom_call.1} parent=0
    #allocation5 [shape = 'u8[221184]{0}', space=vmem, size = 0x36000, scoped, tag = 'input window, operand 0, single buffered']
    #allocation6 [shape = 's32[1]{0}', space=sflag, size = 0x4, scoped, tag = 'scoped memory for tpu_custom_call.1']
    #allocation7 [shape = 's32[1]{0}', space=sflag, size = 0x4, scoped, tag = 'scoped memory for tpu_custom_call.1']
    #allocation8 [shape = 'u8[16384]{0}', space=vmem, size = 0x4000, scoped, tag = 'output window, operand 0, single buffered']
    #allocation10 [shape = 'u32[6]{0}', space=smem, size = 0x18, scoped, tag = 'DMA stride descriptor']
    %9 = vsyncpa [#allocation6], 0
    %10 = vsyncpa [#allocation7], 0
    // Predicated region
    $region2: #{tpu_custom_call.1} parent=1 // pred_check
      _
    $region3: #{tpu_custom_call.1} parent=1 // pred_check_branch
      %12 = sbr.rel (0) target = $region5
    $region4: #{tpu_custom_call.1} parent=1 // pred_region
      %s14 = ssub.s32 6912, 6912
      %15 = vsyncadd [#allocation6], %s14
      %s16 = sshll.u32 [#allocation5], 4
      %s17 = int_to_ptr.vmem [resolvable:$true] %s16
      %22 = dma.hbm_to_vmem [thread:$0]  %s0, 6912, %s17, [#allocation6], 128, 128, 8
    $region5: #{tpu_custom_call.1} parent=1 // pred_fallthru
      _
    // Predicated region
    $region6: #{tpu_custom_call.1} parent=1 // pred_check
      _
    $region7: #{tpu_custom_call.1} parent=1 // pred_check_branch
      %24 = sbr.rel (0) target = $region9
    $region8: #{tpu_custom_call.1} parent=1 // pred_region
      _
    $region9: #{tpu_custom_call.1} parent=1 // pred_fallthru
      _
    // Predicated region
    $region10: #{tpu_custom_call.1} parent=1 // pred_check
      _
    $region11: #{tpu_custom_call.1} parent=1 // pred_check_branch
      %26 = sbr.rel (0) target = $region13
    $region12: #{tpu_custom_call.1} parent=1 // pred_region
      _
    $region13: #{tpu_custom_call.1} parent=1 // pred_fallthru
      _
    // Predicated region
    $region14: #{tpu_custom_call.1} parent=1 // pred_check
      _
    $region15: #{tpu_custom_call.1} parent=1 // pred_check_branch
      %28 = sbr.rel (0) target = $region17
    $region16: #{tpu_custom_call.1} parent=1 // pred_region
      %29 = dma.done [#allocation6], 6912
    $region17: #{tpu_custom_call.1} parent=1 // pred_fallthru
      _
    %s32 = sshll.u32 1, 14
    %s33 = sxor.u32 4294967295, %s32
    %s35 = sld [smem:[#allocation0]]
    %s36 = sadd.s32 2, %s35
    %s38 = sshll.u32 7, 26
    %s39 = sxor.u32 4294967295, %s38
    %s40 = sand.u32 0, %s39
    %s41 = sshll.u32 %s36, 26
    %s42 = sor.u32 %s40, %s41
    %s43 = sshll.u32 [#allocation2], 4
    %s44 = int_to_ptr.vmem [resolvable:$true] %s43
    %47 = sst [smem:[#allocation10]] 64
    %s48 = scalar_lea.smem [#allocation10], 1
    %49 = sst [smem:[%s48]] 128
    %s50 = scalar_lea.smem [#allocation10], 2
    %51 = sst [smem:[%s50]] 2
    %s52 = scalar_lea.smem [#allocation10], 3
    %53 = sst [smem:[%s52]] 6272
    %s54 = scalar_lea.smem [#allocation10], 4
    %55 = sst [smem:[%s54]] 64
    %s56 = scalar_lea.smem [#allocation10], 5
    %57 = sst [smem:[%s56]] 4
    %59 = dma.general %s2, 12544, %s44, [#allocation4], [#allocation9], [#allocation10], %s42, 0
    %v60 = vld [vmem:[#allocation5] sm:$0xff]
    %v61 = vld [vmem:[#allocation5 + $0x8] sm:$0xff]
    %v62 = vld [vmem:[#allocation5 + $0x18] sm:$0xff]
    %v63 = vld [vmem:[#allocation5 + $0x20] sm:$0xff]
    %v64 = vld [vmem:[#allocation5 + $0x30] sm:$0xff]
    %v65 = vld [vmem:[#allocation5 + $0x38] sm:$0xff]
    %v66 = vld [vmem:[#allocation5 + $0x48] sm:$0xff]
    %v67 = vld [vmem:[#allocation5 + $0x50] sm:$0xff]
    %v68 = vld [vmem:[#allocation5 + $0x60] sm:$0xff]
    %v69 = vld [vmem:[#allocation5 + $0x68] sm:$0xff]
    %v70 = vld [vmem:[#allocation5 + $0x78] sm:$0xff]
    %v71 = vld [vmem:[#allocation5 + $0x80] sm:$0xff]
    %v72 = vld [vmem:[#allocation5 + $0x90] sm:$0xff]
    %v73 = vld [vmem:[#allocation5 + $0x98] sm:$0xff]
    %v74 = vld [vmem:[#allocation5 + $0xa8] sm:$0xff]
    %v75 = vld [vmem:[#allocation5 + $0xb0] sm:$0xff]
    %v76 = vld [vmem:[#allocation5 + $0xc0] sm:$0xff]
    %v77 = vld [vmem:[#allocation5 + $0xc8] sm:$0xff]
    %v78 = vld [vmem:[#allocation5 + $0xd8] sm:$0xff]
    %v79 = vld [vmem:[#allocation5 + $0xe0] sm:$0xff]
    %v80 = vld [vmem:[#allocation5 + $0xf0] sm:$0xff]
    %v81 = vld [vmem:[#allocation5 + $0xf8] sm:$0xff]
    %v82 = vld [vmem:[#allocation5 + $0x108] sm:$0xff]
    %v83 = vld [vmem:[#allocation5 + $0x110] sm:$0xff]
    %v84 = vld [vmem:[#allocation5 + $0x120] sm:$0xff]
    %v85 = vld [vmem:[#allocation5 + $0x128] sm:$0xff]
    %v86 = vld [vmem:[#allocation5 + $0x138] sm:$0xff]
    %v87 = vld [vmem:[#allocation5 + $0x140] sm:$0xff]
    %v88 = vld [vmem:[#allocation5 + $0x150] sm:$0xff]
    %v89 = vld [vmem:[#allocation5 + $0x158] sm:$0xff]
    %v90 = vld [vmem:[#allocation5 + $0x168] sm:$0xff]
    %v91 = vld [vmem:[#allocation5 + $0x170] sm:$0xff]
    %v92 = vld [vmem:[#allocation5 + $0x180] sm:$0xff]
    %v93 = vld [vmem:[#allocation5 + $0x188] sm:$0xff]
    %v94 = vld [vmem:[#allocation5 + $0x198] sm:$0xff]
    %v95 = vld [vmem:[#allocation5 + $0x1a0] sm:$0xff]
    %v96 = vunpack.c.l.bf16 %v60
    %v97 = vunpack.c.h.bf16 %v60
    %v98 = vunpack.c.l.bf16 %v61
    %v99 = vunpack.c.h.bf16 %v61
    %v100 = vunpack.c.l.bf16 %v62
    %v101 = vunpack.c.h.bf16 %v62
    %v102 = vunpack.c.l.bf16 %v63
    %v103 = vunpack.c.h.bf16 %v63
    %v104 = vunpack.c.l.bf16 %v64
    %v105 = vunpack.c.h.bf16 %v64
    %v106 = vunpack.c.l.bf16 %v65
    %v107 = vunpack.c.h.bf16 %v65
    %v108 = vunpack.c.l.bf16 %v66
    %v109 = vunpack.c.h.bf16 %v66
    %v110 = vunpack.c.l.bf16 %v67
    %v111 = vunpack.c.h.bf16 %v67
    %v112 = vunpack.c.l.bf16 %v68
    %v113 = vunpack.c.h.bf16 %v68
    %v114 = vunpack.c.l.bf16 %v69
    %v115 = vunpack.c.h.bf16 %v69
    %v116 = vunpack.c.l.bf16 %v70
    %v117 = vunpack.c.h.bf16 %v70
    %v118 = vunpack.c.l.bf16 %v71
    %v119 = vunpack.c.h.bf16 %v71
    %v120 = vunpack.c.l.bf16 %v72
    %v121 = vunpack.c.h.bf16 %v72
    %v122 = vunpack.c.l.bf16 %v73
    %v123 = vunpack.c.h.bf16 %v73
    %v124 = vunpack.c.l.bf16 %v74
    %v125 = vunpack.c.h.bf16 %v74
    %v126 = vunpack.c.l.bf16 %v75
    %v127 = vunpack.c.h.bf16 %v75
    %v128 = vunpack.c.l.bf16 %v76
    %v129 = vunpack.c.h.bf16 %v76
    %v130 = vunpack.c.l.bf16 %v77
    %v131 = vunpack.c.h.bf16 %v77
    %v132 = vunpack.c.l.bf16 %v78
    %v133 = vunpack.c.h.bf16 %v78
    %v134 = vunpack.c.l.bf16 %v79
    %v135 = vunpack.c.h.bf16 %v79
    %v136 = vunpack.c.l.bf16 %v80
    %v137 = vunpack.c.h.bf16 %v80
    %v138 = vunpack.c.l.bf16 %v81
    %v139 = vunpack.c.h.bf16 %v81
    %v140 = vunpack.c.l.bf16 %v82
    %v141 = vunpack.c.h.bf16 %v82
    %v142 = vunpack.c.l.bf16 %v83
    %v143 = vunpack.c.h.bf16 %v83
    %v144 = vunpack.c.l.bf16 %v84
    %v145 = vunpack.c.h.bf16 %v84
    %v146 = vunpack.c.l.bf16 %v85
    %v147 = vunpack.c.h.bf16 %v85
    %v148 = vunpack.c.l.bf16 %v86
    %v149 = vunpack.c.h.bf16 %v86
    %v150 = vunpack.c.l.bf16 %v87
    %v151 = vunpack.c.h.bf16 %v87
    %v152 = vunpack.c.l.bf16 %v88
    %v153 = vunpack.c.h.bf16 %v88
    %v154 = vunpack.c.l.bf16 %v89
    %v155 = vunpack.c.h.bf16 %v89
    %v156 = vunpack.c.l.bf16 %v90
    %v157 = vunpack.c.h.bf16 %v90
    %v158 = vunpack.c.l.bf16 %v91
    %v159 = vunpack.c.h.bf16 %v91
    %v160 = vunpack.c.l.bf16 %v92
    %v161 = vunpack.c.h.bf16 %v92
    %v162 = vunpack.c.l.bf16 %v93
    %v163 = vunpack.c.h.bf16 %v93
    %v164 = vunpack.c.l.bf16 %v94
    %v165 = vunpack.c.h.bf16 %v94
    %v166 = vunpack.c.l.bf16 %v95
    %v167 = vunpack.c.h.bf16 %v95
    %v168 = vld [vmem:[#allocation5 + $0x10] sm:$0x11]
    %v169 = vld [vmem:[#allocation5 + $0x28] sm:$0x11]
    %v170 = vld [vmem:[#allocation5 + $0x40] sm:$0x11]
    %v171 = vld [vmem:[#allocation5 + $0x58] sm:$0x11]
    %v172 = vld [vmem:[#allocation5 + $0x70] sm:$0x11]
    %v173 = vld [vmem:[#allocation5 + $0x88] sm:$0x11]
    %v174 = vld [vmem:[#allocation5 + $0xa0] sm:$0x11]
    %v175 = vld [vmem:[#allocation5 + $0xb8] sm:$0x11]
    %v176 = vld [vmem:[#allocation5 + $0xd0] sm:$0x11]
    %v177 = vld [vmem:[#allocation5 + $0xe8] sm:$0x11]
    %v178 = vld [vmem:[#allocation5 + $0x100] sm:$0x11]
    %v179 = vld [vmem:[#allocation5 + $0x118] sm:$0x11]
    %v180 = vld [vmem:[#allocation5 + $0x130] sm:$0x11]
    %v181 = vld [vmem:[#allocation5 + $0x148] sm:$0x11]
    %v182 = vld [vmem:[#allocation5 + $0x160] sm:$0x11]
    %v183 = vld [vmem:[#allocation5 + $0x178] sm:$0x11]
    %v184 = vld [vmem:[#allocation5 + $0x190] sm:$0x11]
    %v185 = vld [vmem:[#allocation5 + $0x1a8] sm:$0x11]
    %v186 = vunpack.c.l.bf16 %v168
    %v187 = vunpack.c.h.bf16 %v168
    %v188 = vunpack.c.l.bf16 %v169
    %v189 = vunpack.c.h.bf16 %v169
    %v190 = vunpack.c.l.bf16 %v170
    %v191 = vunpack.c.h.bf16 %v170
    %v192 = vunpack.c.l.bf16 %v171
    %v193 = vunpack.c.h.bf16 %v171
    %v194 = vunpack.c.l.bf16 %v172
    %v195 = vunpack.c.h.bf16 %v172
    %v196 = vunpack.c.l.bf16 %v173
    %v197 = vunpack.c.h.bf16 %v173
    %v198 = vunpack.c.l.bf16 %v174
    %v199 = vunpack.c.h.bf16 %v174
    %v200 = vunpack.c.l.bf16 %v175
    %v201 = vunpack.c.h.bf16 %v175
    %v202 = vunpack.c.l.bf16 %v176
    %v203 = vunpack.c.h.bf16 %v176
    %v204 = vunpack.c.l.bf16 %v177
    %v205 = vunpack.c.h.bf16 %v177
    %v206 = vunpack.c.l.bf16 %v178
    %v207 = vunpack.c.h.bf16 %v178
    %v208 = vunpack.c.l.bf16 %v179
    %v209 = vunpack.c.h.bf16 %v179
    %v210 = vunpack.c.l.bf16 %v180
    %v211 = vunpack.c.h.bf16 %v180
    %v212 = vunpack.c.l.bf16 %v181
    %v213 = vunpack.c.h.bf16 %v181
    %v214 = vunpack.c.l.bf16 %v182
    %v215 = vunpack.c.h.bf16 %v182
    %v216 = vunpack.c.l.bf16 %v183
    %v217 = vunpack.c.h.bf16 %v183
    %v218 = vunpack.c.l.bf16 %v184
    %v219 = vunpack.c.h.bf16 %v184
    %v220 = vunpack.c.l.bf16 %v185
    %v221 = vunpack.c.h.bf16 %v185
    %v222 = vld [vmem:[#allocation5] sm:$0xee]
    %v223 = vld [vmem:[#allocation5 + $0x18] sm:$0xee]
    %v224 = vld [vmem:[#allocation5 + $0x30] sm:$0xee]
    %v225 = vld [vmem:[#allocation5 + $0x48] sm:$0xee]
    %v226 = vld [vmem:[#allocation5 + $0x60] sm:$0xee]
    %v227 = vld [vmem:[#allocation5 + $0x78] sm:$0xee]
    %v228 = vld [vmem:[#allocation5 + $0x90] sm:$0xee]
    %v229 = vld [vmem:[#allocation5 + $0xa8] sm:$0xee]
    %v230 = vld [vmem:[#allocation5 + $0xc0] sm:$0xee]
    %v231 = vld [vmem:[#allocation5 + $0xd8] sm:$0xee]
    %v232 = vld [vmem:[#allocation5 + $0xf0] sm:$0xee]
    %v233 = vld [vmem:[#allocation5 + $0x108] sm:$0xee]
    %v234 = vld [vmem:[#allocation5 + $0x120] sm:$0xee]
    %v235 = vld [vmem:[#allocation5 + $0x138] sm:$0xee]
    %v236 = vld [vmem:[#allocation5 + $0x150] sm:$0xee]
    %v237 = vld [vmem:[#allocation5 + $0x168] sm:$0xee]
    %v238 = vld [vmem:[#allocation5 + $0x180] sm:$0xee]
    %v239 = vld [vmem:[#allocation5 + $0x198] sm:$0xee]
    %v240 = vunpack.c.l.bf16 %v222
    %v241 = vunpack.c.h.bf16 %v222
    %v242 = vunpack.c.l.bf16 %v223
    %v243 = vunpack.c.h.bf16 %v223
    %v244 = vunpack.c.l.bf16 %v224
    %v245 = vunpack.c.h.bf16 %v224
    %v246 = vunpack.c.l.bf16 %v225
    %v247 = vunpack.c.h.bf16 %v225
    %v248 = vunpack.c.l.bf16 %v226
    %v249 = vunpack.c.h.bf16 %v226
    %v250 = vunpack.c.l.bf16 %v227
    %v251 = vunpack.c.h.bf16 %v227
    %v252 = vunpack.c.l.bf16 %v228
    %v253 = vunpack.c.h.bf16 %v228
    %v254 = vunpack.c.l.bf16 %v229
    %v255 = vunpack.c.h.bf16 %v229
    %v256 = vunpack.c.l.bf16 %v230
    %v257 = vunpack.c.h.bf16 %v230
    %v258 = vunpack.c.l.bf16 %v231
    %v259 = vunpack.c.h.bf16 %v231
    %v260 = vunpack.c.l.bf16 %v232
    %v261 = vunpack.c.h.bf16 %v232
    %v262 = vunpack.c.l.bf16 %v233
    %v263 = vunpack.c.h.bf16 %v233
    %v264 = vunpack.c.l.bf16 %v234
    %v265 = vunpack.c.h.bf16 %v234
    %v266 = vunpack.c.l.bf16 %v235
    %v267 = vunpack.c.h.bf16 %v235
    %v268 = vunpack.c.l.bf16 %v236
    %v269 = vunpack.c.h.bf16 %v236
    %v270 = vunpack.c.l.bf16 %v237
    %v271 = vunpack.c.h.bf16 %v237
    %v272 = vunpack.c.l.bf16 %v238
    %v273 = vunpack.c.h.bf16 %v238
    %v274 = vunpack.c.l.bf16 %v239
    %v275 = vunpack.c.h.bf16 %v239
    %vm384 = vcmask 1046528
    %v385 = vrot.slane %v96, 1
    %v386 = vrot.slane %v98, 1
    %v387 = vsel %vm384, %v385, %v386
    %v388 = vrot.slane %v97, 1
    %v389 = vrot.slane %v99, 1
    %v390 = vsel %vm384, %v388, %v389
    %v391 = vrot.slane %v186, 1
    %v392 = vsel %vm384, %v386, %v391
    %v393 = vrot.slane %v187, 1
    %v394 = vsel %vm384, %v389, %v393
    %v395 = vrot.slane %v100, 1
    %v396 = vrot.slane %v102, 1
    %v397 = vsel %vm384, %v395, %v396
    %v398 = vrot.slane %v101, 1
    %v399 = vrot.slane %v103, 1
    %v400 = vsel %vm384, %v398, %v399
    %v401 = vrot.slane %v188, 1
    %v402 = vsel %vm384, %v396, %v401
    %v403 = vrot.slane %v189, 1
    %v404 = vsel %vm384, %v399, %v403
    %v405 = vrot.slane %v104, 1
    %v406 = vrot.slane %v106, 1
    %v407 = vsel %vm384, %v405, %v406
    %v408 = vrot.slane %v105, 1
    %v409 = vrot.slane %v107, 1
    %v410 = vsel %vm384, %v408, %v409
    %v411 = vrot.slane %v190, 1
    %v412 = vsel %vm384, %v406, %v411
    %v413 = vrot.slane %v191, 1
    %v414 = vsel %vm384, %v409, %v413
    %v415 = vrot.slane %v108, 1
    %v416 = vrot.slane %v110, 1
    %v417 = vsel %vm384, %v415, %v416
    %v418 = vrot.slane %v109, 1
    %v419 = vrot.slane %v111, 1
    %v420 = vsel %vm384, %v418, %v419
    %v421 = vrot.slane %v192, 1
    %v422 = vsel %vm384, %v416, %v421
    %v423 = vrot.slane %v193, 1
    %v424 = vsel %vm384, %v419, %v423
    %v425 = vrot.slane %v112, 1
    %v426 = vrot.slane %v114, 1
    %v427 = vsel %vm384, %v425, %v426
    %v428 = vrot.slane %v113, 1
    %v429 = vrot.slane %v115, 1
    %v430 = vsel %vm384, %v428, %v429
    %v431 = vrot.slane %v194, 1
    %v432 = vsel %vm384, %v426, %v431
    %v433 = vrot.slane %v195, 1
    %v434 = vsel %vm384, %v429, %v433
    %v435 = vrot.slane %v116, 1
    %v436 = vrot.slane %v118, 1
    %v437 = vsel %vm384, %v435, %v436
    %v438 = vrot.slane %v117, 1
    %v439 = vrot.slane %v119, 1
    %v440 = vsel %vm384, %v438, %v439
    %v441 = vrot.slane %v196, 1
    %v442 = vsel %vm384, %v436, %v441
    %v443 = vrot.slane %v197, 1
    %v444 = vsel %vm384, %v439, %v443
    %v445 = vrot.slane %v120, 1
    %v446 = vrot.slane %v122, 1
    %v447 = vsel %vm384, %v445, %v446
    %v448 = vrot.slane %v121, 1
    %v449 = vrot.slane %v123, 1
    %v450 = vsel %vm384, %v448, %v449
    %v451 = vrot.slane %v198, 1
    %v452 = vsel %vm384, %v446, %v451
    %v453 = vrot.slane %v199, 1
    %v454 = vsel %vm384, %v449, %v453
    %v455 = vrot.slane %v124, 1
    %v456 = vrot.slane %v126, 1
    %v457 = vsel %vm384, %v455, %v456
    %v458 = vrot.slane %v125, 1
    %v459 = vrot.slane %v127, 1
    %v460 = vsel %vm384, %v458, %v459
    %v461 = vrot.slane %v200, 1
    %v462 = vsel %vm384, %v456, %v461
    %v463 = vrot.slane %v201, 1
    %v464 = vsel %vm384, %v459, %v463
    %v465 = vrot.slane %v128, 1
    %v466 = vrot.slane %v130, 1
    %v467 = vsel %vm384, %v465, %v466
    %v468 = vrot.slane %v129, 1
    %v469 = vrot.slane %v131, 1
    %v470 = vsel %vm384, %v468, %v469
    %v471 = vrot.slane %v202, 1
    %v472 = vsel %vm384, %v466, %v471
    %v473 = vrot.slane %v203, 1
    %v474 = vsel %vm384, %v469, %v473
    %v475 = vrot.slane %v132, 1
    %v476 = vrot.slane %v134, 1
    %v477 = vsel %vm384, %v475, %v476
    %v478 = vrot.slane %v133, 1
    %v479 = vrot.slane %v135, 1
    %v480 = vsel %vm384, %v478, %v479
    %v481 = vrot.slane %v204, 1
    %v482 = vsel %vm384, %v476, %v481
    %v483 = vrot.slane %v205, 1
    %v484 = vsel %vm384, %v479, %v483
    %v485 = vrot.slane %v136, 1
    %v486 = vrot.slane %v138, 1
    %v487 = vsel %vm384, %v485, %v486
    %v488 = vrot.slane %v137, 1
    %v489 = vrot.slane %v139, 1
    %v490 = vsel %vm384, %v488, %v489
    %v491 = vrot.slane %v206, 1
    %v492 = vsel %vm384, %v486, %v491
    %v493 = vrot.slane %v207, 1
    %v494 = vsel %vm384, %v489, %v493
    %v495 = vrot.slane %v140, 1
    %v496 = vrot.slane %v142, 1
    %v497 = vsel %vm384, %v495, %v496
    %v498 = vrot.slane %v141, 1
    %v499 = vrot.slane %v143, 1
    %v500 = vsel %vm384, %v498, %v499
    %v501 = vrot.slane %v208, 1
    %v502 = vsel %vm384, %v496, %v501
    %v503 = vrot.slane %v209, 1
    %v504 = vsel %vm384, %v499, %v503
    %v505 = vrot.slane %v144, 1
    %v506 = vrot.slane %v146, 1
    %v507 = vsel %vm384, %v505, %v506
    %v508 = vrot.slane %v145, 1
    %v509 = vrot.slane %v147, 1
    %v510 = vsel %vm384, %v508, %v509
    %v511 = vrot.slane %v210, 1
    %v512 = vsel %vm384, %v506, %v511
    %v513 = vrot.slane %v211, 1
    %v514 = vsel %vm384, %v509, %v513
    %v515 = vrot.slane %v148, 1
    %v516 = vrot.slane %v150, 1
    %v517 = vsel %vm384, %v515, %v516
    %v518 = vrot.slane %v149, 1
    %v519 = vrot.slane %v151, 1
    %v520 = vsel %vm384, %v518, %v519
    %v521 = vrot.slane %v212, 1
    %v522 = vsel %vm384, %v516, %v521
    %v523 = vrot.slane %v213, 1
    %v524 = vsel %vm384, %v519, %v523
    %v525 = vrot.slane %v152, 1
    %v526 = vrot.slane %v154, 1
    %v527 = vsel %vm384, %v525, %v526
    %v528 = vrot.slane %v153, 1
    %v529 = vrot.slane %v155, 1
    %v530 = vsel %vm384, %v528, %v529
    %v531 = vrot.slane %v214, 1
    %v532 = vsel %vm384, %v526, %v531
    %v533 = vrot.slane %v215, 1
    %v534 = vsel %vm384, %v529, %v533
    %v535 = vrot.slane %v156, 1
    %v536 = vrot.slane %v158, 1
    %v537 = vsel %vm384, %v535, %v536
    %v538 = vrot.slane %v157, 1
    %v539 = vrot.slane %v159, 1
    %v540 = vsel %vm384, %v538, %v539
    %v541 = vrot.slane %v216, 1
    %v542 = vsel %vm384, %v536, %v541
    %v543 = vrot.slane %v217, 1
    %v544 = vsel %vm384, %v539, %v543
    %v545 = vrot.slane %v160, 1
    %v546 = vrot.slane %v162, 1
    %v547 = vsel %vm384, %v545, %v546
    %v548 = vrot.slane %v161, 1
    %v549 = vrot.slane %v163, 1
    %v550 = vsel %vm384, %v548, %v549
    %v551 = vrot.slane %v218, 1
    %v552 = vsel %vm384, %v546, %v551
    %v553 = vrot.slane %v219, 1
    %v554 = vsel %vm384, %v549, %v553
    %v555 = vrot.slane %v164, 1
    %v556 = vrot.slane %v166, 1
    %v557 = vsel %vm384, %v555, %v556
    %v558 = vrot.slane %v165, 1
    %v559 = vrot.slane %v167, 1
    %v560 = vsel %vm384, %v558, %v559
    %v561 = vrot.slane %v220, 1
    %v562 = vsel %vm384, %v556, %v561
    %v563 = vrot.slane %v221, 1
    %v564 = vsel %vm384, %v559, %v563
    %v637 = vadd.f32 %v96, %v387
    %v638 = vadd.f32 %v97, %v390
    %v639 = vadd.f32 %v98, %v392
    %v640 = vadd.f32 %v99, %v394
    %v641 = vadd.f32 %v100, %v397
    %v642 = vadd.f32 %v101, %v400
    %v643 = vadd.f32 %v102, %v402
    %v644 = vadd.f32 %v103, %v404
    %v645 = vadd.f32 %v104, %v407
    %v646 = vadd.f32 %v105, %v410
    %v647 = vadd.f32 %v106, %v412
    %v648 = vadd.f32 %v107, %v414
    %v649 = vadd.f32 %v108, %v417
    %v650 = vadd.f32 %v109, %v420
    %v651 = vadd.f32 %v110, %v422
    %v652 = vadd.f32 %v111, %v424
    %v653 = vadd.f32 %v112, %v427
    %v654 = vadd.f32 %v113, %v430
    %v655 = vadd.f32 %v114, %v432
    %v656 = vadd.f32 %v115, %v434
    %v657 = vadd.f32 %v116, %v437
    %v658 = vadd.f32 %v117, %v440
    %v659 = vadd.f32 %v118, %v442
    %v660 = vadd.f32 %v119, %v444
    %v661 = vadd.f32 %v120, %v447
    %v662 = vadd.f32 %v121, %v450
    %v663 = vadd.f32 %v122, %v452
    %v664 = vadd.f32 %v123, %v454
    %v665 = vadd.f32 %v124, %v457
    %v666 = vadd.f32 %v125, %v460
    %v667 = vadd.f32 %v126, %v462
    %v668 = vadd.f32 %v127, %v464
    %v669 = vadd.f32 %v128, %v467
    %v670 = vadd.f32 %v129, %v470
    %v671 = vadd.f32 %v130, %v472
    %v672 = vadd.f32 %v131, %v474
    %v673 = vadd.f32 %v132, %v477
    %v674 = vadd.f32 %v133, %v480
    %v675 = vadd.f32 %v134, %v482
    %v676 = vadd.f32 %v135, %v484
    %v677 = vadd.f32 %v136, %v487
    %v678 = vadd.f32 %v137, %v490
    %v679 = vadd.f32 %v138, %v492
    %v680 = vadd.f32 %v139, %v494
    %v681 = vadd.f32 %v140, %v497
    %v682 = vadd.f32 %v141, %v500
    %v683 = vadd.f32 %v142, %v502
    %v684 = vadd.f32 %v143, %v504
    %v685 = vadd.f32 %v144, %v507
    %v686 = vadd.f32 %v145, %v510
    %v687 = vadd.f32 %v146, %v512
    %v688 = vadd.f32 %v147, %v514
    %v689 = vadd.f32 %v148, %v517
    %v690 = vadd.f32 %v149, %v520
    %v691 = vadd.f32 %v150, %v522
    %v692 = vadd.f32 %v151, %v524
    %v693 = vadd.f32 %v152, %v527
    %v694 = vadd.f32 %v153, %v530
    %v695 = vadd.f32 %v154, %v532
    %v696 = vadd.f32 %v155, %v534
    %v697 = vadd.f32 %v156, %v537
    %v698 = vadd.f32 %v157, %v540
    %v699 = vadd.f32 %v158, %v542
    %v700 = vadd.f32 %v159, %v544
    %v701 = vadd.f32 %v160, %v547
    %v702 = vadd.f32 %v161, %v550
    %v703 = vadd.f32 %v162, %v552
    %v704 = vadd.f32 %v163, %v554
    %v705 = vadd.f32 %v164, %v557
    %v706 = vadd.f32 %v165, %v560
    %v707 = vadd.f32 %v166, %v562
    %v708 = vadd.f32 %v167, %v564
    %vm745 = vcmask 1045504
    %v746 = vrot.slane %v240, 2
    %v747 = vrot.slane %v98, 2
    %v748 = vsel %vm745, %v746, %v747
    %v749 = vrot.slane %v241, 2
    %v750 = vrot.slane %v99, 2
    %v751 = vsel %vm745, %v749, %v750
    %v752 = vrot.slane %v186, 2
    %v753 = vsel %vm745, %v747, %v752
    %v754 = vrot.slane %v187, 2
    %v755 = vsel %vm745, %v750, %v754
    %v756 = vrot.slane %v242, 2
    %v757 = vrot.slane %v102, 2
    %v758 = vsel %vm745, %v756, %v757
    %v759 = vrot.slane %v243, 2
    %v760 = vrot.slane %v103, 2
    %v761 = vsel %vm745, %v759, %v760
    %v762 = vrot.slane %v188, 2
    %v763 = vsel %vm745, %v757, %v762
    %v764 = vrot.slane %v189, 2
    %v765 = vsel %vm745, %v760, %v764
    %v766 = vrot.slane %v244, 2
    %v767 = vrot.slane %v106, 2
    %v768 = vsel %vm745, %v766, %v767
    %v769 = vrot.slane %v245, 2
    %v770 = vrot.slane %v107, 2
    %v771 = vsel %vm745, %v769, %v770
    %v772 = vrot.slane %v190, 2
    %v773 = vsel %vm745, %v767, %v772
    %v774 = vrot.slane %v191, 2
    %v775 = vsel %vm745, %v770, %v774
    %v776 = vrot.slane %v246, 2
    %v777 = vrot.slane %v110, 2
    %v778 = vsel %vm745, %v776, %v777
    %v779 = vrot.slane %v247, 2
    %v780 = vrot.slane %v111, 2
    %v781 = vsel %vm745, %v779, %v780
    %v782 = vrot.slane %v192, 2
    %v783 = vsel %vm745, %v777, %v782
    %v784 = vrot.slane %v193, 2
    %v785 = vsel %vm745, %v780, %v784
    %v786 = vrot.slane %v248, 2
    %v787 = vrot.slane %v114, 2
    %v788 = vsel %vm745, %v786, %v787
    %v789 = vrot.slane %v249, 2
    %v790 = vrot.slane %v115, 2
    %v791 = vsel %vm745, %v789, %v790
    %v792 = vrot.slane %v194, 2
    %v793 = vsel %vm745, %v787, %v792
    %v794 = vrot.slane %v195, 2
    %v795 = vsel %vm745, %v790, %v794
    %v796 = vrot.slane %v250, 2
    %v797 = vrot.slane %v118, 2
    %v798 = vsel %vm745, %v796, %v797
    %v799 = vrot.slane %v251, 2
    %v800 = vrot.slane %v119, 2
    %v801 = vsel %vm745, %v799, %v800
    %v802 = vrot.slane %v196, 2
    %v803 = vsel %vm745, %v797, %v802
    %v804 = vrot.slane %v197, 2
    %v805 = vsel %vm745, %v800, %v804
    %v806 = vrot.slane %v252, 2
    %v807 = vrot.slane %v122, 2
    %v808 = vsel %vm745, %v806, %v807
    %v809 = vrot.slane %v253, 2
    %v810 = vrot.slane %v123, 2
    %v811 = vsel %vm745, %v809, %v810
    %v812 = vrot.slane %v198, 2
    %v813 = vsel %vm745, %v807, %v812
    %v814 = vrot.slane %v199, 2
    %v815 = vsel %vm745, %v810, %v814
    %v816 = vrot.slane %v254, 2
    %v817 = vrot.slane %v126, 2
    %v818 = vsel %vm745, %v816, %v817
    %v819 = vrot.slane %v255, 2
    %v820 = vrot.slane %v127, 2
    %v821 = vsel %vm745, %v819, %v820
    %v822 = vrot.slane %v200, 2
    %v823 = vsel %vm745, %v817, %v822
    %v824 = vrot.slane %v201, 2
    %v825 = vsel %vm745, %v820, %v824
    %v826 = vrot.slane %v256, 2
    %v827 = vrot.slane %v130, 2
    %v828 = vsel %vm745, %v826, %v827
    %v829 = vrot.slane %v257, 2
    %v830 = vrot.slane %v131, 2
    %v831 = vsel %vm745, %v829, %v830
    %v832 = vrot.slane %v202, 2
    %v833 = vsel %vm745, %v827, %v832
    %v834 = vrot.slane %v203, 2
    %v835 = vsel %vm745, %v830, %v834
    %v836 = vrot.slane %v258, 2
    %v837 = vrot.slane %v134, 2
    %v838 = vsel %vm745, %v836, %v837
    %v839 = vrot.slane %v259, 2
    %v840 = vrot.slane %v135, 2
    %v841 = vsel %vm745, %v839, %v840
    %v842 = vrot.slane %v204, 2
    %v843 = vsel %vm745, %v837, %v842
    %v844 = vrot.slane %v205, 2
    %v845 = vsel %vm745, %v840, %v844
    %v846 = vrot.slane %v260, 2
    %v847 = vrot.slane %v138, 2
    %v848 = vsel %vm745, %v846, %v847
    %v849 = vrot.slane %v261, 2
    %v850 = vrot.slane %v139, 2
    %v851 = vsel %vm745, %v849, %v850
    %v852 = vrot.slane %v206, 2
    %v853 = vsel %vm745, %v847, %v852
    %v854 = vrot.slane %v207, 2
    %v855 = vsel %vm745, %v850, %v854
    %v856 = vrot.slane %v262, 2
    %v857 = vrot.slane %v142, 2
    %v858 = vsel %vm745, %v856, %v857
    %v859 = vrot.slane %v263, 2
    %v860 = vrot.slane %v143, 2
    %v861 = vsel %vm745, %v859, %v860
    %v862 = vrot.slane %v208, 2
    %v863 = vsel %vm745, %v857, %v862
    %v864 = vrot.slane %v209, 2
    %v865 = vsel %vm745, %v860, %v864
    %v866 = vrot.slane %v264, 2
    %v867 = vrot.slane %v146, 2
    %v868 = vsel %vm745, %v866, %v867
    %v869 = vrot.slane %v265, 2
    %v870 = vrot.slane %v147, 2
    %v871 = vsel %vm745, %v869, %v870
    %v872 = vrot.slane %v210, 2
    %v873 = vsel %vm745, %v867, %v872
    %v874 = vrot.slane %v211, 2
    %v875 = vsel %vm745, %v870, %v874
    %v876 = vrot.slane %v266, 2
    %v877 = vrot.slane %v150, 2
    %v878 = vsel %vm745, %v876, %v877
    %v879 = vrot.slane %v267, 2
    %v880 = vrot.slane %v151, 2
    %v881 = vsel %vm745, %v879, %v880
    %v882 = vrot.slane %v212, 2
    %v883 = vsel %vm745, %v877, %v882
    %v884 = vrot.slane %v213, 2
    %v885 = vsel %vm745, %v880, %v884
    %v886 = vrot.slane %v268, 2
    %v887 = vrot.slane %v154, 2
    %v888 = vsel %vm745, %v886, %v887
    %v889 = vrot.slane %v269, 2
    %v890 = vrot.slane %v155, 2
    %v891 = vsel %vm745, %v889, %v890
    %v892 = vrot.slane %v214, 2
    %v893 = vsel %vm745, %v887, %v892
    %v894 = vrot.slane %v215, 2
    %v895 = vsel %vm745, %v890, %v894
    %v896 = vrot.slane %v270, 2
    %v897 = vrot.slane %v158, 2
    %v898 = vsel %vm745, %v896, %v897
    %v899 = vrot.slane %v271, 2
    %v900 = vrot.slane %v159, 2
    %v901 = vsel %vm745, %v899, %v900
    %v902 = vrot.slane %v216, 2
    %v903 = vsel %vm745, %v897, %v902
    %v904 = vrot.slane %v217, 2
    %v905 = vsel %vm745, %v900, %v904
    %v906 = vrot.slane %v272, 2
    %v907 = vrot.slane %v162, 2
    %v908 = vsel %vm745, %v906, %v907
    %v909 = vrot.slane %v273, 2
    %v910 = vrot.slane %v163, 2
    %v911 = vsel %vm745, %v909, %v910
    %v912 = vrot.slane %v218, 2
    %v913 = vsel %vm745, %v907, %v912
    %v914 = vrot.slane %v219, 2
    %v915 = vsel %vm745, %v910, %v914
    %v916 = vrot.slane %v274, 2
    %v917 = vrot.slane %v166, 2
    %v918 = vsel %vm745, %v916, %v917
    %v919 = vrot.slane %v275, 2
    %v920 = vrot.slane %v167, 2
    %v921 = vsel %vm745, %v919, %v920
    %v922 = vrot.slane %v220, 2
    %v923 = vsel %vm745, %v917, %v922
    %v924 = vrot.slane %v221, 2
    %v925 = vsel %vm745, %v920, %v924
    %v998 = vadd.f32 %v637, %v748
    %v999 = vadd.f32 %v638, %v751
    %v1000 = vadd.f32 %v639, %v753
    %v1001 = vadd.f32 %v640, %v755
    %v1002 = vadd.f32 %v641, %v758
    %v1003 = vadd.f32 %v642, %v761
    %v1004 = vadd.f32 %v643, %v763
    %v1005 = vadd.f32 %v644, %v765
    %v1006 = vadd.f32 %v645, %v768
    %v1007 = vadd.f32 %v646, %v771
    %v1008 = vadd.f32 %v647, %v773
    %v1009 = vadd.f32 %v648, %v775
    %v1010 = vadd.f32 %v649, %v778
    %v1011 = vadd.f32 %v650, %v781
    %v1012 = vadd.f32 %v651, %v783
    %v1013 = vadd.f32 %v652, %v785
    %v1014 = vadd.f32 %v653, %v788
    %v1015 = vadd.f32 %v654, %v791
    %v1016 = vadd.f32 %v655, %v793
    %v1017 = vadd.f32 %v656, %v795
    %v1018 = vadd.f32 %v657, %v798
    %v1019 = vadd.f32 %v658, %v801
    %v1020 = vadd.f32 %v659, %v803
    %v1021 = vadd.f32 %v660, %v805
    %v1022 = vadd.f32 %v661, %v808
    %v1023 = vadd.f32 %v662, %v811
    %v1024 = vadd.f32 %v663, %v813
    %v1025 = vadd.f32 %v664, %v815
    %v1026 = vadd.f32 %v665, %v818
    %v1027 = vadd.f32 %v666, %v821
    %v1028 = vadd.f32 %v667, %v823
    %v1029 = vadd.f32 %v668, %v825
    %v1030 = vadd.f32 %v669, %v828
    %v1031 = vadd.f32 %v670, %v831
    %v1032 = vadd.f32 %v671, %v833
    %v1033 = vadd.f32 %v672, %v835
    %v1034 = vadd.f32 %v673, %v838
    %v1035 = vadd.f32 %v674, %v841
    %v1036 = vadd.f32 %v675, %v843
    %v1037 = vadd.f32 %v676, %v845
    %v1038 = vadd.f32 %v677, %v848
    %v1039 = vadd.f32 %v678, %v851
    %v1040 = vadd.f32 %v679, %v853
    %v1041 = vadd.f32 %v680, %v855
    %v1042 = vadd.f32 %v681, %v858
    %v1043 = vadd.f32 %v682, %v861
    %v1044 = vadd.f32 %v683, %v863
    %v1045 = vadd.f32 %v684, %v865
    %v1046 = vadd.f32 %v685, %v868
    %v1047 = vadd.f32 %v686, %v871
    %v1048 = vadd.f32 %v687, %v873
    %v1049 = vadd.f32 %v688, %v875
    %v1050 = vadd.f32 %v689, %v878
    %v1051 = vadd.f32 %v690, %v881
    %v1052 = vadd.f32 %v691, %v883
    %v1053 = vadd.f32 %v692, %v885
    %v1054 = vadd.f32 %v693, %v888
    %v1055 = vadd.f32 %v694, %v891
    %v1056 = vadd.f32 %v695, %v893
    %v1057 = vadd.f32 %v696, %v895
    %v1058 = vadd.f32 %v697, %v898
    %v1059 = vadd.f32 %v698, %v901
    %v1060 = vadd.f32 %v699, %v903
    %v1061 = vadd.f32 %v700, %v905
    %v1062 = vadd.f32 %v701, %v908
    %v1063 = vadd.f32 %v702, %v911
    %v1064 = vadd.f32 %v703, %v913
    %v1065 = vadd.f32 %v704, %v915
    %v1066 = vadd.f32 %v705, %v918
    %v1067 = vadd.f32 %v706, %v921
    %v1068 = vadd.f32 %v707, %v923
    %v1069 = vadd.f32 %v708, %v925
    %v1070 = vadd.f32 %v998, %v1002
    %v1071 = vadd.f32 %v999, %v1003
    %v1072 = vadd.f32 %v1000, %v1004
    %v1073 = vadd.f32 %v1001, %v1005
    %v1074 = vadd.f32 %v1002, %v1006
    %v1075 = vadd.f32 %v1003, %v1007
    %v1076 = vadd.f32 %v1004, %v1008
    %v1077 = vadd.f32 %v1005, %v1009
    %v1078 = vadd.f32 %v1006, %v1010
    %v1079 = vadd.f32 %v1007, %v1011
    %v1080 = vadd.f32 %v1008, %v1012
    %v1081 = vadd.f32 %v1009, %v1013
    %v1082 = vadd.f32 %v1010, %v1014
    %v1083 = vadd.f32 %v1011, %v1015
    %v1084 = vadd.f32 %v1012, %v1016
    %v1085 = vadd.f32 %v1013, %v1017
    %v1086 = vadd.f32 %v1014, %v1018
    %v1087 = vadd.f32 %v1015, %v1019
    %v1088 = vadd.f32 %v1016, %v1020
    %v1089 = vadd.f32 %v1017, %v1021
    %v1090 = vadd.f32 %v1018, %v1022
    %v1091 = vadd.f32 %v1019, %v1023
    %v1092 = vadd.f32 %v1020, %v1024
    %v1093 = vadd.f32 %v1021, %v1025
    %v1094 = vadd.f32 %v1022, %v1026
    %v1095 = vadd.f32 %v1023, %v1027
    %v1096 = vadd.f32 %v1024, %v1028
    %v1097 = vadd.f32 %v1025, %v1029
    %v1098 = vadd.f32 %v1026, %v1030
    %v1099 = vadd.f32 %v1027, %v1031
    %v1100 = vadd.f32 %v1028, %v1032
    %v1101 = vadd.f32 %v1029, %v1033
    %v1102 = vadd.f32 %v1030, %v1034
    %v1103 = vadd.f32 %v1031, %v1035
    %v1104 = vadd.f32 %v1032, %v1036
    %v1105 = vadd.f32 %v1033, %v1037
    %v1106 = vadd.f32 %v1034, %v1038
    %v1107 = vadd.f32 %v1035, %v1039
    %v1108 = vadd.f32 %v1036, %v1040
    %v1109 = vadd.f32 %v1037, %v1041
    %v1110 = vadd.f32 %v1038, %v1042
    %v1111 = vadd.f32 %v1039, %v1043
    %v1112 = vadd.f32 %v1040, %v1044
    %v1113 = vadd.f32 %v1041, %v1045
    %v1114 = vadd.f32 %v1042, %v1046
    %v1115 = vadd.f32 %v1043, %v1047
    %v1116 = vadd.f32 %v1044, %v1048
    %v1117 = vadd.f32 %v1045, %v1049
    %v1118 = vadd.f32 %v1046, %v1050
    %v1119 = vadd.f32 %v1047, %v1051
    %v1120 = vadd.f32 %v1048, %v1052
    %v1121 = vadd.f32 %v1049, %v1053
    %v1122 = vadd.f32 %v1050, %v1054
    %v1123 = vadd.f32 %v1051, %v1055
    %v1124 = vadd.f32 %v1052, %v1056
    %v1125 = vadd.f32 %v1053, %v1057
    %v1126 = vadd.f32 %v1054, %v1058
    %v1127 = vadd.f32 %v1055, %v1059
    %v1128 = vadd.f32 %v1056, %v1060
    %v1129 = vadd.f32 %v1057, %v1061
    %v1130 = vadd.f32 %v1058, %v1062
    %v1131 = vadd.f32 %v1059, %v1063
    %v1132 = vadd.f32 %v1060, %v1064
    %v1133 = vadd.f32 %v1061, %v1065
    %v1134 = vadd.f32 %v1070, %v1006
    %v1135 = vadd.f32 %v1071, %v1007
    %v1136 = vadd.f32 %v1072, %v1008
    %v1137 = vadd.f32 %v1073, %v1009
    %v1138 = vadd.f32 %v1074, %v1010
    %v1139 = vadd.f32 %v1075, %v1011
    %v1140 = vadd.f32 %v1076, %v1012
    %v1141 = vadd.f32 %v1077, %v1013
    %v1142 = vadd.f32 %v1078, %v1014
    %v1143 = vadd.f32 %v1079, %v1015
    %v1144 = vadd.f32 %v1080, %v1016
    %v1145 = vadd.f32 %v1081, %v1017
    %v1146 = vadd.f32 %v1082, %v1018
    %v1147 = vadd.f32 %v1083, %v1019
    %v1148 = vadd.f32 %v1084, %v1020
    %v1149 = vadd.f32 %v1085, %v1021
    %v1150 = vadd.f32 %v1086, %v1022
    %v1151 = vadd.f32 %v1087, %v1023
    %v1152 = vadd.f32 %v1088, %v1024
    %v1153 = vadd.f32 %v1089, %v1025
    %v1154 = vadd.f32 %v1090, %v1026
    %v1155 = vadd.f32 %v1091, %v1027
    %v1156 = vadd.f32 %v1092, %v1028
    %v1157 = vadd.f32 %v1093, %v1029
    %v1158 = vadd.f32 %v1094, %v1030
    %v1159 = vadd.f32 %v1095, %v1031
    %v1160 = vadd.f32 %v1096, %v1032
    %v1161 = vadd.f32 %v1097, %v1033
    %v1162 = vadd.f32 %v1098, %v1034
    %v1163 = vadd.f32 %v1099, %v1035
    %v1164 = vadd.f32 %v1100, %v1036
    %v1165 = vadd.f32 %v1101, %v1037
    %v1166 = vadd.f32 %v1102, %v1038
    %v1167 = vadd.f32 %v1103, %v1039
    %v1168 = vadd.f32 %v1104, %v1040
    %v1169 = vadd.f32 %v1105, %v1041
    %v1170 = vadd.f32 %v1106, %v1042
    %v1171 = vadd.f32 %v1107, %v1043
    %v1172 = vadd.f32 %v1108, %v1044
    %v1173 = vadd.f32 %v1109, %v1045
    %v1174 = vadd.f32 %v1110, %v1046
    %v1175 = vadd.f32 %v1111, %v1047
    %v1176 = vadd.f32 %v1112, %v1048
    %v1177 = vadd.f32 %v1113, %v1049
    %v1178 = vadd.f32 %v1114, %v1050
    %v1179 = vadd.f32 %v1115, %v1051
    %v1180 = vadd.f32 %v1116, %v1052
    %v1181 = vadd.f32 %v1117, %v1053
    %v1182 = vadd.f32 %v1118, %v1054
    %v1183 = vadd.f32 %v1119, %v1055
    %v1184 = vadd.f32 %v1120, %v1056
    %v1185 = vadd.f32 %v1121, %v1057
    %v1186 = vadd.f32 %v1122, %v1058
    %v1187 = vadd.f32 %v1123, %v1059
    %v1188 = vadd.f32 %v1124, %v1060
    %v1189 = vadd.f32 %v1125, %v1061
    %v1190 = vadd.f32 %v1126, %v1062
    %v1191 = vadd.f32 %v1127, %v1063
    %v1192 = vadd.f32 %v1128, %v1064
    %v1193 = vadd.f32 %v1129, %v1065
    %v1194 = vadd.f32 %v1130, %v1066
    %v1195 = vadd.f32 %v1131, %v1067
    %v1196 = vadd.f32 %v1132, %v1068
    %v1197 = vadd.f32 %v1133, %v1069
    %v1198 = vld [vmem:[%s1] sm:$0xff]
    %v1199 = vld [vmem:[%s1 + $0x8] sm:$0xff]
    %v1200 = vlaneseq
    %v1201 = vshrl.u32 %v1200, 7
    %v1202 = vsub.s32 0, %v1201
    %v1203 = vrot.slane %v1198, %v1202
    %1205 = vbcast.lane.b32.xlu0 %v1203, 256
    %v1206 = vpop.permute.xlu0 %1205
    %s1208 = sor.u32 256, 8
    %1209 = vbcast.lane.b32.xlu0 %v1203, %s1208
    %v1210 = vpop.permute.xlu0 %1209
    %v1211 = vlaneseq
    %v1212 = vshrl.u32 %v1211, 7
    %v1213 = vsub.s32 1, %v1212
    %v1214 = vrot.slane %v1198, %v1213
    %1216 = vbcast.lane.b32.xlu0 %v1214, 256
    %v1217 = vpop.permute.xlu0 %1216
    %s1219 = sor.u32 256, 8
    %1220 = vbcast.lane.b32.xlu0 %v1214, %s1219
    %v1221 = vpop.permute.xlu0 %1220
    %v1222 = vlaneseq
    %v1223 = vshrl.u32 %v1222, 7
    %v1224 = vsub.s32 2, %v1223
    %v1225 = vrot.slane %v1198, %v1224
    %1227 = vbcast.lane.b32.xlu0 %v1225, 256
    %v1228 = vpop.permute.xlu0 %1227
    %s1230 = sor.u32 256, 8
    %1231 = vbcast.lane.b32.xlu0 %v1225, %s1230
    %v1232 = vpop.permute.xlu0 %1231
    %v1233 = vlaneseq
    %v1234 = vshrl.u32 %v1233, 7
    %v1235 = vsub.s32 3, %v1234
    %v1236 = vrot.slane %v1198, %v1235
    %1238 = vbcast.lane.b32.xlu0 %v1236, 256
    %v1239 = vpop.permute.xlu0 %1238
    %s1241 = sor.u32 256, 8
    %1242 = vbcast.lane.b32.xlu0 %v1236, %s1241
    %v1243 = vpop.permute.xlu0 %1242
    %v1244 = vlaneseq
    %v1245 = vshrl.u32 %v1244, 7
    %v1246 = vsub.s32 4, %v1245
    %v1247 = vrot.slane %v1198, %v1246
    %1249 = vbcast.lane.b32.xlu0 %v1247, 256
    %v1250 = vpop.permute.xlu0 %1249
    %s1252 = sor.u32 256, 8
    %1253 = vbcast.lane.b32.xlu0 %v1247, %s1252
    %v1254 = vpop.permute.xlu0 %1253
    %v1255 = vlaneseq
    %v1256 = vshrl.u32 %v1255, 7
    %v1257 = vsub.s32 5, %v1256
    %v1258 = vrot.slane %v1198, %v1257
    %1260 = vbcast.lane.b32.xlu0 %v1258, 256
    %v1261 = vpop.permute.xlu0 %1260
    %s1263 = sor.u32 256, 8
    %1264 = vbcast.lane.b32.xlu0 %v1258, %s1263
    %v1265 = vpop.permute.xlu0 %1264
    %v1266 = vlaneseq
    %v1267 = vshrl.u32 %v1266, 7
    %v1268 = vsub.s32 6, %v1267
    %v1269 = vrot.slane %v1198, %v1268
    %1271 = vbcast.lane.b32.xlu0 %v1269, 256
    %v1272 = vpop.permute.xlu0 %1271
    %s1274 = sor.u32 256, 8
    %1275 = vbcast.lane.b32.xlu0 %v1269, %s1274
    %v1276 = vpop.permute.xlu0 %1275
    %v1277 = vlaneseq
    %v1278 = vshrl.u32 %v1277, 7
    %v1279 = vsub.s32 7, %v1278
    %v1280 = vrot.slane %v1198, %v1279
    %1282 = vbcast.lane.b32.xlu0 %v1280, 256
    %v1283 = vpop.permute.xlu0 %1282
    %s1285 = sor.u32 256, 8
    %1286 = vbcast.lane.b32.xlu0 %v1280, %s1285
    %v1287 = vpop.permute.xlu0 %1286
    %v1288 = vlaneseq
    %v1289 = vshrl.u32 %v1288, 7
    %v1290 = vsub.s32 0, %v1289
    %v1291 = vrot.slane %v1199, %v1290
    %1293 = vbcast.lane.b32.xlu0 %v1291, 256
    %v1294 = vpop.permute.xlu0 %1293
    %s1296 = sor.u32 256, 8
    %1297 = vbcast.lane.b32.xlu0 %v1291, %s1296
    %v1298 = vpop.permute.xlu0 %1297
    %v1299 = vlaneseq
    %v1300 = vshrl.u32 %v1299, 7
    %v1301 = vsub.s32 1, %v1300
    %v1302 = vrot.slane %v1199, %v1301
    %1304 = vbcast.lane.b32.xlu0 %v1302, 256
    %v1305 = vpop.permute.xlu0 %1304
    %s1307 = sor.u32 256, 8
    %1308 = vbcast.lane.b32.xlu0 %v1302, %s1307
    %v1309 = vpop.permute.xlu0 %1308
    %v1310 = vlaneseq
    %v1311 = vshrl.u32 %v1310, 7
    %v1312 = vsub.s32 2, %v1311
    %v1313 = vrot.slane %v1199, %v1312
    %1315 = vbcast.lane.b32.xlu0 %v1313, 256
    %v1316 = vpop.permute.xlu0 %1315
    %s1318 = sor.u32 256, 8
    %1319 = vbcast.lane.b32.xlu0 %v1313, %s1318
    %v1320 = vpop.permute.xlu0 %1319
    %v1321 = vlaneseq
    %v1322 = vshrl.u32 %v1321, 7
    %v1323 = vsub.s32 3, %v1322
    %v1324 = vrot.slane %v1199, %v1323
    %1326 = vbcast.lane.b32.xlu0 %v1324, 256
    %v1327 = vpop.permute.xlu0 %1326
    %s1329 = sor.u32 256, 8
    %1330 = vbcast.lane.b32.xlu0 %v1324, %s1329
    %v1331 = vpop.permute.xlu0 %1330
    %v1332 = vlaneseq
    %v1333 = vshrl.u32 %v1332, 7
    %v1334 = vsub.s32 4, %v1333
    %v1335 = vrot.slane %v1199, %v1334
    %1337 = vbcast.lane.b32.xlu0 %v1335, 256
    %v1338 = vpop.permute.xlu0 %1337
    %s1340 = sor.u32 256, 8
    %1341 = vbcast.lane.b32.xlu0 %v1335, %s1340
    %v1342 = vpop.permute.xlu0 %1341
    %v1343 = vlaneseq
    %v1344 = vshrl.u32 %v1343, 7
    %v1345 = vsub.s32 5, %v1344
    %v1346 = vrot.slane %v1199, %v1345
    %1348 = vbcast.lane.b32.xlu0 %v1346, 256
    %v1349 = vpop.permute.xlu0 %1348
    %s1351 = sor.u32 256, 8
    %1352 = vbcast.lane.b32.xlu0 %v1346, %s1351
    %v1353 = vpop.permute.xlu0 %1352
    %v1354 = vlaneseq
    %v1355 = vshrl.u32 %v1354, 7
    %v1356 = vsub.s32 6, %v1355
    %v1357 = vrot.slane %v1199, %v1356
    %1359 = vbcast.lane.b32.xlu0 %v1357, 256
    %v1360 = vpop.permute.xlu0 %1359
    %s1362 = sor.u32 256, 8
    %1363 = vbcast.lane.b32.xlu0 %v1357, %s1362
    %v1364 = vpop.permute.xlu0 %1363
    %v1365 = vlaneseq
    %v1366 = vshrl.u32 %v1365, 7
    %v1367 = vsub.s32 7, %v1366
    %v1368 = vrot.slane %v1199, %v1367
    %1370 = vbcast.lane.b32.xlu0 %v1368, 256
    %v1371 = vpop.permute.xlu0 %1370
    %s1373 = sor.u32 256, 8
    %1374 = vbcast.lane.b32.xlu0 %v1368, %s1373
    %v1375 = vpop.permute.xlu0 %1374
    %v1376 = vmul.f32 %v1134, %v1206
    %v1377 = vmul.f32 %v1135, %v1206
    %v1378 = vmul.f32 %v1136, %v1210
    %v1379 = vmul.f32 %v1137, %v1210
    %v1380 = vmul.f32 %v1138, %v1217
    %v1381 = vmul.f32 %v1139, %v1217
    %v1382 = vmul.f32 %v1140, %v1221
    %v1383 = vmul.f32 %v1141, %v1221
    %v1384 = vmul.f32 %v1142, %v1228
    %v1385 = vmul.f32 %v1143, %v1228
    %v1386 = vmul.f32 %v1144, %v1232
    %v1387 = vmul.f32 %v1145, %v1232
    %v1388 = vmul.f32 %v1146, %v1239
    %v1389 = vmul.f32 %v1147, %v1239
    %v1390 = vmul.f32 %v1148, %v1243
    %v1391 = vmul.f32 %v1149, %v1243
    %v1392 = vmul.f32 %v1150, %v1250
    %v1393 = vmul.f32 %v1151, %v1250
    %v1394 = vmul.f32 %v1152, %v1254
    %v1395 = vmul.f32 %v1153, %v1254
    %v1396 = vmul.f32 %v1154, %v1261
    %v1397 = vmul.f32 %v1155, %v1261
    %v1398 = vmul.f32 %v1156, %v1265
    %v1399 = vmul.f32 %v1157, %v1265
    %v1400 = vmul.f32 %v1158, %v1272
    %v1401 = vmul.f32 %v1159, %v1272
    %v1402 = vmul.f32 %v1160, %v1276
    %v1403 = vmul.f32 %v1161, %v1276
    %v1404 = vmul.f32 %v1162, %v1283
    %v1405 = vmul.f32 %v1163, %v1283
    %v1406 = vmul.f32 %v1164, %v1287
    %v1407 = vmul.f32 %v1165, %v1287
    %v1408 = vmul.f32 %v1166, %v1294
    %v1409 = vmul.f32 %v1167, %v1294
    %v1410 = vmul.f32 %v1168, %v1298
    %v1411 = vmul.f32 %v1169, %v1298
    %v1412 = vmul.f32 %v1170, %v1305
    %v1413 = vmul.f32 %v1171, %v1305
    %v1414 = vmul.f32 %v1172, %v1309
    %v1415 = vmul.f32 %v1173, %v1309
    %v1416 = vmul.f32 %v1174, %v1316
    %v1417 = vmul.f32 %v1175, %v1316
    %v1418 = vmul.f32 %v1176, %v1320
    %v1419 = vmul.f32 %v1177, %v1320
    %v1420 = vmul.f32 %v1178, %v1327
    %v1421 = vmul.f32 %v1179, %v1327
    %v1422 = vmul.f32 %v1180, %v1331
    %v1423 = vmul.f32 %v1181, %v1331
    %v1424 = vmul.f32 %v1182, %v1338
    %v1425 = vmul.f32 %v1183, %v1338
    %v1426 = vmul.f32 %v1184, %v1342
    %v1427 = vmul.f32 %v1185, %v1342
    %v1428 = vmul.f32 %v1186, %v1349
    %v1429 = vmul.f32 %v1187, %v1349
    %v1430 = vmul.f32 %v1188, %v1353
    %v1431 = vmul.f32 %v1189, %v1353
    %v1432 = vmul.f32 %v1190, %v1360
    %v1433 = vmul.f32 %v1191, %v1360
    %v1434 = vmul.f32 %v1192, %v1364
    %v1435 = vmul.f32 %v1193, %v1364
    %v1436 = vmul.f32 %v1194, %v1371
    %v1437 = vmul.f32 %v1195, %v1371
    %v1438 = vmul.f32 %v1196, %v1375
    %v1439 = vmul.f32 %v1197, %v1375
    %v1440 = vpack.c.bf16 %v1378, %v1376
    %v1441 = vpack.c.bf16 %v1379, %v1377
    %v1442 = vpack.c.bf16 %v1382, %v1380
    %v1443 = vpack.c.bf16 %v1383, %v1381
    %v1444 = vpack.c.bf16 %v1386, %v1384
    %v1445 = vpack.c.bf16 %v1387, %v1385
    %v1446 = vpack.c.bf16 %v1390, %v1388
    %v1447 = vpack.c.bf16 %v1391, %v1389
    %v1448 = vpack.c.bf16 %v1394, %v1392
    %v1449 = vpack.c.bf16 %v1395, %v1393
    %v1450 = vpack.c.bf16 %v1398, %v1396
    %v1451 = vpack.c.bf16 %v1399, %v1397
    %v1452 = vpack.c.bf16 %v1402, %v1400
    %v1453 = vpack.c.bf16 %v1403, %v1401
    %v1454 = vpack.c.bf16 %v1406, %v1404
    %v1455 = vpack.c.bf16 %v1407, %v1405
    %v1456 = vpack.c.bf16 %v1410, %v1408
    %v1457 = vpack.c.bf16 %v1411, %v1409
    %v1458 = vpack.c.bf16 %v1414, %v1412
    %v1459 = vpack.c.bf16 %v1415, %v1413
    %v1460 = vpack.c.bf16 %v1418, %v1416
    %v1461 = vpack.c.bf16 %v1419, %v1417
    %v1462 = vpack.c.bf16 %v1422, %v1420
    %v1463 = vpack.c.bf16 %v1423, %v1421
    %v1464 = vpack.c.bf16 %v1426, %v1424
    %v1465 = vpack.c.bf16 %v1427, %v1425
    %v1466 = vpack.c.bf16 %v1430, %v1428
    %v1467 = vpack.c.bf16 %v1431, %v1429
    %v1468 = vpack.c.bf16 %v1434, %v1432
    %v1469 = vpack.c.bf16 %v1435, %v1433
    %v1470 = vpack.c.bf16 %v1438, %v1436
    %v1471 = vpack.c.bf16 %v1439, %v1437
    %1472 = vst [vmem:[#allocation3 + $0x6a0] sm:$0xff] 0
    %1473 = vst [vmem:[#allocation3 + $0x6a8] sm:$0xff] 0
    %1474 = vst [vmem:[#allocation3 + $0x6b0] sm:$0xff] 0
    %1475 = vst [vmem:[#allocation3 + $0x6b8] sm:$0xff] 0
    %1476 = vst [vmem:[#allocation3 + $0x6c0] sm:$0xff] 0
    %1477 = vst [vmem:[#allocation3 + $0x6c8] sm:$0xff] 0
    %1478 = vst [vmem:[#allocation3 + $0x6d0] sm:$0xff] 0
    %1479 = vst [vmem:[#allocation3 + $0x6d8] sm:$0xff] 0
    %1480 = vst [vmem:[#allocation3 + $0x6e0] sm:$0xff] 0
    %1481 = vst [vmem:[#allocation3 + $0x6e8] sm:$0xff] 0
    %1482 = vst [vmem:[#allocation3 + $0x6f0] sm:$0xff] 0
    %1483 = vst [vmem:[#allocation3 + $0x6f8] sm:$0xff] 0
    %1484 = vst [vmem:[#allocation3] sm:$0xff] %v1440
    %1485 = vst [vmem:[#allocation3 + $0x8] sm:$0xff] %v1441
    %1486 = vst [vmem:[#allocation3 + $0x70] sm:$0xff] %v1442
    %1487 = vst [vmem:[#allocation3 + $0x78] sm:$0xff] %v1443
    %1488 = vst [vmem:[#allocation3 + $0xe0] sm:$0xff] %v1444
    %1489 = vst [vmem:[#allocation3 + $0xe8] sm:$0xff] %v1445
    %1490 = vst [vmem:[#allocation3 + $0x150] sm:$0xff] %v1446
    %1491 = vst [vmem:[#allocation3 + $0x158] sm:$0xff] %v1447
    %1492 = vst [vmem:[#allocation3 + $0x1c0] sm:$0xff] %v1448
    %1493 = vst [vmem:[#allocation3 + $0x1c8] sm:$0xff] %v1449
    %1494 = vst [vmem:[#allocation3 + $0x230] sm:$0xff] %v1450
    %1495 = vst [vmem:[#allocation3 + $0x238] sm:$0xff] %v1451
    %1496 = vst [vmem:[#allocation3 + $0x2a0] sm:$0xff] %v1452
    %1497 = vst [vmem:[#allocation3 + $0x2a8] sm:$0xff] %v1453
    %1498 = vst [vmem:[#allocation3 + $0x310] sm:$0xff] %v1454
    %1499 = vst [vmem:[#allocation3 + $0x318] sm:$0xff] %v1455
    %1500 = vst [vmem:[#allocation3 + $0x380] sm:$0xff] %v1456
    %1501 = vst [vmem:[#allocation3 + $0x388] sm:$0xff] %v1457
    %1502 = vst [vmem:[#allocation3 + $0x3f0] sm:$0xff] %v1458
    %1503 = vst [vmem:[#allocation3 + $0x3f8] sm:$0xff] %v1459
    %1504 = vst [vmem:[#allocation3 + $0x460] sm:$0xff] %v1460
    %1505 = vst [vmem:[#allocation3 + $0x468] sm:$0xff] %v1461
    %1506 = vst [vmem:[#allocation3 + $0x4d0] sm:$0xff] %v1462
    %1507 = vst [vmem:[#allocation3 + $0x4d8] sm:$0xff] %v1463
    %1508 = vst [vmem:[#allocation3 + $0x540] sm:$0xff] %v1464
    %1509 = vst [vmem:[#allocation3 + $0x548] sm:$0xff] %v1465
    %1510 = vst [vmem:[#allocation3 + $0x5b0] sm:$0xff] %v1466
    %1511 = vst [vmem:[#allocation3 + $0x5b8] sm:$0xff] %v1467
    %1512 = vst [vmem:[#allocation3 + $0x620] sm:$0xff] %v1468
    %1513 = vst [vmem:[#allocation3 + $0x628] sm:$0xff] %v1469
    %1514 = vst [vmem:[#allocation3 + $0x690] sm:$0xff] %v1470
    %1515 = vst [vmem:[#allocation3 + $0x698] sm:$0xff] %v1471
    %v1516 = vld [vmem:[#allocation3] sm:$0xff]
    %v1517 = vld [vmem:[#allocation3 + $0x8] sm:$0xff]
    %v1518 = vld [vmem:[#allocation3 + $0x70] sm:$0xff]
    %v1519 = vld [vmem:[#allocation3 + $0x78] sm:$0xff]
    %v1520 = vld [vmem:[#allocation3 + $0xe0] sm:$0xff]
    %v1521 = vld [vmem:[#allocation3 + $0xe8] sm:$0xff]
    %v1522 = vld [vmem:[#allocation3 + $0x150] sm:$0xff]
    %v1523 = vld [vmem:[#allocation3 + $0x158] sm:$0xff]
    %v1524 = vld [vmem:[#allocation3 + $0x1c0] sm:$0xff]
    %v1525 = vld [vmem:[#allocation3 + $0x1c8] sm:$0xff]
    %v1526 = vld [vmem:[#allocation3 + $0x230] sm:$0xff]
    %v1527 = vld [vmem:[#allocation3 + $0x238] sm:$0xff]
    %v1528 = vld [vmem:[#allocation3 + $0x2a0] sm:$0xff]
    %v1529 = vld [vmem:[#allocation3 + $0x2a8] sm:$0xff]
    %v1530 = vld [vmem:[#allocation3 + $0x310] sm:$0xff]
    %v1531 = vld [vmem:[#allocation3 + $0x318] sm:$0xff]
    %v1532 = vld [vmem:[#allocation3 + $0x380] sm:$0xff]
    %v1533 = vld [vmem:[#allocation3 + $0x388] sm:$0xff]
    %v1534 = vld [vmem:[#allocation3 + $0x3f0] sm:$0xff]
    %v1535 = vld [vmem:[#allocation3 + $0x3f8] sm:$0xff]
    %v1536 = vld [vmem:[#allocation3 + $0x460] sm:$0xff]
    %v1537 = vld [vmem:[#allocation3 + $0x468] sm:$0xff]
    %v1538 = vld [vmem:[#allocation3 + $0x4d0] sm:$0xff]
    %v1539 = vld [vmem:[#allocation3 + $0x4d8] sm:$0xff]
    %v1540 = vld [vmem:[#allocation3 + $0x540] sm:$0xff]
    %v1541 = vld [vmem:[#allocation3 + $0x548] sm:$0xff]
    %v1542 = vld [vmem:[#allocation3 + $0x5b0] sm:$0xff]
    %v1543 = vld [vmem:[#allocation3 + $0x5b8] sm:$0xff]
    %v1544 = vld [vmem:[#allocation3 + $0x620] sm:$0xff]
    %v1545 = vld [vmem:[#allocation3 + $0x628] sm:$0xff]
    %v1546 = vld [vmem:[#allocation3 + $0x690] sm:$0xff]
    %v1547 = vld [vmem:[#allocation3 + $0x698] sm:$0xff]
    %vm1548 = vsmask.f32 7424
    %v1550 = vshrl.u32 %v1516, 16
    %v1552 = vshll.u32 %v1516, 16
    %v1554 = vrot.slane %v1552, 1
    %v1555 = vor.u32 %v1550, %v1554
    %v1557 = vshll.u32 %v1518, 16
    %v1559 = vrot.slane %v1557, 1
    %v1560 = vsel %vm1548, %v1555, %v1559
    %v1562 = vshrl.u32 %v1517, 16
    %v1564 = vshll.u32 %v1517, 16
    %v1566 = vrot.slane %v1564, 1
    %v1567 = vor.u32 %v1562, %v1566
    %v1569 = vshll.u32 %v1519, 16
    %v1571 = vrot.slane %v1569, 1
    %v1572 = vsel %vm1548, %v1567, %v1571
    %v1573 = vshrl.u32 %v1518, 16
    %v1575 = vor.u32 %v1573, %v1559
    %v1577 = vshll.u32 %v1520, 16
    %v1579 = vrot.slane %v1577, 1
    %v1580 = vsel %vm1548, %v1575, %v1579
    %v1581 = vshrl.u32 %v1519, 16
    %v1583 = vor.u32 %v1581, %v1571
    %v1585 = vshll.u32 %v1521, 16
    %v1587 = vrot.slane %v1585, 1
    %v1588 = vsel %vm1548, %v1583, %v1587
    %v1589 = vshrl.u32 %v1520, 16
    %v1591 = vor.u32 %v1589, %v1579
    %v1593 = vshll.u32 %v1522, 16
    %v1595 = vrot.slane %v1593, 1
    %v1596 = vsel %vm1548, %v1591, %v1595
    %v1597 = vshrl.u32 %v1521, 16
    %v1599 = vor.u32 %v1597, %v1587
    %v1601 = vshll.u32 %v1523, 16
    %v1603 = vrot.slane %v1601, 1
    %v1604 = vsel %vm1548, %v1599, %v1603
    %v1605 = vshrl.u32 %v1522, 16
    %v1607 = vor.u32 %v1605, %v1595
    %v1609 = vshll.u32 %v1524, 16
    %v1611 = vrot.slane %v1609, 1
    %v1612 = vsel %vm1548, %v1607, %v1611
    %v1613 = vshrl.u32 %v1523, 16
    %v1615 = vor.u32 %v1613, %v1603
    %v1617 = vshll.u32 %v1525, 16
    %v1619 = vrot.slane %v1617, 1
    %v1620 = vsel %vm1548, %v1615, %v1619
    %v1621 = vshrl.u32 %v1524, 16
    %v1623 = vor.u32 %v1621, %v1611
    %v1625 = vshll.u32 %v1526, 16
    %v1627 = vrot.slane %v1625, 1
    %v1628 = vsel %vm1548, %v1623, %v1627
    %v1629 = vshrl.u32 %v1525, 16
    %v1631 = vor.u32 %v1629, %v1619
    %v1633 = vshll.u32 %v1527, 16
    %v1635 = vrot.slane %v1633, 1
    %v1636 = vsel %vm1548, %v1631, %v1635
    %v1637 = vshrl.u32 %v1526, 16
    %v1639 = vor.u32 %v1637, %v1627
    %v1641 = vshll.u32 %v1528, 16
    %v1643 = vrot.slane %v1641, 1
    %v1644 = vsel %vm1548, %v1639, %v1643
    %v1645 = vshrl.u32 %v1527, 16
    %v1647 = vor.u32 %v1645, %v1635
    %v1649 = vshll.u32 %v1529, 16
    %v1651 = vrot.slane %v1649, 1
    %v1652 = vsel %vm1548, %v1647, %v1651
    %v1653 = vshrl.u32 %v1528, 16
    %v1655 = vor.u32 %v1653, %v1643
    %v1657 = vshll.u32 %v1530, 16
    %v1659 = vrot.slane %v1657, 1
    %v1660 = vsel %vm1548, %v1655, %v1659
    %v1661 = vshrl.u32 %v1529, 16
    %v1663 = vor.u32 %v1661, %v1651
    %v1665 = vshll.u32 %v1531, 16
    %v1667 = vrot.slane %v1665, 1
    %v1668 = vsel %vm1548, %v1663, %v1667
    %v1669 = vshrl.u32 %v1530, 16
    %v1671 = vor.u32 %v1669, %v1659
    %v1673 = vshll.u32 %v1532, 16
    %v1675 = vrot.slane %v1673, 1
    %v1676 = vsel %vm1548, %v1671, %v1675
    %v1677 = vshrl.u32 %v1531, 16
    %v1679 = vor.u32 %v1677, %v1667
    %v1681 = vshll.u32 %v1533, 16
    %v1683 = vrot.slane %v1681, 1
    %v1684 = vsel %vm1548, %v1679, %v1683
    %v1685 = vshrl.u32 %v1532, 16
    %v1687 = vor.u32 %v1685, %v1675
    %v1689 = vshll.u32 %v1534, 16
    %v1691 = vrot.slane %v1689, 1
    %v1692 = vsel %vm1548, %v1687, %v1691
    %v1693 = vshrl.u32 %v1533, 16
    %v1695 = vor.u32 %v1693, %v1683
    %v1697 = vshll.u32 %v1535, 16
    %v1699 = vrot.slane %v1697, 1
    %v1700 = vsel %vm1548, %v1695, %v1699
    %v1701 = vshrl.u32 %v1534, 16
    %v1703 = vor.u32 %v1701, %v1691
    %v1705 = vshll.u32 %v1536, 16
    %v1707 = vrot.slane %v1705, 1
    %v1708 = vsel %vm1548, %v1703, %v1707
    %v1709 = vshrl.u32 %v1535, 16
    %v1711 = vor.u32 %v1709, %v1699
    %v1713 = vshll.u32 %v1537, 16
    %v1715 = vrot.slane %v1713, 1
    %v1716 = vsel %vm1548, %v1711, %v1715
    %v1717 = vshrl.u32 %v1536, 16
    %v1719 = vor.u32 %v1717, %v1707
    %v1721 = vshll.u32 %v1538, 16
    %v1723 = vrot.slane %v1721, 1
    %v1724 = vsel %vm1548, %v1719, %v1723
    %v1725 = vshrl.u32 %v1537, 16
    %v1727 = vor.u32 %v1725, %v1715
    %v1729 = vshll.u32 %v1539, 16
    %v1731 = vrot.slane %v1729, 1
    %v1732 = vsel %vm1548, %v1727, %v1731
    %v1733 = vshrl.u32 %v1538, 16
    %v1735 = vor.u32 %v1733, %v1723
    %v1737 = vshll.u32 %v1540, 16
    %v1739 = vrot.slane %v1737, 1
    %v1740 = vsel %vm1548, %v1735, %v1739
    %v1741 = vshrl.u32 %v1539, 16
    %v1743 = vor.u32 %v1741, %v1731
    %v1745 = vshll.u32 %v1541, 16
    %v1747 = vrot.slane %v1745, 1
    %v1748 = vsel %vm1548, %v1743, %v1747
    %v1749 = vshrl.u32 %v1540, 16
    %v1751 = vor.u32 %v1749, %v1739
    %v1753 = vshll.u32 %v1542, 16
    %v1755 = vrot.slane %v1753, 1
    %v1756 = vsel %vm1548, %v1751, %v1755
    %v1757 = vshrl.u32 %v1541, 16
    %v1759 = vor.u32 %v1757, %v1747
    %v1761 = vshll.u32 %v1543, 16
    %v1763 = vrot.slane %v1761, 1
    %v1764 = vsel %vm1548, %v1759, %v1763
    %v1765 = vshrl.u32 %v1542, 16
    %v1767 = vor.u32 %v1765, %v1755
    %v1769 = vshll.u32 %v1544, 16
    %v1771 = vrot.slane %v1769, 1
    %v1772 = vsel %vm1548, %v1767, %v1771
    %v1773 = vshrl.u32 %v1543, 16
    %v1775 = vor.u32 %v1773, %v1763
    %v1777 = vshll.u32 %v1545, 16
    %v1779 = vrot.slane %v1777, 1
    %v1780 = vsel %vm1548, %v1775, %v1779
    %v1781 = vshrl.u32 %v1544, 16
    %v1783 = vor.u32 %v1781, %v1771
    %v1785 = vshll.u32 %v1546, 16
    %v1787 = vrot.slane %v1785, 1
    %v1788 = vsel %vm1548, %v1783, %v1787
    %v1789 = vshrl.u32 %v1545, 16
    %v1791 = vor.u32 %v1789, %v1779
    %v1793 = vshll.u32 %v1547, 16
    %v1795 = vrot.slane %v1793, 1
    %v1796 = vsel %vm1548, %v1791, %v1795
    %v1797 = vshrl.u32 %v1546, 16
    %v1799 = vor.u32 %v1797, %v1787
    %v1800 = vshrl.u32 %v1547, 16
    %v1802 = vor.u32 %v1800, %v1795
    %1835 = vst [vmem:[#allocation3 + $0x10] sm:$0xff] %v1560
    %1836 = vst [vmem:[#allocation3 + $0x18] sm:$0xff] %v1572
    %1837 = vst [vmem:[#allocation3 + $0x80] sm:$0xff] %v1580
    %1838 = vst [vmem:[#allocation3 + $0x88] sm:$0xff] %v1588
    %1839 = vst [vmem:[#allocation3 + $0xf0] sm:$0xff] %v1596
    %1840 = vst [vmem:[#allocation3 + $0xf8] sm:$0xff] %v1604
    %1841 = vst [vmem:[#allocation3 + $0x160] sm:$0xff] %v1612
    %1842 = vst [vmem:[#allocation3 + $0x168] sm:$0xff] %v1620
    %1843 = vst [vmem:[#allocation3 + $0x1d0] sm:$0xff] %v1628
    %1844 = vst [vmem:[#allocation3 + $0x1d8] sm:$0xff] %v1636
    %1845 = vst [vmem:[#allocation3 + $0x240] sm:$0xff] %v1644
    %1846 = vst [vmem:[#allocation3 + $0x248] sm:$0xff] %v1652
    %1847 = vst [vmem:[#allocation3 + $0x2b0] sm:$0xff] %v1660
    %1848 = vst [vmem:[#allocation3 + $0x2b8] sm:$0xff] %v1668
    %1849 = vst [vmem:[#allocation3 + $0x320] sm:$0xff] %v1676
    %1850 = vst [vmem:[#allocation3 + $0x328] sm:$0xff] %v1684
    %1851 = vst [vmem:[#allocation3 + $0x390] sm:$0xff] %v1692
    %1852 = vst [vmem:[#allocation3 + $0x398] sm:$0xff] %v1700
    %1853 = vst [vmem:[#allocation3 + $0x400] sm:$0xff] %v1708
    %1854 = vst [vmem:[#allocation3 + $0x408] sm:$0xff] %v1716
    %1855 = vst [vmem:[#allocation3 + $0x470] sm:$0xff] %v1724
    %1856 = vst [vmem:[#allocation3 + $0x478] sm:$0xff] %v1732
    %1857 = vst [vmem:[#allocation3 + $0x4e0] sm:$0xff] %v1740
    %1858 = vst [vmem:[#allocation3 + $0x4e8] sm:$0xff] %v1748
    %1859 = vst [vmem:[#allocation3 + $0x550] sm:$0xff] %v1756
    %1860 = vst [vmem:[#allocation3 + $0x558] sm:$0xff] %v1764
    %1861 = vst [vmem:[#allocation3 + $0x5c0] sm:$0xff] %v1772
    %1862 = vst [vmem:[#allocation3 + $0x5c8] sm:$0xff] %v1780
    %1863 = vst [vmem:[#allocation3 + $0x630] sm:$0xff] %v1788
    %1864 = vst [vmem:[#allocation3 + $0x638] sm:$0xff] %v1796
    %vm1865 = vcmask 1047552
    %vm1866 = vmand %vm1865, %vm1548
    %v1867 = vld [vmem:[#allocation3 + $0x6a0] sm:$0xff]
    %v1868 = vsel %vm1866, %v1799, %v1867
    %1869 = vst [vmem:[#allocation3 + $0x6a0] sm:$0xff] %v1868
    %v1870 = vld [vmem:[#allocation3 + $0x6a8] sm:$0xff]
    %v1871 = vsel %vm1866, %v1802, %v1870
    %1872 = vst [vmem:[#allocation3 + $0x6a8] sm:$0xff] %v1871
    %v1873 = vld [vmem:[#allocation3] sm:$0xfe]
    %v1874 = vld [vmem:[#allocation3 + $0x8] sm:$0xfe]
    %v1875 = vld [vmem:[#allocation3 + $0x70] sm:$0xff]
    %v1876 = vld [vmem:[#allocation3 + $0x78] sm:$0xff]
    %v1877 = vld [vmem:[#allocation3 + $0xe0] sm:$0xff]
    %v1878 = vld [vmem:[#allocation3 + $0xe8] sm:$0xff]
    %v1879 = vld [vmem:[#allocation3 + $0x150] sm:$0xff]
    %v1880 = vld [vmem:[#allocation3 + $0x158] sm:$0xff]
    %v1881 = vld [vmem:[#allocation3 + $0x1c0] sm:$0xff]
    %v1882 = vld [vmem:[#allocation3 + $0x1c8] sm:$0xff]
    %v1883 = vld [vmem:[#allocation3 + $0x230] sm:$0xff]
    %v1884 = vld [vmem:[#allocation3 + $0x238] sm:$0xff]
    %v1885 = vld [vmem:[#allocation3 + $0x2a0] sm:$0xff]
    %v1886 = vld [vmem:[#allocation3 + $0x2a8] sm:$0xff]
    %v1887 = vld [vmem:[#allocation3 + $0x310] sm:$0xff]
    %v1888 = vld [vmem:[#allocation3 + $0x318] sm:$0xff]
    %v1889 = vld [vmem:[#allocation3 + $0x380] sm:$0xff]
    %v1890 = vld [vmem:[#allocation3 + $0x388] sm:$0xff]
    %v1891 = vld [vmem:[#allocation3 + $0x3f0] sm:$0xff]
    %v1892 = vld [vmem:[#allocation3 + $0x3f8] sm:$0xff]
    %v1893 = vld [vmem:[#allocation3 + $0x460] sm:$0xff]
    %v1894 = vld [vmem:[#allocation3 + $0x468] sm:$0xff]
    %v1895 = vld [vmem:[#allocation3 + $0x4d0] sm:$0xff]
    %v1896 = vld [vmem:[#allocation3 + $0x4d8] sm:$0xff]
    %v1897 = vld [vmem:[#allocation3 + $0x540] sm:$0xff]
    %v1898 = vld [vmem:[#allocation3 + $0x548] sm:$0xff]
    %v1899 = vld [vmem:[#allocation3 + $0x5b0] sm:$0xff]
    %v1900 = vld [vmem:[#allocation3 + $0x5b8] sm:$0xff]
    %v1901 = vld [vmem:[#allocation3 + $0x620] sm:$0xff]
    %v1902 = vld [vmem:[#allocation3 + $0x628] sm:$0xff]
    %v1903 = vld [vmem:[#allocation3 + $0x690] sm:$0xff]
    %v1904 = vld [vmem:[#allocation3 + $0x698] sm:$0xff]
    %vm1937 = vcmask 1046528
    %v1938 = vrot.slane %v1873, 1
    %v1939 = vrot.slane %v1875, 1
    %v1940 = vsel %vm1937, %v1938, %v1939
    %v1941 = vrot.slane %v1874, 1
    %v1942 = vrot.slane %v1876, 1
    %v1943 = vsel %vm1937, %v1941, %v1942
    %v1944 = vrot.slane %v1877, 1
    %v1945 = vsel %vm1937, %v1939, %v1944
    %v1946 = vrot.slane %v1878, 1
    %v1947 = vsel %vm1937, %v1942, %v1946
    %v1948 = vrot.slane %v1879, 1
    %v1949 = vsel %vm1937, %v1944, %v1948
    %v1950 = vrot.slane %v1880, 1
    %v1951 = vsel %vm1937, %v1946, %v1950
    %v1952 = vrot.slane %v1881, 1
    %v1953 = vsel %vm1937, %v1948, %v1952
    %v1954 = vrot.slane %v1882, 1
    %v1955 = vsel %vm1937, %v1950, %v1954
    %v1956 = vrot.slane %v1883, 1
    %v1957 = vsel %vm1937, %v1952, %v1956
    %v1958 = vrot.slane %v1884, 1
    %v1959 = vsel %vm1937, %v1954, %v1958
    %v1960 = vrot.slane %v1885, 1
    %v1961 = vsel %vm1937, %v1956, %v1960
    %v1962 = vrot.slane %v1886, 1
    %v1963 = vsel %vm1937, %v1958, %v1962
    %v1964 = vrot.slane %v1887, 1
    %v1965 = vsel %vm1937, %v1960, %v1964
    %v1966 = vrot.slane %v1888, 1
    %v1967 = vsel %vm1937, %v1962, %v1966
    %v1968 = vrot.slane %v1889, 1
    %v1969 = vsel %vm1937, %v1964, %v1968
    %v1970 = vrot.slane %v1890, 1
    %v1971 = vsel %vm1937, %v1966, %v1970
    %v1972 = vrot.slane %v1891, 1
    %v1973 = vsel %vm1937, %v1968, %v1972
    %v1974 = vrot.slane %v1892, 1
    %v1975 = vsel %vm1937, %v1970, %v1974
    %v1976 = vrot.slane %v1893, 1
    %v1977 = vsel %vm1937, %v1972, %v1976
    %v1978 = vrot.slane %v1894, 1
    %v1979 = vsel %vm1937, %v1974, %v1978
    %v1980 = vrot.slane %v1895, 1
    %v1981 = vsel %vm1937, %v1976, %v1980
    %v1982 = vrot.slane %v1896, 1
    %v1983 = vsel %vm1937, %v1978, %v1982
    %v1984 = vrot.slane %v1897, 1
    %v1985 = vsel %vm1937, %v1980, %v1984
    %v1986 = vrot.slane %v1898, 1
    %v1987 = vsel %vm1937, %v1982, %v1986
    %v1988 = vrot.slane %v1899, 1
    %v1989 = vsel %vm1937, %v1984, %v1988
    %v1990 = vrot.slane %v1900, 1
    %v1991 = vsel %vm1937, %v1986, %v1990
    %v1992 = vrot.slane %v1901, 1
    %v1993 = vsel %vm1937, %v1988, %v1992
    %v1994 = vrot.slane %v1902, 1
    %v1995 = vsel %vm1937, %v1990, %v1994
    %v1996 = vrot.slane %v1903, 1
    %v1997 = vsel %vm1937, %v1992, %v1996
    %v1998 = vrot.slane %v1904, 1
    %v1999 = vsel %vm1937, %v1994, %v1998
    %2032 = vst [vmem:[#allocation3 + $0x20] sm:$0xff] %v1940
    %2033 = vst [vmem:[#allocation3 + $0x28] sm:$0xff] %v1943
    %2034 = vst [vmem:[#allocation3 + $0x90] sm:$0xff] %v1945
    %2035 = vst [vmem:[#allocation3 + $0x98] sm:$0xff] %v1947
    %2036 = vst [vmem:[#allocation3 + $0x100] sm:$0xff] %v1949
    %2037 = vst [vmem:[#allocation3 + $0x108] sm:$0xff] %v1951
    %2038 = vst [vmem:[#allocation3 + $0x170] sm:$0xff] %v1953
    %2039 = vst [vmem:[#allocation3 + $0x178] sm:$0xff] %v1955
    %2040 = vst [vmem:[#allocation3 + $0x1e0] sm:$0xff] %v1957
    %2041 = vst [vmem:[#allocation3 + $0x1e8] sm:$0xff] %v1959
    %2042 = vst [vmem:[#allocation3 + $0x250] sm:$0xff] %v1961
    %2043 = vst [vmem:[#allocation3 + $0x258] sm:$0xff] %v1963
    %2044 = vst [vmem:[#allocation3 + $0x2c0] sm:$0xff] %v1965
    %2045 = vst [vmem:[#allocation3 + $0x2c8] sm:$0xff] %v1967
    %2046 = vst [vmem:[#allocation3 + $0x330] sm:$0xff] %v1969
    %2047 = vst [vmem:[#allocation3 + $0x338] sm:$0xff] %v1971
    %2048 = vst [vmem:[#allocation3 + $0x3a0] sm:$0xff] %v1973
    %2049 = vst [vmem:[#allocation3 + $0x3a8] sm:$0xff] %v1975
    %2050 = vst [vmem:[#allocation3 + $0x410] sm:$0xff] %v1977
    %2051 = vst [vmem:[#allocation3 + $0x418] sm:$0xff] %v1979
    %2052 = vst [vmem:[#allocation3 + $0x480] sm:$0xff] %v1981
    %2053 = vst [vmem:[#allocation3 + $0x488] sm:$0xff] %v1983
    %2054 = vst [vmem:[#allocation3 + $0x4f0] sm:$0xff] %v1985
    %2055 = vst [vmem:[#allocation3 + $0x4f8] sm:$0xff] %v1987
    %2056 = vst [vmem:[#allocation3 + $0x560] sm:$0xff] %v1989
    %2057 = vst [vmem:[#allocation3 + $0x568] sm:$0xff] %v1991
    %2058 = vst [vmem:[#allocation3 + $0x5d0] sm:$0xff] %v1993
    %2059 = vst [vmem:[#allocation3 + $0x5d8] sm:$0xff] %v1995
    %2060 = vst [vmem:[#allocation3 + $0x640] sm:$0xff] %v1997
    %2061 = vst [vmem:[#allocation3 + $0x648] sm:$0xff] %v1999
    %2062 = vst [vmem:[#allocation3 + $0x6b0] sm:$0x7f] %v1996
    %2063 = vst [vmem:[#allocation3 + $0x6b8] sm:$0x7f] %v1998
    %v2064 = vld [vmem:[#allocation3] sm:$0xfe]
    %v2065 = vld [vmem:[#allocation3 + $0x8] sm:$0xfe]
    %v2066 = vld [vmem:[#allocation3 + $0x70] sm:$0xff]
    %v2067 = vld [vmem:[#allocation3 + $0x78] sm:$0xff]
    %v2068 = vld [vmem:[#allocation3 + $0xe0] sm:$0xff]
    %v2069 = vld [vmem:[#allocation3 + $0xe8] sm:$0xff]
    %v2070 = vld [vmem:[#allocation3 + $0x150] sm:$0xff]
    %v2071 = vld [vmem:[#allocation3 + $0x158] sm:$0xff]
    %v2072 = vld [vmem:[#allocation3 + $0x1c0] sm:$0xff]
    %v2073 = vld [vmem:[#allocation3 + $0x1c8] sm:$0xff]
    %v2074 = vld [vmem:[#allocation3 + $0x230] sm:$0xff]
    %v2075 = vld [vmem:[#allocation3 + $0x238] sm:$0xff]
    %v2076 = vld [vmem:[#allocation3 + $0x2a0] sm:$0xff]
    %v2077 = vld [vmem:[#allocation3 + $0x2a8] sm:$0xff]
    %v2078 = vld [vmem:[#allocation3 + $0x310] sm:$0xff]
    %v2079 = vld [vmem:[#allocation3 + $0x318] sm:$0xff]
    %v2080 = vld [vmem:[#allocation3 + $0x380] sm:$0xff]
    %v2081 = vld [vmem:[#allocation3 + $0x388] sm:$0xff]
    %v2082 = vld [vmem:[#allocation3 + $0x3f0] sm:$0xff]
    %v2083 = vld [vmem:[#allocation3 + $0x3f8] sm:$0xff]
    %v2084 = vld [vmem:[#allocation3 + $0x460] sm:$0xff]
    %v2085 = vld [vmem:[#allocation3 + $0x468] sm:$0xff]
    %v2086 = vld [vmem:[#allocation3 + $0x4d0] sm:$0xff]
    %v2087 = vld [vmem:[#allocation3 + $0x4d8] sm:$0xff]
    %v2088 = vld [vmem:[#allocation3 + $0x540] sm:$0xff]
    %v2089 = vld [vmem:[#allocation3 + $0x548] sm:$0xff]
    %v2090 = vld [vmem:[#allocation3 + $0x5b0] sm:$0xff]
    %v2091 = vld [vmem:[#allocation3 + $0x5b8] sm:$0xff]
    %v2092 = vld [vmem:[#allocation3 + $0x620] sm:$0xff]
    %v2093 = vld [vmem:[#allocation3 + $0x628] sm:$0xff]
    %v2094 = vld [vmem:[#allocation3 + $0x690] sm:$0xff]
    %v2095 = vld [vmem:[#allocation3 + $0x698] sm:$0xff]
    %vm2096 = vsmask.f32 6400
    %v2098 = vshrl.u32 %v2064, 16
    %v2100 = vrot.slane %v2098, 1
    %v2101 = vshll.u32 %v2064, 16
    %v2103 = vrot.slane %v2101, 2
    %v2104 = vor.u32 %v2100, %v2103
    %v2106 = vshrl.u32 %v2066, 16
    %v2108 = vrot.slane %v2106, 1
    %v2109 = vshll.u32 %v2066, 16
    %v2111 = vrot.slane %v2109, 2
    %v2112 = vor.u32 %v2108, %v2111
    %v2113 = vsel %vm2096, %v2104, %v2112
    %v2115 = vshrl.u32 %v2065, 16
    %v2117 = vrot.slane %v2115, 1
    %v2118 = vshll.u32 %v2065, 16
    %v2120 = vrot.slane %v2118, 2
    %v2121 = vor.u32 %v2117, %v2120
    %v2123 = vshrl.u32 %v2067, 16
    %v2125 = vrot.slane %v2123, 1
    %v2126 = vshll.u32 %v2067, 16
    %v2128 = vrot.slane %v2126, 2
    %v2129 = vor.u32 %v2125, %v2128
    %v2130 = vsel %vm2096, %v2121, %v2129
    %v2132 = vshrl.u32 %v2068, 16
    %v2134 = vrot.slane %v2132, 1
    %v2135 = vshll.u32 %v2068, 16
    %v2137 = vrot.slane %v2135, 2
    %v2138 = vor.u32 %v2134, %v2137
    %v2139 = vsel %vm2096, %v2112, %v2138
    %v2141 = vshrl.u32 %v2069, 16
    %v2143 = vrot.slane %v2141, 1
    %v2144 = vshll.u32 %v2069, 16
    %v2146 = vrot.slane %v2144, 2
    %v2147 = vor.u32 %v2143, %v2146
    %v2148 = vsel %vm2096, %v2129, %v2147
    %v2150 = vshrl.u32 %v2070, 16
    %v2152 = vrot.slane %v2150, 1
    %v2153 = vshll.u32 %v2070, 16
    %v2155 = vrot.slane %v2153, 2
    %v2156 = vor.u32 %v2152, %v2155
    %v2157 = vsel %vm2096, %v2138, %v2156
    %v2159 = vshrl.u32 %v2071, 16
    %v2161 = vrot.slane %v2159, 1
    %v2162 = vshll.u32 %v2071, 16
    %v2164 = vrot.slane %v2162, 2
    %v2165 = vor.u32 %v2161, %v2164
    %v2166 = vsel %vm2096, %v2147, %v2165
    %v2168 = vshrl.u32 %v2072, 16
    %v2170 = vrot.slane %v2168, 1
    %v2171 = vshll.u32 %v2072, 16
    %v2173 = vrot.slane %v2171, 2
    %v2174 = vor.u32 %v2170, %v2173
    %v2175 = vsel %vm2096, %v2156, %v2174
    %v2177 = vshrl.u32 %v2073, 16
    %v2179 = vrot.slane %v2177, 1
    %v2180 = vshll.u32 %v2073, 16
    %v2182 = vrot.slane %v2180, 2
    %v2183 = vor.u32 %v2179, %v2182
    %v2184 = vsel %vm2096, %v2165, %v2183
    %v2186 = vshrl.u32 %v2074, 16
    %v2188 = vrot.slane %v2186, 1
    %v2189 = vshll.u32 %v2074, 16
    %v2191 = vrot.slane %v2189, 2
    %v2192 = vor.u32 %v2188, %v2191
    %v2193 = vsel %vm2096, %v2174, %v2192
    %v2195 = vshrl.u32 %v2075, 16
    %v2197 = vrot.slane %v2195, 1
    %v2198 = vshll.u32 %v2075, 16
    %v2200 = vrot.slane %v2198, 2
    %v2201 = vor.u32 %v2197, %v2200
    %v2202 = vsel %vm2096, %v2183, %v2201
    %v2204 = vshrl.u32 %v2076, 16
    %v2206 = vrot.slane %v2204, 1
    %v2207 = vshll.u32 %v2076, 16
    %v2209 = vrot.slane %v2207, 2
    %v2210 = vor.u32 %v2206, %v2209
    %v2211 = vsel %vm2096, %v2192, %v2210
    %v2213 = vshrl.u32 %v2077, 16
    %v2215 = vrot.slane %v2213, 1
    %v2216 = vshll.u32 %v2077, 16
    %v2218 = vrot.slane %v2216, 2
    %v2219 = vor.u32 %v2215, %v2218
    %v2220 = vsel %vm2096, %v2201, %v2219
    %v2222 = vshrl.u32 %v2078, 16
    %v2224 = vrot.slane %v2222, 1
    %v2225 = vshll.u32 %v2078, 16
    %v2227 = vrot.slane %v2225, 2
    %v2228 = vor.u32 %v2224, %v2227
    %v2229 = vsel %vm2096, %v2210, %v2228
    %v2231 = vshrl.u32 %v2079, 16
    %v2233 = vrot.slane %v2231, 1
    %v2234 = vshll.u32 %v2079, 16
    %v2236 = vrot.slane %v2234, 2
    %v2237 = vor.u32 %v2233, %v2236
    %v2238 = vsel %vm2096, %v2219, %v2237
    %v2240 = vshrl.u32 %v2080, 16
    %v2242 = vrot.slane %v2240, 1
    %v2243 = vshll.u32 %v2080, 16
    %v2245 = vrot.slane %v2243, 2
    %v2246 = vor.u32 %v2242, %v2245
    %v2247 = vsel %vm2096, %v2228, %v2246
    %v2249 = vshrl.u32 %v2081, 16
    %v2251 = vrot.slane %v2249, 1
    %v2252 = vshll.u32 %v2081, 16
    %v2254 = vrot.slane %v2252, 2
    %v2255 = vor.u32 %v2251, %v2254
    %v2256 = vsel %vm2096, %v2237, %v2255
    %v2258 = vshrl.u32 %v2082, 16
    %v2260 = vrot.slane %v2258, 1
    %v2261 = vshll.u32 %v2082, 16
    %v2263 = vrot.slane %v2261, 2
    %v2264 = vor.u32 %v2260, %v2263
    %v2265 = vsel %vm2096, %v2246, %v2264
    %v2267 = vshrl.u32 %v2083, 16
    %v2269 = vrot.slane %v2267, 1
    %v2270 = vshll.u32 %v2083, 16
    %v2272 = vrot.slane %v2270, 2
    %v2273 = vor.u32 %v2269, %v2272
    %v2274 = vsel %vm2096, %v2255, %v2273
    %v2276 = vshrl.u32 %v2084, 16
    %v2278 = vrot.slane %v2276, 1
    %v2279 = vshll.u32 %v2084, 16
    %v2281 = vrot.slane %v2279, 2
    %v2282 = vor.u32 %v2278, %v2281
    %v2283 = vsel %vm2096, %v2264, %v2282
    %v2285 = vshrl.u32 %v2085, 16
    %v2287 = vrot.slane %v2285, 1
    %v2288 = vshll.u32 %v2085, 16
    %v2290 = vrot.slane %v2288, 2
    %v2291 = vor.u32 %v2287, %v2290
    %v2292 = vsel %vm2096, %v2273, %v2291
    %v2294 = vshrl.u32 %v2086, 16
    %v2296 = vrot.slane %v2294, 1
    %v2297 = vshll.u32 %v2086, 16
    %v2299 = vrot.slane %v2297, 2
    %v2300 = vor.u32 %v2296, %v2299
    %v2301 = vsel %vm2096, %v2282, %v2300
    %v2303 = vshrl.u32 %v2087, 16
    %v2305 = vrot.slane %v2303, 1
    %v2306 = vshll.u32 %v2087, 16
    %v2308 = vrot.slane %v2306, 2
    %v2309 = vor.u32 %v2305, %v2308
    %v2310 = vsel %vm2096, %v2291, %v2309
    %v2312 = vshrl.u32 %v2088, 16
    %v2314 = vrot.slane %v2312, 1
    %v2315 = vshll.u32 %v2088, 16
    %v2317 = vrot.slane %v2315, 2
    %v2318 = vor.u32 %v2314, %v2317
    %v2319 = vsel %vm2096, %v2300, %v2318
    %v2321 = vshrl.u32 %v2089, 16
    %v2323 = vrot.slane %v2321, 1
    %v2324 = vshll.u32 %v2089, 16
    %v2326 = vrot.slane %v2324, 2
    %v2327 = vor.u32 %v2323, %v2326
    %v2328 = vsel %vm2096, %v2309, %v2327
    %v2330 = vshrl.u32 %v2090, 16
    %v2332 = vrot.slane %v2330, 1
    %v2333 = vshll.u32 %v2090, 16
    %v2335 = vrot.slane %v2333, 2
    %v2336 = vor.u32 %v2332, %v2335
    %v2337 = vsel %vm2096, %v2318, %v2336
    %v2339 = vshrl.u32 %v2091, 16
    %v2341 = vrot.slane %v2339, 1
    %v2342 = vshll.u32 %v2091, 16
    %v2344 = vrot.slane %v2342, 2
    %v2345 = vor.u32 %v2341, %v2344
    %v2346 = vsel %vm2096, %v2327, %v2345
    %v2348 = vshrl.u32 %v2092, 16
    %v2350 = vrot.slane %v2348, 1
    %v2351 = vshll.u32 %v2092, 16
    %v2353 = vrot.slane %v2351, 2
    %v2354 = vor.u32 %v2350, %v2353
    %v2355 = vsel %vm2096, %v2336, %v2354
    %v2357 = vshrl.u32 %v2093, 16
    %v2359 = vrot.slane %v2357, 1
    %v2360 = vshll.u32 %v2093, 16
    %v2362 = vrot.slane %v2360, 2
    %v2363 = vor.u32 %v2359, %v2362
    %v2364 = vsel %vm2096, %v2345, %v2363
    %v2366 = vshrl.u32 %v2094, 16
    %v2368 = vrot.slane %v2366, 1
    %v2369 = vshll.u32 %v2094, 16
    %v2371 = vrot.slane %v2369, 2
    %v2372 = vor.u32 %v2368, %v2371
    %v2373 = vsel %vm2096, %v2354, %v2372
    %v2375 = vshrl.u32 %v2095, 16
    %v2377 = vrot.slane %v2375, 1
    %v2378 = vshll.u32 %v2095, 16
    %v2380 = vrot.slane %v2378, 2
    %v2381 = vor.u32 %v2377, %v2380
    %v2382 = vsel %vm2096, %v2363, %v2381
    %2415 = vst [vmem:[#allocation3 + $0x30] sm:$0xff] %v2113
    %2416 = vst [vmem:[#allocation3 + $0x38] sm:$0xff] %v2130
    %2417 = vst [vmem:[#allocation3 + $0xa0] sm:$0xff] %v2139
    %2418 = vst [vmem:[#allocation3 + $0xa8] sm:$0xff] %v2148
    %2419 = vst [vmem:[#allocation3 + $0x110] sm:$0xff] %v2157
    %2420 = vst [vmem:[#allocation3 + $0x118] sm:$0xff] %v2166
    %2421 = vst [vmem:[#allocation3 + $0x180] sm:$0xff] %v2175
    %2422 = vst [vmem:[#allocation3 + $0x188] sm:$0xff] %v2184
    %2423 = vst [vmem:[#allocation3 + $0x1f0] sm:$0xff] %v2193
    %2424 = vst [vmem:[#allocation3 + $0x1f8] sm:$0xff] %v2202
    %2425 = vst [vmem:[#allocation3 + $0x260] sm:$0xff] %v2211
    %2426 = vst [vmem:[#allocation3 + $0x268] sm:$0xff] %v2220
    %2427 = vst [vmem:[#allocation3 + $0x2d0] sm:$0xff] %v2229
    %2428 = vst [vmem:[#allocation3 + $0x2d8] sm:$0xff] %v2238
    %2429 = vst [vmem:[#allocation3 + $0x340] sm:$0xff] %v2247
    %2430 = vst [vmem:[#allocation3 + $0x348] sm:$0xff] %v2256
    %2431 = vst [vmem:[#allocation3 + $0x3b0] sm:$0xff] %v2265
    %2432 = vst [vmem:[#allocation3 + $0x3b8] sm:$0xff] %v2274
    %2433 = vst [vmem:[#allocation3 + $0x420] sm:$0xff] %v2283
    %2434 = vst [vmem:[#allocation3 + $0x428] sm:$0xff] %v2292
    %2435 = vst [vmem:[#allocation3 + $0x490] sm:$0xff] %v2301
    %2436 = vst [vmem:[#allocation3 + $0x498] sm:$0xff] %v2310
    %2437 = vst [vmem:[#allocation3 + $0x500] sm:$0xff] %v2319
    %2438 = vst [vmem:[#allocation3 + $0x508] sm:$0xff] %v2328
    %2439 = vst [vmem:[#allocation3 + $0x570] sm:$0xff] %v2337
    %2440 = vst [vmem:[#allocation3 + $0x578] sm:$0xff] %v2346
    %2441 = vst [vmem:[#allocation3 + $0x5e0] sm:$0xff] %v2355
    %2442 = vst [vmem:[#allocation3 + $0x5e8] sm:$0xff] %v2364
    %2443 = vst [vmem:[#allocation3 + $0x650] sm:$0xff] %v2373
    %2444 = vst [vmem:[#allocation3 + $0x658] sm:$0xff] %v2382
    %vm2445 = vmand %vm1937, %vm2096
    %v2446 = vld [vmem:[#allocation3 + $0x6c0] sm:$0x7f]
    %v2447 = vsel %vm2445, %v2372, %v2446
    %2448 = vst [vmem:[#allocation3 + $0x6c0] sm:$0x7f] %v2447
    %v2449 = vld [vmem:[#allocation3 + $0x6c8] sm:$0x7f]
    %v2450 = vsel %vm2445, %v2381, %v2449
    %2451 = vst [vmem:[#allocation3 + $0x6c8] sm:$0x7f] %v2450
    %v2452 = vld [vmem:[#allocation3] sm:$0xfc]
    %v2453 = vld [vmem:[#allocation3 + $0x8] sm:$0xfc]
    %v2454 = vld [vmem:[#allocation3 + $0x70] sm:$0xff]
    %v2455 = vld [vmem:[#allocation3 + $0x78] sm:$0xff]
    %v2456 = vld [vmem:[#allocation3 + $0xe0] sm:$0xff]
    %v2457 = vld [vmem:[#allocation3 + $0xe8] sm:$0xff]
    %v2458 = vld [vmem:[#allocation3 + $0x150] sm:$0xff]
    %v2459 = vld [vmem:[#allocation3 + $0x158] sm:$0xff]
    %v2460 = vld [vmem:[#allocation3 + $0x1c0] sm:$0xff]
    %v2461 = vld [vmem:[#allocation3 + $0x1c8] sm:$0xff]
    %v2462 = vld [vmem:[#allocation3 + $0x230] sm:$0xff]
    %v2463 = vld [vmem:[#allocation3 + $0x238] sm:$0xff]
    %v2464 = vld [vmem:[#allocation3 + $0x2a0] sm:$0xff]
    %v2465 = vld [vmem:[#allocation3 + $0x2a8] sm:$0xff]
    %v2466 = vld [vmem:[#allocation3 + $0x310] sm:$0xff]
    %v2467 = vld [vmem:[#allocation3 + $0x318] sm:$0xff]
    %v2468 = vld [vmem:[#allocation3 + $0x380] sm:$0xff]
    %v2469 = vld [vmem:[#allocation3 + $0x388] sm:$0xff]
    %v2470 = vld [vmem:[#allocation3 + $0x3f0] sm:$0xff]
    %v2471 = vld [vmem:[#allocation3 + $0x3f8] sm:$0xff]
    %v2472 = vld [vmem:[#allocation3 + $0x460] sm:$0xff]
    %v2473 = vld [vmem:[#allocation3 + $0x468] sm:$0xff]
    %v2474 = vld [vmem:[#allocation3 + $0x4d0] sm:$0xff]
    %v2475 = vld [vmem:[#allocation3 + $0x4d8] sm:$0xff]
    %v2476 = vld [vmem:[#allocation3 + $0x540] sm:$0xff]
    %v2477 = vld [vmem:[#allocation3 + $0x548] sm:$0xff]
    %v2478 = vld [vmem:[#allocation3 + $0x5b0] sm:$0xff]
    %v2479 = vld [vmem:[#allocation3 + $0x5b8] sm:$0xff]
    %v2480 = vld [vmem:[#allocation3 + $0x620] sm:$0xff]
    %v2481 = vld [vmem:[#allocation3 + $0x628] sm:$0xff]
    %v2482 = vld [vmem:[#allocation3 + $0x690] sm:$0xff]
    %v2483 = vld [vmem:[#allocation3 + $0x698] sm:$0xff]
    %vm2516 = vcmask 1045504
    %v2517 = vrot.slane %v2452, 2
    %v2518 = vrot.slane %v2454, 2
    %v2519 = vsel %vm2516, %v2517, %v2518
    %v2520 = vrot.slane %v2453, 2
    %v2521 = vrot.slane %v2455, 2
    %v2522 = vsel %vm2516, %v2520, %v2521
    %v2523 = vrot.slane %v2456, 2
    %v2524 = vsel %vm2516, %v2518, %v2523
    %v2525 = vrot.slane %v2457, 2
    %v2526 = vsel %vm2516, %v2521, %v2525
    %v2527 = vrot.slane %v2458, 2
    %v2528 = vsel %vm2516, %v2523, %v2527
    %v2529 = vrot.slane %v2459, 2
    %v2530 = vsel %vm2516, %v2525, %v2529
    %v2531 = vrot.slane %v2460, 2
    %v2532 = vsel %vm2516, %v2527, %v2531
    %v2533 = vrot.slane %v2461, 2
    %v2534 = vsel %vm2516, %v2529, %v2533
    %v2535 = vrot.slane %v2462, 2
    %v2536 = vsel %vm2516, %v2531, %v2535
    %v2537 = vrot.slane %v2463, 2
    %v2538 = vsel %vm2516, %v2533, %v2537
    %v2539 = vrot.slane %v2464, 2
    %v2540 = vsel %vm2516, %v2535, %v2539
    %v2541 = vrot.slane %v2465, 2
    %v2542 = vsel %vm2516, %v2537, %v2541
    %v2543 = vrot.slane %v2466, 2
    %v2544 = vsel %vm2516, %v2539, %v2543
    %v2545 = vrot.slane %v2467, 2
    %v2546 = vsel %vm2516, %v2541, %v2545
    %v2547 = vrot.slane %v2468, 2
    %v2548 = vsel %vm2516, %v2543, %v2547
    %v2549 = vrot.slane %v2469, 2
    %v2550 = vsel %vm2516, %v2545, %v2549
    %v2551 = vrot.slane %v2470, 2
    %v2552 = vsel %vm2516, %v2547, %v2551
    %v2553 = vrot.slane %v2471, 2
    %v2554 = vsel %vm2516, %v2549, %v2553
    %v2555 = vrot.slane %v2472, 2
    %v2556 = vsel %vm2516, %v2551, %v2555
    %v2557 = vrot.slane %v2473, 2
    %v2558 = vsel %vm2516, %v2553, %v2557
    %v2559 = vrot.slane %v2474, 2
    %v2560 = vsel %vm2516, %v2555, %v2559
    %v2561 = vrot.slane %v2475, 2
    %v2562 = vsel %vm2516, %v2557, %v2561
    %v2563 = vrot.slane %v2476, 2
    %v2564 = vsel %vm2516, %v2559, %v2563
    %v2565 = vrot.slane %v2477, 2
    %v2566 = vsel %vm2516, %v2561, %v2565
    %v2567 = vrot.slane %v2478, 2
    %v2568 = vsel %vm2516, %v2563, %v2567
    %v2569 = vrot.slane %v2479, 2
    %v2570 = vsel %vm2516, %v2565, %v2569
    %v2571 = vrot.slane %v2480, 2
    %v2572 = vsel %vm2516, %v2567, %v2571
    %v2573 = vrot.slane %v2481, 2
    %v2574 = vsel %vm2516, %v2569, %v2573
    %v2575 = vrot.slane %v2482, 2
    %v2576 = vsel %vm2516, %v2571, %v2575
    %v2577 = vrot.slane %v2483, 2
    %v2578 = vsel %vm2516, %v2573, %v2577
    %2611 = vst [vmem:[#allocation3 + $0x40] sm:$0xff] %v2519
    %2612 = vst [vmem:[#allocation3 + $0x48] sm:$0xff] %v2522
    %2613 = vst [vmem:[#allocation3 + $0xb0] sm:$0xff] %v2524
    %2614 = vst [vmem:[#allocation3 + $0xb8] sm:$0xff] %v2526
    %2615 = vst [vmem:[#allocation3 + $0x120] sm:$0xff] %v2528
    %2616 = vst [vmem:[#allocation3 + $0x128] sm:$0xff] %v2530
    %2617 = vst [vmem:[#allocation3 + $0x190] sm:$0xff] %v2532
    %2618 = vst [vmem:[#allocation3 + $0x198] sm:$0xff] %v2534
    %2619 = vst [vmem:[#allocation3 + $0x200] sm:$0xff] %v2536
    %2620 = vst [vmem:[#allocation3 + $0x208] sm:$0xff] %v2538
    %2621 = vst [vmem:[#allocation3 + $0x270] sm:$0xff] %v2540
    %2622 = vst [vmem:[#allocation3 + $0x278] sm:$0xff] %v2542
    %2623 = vst [vmem:[#allocation3 + $0x2e0] sm:$0xff] %v2544
    %2624 = vst [vmem:[#allocation3 + $0x2e8] sm:$0xff] %v2546
    %2625 = vst [vmem:[#allocation3 + $0x350] sm:$0xff] %v2548
    %2626 = vst [vmem:[#allocation3 + $0x358] sm:$0xff] %v2550
    %2627 = vst [vmem:[#allocation3 + $0x3c0] sm:$0xff] %v2552
    %2628 = vst [vmem:[#allocation3 + $0x3c8] sm:$0xff] %v2554
    %2629 = vst [vmem:[#allocation3 + $0x430] sm:$0xff] %v2556
    %2630 = vst [vmem:[#allocation3 + $0x438] sm:$0xff] %v2558
    %2631 = vst [vmem:[#allocation3 + $0x4a0] sm:$0xff] %v2560
    %2632 = vst [vmem:[#allocation3 + $0x4a8] sm:$0xff] %v2562
    %2633 = vst [vmem:[#allocation3 + $0x510] sm:$0xff] %v2564
    %2634 = vst [vmem:[#allocation3 + $0x518] sm:$0xff] %v2566
    %2635 = vst [vmem:[#allocation3 + $0x580] sm:$0xff] %v2568
    %2636 = vst [vmem:[#allocation3 + $0x588] sm:$0xff] %v2570
    %2637 = vst [vmem:[#allocation3 + $0x5f0] sm:$0xff] %v2572
    %2638 = vst [vmem:[#allocation3 + $0x5f8] sm:$0xff] %v2574
    %2639 = vst [vmem:[#allocation3 + $0x660] sm:$0xff] %v2576
    %2640 = vst [vmem:[#allocation3 + $0x668] sm:$0xff] %v2578
    %2641 = vst [vmem:[#allocation3 + $0x6d0] sm:$0x3f] %v2575
    %2642 = vst [vmem:[#allocation3 + $0x6d8] sm:$0x3f] %v2577
    %v2643 = vld [vmem:[#allocation3] sm:$0xfc]
    %v2644 = vld [vmem:[#allocation3 + $0x8] sm:$0xfc]
    %v2645 = vld [vmem:[#allocation3 + $0x70] sm:$0xff]
    %v2646 = vld [vmem:[#allocation3 + $0x78] sm:$0xff]
    %v2647 = vld [vmem:[#allocation3 + $0xe0] sm:$0xff]
    %v2648 = vld [vmem:[#allocation3 + $0xe8] sm:$0xff]
    %v2649 = vld [vmem:[#allocation3 + $0x150] sm:$0xff]
    %v2650 = vld [vmem:[#allocation3 + $0x158] sm:$0xff]
    %v2651 = vld [vmem:[#allocation3 + $0x1c0] sm:$0xff]
    %v2652 = vld [vmem:[#allocation3 + $0x1c8] sm:$0xff]
    %v2653 = vld [vmem:[#allocation3 + $0x230] sm:$0xff]
    %v2654 = vld [vmem:[#allocation3 + $0x238] sm:$0xff]
    %v2655 = vld [vmem:[#allocation3 + $0x2a0] sm:$0xff]
    %v2656 = vld [vmem:[#allocation3 + $0x2a8] sm:$0xff]
    %v2657 = vld [vmem:[#allocation3 + $0x310] sm:$0xff]
    %v2658 = vld [vmem:[#allocation3 + $0x318] sm:$0xff]
    %v2659 = vld [vmem:[#allocation3 + $0x380] sm:$0xff]
    %v2660 = vld [vmem:[#allocation3 + $0x388] sm:$0xff]
    %v2661 = vld [vmem:[#allocation3 + $0x3f0] sm:$0xff]
    %v2662 = vld [vmem:[#allocation3 + $0x3f8] sm:$0xff]
    %v2663 = vld [vmem:[#allocation3 + $0x460] sm:$0xff]
    %v2664 = vld [vmem:[#allocation3 + $0x468] sm:$0xff]
    %v2665 = vld [vmem:[#allocation3 + $0x4d0] sm:$0xff]
    %v2666 = vld [vmem:[#allocation3 + $0x4d8] sm:$0xff]
    %v2667 = vld [vmem:[#allocation3 + $0x540] sm:$0xff]
    %v2668 = vld [vmem:[#allocation3 + $0x548] sm:$0xff]
    %v2669 = vld [vmem:[#allocation3 + $0x5b0] sm:$0xff]
    %v2670 = vld [vmem:[#allocation3 + $0x5b8] sm:$0xff]
    %v2671 = vld [vmem:[#allocation3 + $0x620] sm:$0xff]
    %v2672 = vld [vmem:[#allocation3 + $0x628] sm:$0xff]
    %v2673 = vld [vmem:[#allocation3 + $0x690] sm:$0xff]
    %v2674 = vld [vmem:[#allocation3 + $0x698] sm:$0xff]
    %vm2675 = vsmask.f32 5376
    %v2677 = vshrl.u32 %v2643, 16
    %v2679 = vrot.slane %v2677, 2
    %v2680 = vshll.u32 %v2643, 16
    %v2682 = vrot.slane %v2680, 3
    %v2683 = vor.u32 %v2679, %v2682
    %v2685 = vshrl.u32 %v2645, 16
    %v2687 = vrot.slane %v2685, 2
    %v2688 = vshll.u32 %v2645, 16
    %v2690 = vrot.slane %v2688, 3
    %v2691 = vor.u32 %v2687, %v2690
    %v2692 = vsel %vm2675, %v2683, %v2691
    %v2694 = vshrl.u32 %v2644, 16
    %v2696 = vrot.slane %v2694, 2
    %v2697 = vshll.u32 %v2644, 16
    %v2699 = vrot.slane %v2697, 3
    %v2700 = vor.u32 %v2696, %v2699
    %v2702 = vshrl.u32 %v2646, 16
    %v2704 = vrot.slane %v2702, 2
    %v2705 = vshll.u32 %v2646, 16
    %v2707 = vrot.slane %v2705, 3
    %v2708 = vor.u32 %v2704, %v2707
    %v2709 = vsel %vm2675, %v2700, %v2708
    %v2711 = vshrl.u32 %v2647, 16
    %v2713 = vrot.slane %v2711, 2
    %v2714 = vshll.u32 %v2647, 16
    %v2716 = vrot.slane %v2714, 3
    %v2717 = vor.u32 %v2713, %v2716
    %v2718 = vsel %vm2675, %v2691, %v2717
    %v2720 = vshrl.u32 %v2648, 16
    %v2722 = vrot.slane %v2720, 2
    %v2723 = vshll.u32 %v2648, 16
    %v2725 = vrot.slane %v2723, 3
    %v2726 = vor.u32 %v2722, %v2725
    %v2727 = vsel %vm2675, %v2708, %v2726
    %v2729 = vshrl.u32 %v2649, 16
    %v2731 = vrot.slane %v2729, 2
    %v2732 = vshll.u32 %v2649, 16
    %v2734 = vrot.slane %v2732, 3
    %v2735 = vor.u32 %v2731, %v2734
    %v2736 = vsel %vm2675, %v2717, %v2735
    %v2738 = vshrl.u32 %v2650, 16
    %v2740 = vrot.slane %v2738, 2
    %v2741 = vshll.u32 %v2650, 16
    %v2743 = vrot.slane %v2741, 3
    %v2744 = vor.u32 %v2740, %v2743
    %v2745 = vsel %vm2675, %v2726, %v2744
    %v2747 = vshrl.u32 %v2651, 16
    %v2749 = vrot.slane %v2747, 2
    %v2750 = vshll.u32 %v2651, 16
    %v2752 = vrot.slane %v2750, 3
    %v2753 = vor.u32 %v2749, %v2752
    %v2754 = vsel %vm2675, %v2735, %v2753
    %v2756 = vshrl.u32 %v2652, 16
    %v2758 = vrot.slane %v2756, 2
    %v2759 = vshll.u32 %v2652, 16
    %v2761 = vrot.slane %v2759, 3
    %v2762 = vor.u32 %v2758, %v2761
    %v2763 = vsel %vm2675, %v2744, %v2762
    %v2765 = vshrl.u32 %v2653, 16
    %v2767 = vrot.slane %v2765, 2
    %v2768 = vshll.u32 %v2653, 16
    %v2770 = vrot.slane %v2768, 3
    %v2771 = vor.u32 %v2767, %v2770
    %v2772 = vsel %vm2675, %v2753, %v2771
    %v2774 = vshrl.u32 %v2654, 16
    %v2776 = vrot.slane %v2774, 2
    %v2777 = vshll.u32 %v2654, 16
    %v2779 = vrot.slane %v2777, 3
    %v2780 = vor.u32 %v2776, %v2779
    %v2781 = vsel %vm2675, %v2762, %v2780
    %v2783 = vshrl.u32 %v2655, 16
    %v2785 = vrot.slane %v2783, 2
    %v2786 = vshll.u32 %v2655, 16
    %v2788 = vrot.slane %v2786, 3
    %v2789 = vor.u32 %v2785, %v2788
    %v2790 = vsel %vm2675, %v2771, %v2789
    %v2792 = vshrl.u32 %v2656, 16
    %v2794 = vrot.slane %v2792, 2
    %v2795 = vshll.u32 %v2656, 16
    %v2797 = vrot.slane %v2795, 3
    %v2798 = vor.u32 %v2794, %v2797
    %v2799 = vsel %vm2675, %v2780, %v2798
    %v2801 = vshrl.u32 %v2657, 16
    %v2803 = vrot.slane %v2801, 2
    %v2804 = vshll.u32 %v2657, 16
    %v2806 = vrot.slane %v2804, 3
    %v2807 = vor.u32 %v2803, %v2806
    %v2808 = vsel %vm2675, %v2789, %v2807
    %v2810 = vshrl.u32 %v2658, 16
    %v2812 = vrot.slane %v2810, 2
    %v2813 = vshll.u32 %v2658, 16
    %v2815 = vrot.slane %v2813, 3
    %v2816 = vor.u32 %v2812, %v2815
    %v2817 = vsel %vm2675, %v2798, %v2816
    %v2819 = vshrl.u32 %v2659, 16
    %v2821 = vrot.slane %v2819, 2
    %v2822 = vshll.u32 %v2659, 16
    %v2824 = vrot.slane %v2822, 3
    %v2825 = vor.u32 %v2821, %v2824
    %v2826 = vsel %vm2675, %v2807, %v2825
    %v2828 = vshrl.u32 %v2660, 16
    %v2830 = vrot.slane %v2828, 2
    %v2831 = vshll.u32 %v2660, 16
    %v2833 = vrot.slane %v2831, 3
    %v2834 = vor.u32 %v2830, %v2833
    %v2835 = vsel %vm2675, %v2816, %v2834
    %v2837 = vshrl.u32 %v2661, 16
    %v2839 = vrot.slane %v2837, 2
    %v2840 = vshll.u32 %v2661, 16
    %v2842 = vrot.slane %v2840, 3
    %v2843 = vor.u32 %v2839, %v2842
    %v2844 = vsel %vm2675, %v2825, %v2843
    %v2846 = vshrl.u32 %v2662, 16
    %v2848 = vrot.slane %v2846, 2
    %v2849 = vshll.u32 %v2662, 16
    %v2851 = vrot.slane %v2849, 3
    %v2852 = vor.u32 %v2848, %v2851
    %v2853 = vsel %vm2675, %v2834, %v2852
    %v2855 = vshrl.u32 %v2663, 16
    %v2857 = vrot.slane %v2855, 2
    %v2858 = vshll.u32 %v2663, 16
    %v2860 = vrot.slane %v2858, 3
    %v2861 = vor.u32 %v2857, %v2860
    %v2862 = vsel %vm2675, %v2843, %v2861
    %v2864 = vshrl.u32 %v2664, 16
    %v2866 = vrot.slane %v2864, 2
    %v2867 = vshll.u32 %v2664, 16
    %v2869 = vrot.slane %v2867, 3
    %v2870 = vor.u32 %v2866, %v2869
    %v2871 = vsel %vm2675, %v2852, %v2870
    %v2873 = vshrl.u32 %v2665, 16
    %v2875 = vrot.slane %v2873, 2
    %v2876 = vshll.u32 %v2665, 16
    %v2878 = vrot.slane %v2876, 3
    %v2879 = vor.u32 %v2875, %v2878
    %v2880 = vsel %vm2675, %v2861, %v2879
    %v2882 = vshrl.u32 %v2666, 16
    %v2884 = vrot.slane %v2882, 2
    %v2885 = vshll.u32 %v2666, 16
    %v2887 = vrot.slane %v2885, 3
    %v2888 = vor.u32 %v2884, %v2887
    %v2889 = vsel %vm2675, %v2870, %v2888
    %v2891 = vshrl.u32 %v2667, 16
    %v2893 = vrot.slane %v2891, 2
    %v2894 = vshll.u32 %v2667, 16
    %v2896 = vrot.slane %v2894, 3
    %v2897 = vor.u32 %v2893, %v2896
    %v2898 = vsel %vm2675, %v2879, %v2897
    %v2900 = vshrl.u32 %v2668, 16
    %v2902 = vrot.slane %v2900, 2
    %v2903 = vshll.u32 %v2668, 16
    %v2905 = vrot.slane %v2903, 3
    %v2906 = vor.u32 %v2902, %v2905
    %v2907 = vsel %vm2675, %v2888, %v2906
    %v2909 = vshrl.u32 %v2669, 16
    %v2911 = vrot.slane %v2909, 2
    %v2912 = vshll.u32 %v2669, 16
    %v2914 = vrot.slane %v2912, 3
    %v2915 = vor.u32 %v2911, %v2914
    %v2916 = vsel %vm2675, %v2897, %v2915
    %v2918 = vshrl.u32 %v2670, 16
    %v2920 = vrot.slane %v2918, 2
    %v2921 = vshll.u32 %v2670, 16
    %v2923 = vrot.slane %v2921, 3
    %v2924 = vor.u32 %v2920, %v2923
    %v2925 = vsel %vm2675, %v2906, %v2924
    %v2927 = vshrl.u32 %v2671, 16
    %v2929 = vrot.slane %v2927, 2
    %v2930 = vshll.u32 %v2671, 16
    %v2932 = vrot.slane %v2930, 3
    %v2933 = vor.u32 %v2929, %v2932
    %v2934 = vsel %vm2675, %v2915, %v2933
    %v2936 = vshrl.u32 %v2672, 16
    %v2938 = vrot.slane %v2936, 2
    %v2939 = vshll.u32 %v2672, 16
    %v2941 = vrot.slane %v2939, 3
    %v2942 = vor.u32 %v2938, %v2941
    %v2943 = vsel %vm2675, %v2924, %v2942
    %v2945 = vshrl.u32 %v2673, 16
    %v2947 = vrot.slane %v2945, 2
    %v2948 = vshll.u32 %v2673, 16
    %v2950 = vrot.slane %v2948, 3
    %v2951 = vor.u32 %v2947, %v2950
    %v2952 = vsel %vm2675, %v2933, %v2951
    %v2954 = vshrl.u32 %v2674, 16
    %v2956 = vrot.slane %v2954, 2
    %v2957 = vshll.u32 %v2674, 16
    %v2959 = vrot.slane %v2957, 3
    %v2960 = vor.u32 %v2956, %v2959
    %v2961 = vsel %vm2675, %v2942, %v2960
    %2994 = vst [vmem:[#allocation3 + $0x50] sm:$0xff] %v2692
    %2995 = vst [vmem:[#allocation3 + $0x58] sm:$0xff] %v2709
    %2996 = vst [vmem:[#allocation3 + $0xc0] sm:$0xff] %v2718
    %2997 = vst [vmem:[#allocation3 + $0xc8] sm:$0xff] %v2727
    %2998 = vst [vmem:[#allocation3 + $0x130] sm:$0xff] %v2736
    %2999 = vst [vmem:[#allocation3 + $0x138] sm:$0xff] %v2745
    %3000 = vst [vmem:[#allocation3 + $0x1a0] sm:$0xff] %v2754
    %3001 = vst [vmem:[#allocation3 + $0x1a8] sm:$0xff] %v2763
    %3002 = vst [vmem:[#allocation3 + $0x210] sm:$0xff] %v2772
    %3003 = vst [vmem:[#allocation3 + $0x218] sm:$0xff] %v2781
    %3004 = vst [vmem:[#allocation3 + $0x280] sm:$0xff] %v2790
    %3005 = vst [vmem:[#allocation3 + $0x288] sm:$0xff] %v2799
    %3006 = vst [vmem:[#allocation3 + $0x2f0] sm:$0xff] %v2808
    %3007 = vst [vmem:[#allocation3 + $0x2f8] sm:$0xff] %v2817
    %3008 = vst [vmem:[#allocation3 + $0x360] sm:$0xff] %v2826
    %3009 = vst [vmem:[#allocation3 + $0x368] sm:$0xff] %v2835
    %3010 = vst [vmem:[#allocation3 + $0x3d0] sm:$0xff] %v2844
    %3011 = vst [vmem:[#allocation3 + $0x3d8] sm:$0xff] %v2853
    %3012 = vst [vmem:[#allocation3 + $0x440] sm:$0xff] %v2862
    %3013 = vst [vmem:[#allocation3 + $0x448] sm:$0xff] %v2871
    %3014 = vst [vmem:[#allocation3 + $0x4b0] sm:$0xff] %v2880
    %3015 = vst [vmem:[#allocation3 + $0x4b8] sm:$0xff] %v2889
    %3016 = vst [vmem:[#allocation3 + $0x520] sm:$0xff] %v2898
    %3017 = vst [vmem:[#allocation3 + $0x528] sm:$0xff] %v2907
    %3018 = vst [vmem:[#allocation3 + $0x590] sm:$0xff] %v2916
    %3019 = vst [vmem:[#allocation3 + $0x598] sm:$0xff] %v2925
    %3020 = vst [vmem:[#allocation3 + $0x600] sm:$0xff] %v2934
    %3021 = vst [vmem:[#allocation3 + $0x608] sm:$0xff] %v2943
    %3022 = vst [vmem:[#allocation3 + $0x670] sm:$0xff] %v2952
    %3023 = vst [vmem:[#allocation3 + $0x678] sm:$0xff] %v2961
    %vm3024 = vmand %vm2516, %vm2675
    %v3025 = vld [vmem:[#allocation3 + $0x6e0] sm:$0x3f]
    %v3026 = vsel %vm3024, %v2951, %v3025
    %3027 = vst [vmem:[#allocation3 + $0x6e0] sm:$0x3f] %v3026
    %v3028 = vld [vmem:[#allocation3 + $0x6e8] sm:$0x3f]
    %v3029 = vsel %vm3024, %v2960, %v3028
    %3030 = vst [vmem:[#allocation3 + $0x6e8] sm:$0x3f] %v3029
    %v3031 = vld [vmem:[#allocation3] sm:$0xf8]
    %v3032 = vld [vmem:[#allocation3 + $0x8] sm:$0xf8]
    %v3033 = vld [vmem:[#allocation3 + $0x70] sm:$0xff]
    %v3034 = vld [vmem:[#allocation3 + $0x78] sm:$0xff]
    %v3035 = vld [vmem:[#allocation3 + $0xe0] sm:$0xff]
    %v3036 = vld [vmem:[#allocation3 + $0xe8] sm:$0xff]
    %v3037 = vld [vmem:[#allocation3 + $0x150] sm:$0xff]
    %v3038 = vld [vmem:[#allocation3 + $0x158] sm:$0xff]
    %v3039 = vld [vmem:[#allocation3 + $0x1c0] sm:$0xff]
    %v3040 = vld [vmem:[#allocation3 + $0x1c8] sm:$0xff]
    %v3041 = vld [vmem:[#allocation3 + $0x230] sm:$0xff]
    %v3042 = vld [vmem:[#allocation3 + $0x238] sm:$0xff]
    %v3043 = vld [vmem:[#allocation3 + $0x2a0] sm:$0xff]
    %v3044 = vld [vmem:[#allocation3 + $0x2a8] sm:$0xff]
    %v3045 = vld [vmem:[#allocation3 + $0x310] sm:$0xff]
    %v3046 = vld [vmem:[#allocation3 + $0x318] sm:$0xff]
    %v3047 = vld [vmem:[#allocation3 + $0x380] sm:$0xff]
    %v3048 = vld [vmem:[#allocation3 + $0x388] sm:$0xff]
    %v3049 = vld [vmem:[#allocation3 + $0x3f0] sm:$0xff]
    %v3050 = vld [vmem:[#allocation3 + $0x3f8] sm:$0xff]
    %v3051 = vld [vmem:[#allocation3 + $0x460] sm:$0xff]
    %v3052 = vld [vmem:[#allocation3 + $0x468] sm:$0xff]
    %v3053 = vld [vmem:[#allocation3 + $0x4d0] sm:$0xff]
    %v3054 = vld [vmem:[#allocation3 + $0x4d8] sm:$0xff]
    %v3055 = vld [vmem:[#allocation3 + $0x540] sm:$0xff]
    %v3056 = vld [vmem:[#allocation3 + $0x548] sm:$0xff]
    %v3057 = vld [vmem:[#allocation3 + $0x5b0] sm:$0xff]
    %v3058 = vld [vmem:[#allocation3 + $0x5b8] sm:$0xff]
    %v3059 = vld [vmem:[#allocation3 + $0x620] sm:$0xff]
    %v3060 = vld [vmem:[#allocation3 + $0x628] sm:$0xff]
    %v3061 = vld [vmem:[#allocation3 + $0x690] sm:$0xff]
    %v3062 = vld [vmem:[#allocation3 + $0x698] sm:$0xff]
    %vm3095 = vcmask 1044480
    %v3096 = vrot.slane %v3031, 3
    %v3097 = vrot.slane %v3033, 3
    %v3098 = vsel %vm3095, %v3096, %v3097
    %v3099 = vrot.slane %v3032, 3
    %v3100 = vrot.slane %v3034, 3
    %v3101 = vsel %vm3095, %v3099, %v3100
    %v3102 = vrot.slane %v3035, 3
    %v3103 = vsel %vm3095, %v3097, %v3102
    %v3104 = vrot.slane %v3036, 3
    %v3105 = vsel %vm3095, %v3100, %v3104
    %v3106 = vrot.slane %v3037, 3
    %v3107 = vsel %vm3095, %v3102, %v3106
    %v3108 = vrot.slane %v3038, 3
    %v3109 = vsel %vm3095, %v3104, %v3108
    %v3110 = vrot.slane %v3039, 3
    %v3111 = vsel %vm3095, %v3106, %v3110
    %v3112 = vrot.slane %v3040, 3
    %v3113 = vsel %vm3095, %v3108, %v3112
    %v3114 = vrot.slane %v3041, 3
    %v3115 = vsel %vm3095, %v3110, %v3114
    %v3116 = vrot.slane %v3042, 3
    %v3117 = vsel %vm3095, %v3112, %v3116
    %v3118 = vrot.slane %v3043, 3
    %v3119 = vsel %vm3095, %v3114, %v3118
    %v3120 = vrot.slane %v3044, 3
    %v3121 = vsel %vm3095, %v3116, %v3120
    %v3122 = vrot.slane %v3045, 3
    %v3123 = vsel %vm3095, %v3118, %v3122
    %v3124 = vrot.slane %v3046, 3
    %v3125 = vsel %vm3095, %v3120, %v3124
    %v3126 = vrot.slane %v3047, 3
    %v3127 = vsel %vm3095, %v3122, %v3126
    %v3128 = vrot.slane %v3048, 3
    %v3129 = vsel %vm3095, %v3124, %v3128
    %v3130 = vrot.slane %v3049, 3
    %v3131 = vsel %vm3095, %v3126, %v3130
    %v3132 = vrot.slane %v3050, 3
    %v3133 = vsel %vm3095, %v3128, %v3132
    %v3134 = vrot.slane %v3051, 3
    %v3135 = vsel %vm3095, %v3130, %v3134
    %v3136 = vrot.slane %v3052, 3
    %v3137 = vsel %vm3095, %v3132, %v3136
    %v3138 = vrot.slane %v3053, 3
    %v3139 = vsel %vm3095, %v3134, %v3138
    %v3140 = vrot.slane %v3054, 3
    %v3141 = vsel %vm3095, %v3136, %v3140
    %v3142 = vrot.slane %v3055, 3
    %v3143 = vsel %vm3095, %v3138, %v3142
    %v3144 = vrot.slane %v3056, 3
    %v3145 = vsel %vm3095, %v3140, %v3144
    %v3146 = vrot.slane %v3057, 3
    %v3147 = vsel %vm3095, %v3142, %v3146
    %v3148 = vrot.slane %v3058, 3
    %v3149 = vsel %vm3095, %v3144, %v3148
    %v3150 = vrot.slane %v3059, 3
    %v3151 = vsel %vm3095, %v3146, %v3150
    %v3152 = vrot.slane %v3060, 3
    %v3153 = vsel %vm3095, %v3148, %v3152
    %v3154 = vrot.slane %v3061, 3
    %v3155 = vsel %vm3095, %v3150, %v3154
    %v3156 = vrot.slane %v3062, 3
    %v3157 = vsel %vm3095, %v3152, %v3156
    %3190 = vst [vmem:[#allocation3 + $0x60] sm:$0xff] %v3098
    %3191 = vst [vmem:[#allocation3 + $0x68] sm:$0xff] %v3101
    %3192 = vst [vmem:[#allocation3 + $0xd0] sm:$0xff] %v3103
    %3193 = vst [vmem:[#allocation3 + $0xd8] sm:$0xff] %v3105
    %3194 = vst [vmem:[#allocation3 + $0x140] sm:$0xff] %v3107
    %3195 = vst [vmem:[#allocation3 + $0x148] sm:$0xff] %v3109
    %3196 = vst [vmem:[#allocation3 + $0x1b0] sm:$0xff] %v3111
    %3197 = vst [vmem:[#allocation3 + $0x1b8] sm:$0xff] %v3113
    %3198 = vst [vmem:[#allocation3 + $0x220] sm:$0xff] %v3115
    %3199 = vst [vmem:[#allocation3 + $0x228] sm:$0xff] %v3117
    %3200 = vst [vmem:[#allocation3 + $0x290] sm:$0xff] %v3119
    %3201 = vst [vmem:[#allocation3 + $0x298] sm:$0xff] %v3121
    %3202 = vst [vmem:[#allocation3 + $0x300] sm:$0xff] %v3123
    %3203 = vst [vmem:[#allocation3 + $0x308] sm:$0xff] %v3125
    %3204 = vst [vmem:[#allocation3 + $0x370] sm:$0xff] %v3127
    %3205 = vst [vmem:[#allocation3 + $0x378] sm:$0xff] %v3129
    %3206 = vst [vmem:[#allocation3 + $0x3e0] sm:$0xff] %v3131
    %3207 = vst [vmem:[#allocation3 + $0x3e8] sm:$0xff] %v3133
    %3208 = vst [vmem:[#allocation3 + $0x450] sm:$0xff] %v3135
    %3209 = vst [vmem:[#allocation3 + $0x458] sm:$0xff] %v3137
    %3210 = vst [vmem:[#allocation3 + $0x4c0] sm:$0xff] %v3139
    %3211 = vst [vmem:[#allocation3 + $0x4c8] sm:$0xff] %v3141
    %3212 = vst [vmem:[#allocation3 + $0x530] sm:$0xff] %v3143
    %3213 = vst [vmem:[#allocation3 + $0x538] sm:$0xff] %v3145
    %3214 = vst [vmem:[#allocation3 + $0x5a0] sm:$0xff] %v3147
    %3215 = vst [vmem:[#allocation3 + $0x5a8] sm:$0xff] %v3149
    %3216 = vst [vmem:[#allocation3 + $0x610] sm:$0xff] %v3151
    %3217 = vst [vmem:[#allocation3 + $0x618] sm:$0xff] %v3153
    %3218 = vst [vmem:[#allocation3 + $0x680] sm:$0xff] %v3155
    %3219 = vst [vmem:[#allocation3 + $0x688] sm:$0xff] %v3157
    %3220 = vst [vmem:[#allocation3 + $0x6f0] sm:$0x1f] %v3154
    %3221 = vst [vmem:[#allocation3 + $0x6f8] sm:$0x1f] %v3156
    %s3222 = smul.u32 4, 2
    %s3223 = smul.u32 %s3222, 98
    %s3224 = sshll.u32 %s3223, 4
    %3225 = dma.done [#allocation4], %s3224
    %v3226 = vld [vmem:[#allocation3] sm:$0xff]
    %v3227 = vld [vmem:[#allocation3 + $0x8] sm:$0xff]
    %v3228 = vld [vmem:[#allocation3 + $0x10] sm:$0xff]
    %v3229 = vld [vmem:[#allocation3 + $0x18] sm:$0xff]
    %v3230 = vld [vmem:[#allocation3 + $0x20] sm:$0xff]
    %v3231 = vld [vmem:[#allocation3 + $0x28] sm:$0xff]
    %v3232 = vld [vmem:[#allocation3 + $0x30] sm:$0xff]
    %v3233 = vld [vmem:[#allocation3 + $0x38] sm:$0xff]
    %v3234 = vld [vmem:[#allocation3 + $0x40] sm:$0xff]
    %v3235 = vld [vmem:[#allocation3 + $0x48] sm:$0xff]
    %v3236 = vld [vmem:[#allocation3 + $0x50] sm:$0xff]
    %v3237 = vld [vmem:[#allocation3 + $0x58] sm:$0xff]
    %v3238 = vld [vmem:[#allocation3 + $0x60] sm:$0xff]
    %v3239 = vld [vmem:[#allocation3 + $0x68] sm:$0xff]
    %v3240 = vld [vmem:[#allocation3 + $0x70] sm:$0xff]
    %v3241 = vld [vmem:[#allocation3 + $0x78] sm:$0xff]
    %v3242 = vld [vmem:[#allocation3 + $0x80] sm:$0xff]
    %v3243 = vld [vmem:[#allocation3 + $0x88] sm:$0xff]
    %v3244 = vld [vmem:[#allocation3 + $0x90] sm:$0xff]
    %v3245 = vld [vmem:[#allocation3 + $0x98] sm:$0xff]
    %v3246 = vld [vmem:[#allocation3 + $0xa0] sm:$0xff]
    %v3247 = vld [vmem:[#allocation3 + $0xa8] sm:$0xff]
    %v3248 = vld [vmem:[#allocation3 + $0xb0] sm:$0xff]
    %v3249 = vld [vmem:[#allocation3 + $0xb8] sm:$0xff]
    %v3250 = vld [vmem:[#allocation3 + $0xc0] sm:$0xff]
    %v3251 = vld [vmem:[#allocation3 + $0xc8] sm:$0xff]
    %v3252 = vld [vmem:[#allocation3 + $0xd0] sm:$0xff]
    %v3253 = vld [vmem:[#allocation3 + $0xd8] sm:$0xff]
    %v3254 = vld [vmem:[#allocation3 + $0xe0] sm:$0xff]
    %v3255 = vld [vmem:[#allocation3 + $0xe8] sm:$0xff]
    %v3256 = vld [vmem:[#allocation3 + $0xf0] sm:$0xff]
    %v3257 = vld [vmem:[#allocation3 + $0xf8] sm:$0xff]
    %v3258 = vld [vmem:[#allocation3 + $0x100] sm:$0xff]
    %v3259 = vld [vmem:[#allocation3 + $0x108] sm:$0xff]
    %v3260 = vld [vmem:[#allocation3 + $0x110] sm:$0xff]
    %v3261 = vld [vmem:[#allocation3 + $0x118] sm:$0xff]
    %v3262 = vld [vmem:[#allocation3 + $0x120] sm:$0xff]
    %v3263 = vld [vmem:[#allocation3 + $0x128] sm:$0xff]
    %v3264 = vld [vmem:[#allocation3 + $0x130] sm:$0xff]
    %v3265 = vld [vmem:[#allocation3 + $0x138] sm:$0xff]
    %v3266 = vld [vmem:[#allocation3 + $0x140] sm:$0xff]
    %v3267 = vld [vmem:[#allocation3 + $0x148] sm:$0xff]
    %v3268 = vld [vmem:[#allocation3 + $0x150] sm:$0xff]
    %v3269 = vld [vmem:[#allocation3 + $0x158] sm:$0xff]
    %v3270 = vld [vmem:[#allocation3 + $0x160] sm:$0xff]
    %v3271 = vld [vmem:[#allocation3 + $0x168] sm:$0xff]
    %v3272 = vld [vmem:[#allocation3 + $0x170] sm:$0xff]
    %v3273 = vld [vmem:[#allocation3 + $0x178] sm:$0xff]
    %v3274 = vld [vmem:[#allocation3 + $0x180] sm:$0xff]
    %v3275 = vld [vmem:[#allocation3 + $0x188] sm:$0xff]
    %v3276 = vld [vmem:[#allocation3 + $0x190] sm:$0xff]
    %v3277 = vld [vmem:[#allocation3 + $0x198] sm:$0xff]
    %v3278 = vld [vmem:[#allocation3 + $0x1a0] sm:$0xff]
    %v3279 = vld [vmem:[#allocation3 + $0x1a8] sm:$0xff]
    %v3280 = vld [vmem:[#allocation3 + $0x1b0] sm:$0xff]
    %v3281 = vld [vmem:[#allocation3 + $0x1b8] sm:$0xff]
    %v3282 = vld [vmem:[#allocation3 + $0x1c0] sm:$0xff]
    %v3283 = vld [vmem:[#allocation3 + $0x1c8] sm:$0xff]
    %v3284 = vld [vmem:[#allocation3 + $0x1d0] sm:$0xff]
    %v3285 = vld [vmem:[#allocation3 + $0x1d8] sm:$0xff]
    %v3286 = vld [vmem:[#allocation3 + $0x1e0] sm:$0xff]
    %v3287 = vld [vmem:[#allocation3 + $0x1e8] sm:$0xff]
    %v3288 = vld [vmem:[#allocation3 + $0x1f0] sm:$0xff]
    %v3289 = vld [vmem:[#allocation3 + $0x1f8] sm:$0xff]
    %v3290 = vld [vmem:[#allocation3 + $0x200] sm:$0xff]
    %v3291 = vld [vmem:[#allocation3 + $0x208] sm:$0xff]
    %v3292 = vld [vmem:[#allocation3 + $0x210] sm:$0xff]
    %v3293 = vld [vmem:[#allocation3 + $0x218] sm:$0xff]
    %v3294 = vld [vmem:[#allocation3 + $0x220] sm:$0xff]
    %v3295 = vld [vmem:[#allocation3 + $0x228] sm:$0xff]
    %v3296 = vld [vmem:[#allocation3 + $0x230] sm:$0xff]
    %v3297 = vld [vmem:[#allocation3 + $0x238] sm:$0xff]
    %v3298 = vld [vmem:[#allocation3 + $0x240] sm:$0xff]
    %v3299 = vld [vmem:[#allocation3 + $0x248] sm:$0xff]
    %v3300 = vld [vmem:[#allocation3 + $0x250] sm:$0xff]
    %v3301 = vld [vmem:[#allocation3 + $0x258] sm:$0xff]
    %v3302 = vld [vmem:[#allocation3 + $0x260] sm:$0xff]
    %v3303 = vld [vmem:[#allocation3 + $0x268] sm:$0xff]
    %v3304 = vld [vmem:[#allocation3 + $0x270] sm:$0xff]
    %v3305 = vld [vmem:[#allocation3 + $0x278] sm:$0xff]
    %v3306 = vld [vmem:[#allocation3 + $0x280] sm:$0xff]
    %v3307 = vld [vmem:[#allocation3 + $0x288] sm:$0xff]
    %v3308 = vld [vmem:[#allocation3 + $0x290] sm:$0xff]
    %v3309 = vld [vmem:[#allocation3 + $0x298] sm:$0xff]
    %v3310 = vld [vmem:[#allocation3 + $0x2a0] sm:$0xff]
    %v3311 = vld [vmem:[#allocation3 + $0x2a8] sm:$0xff]
    %v3312 = vld [vmem:[#allocation3 + $0x2b0] sm:$0xff]
    %v3313 = vld [vmem:[#allocation3 + $0x2b8] sm:$0xff]
    %v3314 = vld [vmem:[#allocation3 + $0x2c0] sm:$0xff]
    %v3315 = vld [vmem:[#allocation3 + $0x2c8] sm:$0xff]
    %v3316 = vld [vmem:[#allocation3 + $0x2d0] sm:$0xff]
    %v3317 = vld [vmem:[#allocation3 + $0x2d8] sm:$0xff]
    %v3318 = vld [vmem:[#allocation3 + $0x2e0] sm:$0xff]
    %v3319 = vld [vmem:[#allocation3 + $0x2e8] sm:$0xff]
    %v3320 = vld [vmem:[#allocation3 + $0x2f0] sm:$0xff]
    %v3321 = vld [vmem:[#allocation3 + $0x2f8] sm:$0xff]
    %v3322 = vld [vmem:[#allocation3 + $0x300] sm:$0xff]
    %v3323 = vld [vmem:[#allocation3 + $0x308] sm:$0xff]
    %v3324 = vld [vmem:[#allocation3 + $0x310] sm:$0xff]
    %v3325 = vld [vmem:[#allocation3 + $0x318] sm:$0xff]
    %v3326 = vld [vmem:[#allocation3 + $0x320] sm:$0xff]
    %v3327 = vld [vmem:[#allocation3 + $0x328] sm:$0xff]
    %v3328 = vld [vmem:[#allocation3 + $0x330] sm:$0xff]
    %v3329 = vld [vmem:[#allocation3 + $0x338] sm:$0xff]
    %v3330 = vld [vmem:[#allocation3 + $0x340] sm:$0xff]
    %v3331 = vld [vmem:[#allocation3 + $0x348] sm:$0xff]
    %v3332 = vld [vmem:[#allocation3 + $0x350] sm:$0xff]
    %v3333 = vld [vmem:[#allocation3 + $0x358] sm:$0xff]
    %v3334 = vld [vmem:[#allocation3 + $0x360] sm:$0xff]
    %v3335 = vld [vmem:[#allocation3 + $0x368] sm:$0xff]
    %v3336 = vld [vmem:[#allocation3 + $0x370] sm:$0xff]
    %v3337 = vld [vmem:[#allocation3 + $0x378] sm:$0xff]
    %v3338 = vld [vmem:[#allocation3 + $0x380] sm:$0xff]
    %v3339 = vld [vmem:[#allocation3 + $0x388] sm:$0xff]
    %v3340 = vld [vmem:[#allocation3 + $0x390] sm:$0xff]
    %v3341 = vld [vmem:[#allocation3 + $0x398] sm:$0xff]
    %v3342 = vld [vmem:[#allocation3 + $0x3a0] sm:$0xff]
    %v3343 = vld [vmem:[#allocation3 + $0x3a8] sm:$0xff]
    %v3344 = vld [vmem:[#allocation3 + $0x3b0] sm:$0xff]
    %v3345 = vld [vmem:[#allocation3 + $0x3b8] sm:$0xff]
    %v3346 = vld [vmem:[#allocation3 + $0x3c0] sm:$0xff]
    %v3347 = vld [vmem:[#allocation3 + $0x3c8] sm:$0xff]
    %v3348 = vld [vmem:[#allocation3 + $0x3d0] sm:$0xff]
    %v3349 = vld [vmem:[#allocation3 + $0x3d8] sm:$0xff]
    %v3350 = vld [vmem:[#allocation3 + $0x3e0] sm:$0xff]
    %v3351 = vld [vmem:[#allocation3 + $0x3e8] sm:$0xff]
    %v3352 = vld [vmem:[#allocation3 + $0x3f0] sm:$0xff]
    %v3353 = vld [vmem:[#allocation3 + $0x3f8] sm:$0xff]
    %v3354 = vld [vmem:[#allocation3 + $0x400] sm:$0xff]
    %v3355 = vld [vmem:[#allocation3 + $0x408] sm:$0xff]
    %v3356 = vld [vmem:[#allocation3 + $0x410] sm:$0xff]
    %v3357 = vld [vmem:[#allocation3 + $0x418] sm:$0xff]
    %v3358 = vld [vmem:[#allocation3 + $0x420] sm:$0xff]
    %v3359 = vld [vmem:[#allocation3 + $0x428] sm:$0xff]
    %v3360 = vld [vmem:[#allocation3 + $0x430] sm:$0xff]
    %v3361 = vld [vmem:[#allocation3 + $0x438] sm:$0xff]
    %v3362 = vld [vmem:[#allocation3 + $0x440] sm:$0xff]
    %v3363 = vld [vmem:[#allocation3 + $0x448] sm:$0xff]
    %v3364 = vld [vmem:[#allocation3 + $0x450] sm:$0xff]
    %v3365 = vld [vmem:[#allocation3 + $0x458] sm:$0xff]
    %v3366 = vld [vmem:[#allocation2] sm:$0xff]
    %v3367 = vld [vmem:[#allocation2 + $0x8] sm:$0xff]
    %v3368 = vld [vmem:[#allocation2 + $0x10] sm:$0xff]
    %v3369 = vld [vmem:[#allocation2 + $0x18] sm:$0xff]
    %v3370 = vld [vmem:[#allocation2 + $0x20] sm:$0xff]
    %v3371 = vld [vmem:[#allocation2 + $0x28] sm:$0xff]
    %v3372 = vld [vmem:[#allocation2 + $0x30] sm:$0xff]
    %v3373 = vld [vmem:[#allocation2 + $0x38] sm:$0xff]
    %v3374 = vld [vmem:[#allocation2 + $0x40] sm:$0xff]
    %v3375 = vld [vmem:[#allocation2 + $0x48] sm:$0xff]
    %v3376 = vld [vmem:[#allocation2 + $0x50] sm:$0xff]
    %v3377 = vld [vmem:[#allocation2 + $0x58] sm:$0xff]
    %v3378 = vld [vmem:[#allocation2 + $0x60] sm:$0xff]
    %v3379 = vld [vmem:[#allocation2 + $0x68] sm:$0xff]
    %v3380 = vld [vmem:[#allocation3 + $0x460] sm:$0xff]
    %v3381 = vld [vmem:[#allocation3 + $0x468] sm:$0xff]
    %v3382 = vld [vmem:[#allocation3 + $0x470] sm:$0xff]
    %v3383 = vld [vmem:[#allocation3 + $0x478] sm:$0xff]
    %v3384 = vld [vmem:[#allocation3 + $0x480] sm:$0xff]
    %v3385 = vld [vmem:[#allocation3 + $0x488] sm:$0xff]
    %v3386 = vld [vmem:[#allocation3 + $0x490] sm:$0xff]
    %v3387 = vld [vmem:[#allocation3 + $0x498] sm:$0xff]
    %v3388 = vld [vmem:[#allocation3 + $0x4a0] sm:$0xff]
    %v3389 = vld [vmem:[#allocation3 + $0x4a8] sm:$0xff]
    %v3390 = vld [vmem:[#allocation3 + $0x4b0] sm:$0xff]
    %v3391 = vld [vmem:[#allocation3 + $0x4b8] sm:$0xff]
    %v3392 = vld [vmem:[#allocation3 + $0x4c0] sm:$0xff]
    %v3393 = vld [vmem:[#allocation3 + $0x4c8] sm:$0xff]
    %v3394 = vld [vmem:[#allocation2 + $0x70] sm:$0xff]
    %v3395 = vld [vmem:[#allocation2 + $0x78] sm:$0xff]
    %v3396 = vld [vmem:[#allocation2 + $0x80] sm:$0xff]
    %v3397 = vld [vmem:[#allocation2 + $0x88] sm:$0xff]
    %v3398 = vld [vmem:[#allocation2 + $0x90] sm:$0xff]
    %v3399 = vld [vmem:[#allocation2 + $0x98] sm:$0xff]
    %v3400 = vld [vmem:[#allocation2 + $0xa0] sm:$0xff]
    %v3401 = vld [vmem:[#allocation2 + $0xa8] sm:$0xff]
    %v3402 = vld [vmem:[#allocation2 + $0xb0] sm:$0xff]
    %v3403 = vld [vmem:[#allocation2 + $0xb8] sm:$0xff]
    %v3404 = vld [vmem:[#allocation2 + $0xc0] sm:$0xff]
    %v3405 = vld [vmem:[#allocation2 + $0xc8] sm:$0xff]
    %v3406 = vld [vmem:[#allocation2 + $0xd0] sm:$0xff]
    %v3407 = vld [vmem:[#allocation2 + $0xd8] sm:$0xff]
    %3408 = vmatprep.subr.bf16.mxu0 %v3241
    %3409 = vmatpush1.bf16.xpose.msra.mxu0 %v3240
    %3410 = vmatprep.subr.bf16.mxu0 %v3255
    %3411 = vmatpush1.bf16.xpose.msra.mxu0 %v3254
    %3412 = vmatprep.subr.bf16.mxu0 %v3269
    %3413 = vmatpush1.bf16.xpose.msra.mxu0 %v3268
    %3414 = vmatprep.subr.bf16.mxu0 %v3283
    %3415 = vmatpush1.bf16.xpose.msra.mxu0 %v3282
    %3416 = vmatprep.subr.bf16.mxu0 %v3297
    %3417 = vmatpush1.bf16.xpose.msra.mxu0 %v3296
    %3418 = vmatprep.subr.bf16.mxu0 %v3311
    %3419 = vmatpush1.bf16.xpose.msra.mxu0 %v3310
    %3420 = vmatprep.subr.bf16.mxu0 %v3325
    %3421 = vmatpush1.bf16.xpose.msra.mxu0 %v3324
    %3422 = vmatprep.subr.bf16.mxu0 %v3339
    %3423 = vmatpush1.bf16.xpose.msra.mxu0 %v3338
    %3424 = vmatprep.subr.bf16.mxu0 %v3353
    %3425 = vmatpush1.bf16.xpose.msra.mxu0 %v3352
    %3426 = vmatprep.subr.bf16.mxu0 %v3381
    %3427 = vmatpush1.bf16.xpose.msra.mxu0 %v3380
    %3428 = vmatprep.subr.bf16.mxu0 0
    %3429 = vmatpush1.bf16.xpose.msra.mxu0 0
    %3430 = vmatprep.subr.bf16.mxu0 0
    %3431 = vmatpush1.bf16.xpose.msra.mxu0 0
    %3432 = vmatprep.subr.bf16.mxu0 0
    %3433 = vmatpush1.bf16.xpose.msra.mxu0 0
    %3434 = vmatprep.subr.bf16.mxu0 0
    %3435 = vmatpush1.bf16.xpose.msra.mxu0 0
    %3436 = vmatprep.subr.bf16.mxu0 0
    %3437 = vmatpush1.bf16.xpose.msra.mxu0 0
    %3438 = vmatprep.subr.bf16.mxu0 0
    %3439 = vmatpush1.bf16.xpose.msra.mxu0 0
    %3440 = vmatprep.mubr.bf16.mxu0 %v3395
    %3441 = vmatmul.mubr.bf16.gmra.mrb[0].mxu0 %v3394
    %v3442 = vpop.f32.mrb[0].mxu0
    %v3443 = vadd.f32 0.0, %v3442
    %v3444 = vpop.f32.mrb[0].mxu0
    %v3445 = vadd.f32 0.0, %v3444
    %v3446 = vpop.f32.mrb[0].mxu0
    %v3447 = vadd.f32 0.0, %v3446
    %v3448 = vpop.f32.mrb[0].mxu0
    %v3449 = vadd.f32 0.0, %v3448
    %3450 = vdwg.mxu0
    %3451 = vmatprep.subr.bf16.mxu0 %v3243
    %3452 = vmatpush1.bf16.xpose.msra.mxu0 %v3242
    %3453 = vmatprep.subr.bf16.mxu0 %v3257
    %3454 = vmatpush1.bf16.xpose.msra.mxu0 %v3256
    %3455 = vmatprep.subr.bf16.mxu0 %v3271
    %3456 = vmatpush1.bf16.xpose.msra.mxu0 %v3270
    %3457 = vmatprep.subr.bf16.mxu0 %v3285
    %3458 = vmatpush1.bf16.xpose.msra.mxu0 %v3284
    %3459 = vmatprep.subr.bf16.mxu0 %v3299
    %3460 = vmatpush1.bf16.xpose.msra.mxu0 %v3298
    %3461 = vmatprep.subr.bf16.mxu0 %v3313
    %3462 = vmatpush1.bf16.xpose.msra.mxu0 %v3312
    %3463 = vmatprep.subr.bf16.mxu0 %v3327
    %3464 = vmatpush1.bf16.xpose.msra.mxu0 %v3326
    %3465 = vmatprep.subr.bf16.mxu0 %v3341
    %3466 = vmatpush1.bf16.xpose.msra.mxu0 %v3340
    %3467 = vmatprep.subr.bf16.mxu0 %v3355
    %3468 = vmatpush1.bf16.xpose.msra.mxu0 %v3354
    %3469 = vmatprep.subr.bf16.mxu0 %v3383
    %3470 = vmatpush1.bf16.xpose.msra.mxu0 %v3382
    %3471 = vmatprep.subr.bf16.mxu0 0
    %3472 = vmatpush1.bf16.xpose.msra.mxu0 0
    %3473 = vmatprep.subr.bf16.mxu0 0
    %3474 = vmatpush1.bf16.xpose.msra.mxu0 0
    %3475 = vmatprep.subr.bf16.mxu0 0
    %3476 = vmatpush1.bf16.xpose.msra.mxu0 0
    %3477 = vmatprep.subr.bf16.mxu0 0
    %3478 = vmatpush1.bf16.xpose.msra.mxu0 0
    %3479 = vmatprep.subr.bf16.mxu0 0
    %3480 = vmatpush1.bf16.xpose.msra.mxu0 0
    %3481 = vmatprep.subr.bf16.mxu0 0
    %3482 = vmatpush1.bf16.xpose.msra.mxu0 0
    %3483 = vmatprep.mubr.bf16.mxu0 %v3397
    %3484 = vmatmul.mubr.bf16.gmra.mrb[0].mxu0 %v3396
    %v3485 = vpop.f32.mrb[0].mxu0
    %v3486 = vadd.f32 %v3443, %v3485
    %v3487 = vpop.f32.mrb[0].mxu0
    %v3488 = vadd.f32 %v3445, %v3487
    %v3489 = vpop.f32.mrb[0].mxu0
    %v3490 = vadd.f32 %v3447, %v3489
    %v3491 = vpop.f32.mrb[0].mxu0
    %v3492 = vadd.f32 %v3449, %v3491
    %3493 = vdwg.mxu0
    %3494 = vmatprep.subr.bf16.mxu0 %v3245
    %3495 = vmatpush1.bf16.xpose.msra.mxu0 %v3244
    %3496 = vmatprep.subr.bf16.mxu0 %v3259
    %3497 = vmatpush1.bf16.xpose.msra.mxu0 %v3258
    %3498 = vmatprep.subr.bf16.mxu0 %v3273
    %3499 = vmatpush1.bf16.xpose.msra.mxu0 %v3272
    %3500 = vmatprep.subr.bf16.mxu0 %v3287
    %3501 = vmatpush1.bf16.xpose.msra.mxu0 %v3286
    %3502 = vmatprep.subr.bf16.mxu0 %v3301
    %3503 = vmatpush1.bf16.xpose.msra.mxu0 %v3300
    %3504 = vmatprep.subr.bf16.mxu0 %v3315
    %3505 = vmatpush1.bf16.xpose.msra.mxu0 %v3314
    %3506 = vmatprep.subr.bf16.mxu0 %v3329
    %3507 = vmatpush1.bf16.xpose.msra.mxu0 %v3328
    %3508 = vmatprep.subr.bf16.mxu0 %v3343
    %3509 = vmatpush1.bf16.xpose.msra.mxu0 %v3342
    %3510 = vmatprep.subr.bf16.mxu0 %v3357
    %3511 = vmatpush1.bf16.xpose.msra.mxu0 %v3356
    %3512 = vmatprep.subr.bf16.mxu0 %v3385
    %3513 = vmatpush1.bf16.xpose.msra.mxu0 %v3384
    %3514 = vmatprep.subr.bf16.mxu0 0
    %3515 = vmatpush1.bf16.xpose.msra.mxu0 0
    %3516 = vmatprep.subr.bf16.mxu0 0
    %3517 = vmatpush1.bf16.xpose.msra.mxu0 0
    %3518 = vmatprep.subr.bf16.mxu0 0
    %3519 = vmatpush1.bf16.xpose.msra.mxu0 0
    %3520 = vmatprep.subr.bf16.mxu0 0
    %3521 = vmatpush1.bf16.xpose.msra.mxu0 0
    %3522 = vmatprep.subr.bf16.mxu0 0
    %3523 = vmatpush1.bf16.xpose.msra.mxu0 0
    %3524 = vmatprep.subr.bf16.mxu0 0
    %3525 = vmatpush1.bf16.xpose.msra.mxu0 0
    %3526 = vmatprep.mubr.bf16.mxu0 %v3399
    %3527 = vmatmul.mubr.bf16.gmra.mrb[0].mxu0 %v3398
    %v3528 = vpop.f32.mrb[0].mxu0
    %v3529 = vadd.f32 %v3486, %v3528
    %v3530 = vpop.f32.mrb[0].mxu0
    %v3531 = vadd.f32 %v3488, %v3530
    %v3532 = vpop.f32.mrb[0].mxu0
    %v3533 = vadd.f32 %v3490, %v3532
    %v3534 = vpop.f32.mrb[0].mxu0
    %v3535 = vadd.f32 %v3492, %v3534
    %3536 = vdwg.mxu0
    %3537 = vmatprep.subr.bf16.mxu0 %v3247
    %3538 = vmatpush1.bf16.xpose.msra.mxu0 %v3246
    %3539 = vmatprep.subr.bf16.mxu0 %v3261
    %3540 = vmatpush1.bf16.xpose.msra.mxu0 %v3260
    %3541 = vmatprep.subr.bf16.mxu0 %v3275
    %3542 = vmatpush1.bf16.xpose.msra.mxu0 %v3274
    %3543 = vmatprep.subr.bf16.mxu0 %v3289
    %3544 = vmatpush1.bf16.xpose.msra.mxu0 %v3288
    %3545 = vmatprep.subr.bf16.mxu0 %v3303
    %3546 = vmatpush1.bf16.xpose.msra.mxu0 %v3302
    %3547 = vmatprep.subr.bf16.mxu0 %v3317
    %3548 = vmatpush1.bf16.xpose.msra.mxu0 %v3316
    %3549 = vmatprep.subr.bf16.mxu0 %v3331
    %3550 = vmatpush1.bf16.xpose.msra.mxu0 %v3330
    %3551 = vmatprep.subr.bf16.mxu0 %v3345
    %3552 = vmatpush1.bf16.xpose.msra.mxu0 %v3344
    %3553 = vmatprep.subr.bf16.mxu0 %v3359
    %3554 = vmatpush1.bf16.xpose.msra.mxu0 %v3358
    %3555 = vmatprep.subr.bf16.mxu0 %v3387
    %3556 = vmatpush1.bf16.xpose.msra.mxu0 %v3386
    %3557 = vmatprep.subr.bf16.mxu0 0
    %3558 = vmatpush1.bf16.xpose.msra.mxu0 0
    %3559 = vmatprep.subr.bf16.mxu0 0
    %3560 = vmatpush1.bf16.xpose.msra.mxu0 0
    %3561 = vmatprep.subr.bf16.mxu0 0
    %3562 = vmatpush1.bf16.xpose.msra.mxu0 0
    %3563 = vmatprep.subr.bf16.mxu0 0
    %3564 = vmatpush1.bf16.xpose.msra.mxu0 0
    %3565 = vmatprep.subr.bf16.mxu0 0
    %3566 = vmatpush1.bf16.xpose.msra.mxu0 0
    %3567 = vmatprep.subr.bf16.mxu0 0
    %3568 = vmatpush1.bf16.xpose.msra.mxu0 0
    %3569 = vmatprep.mubr.bf16.mxu0 %v3401
    %3570 = vmatmul.mubr.bf16.gmra.mrb[0].mxu0 %v3400
    %v3571 = vpop.f32.mrb[0].mxu0
    %v3572 = vadd.f32 %v3529, %v3571
    %v3573 = vpop.f32.mrb[0].mxu0
    %v3574 = vadd.f32 %v3531, %v3573
    %v3575 = vpop.f32.mrb[0].mxu0
    %v3576 = vadd.f32 %v3533, %v3575
    %v3577 = vpop.f32.mrb[0].mxu0
    %v3578 = vadd.f32 %v3535, %v3577
    %3579 = vdwg.mxu0
    %3580 = vmatprep.subr.bf16.mxu0 %v3249
    %3581 = vmatpush1.bf16.xpose.msra.mxu0 %v3248
    %3582 = vmatprep.subr.bf16.mxu0 %v3263
    %3583 = vmatpush1.bf16.xpose.msra.mxu0 %v3262
    %3584 = vmatprep.subr.bf16.mxu0 %v3277
    %3585 = vmatpush1.bf16.xpose.msra.mxu0 %v3276
    %3586 = vmatprep.subr.bf16.mxu0 %v3291
    %3587 = vmatpush1.bf16.xpose.msra.mxu0 %v3290
    %3588 = vmatprep.subr.bf16.mxu0 %v3305
    %3589 = vmatpush1.bf16.xpose.msra.mxu0 %v3304
    %3590 = vmatprep.subr.bf16.mxu0 %v3319
    %3591 = vmatpush1.bf16.xpose.msra.mxu0 %v3318
    %3592 = vmatprep.subr.bf16.mxu0 %v3333
    %3593 = vmatpush1.bf16.xpose.msra.mxu0 %v3332
    %3594 = vmatprep.subr.bf16.mxu0 %v3347
    %3595 = vmatpush1.bf16.xpose.msra.mxu0 %v3346
    %3596 = vmatprep.subr.bf16.mxu0 %v3361
    %3597 = vmatpush1.bf16.xpose.msra.mxu0 %v3360
    %3598 = vmatprep.subr.bf16.mxu0 %v3389
    %3599 = vmatpush1.bf16.xpose.msra.mxu0 %v3388
    %3600 = vmatprep.subr.bf16.mxu0 0
    %3601 = vmatpush1.bf16.xpose.msra.mxu0 0
    %3602 = vmatprep.subr.bf16.mxu0 0
    %3603 = vmatpush1.bf16.xpose.msra.mxu0 0
    %3604 = vmatprep.subr.bf16.mxu0 0
    %3605 = vmatpush1.bf16.xpose.msra.mxu0 0
    %3606 = vmatprep.subr.bf16.mxu0 0
    %3607 = vmatpush1.bf16.xpose.msra.mxu0 0
    %3608 = vmatprep.subr.bf16.mxu0 0
    %3609 = vmatpush1.bf16.xpose.msra.mxu0 0
    %3610 = vmatprep.subr.bf16.mxu0 0
    %3611 = vmatpush1.bf16.xpose.msra.mxu0 0
    %3612 = vmatprep.mubr.bf16.mxu0 %v3403
    %3613 = vmatmul.mubr.bf16.gmra.mrb[0].mxu0 %v3402
    %v3614 = vpop.f32.mrb[0].mxu0
    %v3615 = vadd.f32 %v3572, %v3614
    %v3616 = vpop.f32.mrb[0].mxu0
    %v3617 = vadd.f32 %v3574, %v3616
    %v3618 = vpop.f32.mrb[0].mxu0
    %v3619 = vadd.f32 %v3576, %v3618
    %v3620 = vpop.f32.mrb[0].mxu0
    %v3621 = vadd.f32 %v3578, %v3620
    %3622 = vdwg.mxu0
    %3623 = vmatprep.subr.bf16.mxu0 %v3251
    %3624 = vmatpush1.bf16.xpose.msra.mxu0 %v3250
    %3625 = vmatprep.subr.bf16.mxu0 %v3265
    %3626 = vmatpush1.bf16.xpose.msra.mxu0 %v3264
    %3627 = vmatprep.subr.bf16.mxu0 %v3279
    %3628 = vmatpush1.bf16.xpose.msra.mxu0 %v3278
    %3629 = vmatprep.subr.bf16.mxu0 %v3293
    %3630 = vmatpush1.bf16.xpose.msra.mxu0 %v3292
    %3631 = vmatprep.subr.bf16.mxu0 %v3307
    %3632 = vmatpush1.bf16.xpose.msra.mxu0 %v3306
    %3633 = vmatprep.subr.bf16.mxu0 %v3321
    %3634 = vmatpush1.bf16.xpose.msra.mxu0 %v3320
    %3635 = vmatprep.subr.bf16.mxu0 %v3335
    %3636 = vmatpush1.bf16.xpose.msra.mxu0 %v3334
    %3637 = vmatprep.subr.bf16.mxu0 %v3349
    %3638 = vmatpush1.bf16.xpose.msra.mxu0 %v3348
    %3639 = vmatprep.subr.bf16.mxu0 %v3363
    %3640 = vmatpush1.bf16.xpose.msra.mxu0 %v3362
    %3641 = vmatprep.subr.bf16.mxu0 %v3391
    %3642 = vmatpush1.bf16.xpose.msra.mxu0 %v3390
    %3643 = vmatprep.subr.bf16.mxu0 0
    %3644 = vmatpush1.bf16.xpose.msra.mxu0 0
    %3645 = vmatprep.subr.bf16.mxu0 0
    %3646 = vmatpush1.bf16.xpose.msra.mxu0 0
    %3647 = vmatprep.subr.bf16.mxu0 0
    %3648 = vmatpush1.bf16.xpose.msra.mxu0 0
    %3649 = vmatprep.subr.bf16.mxu0 0
    %3650 = vmatpush1.bf16.xpose.msra.mxu0 0
    %3651 = vmatprep.subr.bf16.mxu0 0
    %3652 = vmatpush1.bf16.xpose.msra.mxu0 0
    %3653 = vmatprep.subr.bf16.mxu0 0
    %3654 = vmatpush1.bf16.xpose.msra.mxu0 0
    %3655 = vmatprep.mubr.bf16.mxu0 %v3405
    %3656 = vmatmul.mubr.bf16.gmra.mrb[0].mxu0 %v3404
    %v3657 = vpop.f32.mrb[0].mxu0
    %v3658 = vadd.f32 %v3615, %v3657
    %v3659 = vpop.f32.mrb[0].mxu0
    %v3660 = vadd.f32 %v3617, %v3659
    %v3661 = vpop.f32.mrb[0].mxu0
    %v3662 = vadd.f32 %v3619, %v3661
    %v3663 = vpop.f32.mrb[0].mxu0
    %v3664 = vadd.f32 %v3621, %v3663
    %3665 = vdwg.mxu0
    %3666 = vmatprep.subr.bf16.mxu0 %v3253
    %3667 = vmatpush1.bf16.xpose.msra.mxu0 %v3252
    %3668 = vmatprep.subr.bf16.mxu0 %v3267
    %3669 = vmatpush1.bf16.xpose.msra.mxu0 %v3266
    %3670 = vmatprep.subr.bf16.mxu0 %v3281
    %3671 = vmatpush1.bf16.xpose.msra.mxu0 %v3280
    %3672 = vmatprep.subr.bf16.mxu0 %v3295
    %3673 = vmatpush1.bf16.xpose.msra.mxu0 %v3294
    %3674 = vmatprep.subr.bf16.mxu0 %v3309
    %3675 = vmatpush1.bf16.xpose.msra.mxu0 %v3308
    %3676 = vmatprep.subr.bf16.mxu0 %v3323
    %3677 = vmatpush1.bf16.xpose.msra.mxu0 %v3322
    %3678 = vmatprep.subr.bf16.mxu0 %v3337
    %3679 = vmatpush1.bf16.xpose.msra.mxu0 %v3336
    %3680 = vmatprep.subr.bf16.mxu0 %v3351
    %3681 = vmatpush1.bf16.xpose.msra.mxu0 %v3350
    %3682 = vmatprep.subr.bf16.mxu0 %v3365
    %3683 = vmatpush1.bf16.xpose.msra.mxu0 %v3364
    %3684 = vmatprep.subr.bf16.mxu0 %v3393
    %3685 = vmatpush1.bf16.xpose.msra.mxu0 %v3392
    %3686 = vmatprep.subr.bf16.mxu0 0
    %3687 = vmatpush1.bf16.xpose.msra.mxu0 0
    %3688 = vmatprep.subr.bf16.mxu0 0
    %3689 = vmatpush1.bf16.xpose.msra.mxu0 0
    %3690 = vmatprep.subr.bf16.mxu0 0
    %3691 = vmatpush1.bf16.xpose.msra.mxu0 0
    %3692 = vmatprep.subr.bf16.mxu0 0
    %3693 = vmatpush1.bf16.xpose.msra.mxu0 0
    %3694 = vmatprep.subr.bf16.mxu0 0
    %3695 = vmatpush1.bf16.xpose.msra.mxu0 0
    %3696 = vmatprep.subr.bf16.mxu0 0
    %3697 = vmatpush1.bf16.xpose.msra.mxu0 0
    %3698 = vmatprep.mubr.bf16.mxu0 %v3407
    %3699 = vmatmul.mubr.bf16.gmra.mrb[0].mxu0 %v3406
    %v3700 = vpop.f32.mrb[0].mxu0
    %v3701 = vadd.f32 %v3658, %v3700
    %v3702 = vpop.f32.mrb[0].mxu0
    %v3703 = vadd.f32 %v3660, %v3702
    %v3704 = vpop.f32.mrb[0].mxu0
    %v3705 = vadd.f32 %v3662, %v3704
    %v3706 = vpop.f32.mrb[0].mxu0
    %v3707 = vadd.f32 %v3664, %v3706
    %3708 = vdwg.mxu0
    %3709 = vmatprep.subr.bf16.mxu0 %v3227
    %3710 = vmatpush1.bf16.xpose.msra.mxu0 %v3226
    %3711 = vmatprep.subr.bf16.mxu0 %v3241
    %3712 = vmatpush1.bf16.xpose.msra.mxu0 %v3240
    %3713 = vmatprep.subr.bf16.mxu0 %v3255
    %3714 = vmatpush1.bf16.xpose.msra.mxu0 %v3254
    %3715 = vmatprep.subr.bf16.mxu0 %v3269
    %3716 = vmatpush1.bf16.xpose.msra.mxu0 %v3268
    %3717 = vmatprep.subr.bf16.mxu0 %v3283
    %3718 = vmatpush1.bf16.xpose.msra.mxu0 %v3282
    %3719 = vmatprep.subr.bf16.mxu0 %v3297
    %3720 = vmatpush1.bf16.xpose.msra.mxu0 %v3296
    %3721 = vmatprep.subr.bf16.mxu0 %v3311
    %3722 = vmatpush1.bf16.xpose.msra.mxu0 %v3310
    %3723 = vmatprep.subr.bf16.mxu0 %v3325
    %3724 = vmatpush1.bf16.xpose.msra.mxu0 %v3324
    %3725 = vmatprep.subr.bf16.mxu0 %v3339
    %3726 = vmatpush1.bf16.xpose.msra.mxu0 %v3338
    %3727 = vmatprep.subr.bf16.mxu0 %v3353
    %3728 = vmatpush1.bf16.xpose.msra.mxu0 %v3352
    %3729 = vmatprep.subr.bf16.mxu0 0
    %3730 = vmatpush1.bf16.xpose.msra.mxu0 0
    %3731 = vmatprep.subr.bf16.mxu0 0
    %3732 = vmatpush1.bf16.xpose.msra.mxu0 0
    %3733 = vmatprep.subr.bf16.mxu0 0
    %3734 = vmatpush1.bf16.xpose.msra.mxu0 0
    %3735 = vmatprep.subr.bf16.mxu0 0
    %3736 = vmatpush1.bf16.xpose.msra.mxu0 0
    %3737 = vmatprep.subr.bf16.mxu0 0
    %3738 = vmatpush1.bf16.xpose.msra.mxu0 0
    %3739 = vmatprep.subr.bf16.mxu0 0
    %3740 = vmatpush1.bf16.xpose.msra.mxu0 0
    %3741 = vmatprep.mubr.bf16.mxu0 %v3367
    %3742 = vmatmul.mubr.bf16.gmra.mrb[0].mxu0 %v3366
    %v3743 = vpop.f32.mrb[0].mxu0
    %v3744 = vadd.f32 %v3701, %v3743
    %v3745 = vpop.f32.mrb[0].mxu0
    %v3746 = vadd.f32 %v3703, %v3745
    %v3747 = vpop.f32.mrb[0].mxu0
    %v3748 = vadd.f32 %v3705, %v3747
    %v3749 = vpop.f32.mrb[0].mxu0
    %v3750 = vadd.f32 %v3707, %v3749
    %3751 = vdwg.mxu0
    %3752 = vmatprep.subr.bf16.mxu0 %v3229
    %3753 = vmatpush1.bf16.xpose.msra.mxu0 %v3228
    %3754 = vmatprep.subr.bf16.mxu0 %v3243
    %3755 = vmatpush1.bf16.xpose.msra.mxu0 %v3242
    %3756 = vmatprep.subr.bf16.mxu0 %v3257
    %3757 = vmatpush1.bf16.xpose.msra.mxu0 %v3256
    %3758 = vmatprep.subr.bf16.mxu0 %v3271
    %3759 = vmatpush1.bf16.xpose.msra.mxu0 %v3270
    %3760 = vmatprep.subr.bf16.mxu0 %v3285
    %3761 = vmatpush1.bf16.xpose.msra.mxu0 %v3284
    %3762 = vmatprep.subr.bf16.mxu0 %v3299
    %3763 = vmatpush1.bf16.xpose.msra.mxu0 %v3298
    %3764 = vmatprep.subr.bf16.mxu0 %v3313
    %3765 = vmatpush1.bf16.xpose.msra.mxu0 %v3312
    %3766 = vmatprep.subr.bf16.mxu0 %v3327
    %3767 = vmatpush1.bf16.xpose.msra.mxu0 %v3326
    %3768 = vmatprep.subr.bf16.mxu0 %v3341
    %3769 = vmatpush1.bf16.xpose.msra.mxu0 %v3340
    %3770 = vmatprep.subr.bf16.mxu0 %v3355
    %3771 = vmatpush1.bf16.xpose.msra.mxu0 %v3354
    %3772 = vmatprep.subr.bf16.mxu0 0
    %3773 = vmatpush1.bf16.xpose.msra.mxu0 0
    %3774 = vmatprep.subr.bf16.mxu0 0
    %3775 = vmatpush1.bf16.xpose.msra.mxu0 0
    %3776 = vmatprep.subr.bf16.mxu0 0
    %3777 = vmatpush1.bf16.xpose.msra.mxu0 0
    %3778 = vmatprep.subr.bf16.mxu0 0
    %3779 = vmatpush1.bf16.xpose.msra.mxu0 0
    %3780 = vmatprep.subr.bf16.mxu0 0
    %3781 = vmatpush1.bf16.xpose.msra.mxu0 0
    %3782 = vmatprep.subr.bf16.mxu0 0
    %3783 = vmatpush1.bf16.xpose.msra.mxu0 0
    %3784 = vmatprep.mubr.bf16.mxu0 %v3369
    %3785 = vmatmul.mubr.bf16.gmra.mrb[0].mxu0 %v3368
    %v3786 = vpop.f32.mrb[0].mxu0
    %v3787 = vadd.f32 %v3744, %v3786
    %v3788 = vpop.f32.mrb[0].mxu0
    %v3789 = vadd.f32 %v3746, %v3788
    %v3790 = vpop.f32.mrb[0].mxu0
    %v3791 = vadd.f32 %v3748, %v3790
    %v3792 = vpop.f32.mrb[0].mxu0
    %v3793 = vadd.f32 %v3750, %v3792
    %3794 = vdwg.mxu0
    %3795 = vmatprep.subr.bf16.mxu0 %v3231
    %3796 = vmatpush1.bf16.xpose.msra.mxu0 %v3230
    %3797 = vmatprep.subr.bf16.mxu0 %v3245
    %3798 = vmatpush1.bf16.xpose.msra.mxu0 %v3244
    %3799 = vmatprep.subr.bf16.mxu0 %v3259
    %3800 = vmatpush1.bf16.xpose.msra.mxu0 %v3258
    %3801 = vmatprep.subr.bf16.mxu0 %v3273
    %3802 = vmatpush1.bf16.xpose.msra.mxu0 %v3272
    %3803 = vmatprep.subr.bf16.mxu0 %v3287
    %3804 = vmatpush1.bf16.xpose.msra.mxu0 %v3286
    %3805 = vmatprep.subr.bf16.mxu0 %v3301
    %3806 = vmatpush1.bf16.xpose.msra.mxu0 %v3300
    %3807 = vmatprep.subr.bf16.mxu0 %v3315
    %3808 = vmatpush1.bf16.xpose.msra.mxu0 %v3314
    %3809 = vmatprep.subr.bf16.mxu0 %v3329
    %3810 = vmatpush1.bf16.xpose.msra.mxu0 %v3328
    %3811 = vmatprep.subr.bf16.mxu0 %v3343
    %3812 = vmatpush1.bf16.xpose.msra.mxu0 %v3342
    %3813 = vmatprep.subr.bf16.mxu0 %v3357
    %3814 = vmatpush1.bf16.xpose.msra.mxu0 %v3356
    %3815 = vmatprep.subr.bf16.mxu0 0
    %3816 = vmatpush1.bf16.xpose.msra.mxu0 0
    %3817 = vmatprep.subr.bf16.mxu0 0
    %3818 = vmatpush1.bf16.xpose.msra.mxu0 0
    %3819 = vmatprep.subr.bf16.mxu0 0
    %3820 = vmatpush1.bf16.xpose.msra.mxu0 0
    %3821 = vmatprep.subr.bf16.mxu0 0
    %3822 = vmatpush1.bf16.xpose.msra.mxu0 0
    %3823 = vmatprep.subr.bf16.mxu0 0
    %3824 = vmatpush1.bf16.xpose.msra.mxu0 0
    %3825 = vmatprep.subr.bf16.mxu0 0
    %3826 = vmatpush1.bf16.xpose.msra.mxu0 0
    %3827 = vmatprep.mubr.bf16.mxu0 %v3371
    %3828 = vmatmul.mubr.bf16.gmra.mrb[0].mxu0 %v3370
    %v3829 = vpop.f32.mrb[0].mxu0
    %v3830 = vadd.f32 %v3787, %v3829
    %v3831 = vpop.f32.mrb[0].mxu0
    %v3832 = vadd.f32 %v3789, %v3831
    %v3833 = vpop.f32.mrb[0].mxu0
    %v3834 = vadd.f32 %v3791, %v3833
    %v3835 = vpop.f32.mrb[0].mxu0
    %v3836 = vadd.f32 %v3793, %v3835
    %3837 = vdwg.mxu0
    %3838 = vmatprep.subr.bf16.mxu0 %v3233
    %3839 = vmatpush1.bf16.xpose.msra.mxu0 %v3232
    %3840 = vmatprep.subr.bf16.mxu0 %v3247
    %3841 = vmatpush1.bf16.xpose.msra.mxu0 %v3246
    %3842 = vmatprep.subr.bf16.mxu0 %v3261
    %3843 = vmatpush1.bf16.xpose.msra.mxu0 %v3260
    %3844 = vmatprep.subr.bf16.mxu0 %v3275
    %3845 = vmatpush1.bf16.xpose.msra.mxu0 %v3274
    %3846 = vmatprep.subr.bf16.mxu0 %v3289
    %3847 = vmatpush1.bf16.xpose.msra.mxu0 %v3288
    %3848 = vmatprep.subr.bf16.mxu0 %v3303
    %3849 = vmatpush1.bf16.xpose.msra.mxu0 %v3302
    %3850 = vmatprep.subr.bf16.mxu0 %v3317
    %3851 = vmatpush1.bf16.xpose.msra.mxu0 %v3316
    %3852 = vmatprep.subr.bf16.mxu0 %v3331
    %3853 = vmatpush1.bf16.xpose.msra.mxu0 %v3330
    %3854 = vmatprep.subr.bf16.mxu0 %v3345
    %3855 = vmatpush1.bf16.xpose.msra.mxu0 %v3344
    %3856 = vmatprep.subr.bf16.mxu0 %v3359
    %3857 = vmatpush1.bf16.xpose.msra.mxu0 %v3358
    %3858 = vmatprep.subr.bf16.mxu0 0
    %3859 = vmatpush1.bf16.xpose.msra.mxu0 0
    %3860 = vmatprep.subr.bf16.mxu0 0
    %3861 = vmatpush1.bf16.xpose.msra.mxu0 0
    %3862 = vmatprep.subr.bf16.mxu0 0
    %3863 = vmatpush1.bf16.xpose.msra.mxu0 0
    %3864 = vmatprep.subr.bf16.mxu0 0
    %3865 = vmatpush1.bf16.xpose.msra.mxu0 0
    %3866 = vmatprep.subr.bf16.mxu0 0
    %3867 = vmatpush1.bf16.xpose.msra.mxu0 0
    %3868 = vmatprep.subr.bf16.mxu0 0
    %3869 = vmatpush1.bf16.xpose.msra.mxu0 0
    %3870 = vmatprep.mubr.bf16.mxu0 %v3373
    %3871 = vmatmul.mubr.bf16.gmra.mrb[0].mxu0 %v3372
    %v3872 = vpop.f32.mrb[0].mxu0
    %v3873 = vadd.f32 %v3830, %v3872
    %v3874 = vpop.f32.mrb[0].mxu0
    %v3875 = vadd.f32 %v3832, %v3874
    %v3876 = vpop.f32.mrb[0].mxu0
    %v3877 = vadd.f32 %v3834, %v3876
    %v3878 = vpop.f32.mrb[0].mxu0
    %v3879 = vadd.f32 %v3836, %v3878
    %3880 = vdwg.mxu0
    %3881 = vmatprep.subr.bf16.mxu0 %v3235
    %3882 = vmatpush1.bf16.xpose.msra.mxu0 %v3234
    %3883 = vmatprep.subr.bf16.mxu0 %v3249
    %3884 = vmatpush1.bf16.xpose.msra.mxu0 %v3248
    %3885 = vmatprep.subr.bf16.mxu0 %v3263
    %3886 = vmatpush1.bf16.xpose.msra.mxu0 %v3262
    %3887 = vmatprep.subr.bf16.mxu0 %v3277
    %3888 = vmatpush1.bf16.xpose.msra.mxu0 %v3276
    %3889 = vmatprep.subr.bf16.mxu0 %v3291
    %3890 = vmatpush1.bf16.xpose.msra.mxu0 %v3290
    %3891 = vmatprep.subr.bf16.mxu0 %v3305
    %3892 = vmatpush1.bf16.xpose.msra.mxu0 %v3304
    %3893 = vmatprep.subr.bf16.mxu0 %v3319
    %3894 = vmatpush1.bf16.xpose.msra.mxu0 %v3318
    %3895 = vmatprep.subr.bf16.mxu0 %v3333
    %3896 = vmatpush1.bf16.xpose.msra.mxu0 %v3332
    %3897 = vmatprep.subr.bf16.mxu0 %v3347
    %3898 = vmatpush1.bf16.xpose.msra.mxu0 %v3346
    %3899 = vmatprep.subr.bf16.mxu0 %v3361
    %3900 = vmatpush1.bf16.xpose.msra.mxu0 %v3360
    %3901 = vmatprep.subr.bf16.mxu0 0
    %3902 = vmatpush1.bf16.xpose.msra.mxu0 0
    %3903 = vmatprep.subr.bf16.mxu0 0
    %3904 = vmatpush1.bf16.xpose.msra.mxu0 0
    %3905 = vmatprep.subr.bf16.mxu0 0
    %3906 = vmatpush1.bf16.xpose.msra.mxu0 0
    %3907 = vmatprep.subr.bf16.mxu0 0
    %3908 = vmatpush1.bf16.xpose.msra.mxu0 0
    %3909 = vmatprep.subr.bf16.mxu0 0
    %3910 = vmatpush1.bf16.xpose.msra.mxu0 0
    %3911 = vmatprep.subr.bf16.mxu0 0
    %3912 = vmatpush1.bf16.xpose.msra.mxu0 0
    %3913 = vmatprep.mubr.bf16.mxu0 %v3375
    %3914 = vmatmul.mubr.bf16.gmra.mrb[0].mxu0 %v3374
    %v3915 = vpop.f32.mrb[0].mxu0
    %v3916 = vadd.f32 %v3873, %v3915
    %v3917 = vpop.f32.mrb[0].mxu0
    %v3918 = vadd.f32 %v3875, %v3917
    %v3919 = vpop.f32.mrb[0].mxu0
    %v3920 = vadd.f32 %v3877, %v3919
    %v3921 = vpop.f32.mrb[0].mxu0
    %v3922 = vadd.f32 %v3879, %v3921
    %3923 = vdwg.mxu0
    %3924 = vmatprep.subr.bf16.mxu0 %v3237
    %3925 = vmatpush1.bf16.xpose.msra.mxu0 %v3236
    %3926 = vmatprep.subr.bf16.mxu0 %v3251
    %3927 = vmatpush1.bf16.xpose.msra.mxu0 %v3250
    %3928 = vmatprep.subr.bf16.mxu0 %v3265
    %3929 = vmatpush1.bf16.xpose.msra.mxu0 %v3264
    %3930 = vmatprep.subr.bf16.mxu0 %v3279
    %3931 = vmatpush1.bf16.xpose.msra.mxu0 %v3278
    %3932 = vmatprep.subr.bf16.mxu0 %v3293
    %3933 = vmatpush1.bf16.xpose.msra.mxu0 %v3292
    %3934 = vmatprep.subr.bf16.mxu0 %v3307
    %3935 = vmatpush1.bf16.xpose.msra.mxu0 %v3306
    %3936 = vmatprep.subr.bf16.mxu0 %v3321
    %3937 = vmatpush1.bf16.xpose.msra.mxu0 %v3320
    %3938 = vmatprep.subr.bf16.mxu0 %v3335
    %3939 = vmatpush1.bf16.xpose.msra.mxu0 %v3334
    %3940 = vmatprep.subr.bf16.mxu0 %v3349
    %3941 = vmatpush1.bf16.xpose.msra.mxu0 %v3348
    %3942 = vmatprep.subr.bf16.mxu0 %v3363
    %3943 = vmatpush1.bf16.xpose.msra.mxu0 %v3362
    %3944 = vmatprep.subr.bf16.mxu0 0
    %3945 = vmatpush1.bf16.xpose.msra.mxu0 0
    %3946 = vmatprep.subr.bf16.mxu0 0
    %3947 = vmatpush1.bf16.xpose.msra.mxu0 0
    %3948 = vmatprep.subr.bf16.mxu0 0
    %3949 = vmatpush1.bf16.xpose.msra.mxu0 0
    %3950 = vmatprep.subr.bf16.mxu0 0
    %3951 = vmatpush1.bf16.xpose.msra.mxu0 0
    %3952 = vmatprep.subr.bf16.mxu0 0
    %3953 = vmatpush1.bf16.xpose.msra.mxu0 0
    %3954 = vmatprep.subr.bf16.mxu0 0
    %3955 = vmatpush1.bf16.xpose.msra.mxu0 0
    %3956 = vmatprep.mubr.bf16.mxu0 %v3377
    %3957 = vmatmul.mubr.bf16.gmra.mrb[0].mxu0 %v3376
    %v3958 = vpop.f32.mrb[0].mxu0
    %v3959 = vadd.f32 %v3916, %v3958
    %v3960 = vpop.f32.mrb[0].mxu0
    %v3961 = vadd.f32 %v3918, %v3960
    %v3962 = vpop.f32.mrb[0].mxu0
    %v3963 = vadd.f32 %v3920, %v3962
    %v3964 = vpop.f32.mrb[0].mxu0
    %v3965 = vadd.f32 %v3922, %v3964
    %3966 = vdwg.mxu0
    %3967 = vmatprep.subr.bf16.mxu0 %v3239
    %3968 = vmatpush1.bf16.xpose.msra.mxu0 %v3238
    %3969 = vmatprep.subr.bf16.mxu0 %v3253
    %3970 = vmatpush1.bf16.xpose.msra.mxu0 %v3252
    %3971 = vmatprep.subr.bf16.mxu0 %v3267
    %3972 = vmatpush1.bf16.xpose.msra.mxu0 %v3266
    %3973 = vmatprep.subr.bf16.mxu0 %v3281
    %3974 = vmatpush1.bf16.xpose.msra.mxu0 %v3280
    %3975 = vmatprep.subr.bf16.mxu0 %v3295
    %3976 = vmatpush1.bf16.xpose.msra.mxu0 %v3294
    %3977 = vmatprep.subr.bf16.mxu0 %v3309
    %3978 = vmatpush1.bf16.xpose.msra.mxu0 %v3308
    %3979 = vmatprep.subr.bf16.mxu0 %v3323
    %3980 = vmatpush1.bf16.xpose.msra.mxu0 %v3322
    %3981 = vmatprep.subr.bf16.mxu0 %v3337
    %3982 = vmatpush1.bf16.xpose.msra.mxu0 %v3336
    %3983 = vmatprep.subr.bf16.mxu0 %v3351
    %3984 = vmatpush1.bf16.xpose.msra.mxu0 %v3350
    %3985 = vmatprep.subr.bf16.mxu0 %v3365
    %3986 = vmatpush1.bf16.xpose.msra.mxu0 %v3364
    %3987 = vmatprep.subr.bf16.mxu0 0
    %3988 = vmatpush1.bf16.xpose.msra.mxu0 0
    %3989 = vmatprep.subr.bf16.mxu0 0
    %3990 = vmatpush1.bf16.xpose.msra.mxu0 0
    %3991 = vmatprep.subr.bf16.mxu0 0
    %3992 = vmatpush1.bf16.xpose.msra.mxu0 0
    %3993 = vmatprep.subr.bf16.mxu0 0
    %3994 = vmatpush1.bf16.xpose.msra.mxu0 0
    %3995 = vmatprep.subr.bf16.mxu0 0
    %3996 = vmatpush1.bf16.xpose.msra.mxu0 0
    %3997 = vmatprep.subr.bf16.mxu0 0
    %3998 = vmatpush1.bf16.xpose.msra.mxu0 0
    %3999 = vmatprep.mubr.bf16.mxu0 %v3379
    %4000 = vmatmul.mubr.bf16.gmra.mrb[0].mxu0 %v3378
    %v4001 = vpop.f32.mrb[0].mxu0
    %v4002 = vadd.f32 %v3959, %v4001
    %v4003 = vpop.f32.mrb[0].mxu0
    %v4004 = vadd.f32 %v3961, %v4003
    %v4005 = vpop.f32.mrb[0].mxu0
    %v4006 = vadd.f32 %v3963, %v4005
    %v4007 = vpop.f32.mrb[0].mxu0
    %v4008 = vadd.f32 %v3965, %v4007
    %4009 = vdwg.mxu0
    %v4010 = vld [vmem:[#allocation3 + $0xe0] sm:$0xff]
    %v4011 = vld [vmem:[#allocation3 + $0xe8] sm:$0xff]
    %v4012 = vld [vmem:[#allocation3 + $0xf0] sm:$0xff]
    %v4013 = vld [vmem:[#allocation3 + $0xf8] sm:$0xff]
    %v4014 = vld [vmem:[#allocation3 + $0x100] sm:$0xff]
    %v4015 = vld [vmem:[#allocation3 + $0x108] sm:$0xff]
    %v4016 = vld [vmem:[#allocation3 + $0x110] sm:$0xff]
    %v4017 = vld [vmem:[#allocation3 + $0x118] sm:$0xff]
    %v4018 = vld [vmem:[#allocation3 + $0x120] sm:$0xff]
    %v4019 = vld [vmem:[#allocation3 + $0x128] sm:$0xff]
    %v4020 = vld [vmem:[#allocation3 + $0x130] sm:$0xff]
    %v4021 = vld [vmem:[#allocation3 + $0x138] sm:$0xff]
    %v4022 = vld [vmem:[#allocation3 + $0x140] sm:$0xff]
    %v4023 = vld [vmem:[#allocation3 + $0x148] sm:$0xff]
    %v4024 = vld [vmem:[#allocation3 + $0x150] sm:$0xff]
    %v4025 = vld [vmem:[#allocation3 + $0x158] sm:$0xff]
    %v4026 = vld [vmem:[#allocation3 + $0x160] sm:$0xff]
    %v4027 = vld [vmem:[#allocation3 + $0x168] sm:$0xff]
    %v4028 = vld [vmem:[#allocation3 + $0x170] sm:$0xff]
    %v4029 = vld [vmem:[#allocation3 + $0x178] sm:$0xff]
    %v4030 = vld [vmem:[#allocation3 + $0x180] sm:$0xff]
    %v4031 = vld [vmem:[#allocation3 + $0x188] sm:$0xff]
    %v4032 = vld [vmem:[#allocation3 + $0x190] sm:$0xff]
    %v4033 = vld [vmem:[#allocation3 + $0x198] sm:$0xff]
    %v4034 = vld [vmem:[#allocation3 + $0x1a0] sm:$0xff]
    %v4035 = vld [vmem:[#allocation3 + $0x1a8] sm:$0xff]
    %v4036 = vld [vmem:[#allocation3 + $0x1b0] sm:$0xff]
    %v4037 = vld [vmem:[#allocation3 + $0x1b8] sm:$0xff]
    %v4038 = vld [vmem:[#allocation3 + $0x1c0] sm:$0xff]
    %v4039 = vld [vmem:[#allocation3 + $0x1c8] sm:$0xff]
    %v4040 = vld [vmem:[#allocation3 + $0x1d0] sm:$0xff]
    %v4041 = vld [vmem:[#allocation3 + $0x1d8] sm:$0xff]
    %v4042 = vld [vmem:[#allocation3 + $0x1e0] sm:$0xff]
    %v4043 = vld [vmem:[#allocation3 + $0x1e8] sm:$0xff]
    %v4044 = vld [vmem:[#allocation3 + $0x1f0] sm:$0xff]
    %v4045 = vld [vmem:[#allocation3 + $0x1f8] sm:$0xff]
    %v4046 = vld [vmem:[#allocation3 + $0x200] sm:$0xff]
    %v4047 = vld [vmem:[#allocation3 + $0x208] sm:$0xff]
    %v4048 = vld [vmem:[#allocation3 + $0x210] sm:$0xff]
    %v4049 = vld [vmem:[#allocation3 + $0x218] sm:$0xff]
    %v4050 = vld [vmem:[#allocation3 + $0x220] sm:$0xff]
    %v4051 = vld [vmem:[#allocation3 + $0x228] sm:$0xff]
    %v4052 = vld [vmem:[#allocation3 + $0x230] sm:$0xff]
    %v4053 = vld [vmem:[#allocation3 + $0x238] sm:$0xff]
    %v4054 = vld [vmem:[#allocation3 + $0x240] sm:$0xff]
    %v4055 = vld [vmem:[#allocation3 + $0x248] sm:$0xff]
    %v4056 = vld [vmem:[#allocation3 + $0x250] sm:$0xff]
    %v4057 = vld [vmem:[#allocation3 + $0x258] sm:$0xff]
    %v4058 = vld [vmem:[#allocation3 + $0x260] sm:$0xff]
    %v4059 = vld [vmem:[#allocation3 + $0x268] sm:$0xff]
    %v4060 = vld [vmem:[#allocation3 + $0x270] sm:$0xff]
    %v4061 = vld [vmem:[#allocation3 + $0x278] sm:$0xff]
    %v4062 = vld [vmem:[#allocation3 + $0x280] sm:$0xff]
    %v4063 = vld [vmem:[#allocation3 + $0x288] sm:$0xff]
    %v4064 = vld [vmem:[#allocation3 + $0x290] sm:$0xff]
    %v4065 = vld [vmem:[#allocation3 + $0x298] sm:$0xff]
    %v4066 = vld [vmem:[#allocation3 + $0x2a0] sm:$0xff]
    %v4067 = vld [vmem:[#allocation3 + $0x2a8] sm:$0xff]
    %v4068 = vld [vmem:[#allocation3 + $0x2b0] sm:$0xff]
    %v4069 = vld [vmem:[#allocation3 + $0x2b8] sm:$0xff]
    %v4070 = vld [vmem:[#allocation3 + $0x2c0] sm:$0xff]
    %v4071 = vld [vmem:[#allocation3 + $0x2c8] sm:$0xff]
    %v4072 = vld [vmem:[#allocation3 + $0x2d0] sm:$0xff]
    %v4073 = vld [vmem:[#allocation3 + $0x2d8] sm:$0xff]
    %v4074 = vld [vmem:[#allocation3 + $0x2e0] sm:$0xff]
    %v4075 = vld [vmem:[#allocation3 + $0x2e8] sm:$0xff]
    %v4076 = vld [vmem:[#allocation3 + $0x2f0] sm:$0xff]
    %v4077 = vld [vmem:[#allocation3 + $0x2f8] sm:$0xff]
    %v4078 = vld [vmem:[#allocation3 + $0x300] sm:$0xff]
    %v4079 = vld [vmem:[#allocation3 + $0x308] sm:$0xff]
    %v4080 = vld [vmem:[#allocation3 + $0x310] sm:$0xff]
    %v4081 = vld [vmem:[#allocation3 + $0x318] sm:$0xff]
    %v4082 = vld [vmem:[#allocation3 + $0x320] sm:$0xff]
    %v4083 = vld [vmem:[#allocation3 + $0x328] sm:$0xff]
    %v4084 = vld [vmem:[#allocation3 + $0x330] sm:$0xff]
    %v4085 = vld [vmem:[#allocation3 + $0x338] sm:$0xff]
    %v4086 = vld [vmem:[#allocation3 + $0x340] sm:$0xff]
    %v4087 = vld [vmem:[#allocation3 + $0x348] sm:$0xff]
    %v4088 = vld [vmem:[#allocation3 + $0x350] sm:$0xff]
    %v4089 = vld [vmem:[#allocation3 + $0x358] sm:$0xff]
    %v4090 = vld [vmem:[#allocation3 + $0x360] sm:$0xff]
    %v4091 = vld [vmem:[#allocation3 + $0x368] sm:$0xff]
    %v4092 = vld [vmem:[#allocation3 + $0x370] sm:$0xff]
    %v4093 = vld [vmem:[#allocation3 + $0x378] sm:$0xff]
    %v4094 = vld [vmem:[#allocation3 + $0x380] sm:$0xff]
    %v4095 = vld [vmem:[#allocation3 + $0x388] sm:$0xff]
    %v4096 = vld [vmem:[#allocation3 + $0x390] sm:$0xff]
    %v4097 = vld [vmem:[#allocation3 + $0x398] sm:$0xff]
    %v4098 = vld [vmem:[#allocation3 + $0x3a0] sm:$0xff]
    %v4099 = vld [vmem:[#allocation3 + $0x3a8] sm:$0xff]
    %v4100 = vld [vmem:[#allocation3 + $0x3b0] sm:$0xff]
    %v4101 = vld [vmem:[#allocation3 + $0x3b8] sm:$0xff]
    %v4102 = vld [vmem:[#allocation3 + $0x3c0] sm:$0xff]
    %v4103 = vld [vmem:[#allocation3 + $0x3c8] sm:$0xff]
    %v4104 = vld [vmem:[#allocation3 + $0x3d0] sm:$0xff]
    %v4105 = vld [vmem:[#allocation3 + $0x3d8] sm:$0xff]
    %v4106 = vld [vmem:[#allocation3 + $0x3e0] sm:$0xff]
    %v4107 = vld [vmem:[#allocation3 + $0x3e8] sm:$0xff]
    %v4108 = vld [vmem:[#allocation3 + $0x3f0] sm:$0xff]
    %v4109 = vld [vmem:[#allocation3 + $0x3f8] sm:$0xff]
    %v4110 = vld [vmem:[#allocation3 + $0x400] sm:$0xff]
    %v4111 = vld [vmem:[#allocation3 + $0x408] sm:$0xff]
    %v4112 = vld [vmem:[#allocation3 + $0x410] sm:$0xff]
    %v4113 = vld [vmem:[#allocation3 + $0x418] sm:$0xff]
    %v4114 = vld [vmem:[#allocation3 + $0x420] sm:$0xff]
    %v4115 = vld [vmem:[#allocation3 + $0x428] sm:$0xff]
    %v4116 = vld [vmem:[#allocation3 + $0x430] sm:$0xff]
    %v4117 = vld [vmem:[#allocation3 + $0x438] sm:$0xff]
    %v4118 = vld [vmem:[#allocation3 + $0x440] sm:$0xff]
    %v4119 = vld [vmem:[#allocation3 + $0x448] sm:$0xff]
    %v4120 = vld [vmem:[#allocation3 + $0x450] sm:$0xff]
    %v4121 = vld [vmem:[#allocation3 + $0x458] sm:$0xff]
    %v4122 = vld [vmem:[#allocation3 + $0x460] sm:$0xff]
    %v4123 = vld [vmem:[#allocation3 + $0x468] sm:$0xff]
    %v4124 = vld [vmem:[#allocation3 + $0x470] sm:$0xff]
    %v4125 = vld [vmem:[#allocation3 + $0x478] sm:$0xff]
    %v4126 = vld [vmem:[#allocation3 + $0x480] sm:$0xff]
    %v4127 = vld [vmem:[#allocation3 + $0x488] sm:$0xff]
    %v4128 = vld [vmem:[#allocation3 + $0x490] sm:$0xff]
    %v4129 = vld [vmem:[#allocation3 + $0x498] sm:$0xff]
    %v4130 = vld [vmem:[#allocation3 + $0x4a0] sm:$0xff]
    %v4131 = vld [vmem:[#allocation3 + $0x4a8] sm:$0xff]
    %v4132 = vld [vmem:[#allocation3 + $0x4b0] sm:$0xff]
    %v4133 = vld [vmem:[#allocation3 + $0x4b8] sm:$0xff]
    %v4134 = vld [vmem:[#allocation3 + $0x4c0] sm:$0xff]
    %v4135 = vld [vmem:[#allocation3 + $0x4c8] sm:$0xff]
    %v4136 = vld [vmem:[#allocation3 + $0x4d0] sm:$0xff]
    %v4137 = vld [vmem:[#allocation3 + $0x4d8] sm:$0xff]
    %v4138 = vld [vmem:[#allocation3 + $0x4e0] sm:$0xff]
    %v4139 = vld [vmem:[#allocation3 + $0x4e8] sm:$0xff]
    %v4140 = vld [vmem:[#allocation3 + $0x4f0] sm:$0xff]
    %v4141 = vld [vmem:[#allocation3 + $0x4f8] sm:$0xff]
    %v4142 = vld [vmem:[#allocation3 + $0x500] sm:$0xff]
    %v4143 = vld [vmem:[#allocation3 + $0x508] sm:$0xff]
    %v4144 = vld [vmem:[#allocation3 + $0x510] sm:$0xff]
    %v4145 = vld [vmem:[#allocation3 + $0x518] sm:$0xff]
    %v4146 = vld [vmem:[#allocation3 + $0x520] sm:$0xff]
    %v4147 = vld [vmem:[#allocation3 + $0x528] sm:$0xff]
    %v4148 = vld [vmem:[#allocation3 + $0x530] sm:$0xff]
    %v4149 = vld [vmem:[#allocation3 + $0x538] sm:$0xff]
    %v4150 = vld [vmem:[#allocation2 + $0xe0] sm:$0xff]
    %v4151 = vld [vmem:[#allocation2 + $0xe8] sm:$0xff]
    %v4152 = vld [vmem:[#allocation2 + $0xf0] sm:$0xff]
    %v4153 = vld [vmem:[#allocation2 + $0xf8] sm:$0xff]
    %v4154 = vld [vmem:[#allocation2 + $0x100] sm:$0xff]
    %v4155 = vld [vmem:[#allocation2 + $0x108] sm:$0xff]
    %v4156 = vld [vmem:[#allocation2 + $0x110] sm:$0xff]
    %v4157 = vld [vmem:[#allocation2 + $0x118] sm:$0xff]
    %v4158 = vld [vmem:[#allocation2 + $0x120] sm:$0xff]
    %v4159 = vld [vmem:[#allocation2 + $0x128] sm:$0xff]
    %v4160 = vld [vmem:[#allocation2 + $0x130] sm:$0xff]
    %v4161 = vld [vmem:[#allocation2 + $0x138] sm:$0xff]
    %v4162 = vld [vmem:[#allocation2 + $0x140] sm:$0xff]
    %v4163 = vld [vmem:[#allocation2 + $0x148] sm:$0xff]
    %4164 = vmatprep.subr.bf16.mxu0 %v4011
    %4165 = vmatpush1.bf16.xpose.msra.mxu0 %v4010
    %4166 = vmatprep.subr.bf16.mxu0 %v4025
    %4167 = vmatpush1.bf16.xpose.msra.mxu0 %v4024
    %4168 = vmatprep.subr.bf16.mxu0 %v4039
    %4169 = vmatpush1.bf16.xpose.msra.mxu0 %v4038
    %4170 = vmatprep.subr.bf16.mxu0 %v4053
    %4171 = vmatpush1.bf16.xpose.msra.mxu0 %v4052
    %4172 = vmatprep.subr.bf16.mxu0 %v4067
    %4173 = vmatpush1.bf16.xpose.msra.mxu0 %v4066
    %4174 = vmatprep.subr.bf16.mxu0 %v4081
    %4175 = vmatpush1.bf16.xpose.msra.mxu0 %v4080
    %4176 = vmatprep.subr.bf16.mxu0 %v4095
    %4177 = vmatpush1.bf16.xpose.msra.mxu0 %v4094
    %4178 = vmatprep.subr.bf16.mxu0 %v4109
    %4179 = vmatpush1.bf16.xpose.msra.mxu0 %v4108
    %4180 = vmatprep.subr.bf16.mxu0 %v4123
    %4181 = vmatpush1.bf16.xpose.msra.mxu0 %v4122
    %4182 = vmatprep.subr.bf16.mxu0 %v4137
    %4183 = vmatpush1.bf16.xpose.msra.mxu0 %v4136
    %4184 = vmatprep.subr.bf16.mxu0 0
    %4185 = vmatpush1.bf16.xpose.msra.mxu0 0
    %4186 = vmatprep.subr.bf16.mxu0 0
    %4187 = vmatpush1.bf16.xpose.msra.mxu0 0
    %4188 = vmatprep.subr.bf16.mxu0 0
    %4189 = vmatpush1.bf16.xpose.msra.mxu0 0
    %4190 = vmatprep.subr.bf16.mxu0 0
    %4191 = vmatpush1.bf16.xpose.msra.mxu0 0
    %4192 = vmatprep.subr.bf16.mxu0 0
    %4193 = vmatpush1.bf16.xpose.msra.mxu0 0
    %4194 = vmatprep.subr.bf16.mxu0 0
    %4195 = vmatpush1.bf16.xpose.msra.mxu0 0
    %4196 = vmatprep.mubr.bf16.mxu0 %v4151
    %4197 = vmatmul.mubr.bf16.gmra.mrb[0].mxu0 %v4150
    %v4198 = vpop.f32.mrb[0].mxu0
    %v4199 = vadd.f32 0.0, %v4198
    %v4200 = vpop.f32.mrb[0].mxu0
    %v4201 = vadd.f32 0.0, %v4200
    %v4202 = vpop.f32.mrb[0].mxu0
    %v4203 = vadd.f32 0.0, %v4202
    %v4204 = vpop.f32.mrb[0].mxu0
    %v4205 = vadd.f32 0.0, %v4204
    %4206 = vdwg.mxu0
    %4207 = vmatprep.subr.bf16.mxu0 %v4013
    %4208 = vmatpush1.bf16.xpose.msra.mxu0 %v4012
    %4209 = vmatprep.subr.bf16.mxu0 %v4027
    %4210 = vmatpush1.bf16.xpose.msra.mxu0 %v4026
    %4211 = vmatprep.subr.bf16.mxu0 %v4041
    %4212 = vmatpush1.bf16.xpose.msra.mxu0 %v4040
    %4213 = vmatprep.subr.bf16.mxu0 %v4055
    %4214 = vmatpush1.bf16.xpose.msra.mxu0 %v4054
    %4215 = vmatprep.subr.bf16.mxu0 %v4069
    %4216 = vmatpush1.bf16.xpose.msra.mxu0 %v4068
    %4217 = vmatprep.subr.bf16.mxu0 %v4083
    %4218 = vmatpush1.bf16.xpose.msra.mxu0 %v4082
    %4219 = vmatprep.subr.bf16.mxu0 %v4097
    %4220 = vmatpush1.bf16.xpose.msra.mxu0 %v4096
    %4221 = vmatprep.subr.bf16.mxu0 %v4111
    %4222 = vmatpush1.bf16.xpose.msra.mxu0 %v4110
    %4223 = vmatprep.subr.bf16.mxu0 %v4125
    %4224 = vmatpush1.bf16.xpose.msra.mxu0 %v4124
    %4225 = vmatprep.subr.bf16.mxu0 %v4139
    %4226 = vmatpush1.bf16.xpose.msra.mxu0 %v4138
    %4227 = vmatprep.subr.bf16.mxu0 0
    %4228 = vmatpush1.bf16.xpose.msra.mxu0 0
    %4229 = vmatprep.subr.bf16.mxu0 0
    %4230 = vmatpush1.bf16.xpose.msra.mxu0 0
    %4231 = vmatprep.subr.bf16.mxu0 0
    %4232 = vmatpush1.bf16.xpose.msra.mxu0 0
    %4233 = vmatprep.subr.bf16.mxu0 0
    %4234 = vmatpush1.bf16.xpose.msra.mxu0 0
    %4235 = vmatprep.subr.bf16.mxu0 0
    %4236 = vmatpush1.bf16.xpose.msra.mxu0 0
    %4237 = vmatprep.subr.bf16.mxu0 0
    %4238 = vmatpush1.bf16.xpose.msra.mxu0 0
    %4239 = vmatprep.mubr.bf16.mxu0 %v4153
    %4240 = vmatmul.mubr.bf16.gmra.mrb[0].mxu0 %v4152
    %v4241 = vpop.f32.mrb[0].mxu0
    %v4242 = vadd.f32 %v4199, %v4241
    %v4243 = vpop.f32.mrb[0].mxu0
    %v4244 = vadd.f32 %v4201, %v4243
    %v4245 = vpop.f32.mrb[0].mxu0
    %v4246 = vadd.f32 %v4203, %v4245
    %v4247 = vpop.f32.mrb[0].mxu0
    %v4248 = vadd.f32 %v4205, %v4247
    %4249 = vdwg.mxu0
    %4250 = vmatprep.subr.bf16.mxu0 %v4015
    %4251 = vmatpush1.bf16.xpose.msra.mxu0 %v4014
    %4252 = vmatprep.subr.bf16.mxu0 %v4029
    %4253 = vmatpush1.bf16.xpose.msra.mxu0 %v4028
    %4254 = vmatprep.subr.bf16.mxu0 %v4043
    %4255 = vmatpush1.bf16.xpose.msra.mxu0 %v4042
    %4256 = vmatprep.subr.bf16.mxu0 %v4057
    %4257 = vmatpush1.bf16.xpose.msra.mxu0 %v4056
    %4258 = vmatprep.subr.bf16.mxu0 %v4071
    %4259 = vmatpush1.bf16.xpose.msra.mxu0 %v4070
    %4260 = vmatprep.subr.bf16.mxu0 %v4085
    %4261 = vmatpush1.bf16.xpose.msra.mxu0 %v4084
    %4262 = vmatprep.subr.bf16.mxu0 %v4099
    %4263 = vmatpush1.bf16.xpose.msra.mxu0 %v4098
    %4264 = vmatprep.subr.bf16.mxu0 %v4113
    %4265 = vmatpush1.bf16.xpose.msra.mxu0 %v4112
    %4266 = vmatprep.subr.bf16.mxu0 %v4127
    %4267 = vmatpush1.bf16.xpose.msra.mxu0 %v4126
    %4268 = vmatprep.subr.bf16.mxu0 %v4141
    %4269 = vmatpush1.bf16.xpose.msra.mxu0 %v4140
    %4270 = vmatprep.subr.bf16.mxu0 0
    %4271 = vmatpush1.bf16.xpose.msra.mxu0 0
    %4272 = vmatprep.subr.bf16.mxu0 0
    %4273 = vmatpush1.bf16.xpose.msra.mxu0 0
    %4274 = vmatprep.subr.bf16.mxu0 0
    %4275 = vmatpush1.bf16.xpose.msra.mxu0 0
    %4276 = vmatprep.subr.bf16.mxu0 0
    %4277 = vmatpush1.bf16.xpose.msra.mxu0 0
    %4278 = vmatprep.subr.bf16.mxu0 0
    %4279 = vmatpush1.bf16.xpose.msra.mxu0 0
    %4280 = vmatprep.subr.bf16.mxu0 0
    %4281 = vmatpush1.bf16.xpose.msra.mxu0 0
    %4282 = vmatprep.mubr.bf16.mxu0 %v4155
    %4283 = vmatmul.mubr.bf16.gmra.mrb[0].mxu0 %v4154
    %v4284 = vpop.f32.mrb[0].mxu0
    %v4285 = vadd.f32 %v4242, %v4284
    %v4286 = vpop.f32.mrb[0].mxu0
    %v4287 = vadd.f32 %v4244, %v4286
    %v4288 = vpop.f32.mrb[0].mxu0
    %v4289 = vadd.f32 %v4246, %v4288
    %v4290 = vpop.f32.mrb[0].mxu0
    %v4291 = vadd.f32 %v4248, %v4290
    %4292 = vdwg.mxu0
    %4293 = vmatprep.subr.bf16.mxu0 %v4017
    %4294 = vmatpush1.bf16.xpose.msra.mxu0 %v4016
    %4295 = vmatprep.subr.bf16.mxu0 %v4031
    %4296 = vmatpush1.bf16.xpose.msra.mxu0 %v4030
    %4297 = vmatprep.subr.bf16.mxu0 %v4045
    %4298 = vmatpush1.bf16.xpose.msra.mxu0 %v4044
    %4299 = vmatprep.subr.bf16.mxu0 %v4059
    %4300 = vmatpush1.bf16.xpose.msra.mxu0 %v4058
    %4301 = vmatprep.subr.bf16.mxu0 %v4073
    %4302 = vmatpush1.bf16.xpose.msra.mxu0 %v4072
    %4303 = vmatprep.subr.bf16.mxu0 %v4087
    %4304 = vmatpush1.bf16.xpose.msra.mxu0 %v4086
    %4305 = vmatprep.subr.bf16.mxu0 %v4101
    %4306 = vmatpush1.bf16.xpose.msra.mxu0 %v4100
    %4307 = vmatprep.subr.bf16.mxu0 %v4115
    %4308 = vmatpush1.bf16.xpose.msra.mxu0 %v4114
    %4309 = vmatprep.subr.bf16.mxu0 %v4129
    %4310 = vmatpush1.bf16.xpose.msra.mxu0 %v4128
    %4311 = vmatprep.subr.bf16.mxu0 %v4143
    %4312 = vmatpush1.bf16.xpose.msra.mxu0 %v4142
    %4313 = vmatprep.subr.bf16.mxu0 0
    %4314 = vmatpush1.bf16.xpose.msra.mxu0 0
    %4315 = vmatprep.subr.bf16.mxu0 0
    %4316 = vmatpush1.bf16.xpose.msra.mxu0 0
    %4317 = vmatprep.subr.bf16.mxu0 0
    %4318 = vmatpush1.bf16.xpose.msra.mxu0 0
    %4319 = vmatprep.subr.bf16.mxu0 0
    %4320 = vmatpush1.bf16.xpose.msra.mxu0 0
    %4321 = vmatprep.subr.bf16.mxu0 0
    %4322 = vmatpush1.bf16.xpose.msra.mxu0 0
    %4323 = vmatprep.subr.bf16.mxu0 0
    %4324 = vmatpush1.bf16.xpose.msra.mxu0 0
    %4325 = vmatprep.mubr.bf16.mxu0 %v4157
    %4326 = vmatmul.mubr.bf16.gmra.mrb[0].mxu0 %v4156
    %v4327 = vpop.f32.mrb[0].mxu0
    %v4328 = vadd.f32 %v4285, %v4327
    %v4329 = vpop.f32.mrb[0].mxu0
    %v4330 = vadd.f32 %v4287, %v4329
    %v4331 = vpop.f32.mrb[0].mxu0
    %v4332 = vadd.f32 %v4289, %v4331
    %v4333 = vpop.f32.mrb[0].mxu0
    %v4334 = vadd.f32 %v4291, %v4333
    %4335 = vdwg.mxu0
    %4336 = vmatprep.subr.bf16.mxu0 %v4019
    %4337 = vmatpush1.bf16.xpose.msra.mxu0 %v4018
    %4338 = vmatprep.subr.bf16.mxu0 %v4033
    %4339 = vmatpush1.bf16.xpose.msra.mxu0 %v4032
    %4340 = vmatprep.subr.bf16.mxu0 %v4047
    %4341 = vmatpush1.bf16.xpose.msra.mxu0 %v4046
    %4342 = vmatprep.subr.bf16.mxu0 %v4061
    %4343 = vmatpush1.bf16.xpose.msra.mxu0 %v4060
    %4344 = vmatprep.subr.bf16.mxu0 %v4075
    %4345 = vmatpush1.bf16.xpose.msra.mxu0 %v4074
    %4346 = vmatprep.subr.bf16.mxu0 %v4089
    %4347 = vmatpush1.bf16.xpose.msra.mxu0 %v4088
    %4348 = vmatprep.subr.bf16.mxu0 %v4103
    %4349 = vmatpush1.bf16.xpose.msra.mxu0 %v4102
    %4350 = vmatprep.subr.bf16.mxu0 %v4117
    %4351 = vmatpush1.bf16.xpose.msra.mxu0 %v4116
    %4352 = vmatprep.subr.bf16.mxu0 %v4131
    %4353 = vmatpush1.bf16.xpose.msra.mxu0 %v4130
    %4354 = vmatprep.subr.bf16.mxu0 %v4145
    %4355 = vmatpush1.bf16.xpose.msra.mxu0 %v4144
    %4356 = vmatprep.subr.bf16.mxu0 0
    %4357 = vmatpush1.bf16.xpose.msra.mxu0 0
    %4358 = vmatprep.subr.bf16.mxu0 0
    %4359 = vmatpush1.bf16.xpose.msra.mxu0 0
    %4360 = vmatprep.subr.bf16.mxu0 0
    %4361 = vmatpush1.bf16.xpose.msra.mxu0 0
    %4362 = vmatprep.subr.bf16.mxu0 0
    %4363 = vmatpush1.bf16.xpose.msra.mxu0 0
    %4364 = vmatprep.subr.bf16.mxu0 0
    %4365 = vmatpush1.bf16.xpose.msra.mxu0 0
    %4366 = vmatprep.subr.bf16.mxu0 0
    %4367 = vmatpush1.bf16.xpose.msra.mxu0 0
    %4368 = vmatprep.mubr.bf16.mxu0 %v4159
    %4369 = vmatmul.mubr.bf16.gmra.mrb[0].mxu0 %v4158
    %v4370 = vpop.f32.mrb[0].mxu0
    %v4371 = vadd.f32 %v4328, %v4370
    %v4372 = vpop.f32.mrb[0].mxu0
    %v4373 = vadd.f32 %v4330, %v4372
    %v4374 = vpop.f32.mrb[0].mxu0
    %v4375 = vadd.f32 %v4332, %v4374
    %v4376 = vpop.f32.mrb[0].mxu0
    %v4377 = vadd.f32 %v4334, %v4376
    %4378 = vdwg.mxu0
    %4379 = vmatprep.subr.bf16.mxu0 %v4021
    %4380 = vmatpush1.bf16.xpose.msra.mxu0 %v4020
    %4381 = vmatprep.subr.bf16.mxu0 %v4035
    %4382 = vmatpush1.bf16.xpose.msra.mxu0 %v4034
    %4383 = vmatprep.subr.bf16.mxu0 %v4049
    %4384 = vmatpush1.bf16.xpose.msra.mxu0 %v4048
    %4385 = vmatprep.subr.bf16.mxu0 %v4063
    %4386 = vmatpush1.bf16.xpose.msra.mxu0 %v4062
    %4387 = vmatprep.subr.bf16.mxu0 %v4077
    %4388 = vmatpush1.bf16.xpose.msra.mxu0 %v4076
    %4389 = vmatprep.subr.bf16.mxu0 %v4091
    %4390 = vmatpush1.bf16.xpose.msra.mxu0 %v4090
    %4391 = vmatprep.subr.bf16.mxu0 %v4105
    %4392 = vmatpush1.bf16.xpose.msra.mxu0 %v4104
    %4393 = vmatprep.subr.bf16.mxu0 %v4119
    %4394 = vmatpush1.bf16.xpose.msra.mxu0 %v4118
    %4395 = vmatprep.subr.bf16.mxu0 %v4133
    %4396 = vmatpush1.bf16.xpose.msra.mxu0 %v4132
    %4397 = vmatprep.subr.bf16.mxu0 %v4147
    %4398 = vmatpush1.bf16.xpose.msra.mxu0 %v4146
    %4399 = vmatprep.subr.bf16.mxu0 0
    %4400 = vmatpush1.bf16.xpose.msra.mxu0 0
    %4401 = vmatprep.subr.bf16.mxu0 0
    %4402 = vmatpush1.bf16.xpose.msra.mxu0 0
    %4403 = vmatprep.subr.bf16.mxu0 0
    %4404 = vmatpush1.bf16.xpose.msra.mxu0 0
    %4405 = vmatprep.subr.bf16.mxu0 0
    %4406 = vmatpush1.bf16.xpose.msra.mxu0 0
    %4407 = vmatprep.subr.bf16.mxu0 0
    %4408 = vmatpush1.bf16.xpose.msra.mxu0 0
    %4409 = vmatprep.subr.bf16.mxu0 0
    %4410 = vmatpush1.bf16.xpose.msra.mxu0 0
    %4411 = vmatprep.mubr.bf16.mxu0 %v4161
    %4412 = vmatmul.mubr.bf16.gmra.mrb[0].mxu0 %v4160
    %v4413 = vpop.f32.mrb[0].mxu0
    %v4414 = vadd.f32 %v4371, %v4413
    %v4415 = vpop.f32.mrb[0].mxu0
    %v4416 = vadd.f32 %v4373, %v4415
    %v4417 = vpop.f32.mrb[0].mxu0
    %v4418 = vadd.f32 %v4375, %v4417
    %v4419 = vpop.f32.mrb[0].mxu0
    %v4420 = vadd.f32 %v4377, %v4419
    %4421 = vdwg.mxu0
    %4422 = vmatprep.subr.bf16.mxu0 %v4023
    %4423 = vmatpush1.bf16.xpose.msra.mxu0 %v4022
    %4424 = vmatprep.subr.bf16.mxu0 %v4037
    %4425 = vmatpush1.bf16.xpose.msra.mxu0 %v4036
    %4426 = vmatprep.subr.bf16.mxu0 %v4051
    %4427 = vmatpush1.bf16.xpose.msra.mxu0 %v4050
    %4428 = vmatprep.subr.bf16.mxu0 %v4065
    %4429 = vmatpush1.bf16.xpose.msra.mxu0 %v4064
    %4430 = vmatprep.subr.bf16.mxu0 %v4079
    %4431 = vmatpush1.bf16.xpose.msra.mxu0 %v4078
    %4432 = vmatprep.subr.bf16.mxu0 %v4093
    %4433 = vmatpush1.bf16.xpose.msra.mxu0 %v4092
    %4434 = vmatprep.subr.bf16.mxu0 %v4107
    %4435 = vmatpush1.bf16.xpose.msra.mxu0 %v4106
    %4436 = vmatprep.subr.bf16.mxu0 %v4121
    %4437 = vmatpush1.bf16.xpose.msra.mxu0 %v4120
    %4438 = vmatprep.subr.bf16.mxu0 %v4135
    %4439 = vmatpush1.bf16.xpose.msra.mxu0 %v4134
    %4440 = vmatprep.subr.bf16.mxu0 %v4149
    %4441 = vmatpush1.bf16.xpose.msra.mxu0 %v4148
    %4442 = vmatprep.subr.bf16.mxu0 0
    %4443 = vmatpush1.bf16.xpose.msra.mxu0 0
    %4444 = vmatprep.subr.bf16.mxu0 0
    %4445 = vmatpush1.bf16.xpose.msra.mxu0 0
    %4446 = vmatprep.subr.bf16.mxu0 0
    %4447 = vmatpush1.bf16.xpose.msra.mxu0 0
    %4448 = vmatprep.subr.bf16.mxu0 0
    %4449 = vmatpush1.bf16.xpose.msra.mxu0 0
    %4450 = vmatprep.subr.bf16.mxu0 0
    %4451 = vmatpush1.bf16.xpose.msra.mxu0 0
    %4452 = vmatprep.subr.bf16.mxu0 0
    %4453 = vmatpush1.bf16.xpose.msra.mxu0 0
    %4454 = vmatprep.mubr.bf16.mxu0 %v4163
    %4455 = vmatmul.mubr.bf16.gmra.mrb[0].mxu0 %v4162
    %v4456 = vpop.f32.mrb[0].mxu0
    %v4457 = vadd.f32 %v4414, %v4456
    %v4458 = vpop.f32.mrb[0].mxu0
    %v4459 = vadd.f32 %v4416, %v4458
    %v4460 = vpop.f32.mrb[0].mxu0
    %v4461 = vadd.f32 %v4418, %v4460
    %v4462 = vpop.f32.mrb[0].mxu0
    %v4463 = vadd.f32 %v4420, %v4462
    %4464 = vdwg.mxu0
    %v4465 = vadd.f32 %v4002, %v4457
    %v4466 = vadd.f32 %v4004, %v4459
    %v4467 = vadd.f32 %v4006, %v4461
    %v4468 = vadd.f32 %v4008, %v4463
    %v4469 = vld [vmem:[#allocation3 + $0x150] sm:$0xff]
    %v4470 = vld [vmem:[#allocation3 + $0x158] sm:$0xff]
    %v4471 = vld [vmem:[#allocation3 + $0x160] sm:$0xff]
    %v4472 = vld [vmem:[#allocation3 + $0x168] sm:$0xff]
    %v4473 = vld [vmem:[#allocation3 + $0x170] sm:$0xff]
    %v4474 = vld [vmem:[#allocation3 + $0x178] sm:$0xff]
    %v4475 = vld [vmem:[#allocation3 + $0x180] sm:$0xff]
    %v4476 = vld [vmem:[#allocation3 + $0x188] sm:$0xff]
    %v4477 = vld [vmem:[#allocation3 + $0x190] sm:$0xff]
    %v4478 = vld [vmem:[#allocation3 + $0x198] sm:$0xff]
    %v4479 = vld [vmem:[#allocation3 + $0x1a0] sm:$0xff]
    %v4480 = vld [vmem:[#allocation3 + $0x1a8] sm:$0xff]
    %v4481 = vld [vmem:[#allocation3 + $0x1b0] sm:$0xff]
    %v4482 = vld [vmem:[#allocation3 + $0x1b8] sm:$0xff]
    %v4483 = vld [vmem:[#allocation3 + $0x1c0] sm:$0xff]
    %v4484 = vld [vmem:[#allocation3 + $0x1c8] sm:$0xff]
    %v4485 = vld [vmem:[#allocation3 + $0x1d0] sm:$0xff]
    %v4486 = vld [vmem:[#allocation3 + $0x1d8] sm:$0xff]
    %v4487 = vld [vmem:[#allocation3 + $0x1e0] sm:$0xff]
    %v4488 = vld [vmem:[#allocation3 + $0x1e8] sm:$0xff]
    %v4489 = vld [vmem:[#allocation3 + $0x1f0] sm:$0xff]
    %v4490 = vld [vmem:[#allocation3 + $0x1f8] sm:$0xff]
    %v4491 = vld [vmem:[#allocation3 + $0x200] sm:$0xff]
    %v4492 = vld [vmem:[#allocation3 + $0x208] sm:$0xff]
    %v4493 = vld [vmem:[#allocation3 + $0x210] sm:$0xff]
    %v4494 = vld [vmem:[#allocation3 + $0x218] sm:$0xff]
    %v4495 = vld [vmem:[#allocation3 + $0x220] sm:$0xff]
    %v4496 = vld [vmem:[#allocation3 + $0x228] sm:$0xff]
    %v4497 = vld [vmem:[#allocation3 + $0x230] sm:$0xff]
    %v4498 = vld [vmem:[#allocation3 + $0x238] sm:$0xff]
    %v4499 = vld [vmem:[#allocation3 + $0x240] sm:$0xff]
    %v4500 = vld [vmem:[#allocation3 + $0x248] sm:$0xff]
    %v4501 = vld [vmem:[#allocation3 + $0x250] sm:$0xff]
    %v4502 = vld [vmem:[#allocation3 + $0x258] sm:$0xff]
    %v4503 = vld [vmem:[#allocation3 + $0x260] sm:$0xff]
    %v4504 = vld [vmem:[#allocation3 + $0x268] sm:$0xff]
    %v4505 = vld [vmem:[#allocation3 + $0x270] sm:$0xff]
    %v4506 = vld [vmem:[#allocation3 + $0x278] sm:$0xff]
    %v4507 = vld [vmem:[#allocation3 + $0x280] sm:$0xff]
    %v4508 = vld [vmem:[#allocation3 + $0x288] sm:$0xff]
    %v4509 = vld [vmem:[#allocation3 + $0x290] sm:$0xff]
    %v4510 = vld [vmem:[#allocation3 + $0x298] sm:$0xff]
    %v4511 = vld [vmem:[#allocation3 + $0x2a0] sm:$0xff]
    %v4512 = vld [vmem:[#allocation3 + $0x2a8] sm:$0xff]
    %v4513 = vld [vmem:[#allocation3 + $0x2b0] sm:$0xff]
    %v4514 = vld [vmem:[#allocation3 + $0x2b8] sm:$0xff]
    %v4515 = vld [vmem:[#allocation3 + $0x2c0] sm:$0xff]
    %v4516 = vld [vmem:[#allocation3 + $0x2c8] sm:$0xff]
    %v4517 = vld [vmem:[#allocation3 + $0x2d0] sm:$0xff]
    %v4518 = vld [vmem:[#allocation3 + $0x2d8] sm:$0xff]
    %v4519 = vld [vmem:[#allocation3 + $0x2e0] sm:$0xff]
    %v4520 = vld [vmem:[#allocation3 + $0x2e8] sm:$0xff]
    %v4521 = vld [vmem:[#allocation3 + $0x2f0] sm:$0xff]
    %v4522 = vld [vmem:[#allocation3 + $0x2f8] sm:$0xff]
    %v4523 = vld [vmem:[#allocation3 + $0x300] sm:$0xff]
    %v4524 = vld [vmem:[#allocation3 + $0x308] sm:$0xff]
    %v4525 = vld [vmem:[#allocation3 + $0x310] sm:$0xff]
    %v4526 = vld [vmem:[#allocation3 + $0x318] sm:$0xff]
    %v4527 = vld [vmem:[#allocation3 + $0x320] sm:$0xff]
    %v4528 = vld [vmem:[#allocation3 + $0x328] sm:$0xff]
    %v4529 = vld [vmem:[#allocation3 + $0x330] sm:$0xff]
    %v4530 = vld [vmem:[#allocation3 + $0x338] sm:$0xff]
    %v4531 = vld [vmem:[#allocation3 + $0x340] sm:$0xff]
    %v4532 = vld [vmem:[#allocation3 + $0x348] sm:$0xff]
    %v4533 = vld [vmem:[#allocation3 + $0x350] sm:$0xff]
    %v4534 = vld [vmem:[#allocation3 + $0x358] sm:$0xff]
    %v4535 = vld [vmem:[#allocation3 + $0x360] sm:$0xff]
    %v4536 = vld [vmem:[#allocation3 + $0x368] sm:$0xff]
    %v4537 = vld [vmem:[#allocation3 + $0x370] sm:$0xff]
    %v4538 = vld [vmem:[#allocation3 + $0x378] sm:$0xff]
    %v4539 = vld [vmem:[#allocation3 + $0x380] sm:$0xff]
    %v4540 = vld [vmem:[#allocation3 + $0x388] sm:$0xff]
    %v4541 = vld [vmem:[#allocation3 + $0x390] sm:$0xff]
    %v4542 = vld [vmem:[#allocation3 + $0x398] sm:$0xff]
    %v4543 = vld [vmem:[#allocation3 + $0x3a0] sm:$0xff]
    %v4544 = vld [vmem:[#allocation3 + $0x3a8] sm:$0xff]
    %v4545 = vld [vmem:[#allocation3 + $0x3b0] sm:$0xff]
    %v4546 = vld [vmem:[#allocation3 + $0x3b8] sm:$0xff]
    %v4547 = vld [vmem:[#allocation3 + $0x3c0] sm:$0xff]
    %v4548 = vld [vmem:[#allocation3 + $0x3c8] sm:$0xff]
    %v4549 = vld [vmem:[#allocation3 + $0x3d0] sm:$0xff]
    %v4550 = vld [vmem:[#allocation3 + $0x3d8] sm:$0xff]
    %v4551 = vld [vmem:[#allocation3 + $0x3e0] sm:$0xff]
    %v4552 = vld [vmem:[#allocation3 + $0x3e8] sm:$0xff]
    %v4553 = vld [vmem:[#allocation3 + $0x3f0] sm:$0xff]
    %v4554 = vld [vmem:[#allocation3 + $0x3f8] sm:$0xff]
    %v4555 = vld [vmem:[#allocation3 + $0x400] sm:$0xff]
    %v4556 = vld [vmem:[#allocation3 + $0x408] sm:$0xff]
    %v4557 = vld [vmem:[#allocation3 + $0x410] sm:$0xff]
    %v4558 = vld [vmem:[#allocation3 + $0x418] sm:$0xff]
    %v4559 = vld [vmem:[#allocation3 + $0x420] sm:$0xff]
    %v4560 = vld [vmem:[#allocation3 + $0x428] sm:$0xff]
    %v4561 = vld [vmem:[#allocation3 + $0x430] sm:$0xff]
    %v4562 = vld [vmem:[#allocation3 + $0x438] sm:$0xff]
    %v4563 = vld [vmem:[#allocation3 + $0x440] sm:$0xff]
    %v4564 = vld [vmem:[#allocation3 + $0x448] sm:$0xff]
    %v4565 = vld [vmem:[#allocation3 + $0x450] sm:$0xff]
    %v4566 = vld [vmem:[#allocation3 + $0x458] sm:$0xff]
    %v4567 = vld [vmem:[#allocation3 + $0x460] sm:$0xff]
    %v4568 = vld [vmem:[#allocation3 + $0x468] sm:$0xff]
    %v4569 = vld [vmem:[#allocation3 + $0x470] sm:$0xff]
    %v4570 = vld [vmem:[#allocation3 + $0x478] sm:$0xff]
    %v4571 = vld [vmem:[#allocation3 + $0x480] sm:$0xff]
    %v4572 = vld [vmem:[#allocation3 + $0x488] sm:$0xff]
    %v4573 = vld [vmem:[#allocation3 + $0x490] sm:$0xff]
    %v4574 = vld [vmem:[#allocation3 + $0x498] sm:$0xff]
    %v4575 = vld [vmem:[#allocation3 + $0x4a0] sm:$0xff]
    %v4576 = vld [vmem:[#allocation3 + $0x4a8] sm:$0xff]
    %v4577 = vld [vmem:[#allocation3 + $0x4b0] sm:$0xff]
    %v4578 = vld [vmem:[#allocation3 + $0x4b8] sm:$0xff]
    %v4579 = vld [vmem:[#allocation3 + $0x4c0] sm:$0xff]
    %v4580 = vld [vmem:[#allocation3 + $0x4c8] sm:$0xff]
    %v4581 = vld [vmem:[#allocation3 + $0x4d0] sm:$0xff]
    %v4582 = vld [vmem:[#allocation3 + $0x4d8] sm:$0xff]
    %v4583 = vld [vmem:[#allocation3 + $0x4e0] sm:$0xff]
    %v4584 = vld [vmem:[#allocation3 + $0x4e8] sm:$0xff]
    %v4585 = vld [vmem:[#allocation3 + $0x4f0] sm:$0xff]
    %v4586 = vld [vmem:[#allocation3 + $0x4f8] sm:$0xff]
    %v4587 = vld [vmem:[#allocation3 + $0x500] sm:$0xff]
    %v4588 = vld [vmem:[#allocation3 + $0x508] sm:$0xff]
    %v4589 = vld [vmem:[#allocation3 + $0x510] sm:$0xff]
    %v4590 = vld [vmem:[#allocation3 + $0x518] sm:$0xff]
    %v4591 = vld [vmem:[#allocation3 + $0x520] sm:$0xff]
    %v4592 = vld [vmem:[#allocation3 + $0x528] sm:$0xff]
    %v4593 = vld [vmem:[#allocation3 + $0x530] sm:$0xff]
    %v4594 = vld [vmem:[#allocation3 + $0x538] sm:$0xff]
    %v4595 = vld [vmem:[#allocation3 + $0x540] sm:$0xff]
    %v4596 = vld [vmem:[#allocation3 + $0x548] sm:$0xff]
    %v4597 = vld [vmem:[#allocation3 + $0x550] sm:$0xff]
    %v4598 = vld [vmem:[#allocation3 + $0x558] sm:$0xff]
    %v4599 = vld [vmem:[#allocation3 + $0x560] sm:$0xff]
    %v4600 = vld [vmem:[#allocation3 + $0x568] sm:$0xff]
    %v4601 = vld [vmem:[#allocation3 + $0x570] sm:$0xff]
    %v4602 = vld [vmem:[#allocation3 + $0x578] sm:$0xff]
    %v4603 = vld [vmem:[#allocation3 + $0x580] sm:$0xff]
    %v4604 = vld [vmem:[#allocation3 + $0x588] sm:$0xff]
    %v4605 = vld [vmem:[#allocation3 + $0x590] sm:$0xff]
    %v4606 = vld [vmem:[#allocation3 + $0x598] sm:$0xff]
    %v4607 = vld [vmem:[#allocation3 + $0x5a0] sm:$0xff]
    %v4608 = vld [vmem:[#allocation3 + $0x5a8] sm:$0xff]
    %v4609 = vld [vmem:[#allocation2 + $0x150] sm:$0xff]
    %v4610 = vld [vmem:[#allocation2 + $0x158] sm:$0xff]
    %v4611 = vld [vmem:[#allocation2 + $0x160] sm:$0xff]
    %v4612 = vld [vmem:[#allocation2 + $0x168] sm:$0xff]
    %v4613 = vld [vmem:[#allocation2 + $0x170] sm:$0xff]
    %v4614 = vld [vmem:[#allocation2 + $0x178] sm:$0xff]
    %v4615 = vld [vmem:[#allocation2 + $0x180] sm:$0xff]
    %v4616 = vld [vmem:[#allocation2 + $0x188] sm:$0xff]
    %v4617 = vld [vmem:[#allocation2 + $0x190] sm:$0xff]
    %v4618 = vld [vmem:[#allocation2 + $0x198] sm:$0xff]
    %v4619 = vld [vmem:[#allocation2 + $0x1a0] sm:$0xff]
    %v4620 = vld [vmem:[#allocation2 + $0x1a8] sm:$0xff]
    %v4621 = vld [vmem:[#allocation2 + $0x1b0] sm:$0xff]
    %v4622 = vld [vmem:[#allocation2 + $0x1b8] sm:$0xff]
    %4623 = vmatprep.subr.bf16.mxu0 %v4470
    %4624 = vmatpush1.bf16.xpose.msra.mxu0 %v4469
    %4625 = vmatprep.subr.bf16.mxu0 %v4484
    %4626 = vmatpush1.bf16.xpose.msra.mxu0 %v4483
    %4627 = vmatprep.subr.bf16.mxu0 %v4498
    %4628 = vmatpush1.bf16.xpose.msra.mxu0 %v4497
    %4629 = vmatprep.subr.bf16.mxu0 %v4512
    %4630 = vmatpush1.bf16.xpose.msra.mxu0 %v4511
    %4631 = vmatprep.subr.bf16.mxu0 %v4526
    %4632 = vmatpush1.bf16.xpose.msra.mxu0 %v4525
    %4633 = vmatprep.subr.bf16.mxu0 %v4540
    %4634 = vmatpush1.bf16.xpose.msra.mxu0 %v4539
    %4635 = vmatprep.subr.bf16.mxu0 %v4554
    %4636 = vmatpush1.bf16.xpose.msra.mxu0 %v4553
    %4637 = vmatprep.subr.bf16.mxu0 %v4568
    %4638 = vmatpush1.bf16.xpose.msra.mxu0 %v4567
    %4639 = vmatprep.subr.bf16.mxu0 %v4582
    %4640 = vmatpush1.bf16.xpose.msra.mxu0 %v4581
    %4641 = vmatprep.subr.bf16.mxu0 %v4596
    %4642 = vmatpush1.bf16.xpose.msra.mxu0 %v4595
    %4643 = vmatprep.subr.bf16.mxu0 0
    %4644 = vmatpush1.bf16.xpose.msra.mxu0 0
    %4645 = vmatprep.subr.bf16.mxu0 0
    %4646 = vmatpush1.bf16.xpose.msra.mxu0 0
    %4647 = vmatprep.subr.bf16.mxu0 0
    %4648 = vmatpush1.bf16.xpose.msra.mxu0 0
    %4649 = vmatprep.subr.bf16.mxu0 0
    %4650 = vmatpush1.bf16.xpose.msra.mxu0 0
    %4651 = vmatprep.subr.bf16.mxu0 0
    %4652 = vmatpush1.bf16.xpose.msra.mxu0 0
    %4653 = vmatprep.subr.bf16.mxu0 0
    %4654 = vmatpush1.bf16.xpose.msra.mxu0 0
    %4655 = vmatprep.mubr.bf16.mxu0 %v4610
    %4656 = vmatmul.mubr.bf16.gmra.mrb[0].mxu0 %v4609
    %v4657 = vpop.f32.mrb[0].mxu0
    %v4658 = vadd.f32 0.0, %v4657
    %v4659 = vpop.f32.mrb[0].mxu0
    %v4660 = vadd.f32 0.0, %v4659
    %v4661 = vpop.f32.mrb[0].mxu0
    %v4662 = vadd.f32 0.0, %v4661
    %v4663 = vpop.f32.mrb[0].mxu0
    %v4664 = vadd.f32 0.0, %v4663
    %4665 = vdwg.mxu0
    %4666 = vmatprep.subr.bf16.mxu0 %v4472
    %4667 = vmatpush1.bf16.xpose.msra.mxu0 %v4471
    %4668 = vmatprep.subr.bf16.mxu0 %v4486
    %4669 = vmatpush1.bf16.xpose.msra.mxu0 %v4485
    %4670 = vmatprep.subr.bf16.mxu0 %v4500
    %4671 = vmatpush1.bf16.xpose.msra.mxu0 %v4499
    %4672 = vmatprep.subr.bf16.mxu0 %v4514
    %4673 = vmatpush1.bf16.xpose.msra.mxu0 %v4513
    %4674 = vmatprep.subr.bf16.mxu0 %v4528
    %4675 = vmatpush1.bf16.xpose.msra.mxu0 %v4527
    %4676 = vmatprep.subr.bf16.mxu0 %v4542
    %4677 = vmatpush1.bf16.xpose.msra.mxu0 %v4541
    %4678 = vmatprep.subr.bf16.mxu0 %v4556
    %4679 = vmatpush1.bf16.xpose.msra.mxu0 %v4555
    %4680 = vmatprep.subr.bf16.mxu0 %v4570
    %4681 = vmatpush1.bf16.xpose.msra.mxu0 %v4569
    %4682 = vmatprep.subr.bf16.mxu0 %v4584
    %4683 = vmatpush1.bf16.xpose.msra.mxu0 %v4583
    %4684 = vmatprep.subr.bf16.mxu0 %v4598
    %4685 = vmatpush1.bf16.xpose.msra.mxu0 %v4597
    %4686 = vmatprep.subr.bf16.mxu0 0
    %4687 = vmatpush1.bf16.xpose.msra.mxu0 0
    %4688 = vmatprep.subr.bf16.mxu0 0
    %4689 = vmatpush1.bf16.xpose.msra.mxu0 0
    %4690 = vmatprep.subr.bf16.mxu0 0
    %4691 = vmatpush1.bf16.xpose.msra.mxu0 0
    %4692 = vmatprep.subr.bf16.mxu0 0
    %4693 = vmatpush1.bf16.xpose.msra.mxu0 0
    %4694 = vmatprep.subr.bf16.mxu0 0
    %4695 = vmatpush1.bf16.xpose.msra.mxu0 0
    %4696 = vmatprep.subr.bf16.mxu0 0
    %4697 = vmatpush1.bf16.xpose.msra.mxu0 0
    %4698 = vmatprep.mubr.bf16.mxu0 %v4612
    %4699 = vmatmul.mubr.bf16.gmra.mrb[0].mxu0 %v4611
    %v4700 = vpop.f32.mrb[0].mxu0
    %v4701 = vadd.f32 %v4658, %v4700
    %v4702 = vpop.f32.mrb[0].mxu0
    %v4703 = vadd.f32 %v4660, %v4702
    %v4704 = vpop.f32.mrb[0].mxu0
    %v4705 = vadd.f32 %v4662, %v4704
    %v4706 = vpop.f32.mrb[0].mxu0
    %v4707 = vadd.f32 %v4664, %v4706
    %4708 = vdwg.mxu0
    %4709 = vmatprep.subr.bf16.mxu0 %v4474
    %4710 = vmatpush1.bf16.xpose.msra.mxu0 %v4473
    %4711 = vmatprep.subr.bf16.mxu0 %v4488
    %4712 = vmatpush1.bf16.xpose.msra.mxu0 %v4487
    %4713 = vmatprep.subr.bf16.mxu0 %v4502
    %4714 = vmatpush1.bf16.xpose.msra.mxu0 %v4501
    %4715 = vmatprep.subr.bf16.mxu0 %v4516
    %4716 = vmatpush1.bf16.xpose.msra.mxu0 %v4515
    %4717 = vmatprep.subr.bf16.mxu0 %v4530
    %4718 = vmatpush1.bf16.xpose.msra.mxu0 %v4529
    %4719 = vmatprep.subr.bf16.mxu0 %v4544
    %4720 = vmatpush1.bf16.xpose.msra.mxu0 %v4543
    %4721 = vmatprep.subr.bf16.mxu0 %v4558
    %4722 = vmatpush1.bf16.xpose.msra.mxu0 %v4557
    %4723 = vmatprep.subr.bf16.mxu0 %v4572
    %4724 = vmatpush1.bf16.xpose.msra.mxu0 %v4571
    %4725 = vmatprep.subr.bf16.mxu0 %v4586
    %4726 = vmatpush1.bf16.xpose.msra.mxu0 %v4585
    %4727 = vmatprep.subr.bf16.mxu0 %v4600
    %4728 = vmatpush1.bf16.xpose.msra.mxu0 %v4599
    %4729 = vmatprep.subr.bf16.mxu0 0
    %4730 = vmatpush1.bf16.xpose.msra.mxu0 0
    %4731 = vmatprep.subr.bf16.mxu0 0
    %4732 = vmatpush1.bf16.xpose.msra.mxu0 0
    %4733 = vmatprep.subr.bf16.mxu0 0
    %4734 = vmatpush1.bf16.xpose.msra.mxu0 0
    %4735 = vmatprep.subr.bf16.mxu0 0
    %4736 = vmatpush1.bf16.xpose.msra.mxu0 0
    %4737 = vmatprep.subr.bf16.mxu0 0
    %4738 = vmatpush1.bf16.xpose.msra.mxu0 0
    %4739 = vmatprep.subr.bf16.mxu0 0
    %4740 = vmatpush1.bf16.xpose.msra.mxu0 0
    %4741 = vmatprep.mubr.bf16.mxu0 %v4614
    %4742 = vmatmul.mubr.bf16.gmra.mrb[0].mxu0 %v4613
    %v4743 = vpop.f32.mrb[0].mxu0
    %v4744 = vadd.f32 %v4701, %v4743
    %v4745 = vpop.f32.mrb[0].mxu0
    %v4746 = vadd.f32 %v4703, %v4745
    %v4747 = vpop.f32.mrb[0].mxu0
    %v4748 = vadd.f32 %v4705, %v4747
    %v4749 = vpop.f32.mrb[0].mxu0
    %v4750 = vadd.f32 %v4707, %v4749
    %4751 = vdwg.mxu0
    %4752 = vmatprep.subr.bf16.mxu0 %v4476
    %4753 = vmatpush1.bf16.xpose.msra.mxu0 %v4475
    %4754 = vmatprep.subr.bf16.mxu0 %v4490
    %4755 = vmatpush1.bf16.xpose.msra.mxu0 %v4489
    %4756 = vmatprep.subr.bf16.mxu0 %v4504
    %4757 = vmatpush1.bf16.xpose.msra.mxu0 %v4503
    %4758 = vmatprep.subr.bf16.mxu0 %v4518
    %4759 = vmatpush1.bf16.xpose.msra.mxu0 %v4517
    %4760 = vmatprep.subr.bf16.mxu0 %v4532
    %4761 = vmatpush1.bf16.xpose.msra.mxu0 %v4531
    %4762 = vmatprep.subr.bf16.mxu0 %v4546
    %4763 = vmatpush1.bf16.xpose.msra.mxu0 %v4545
    %4764 = vmatprep.subr.bf16.mxu0 %v4560
    %4765 = vmatpush1.bf16.xpose.msra.mxu0 %v4559
    %4766 = vmatprep.subr.bf16.mxu0 %v4574
    %4767 = vmatpush1.bf16.xpose.msra.mxu0 %v4573
    %4768 = vmatprep.subr.bf16.mxu0 %v4588
    %4769 = vmatpush1.bf16.xpose.msra.mxu0 %v4587
    %4770 = vmatprep.subr.bf16.mxu0 %v4602
    %4771 = vmatpush1.bf16.xpose.msra.mxu0 %v4601
    %4772 = vmatprep.subr.bf16.mxu0 0
    %4773 = vmatpush1.bf16.xpose.msra.mxu0 0
    %4774 = vmatprep.subr.bf16.mxu0 0
    %4775 = vmatpush1.bf16.xpose.msra.mxu0 0
    %4776 = vmatprep.subr.bf16.mxu0 0
    %4777 = vmatpush1.bf16.xpose.msra.mxu0 0
    %4778 = vmatprep.subr.bf16.mxu0 0
    %4779 = vmatpush1.bf16.xpose.msra.mxu0 0
    %4780 = vmatprep.subr.bf16.mxu0 0
    %4781 = vmatpush1.bf16.xpose.msra.mxu0 0
    %4782 = vmatprep.subr.bf16.mxu0 0
    %4783 = vmatpush1.bf16.xpose.msra.mxu0 0
    %4784 = vmatprep.mubr.bf16.mxu0 %v4616
    %4785 = vmatmul.mubr.bf16.gmra.mrb[0].mxu0 %v4615
    %v4786 = vpop.f32.mrb[0].mxu0
    %v4787 = vadd.f32 %v4744, %v4786
    %v4788 = vpop.f32.mrb[0].mxu0
    %v4789 = vadd.f32 %v4746, %v4788
    %v4790 = vpop.f32.mrb[0].mxu0
    %v4791 = vadd.f32 %v4748, %v4790
    %v4792 = vpop.f32.mrb[0].mxu0
    %v4793 = vadd.f32 %v4750, %v4792
    %4794 = vdwg.mxu0
    %4795 = vmatprep.subr.bf16.mxu0 %v4478
    %4796 = vmatpush1.bf16.xpose.msra.mxu0 %v4477
    %4797 = vmatprep.subr.bf16.mxu0 %v4492
    %4798 = vmatpush1.bf16.xpose.msra.mxu0 %v4491
    %4799 = vmatprep.subr.bf16.mxu0 %v4506
    %4800 = vmatpush1.bf16.xpose.msra.mxu0 %v4505
    %4801 = vmatprep.subr.bf16.mxu0 %v4520
    %4802 = vmatpush1.bf16.xpose.msra.mxu0 %v4519
    %4803 = vmatprep.subr.bf16.mxu0 %v4534
    %4804 = vmatpush1.bf16.xpose.msra.mxu0 %v4533
    %4805 = vmatprep.subr.bf16.mxu0 %v4548
    %4806 = vmatpush1.bf16.xpose.msra.mxu0 %v4547
    %4807 = vmatprep.subr.bf16.mxu0 %v4562
    %4808 = vmatpush1.bf16.xpose.msra.mxu0 %v4561
    %4809 = vmatprep.subr.bf16.mxu0 %v4576
    %4810 = vmatpush1.bf16.xpose.msra.mxu0 %v4575
    %4811 = vmatprep.subr.bf16.mxu0 %v4590
    %4812 = vmatpush1.bf16.xpose.msra.mxu0 %v4589
    %4813 = vmatprep.subr.bf16.mxu0 %v4604
    %4814 = vmatpush1.bf16.xpose.msra.mxu0 %v4603
    %4815 = vmatprep.subr.bf16.mxu0 0
    %4816 = vmatpush1.bf16.xpose.msra.mxu0 0
    %4817 = vmatprep.subr.bf16.mxu0 0
    %4818 = vmatpush1.bf16.xpose.msra.mxu0 0
    %4819 = vmatprep.subr.bf16.mxu0 0
    %4820 = vmatpush1.bf16.xpose.msra.mxu0 0
    %4821 = vmatprep.subr.bf16.mxu0 0
    %4822 = vmatpush1.bf16.xpose.msra.mxu0 0
    %4823 = vmatprep.subr.bf16.mxu0 0
    %4824 = vmatpush1.bf16.xpose.msra.mxu0 0
    %4825 = vmatprep.subr.bf16.mxu0 0
    %4826 = vmatpush1.bf16.xpose.msra.mxu0 0
    %4827 = vmatprep.mubr.bf16.mxu0 %v4618
    %4828 = vmatmul.mubr.bf16.gmra.mrb[0].mxu0 %v4617
    %v4829 = vpop.f32.mrb[0].mxu0
    %v4830 = vadd.f32 %v4787, %v4829
    %v4831 = vpop.f32.mrb[0].mxu0
    %v4832 = vadd.f32 %v4789, %v4831
    %v4833 = vpop.f32.mrb[0].mxu0
    %v4834 = vadd.f32 %v4791, %v4833
    %v4835 = vpop.f32.mrb[0].mxu0
    %v4836 = vadd.f32 %v4793, %v4835
    %4837 = vdwg.mxu0
    %4838 = vmatprep.subr.bf16.mxu0 %v4480
    %4839 = vmatpush1.bf16.xpose.msra.mxu0 %v4479
    %4840 = vmatprep.subr.bf16.mxu0 %v4494
    %4841 = vmatpush1.bf16.xpose.msra.mxu0 %v4493
    %4842 = vmatprep.subr.bf16.mxu0 %v4508
    %4843 = vmatpush1.bf16.xpose.msra.mxu0 %v4507
    %4844 = vmatprep.subr.bf16.mxu0 %v4522
    %4845 = vmatpush1.bf16.xpose.msra.mxu0 %v4521
    %4846 = vmatprep.subr.bf16.mxu0 %v4536
    %4847 = vmatpush1.bf16.xpose.msra.mxu0 %v4535
    %4848 = vmatprep.subr.bf16.mxu0 %v4550
    %4849 = vmatpush1.bf16.xpose.msra.mxu0 %v4549
    %4850 = vmatprep.subr.bf16.mxu0 %v4564
    %4851 = vmatpush1.bf16.xpose.msra.mxu0 %v4563
    %4852 = vmatprep.subr.bf16.mxu0 %v4578
    %4853 = vmatpush1.bf16.xpose.msra.mxu0 %v4577
    %4854 = vmatprep.subr.bf16.mxu0 %v4592
    %4855 = vmatpush1.bf16.xpose.msra.mxu0 %v4591
    %4856 = vmatprep.subr.bf16.mxu0 %v4606
    %4857 = vmatpush1.bf16.xpose.msra.mxu0 %v4605
    %4858 = vmatprep.subr.bf16.mxu0 0
    %4859 = vmatpush1.bf16.xpose.msra.mxu0 0
    %4860 = vmatprep.subr.bf16.mxu0 0
    %4861 = vmatpush1.bf16.xpose.msra.mxu0 0
    %4862 = vmatprep.subr.bf16.mxu0 0
    %4863 = vmatpush1.bf16.xpose.msra.mxu0 0
    %4864 = vmatprep.subr.bf16.mxu0 0
    %4865 = vmatpush1.bf16.xpose.msra.mxu0 0
    %4866 = vmatprep.subr.bf16.mxu0 0
    %4867 = vmatpush1.bf16.xpose.msra.mxu0 0
    %4868 = vmatprep.subr.bf16.mxu0 0
    %4869 = vmatpush1.bf16.xpose.msra.mxu0 0
    %4870 = vmatprep.mubr.bf16.mxu0 %v4620
    %4871 = vmatmul.mubr.bf16.gmra.mrb[0].mxu0 %v4619
    %v4872 = vpop.f32.mrb[0].mxu0
    %v4873 = vadd.f32 %v4830, %v4872
    %v4874 = vpop.f32.mrb[0].mxu0
    %v4875 = vadd.f32 %v4832, %v4874
    %v4876 = vpop.f32.mrb[0].mxu0
    %v4877 = vadd.f32 %v4834, %v4876
    %v4878 = vpop.f32.mrb[0].mxu0
    %v4879 = vadd.f32 %v4836, %v4878
    %4880 = vdwg.mxu0
    %4881 = vmatprep.subr.bf16.mxu0 %v4482
    %4882 = vmatpush1.bf16.xpose.msra.mxu0 %v4481
    %4883 = vmatprep.subr.bf16.mxu0 %v4496
    %4884 = vmatpush1.bf16.xpose.msra.mxu0 %v4495
    %4885 = vmatprep.subr.bf16.mxu0 %v4510
    %4886 = vmatpush1.bf16.xpose.msra.mxu0 %v4509
    %4887 = vmatprep.subr.bf16.mxu0 %v4524
    %4888 = vmatpush1.bf16.xpose.msra.mxu0 %v4523
    %4889 = vmatprep.subr.bf16.mxu0 %v4538
    %4890 = vmatpush1.bf16.xpose.msra.mxu0 %v4537
    %4891 = vmatprep.subr.bf16.mxu0 %v4552
    %4892 = vmatpush1.bf16.xpose.msra.mxu0 %v4551
    %4893 = vmatprep.subr.bf16.mxu0 %v4566
    %4894 = vmatpush1.bf16.xpose.msra.mxu0 %v4565
    %4895 = vmatprep.subr.bf16.mxu0 %v4580
    %4896 = vmatpush1.bf16.xpose.msra.mxu0 %v4579
    %4897 = vmatprep.subr.bf16.mxu0 %v4594
    %4898 = vmatpush1.bf16.xpose.msra.mxu0 %v4593
    %4899 = vmatprep.subr.bf16.mxu0 %v4608
    %4900 = vmatpush1.bf16.xpose.msra.mxu0 %v4607
    %4901 = vmatprep.subr.bf16.mxu0 0
    %4902 = vmatpush1.bf16.xpose.msra.mxu0 0
    %4903 = vmatprep.subr.bf16.mxu0 0
    %4904 = vmatpush1.bf16.xpose.msra.mxu0 0
    %4905 = vmatprep.subr.bf16.mxu0 0
    %4906 = vmatpush1.bf16.xpose.msra.mxu0 0
    %4907 = vmatprep.subr.bf16.mxu0 0
    %4908 = vmatpush1.bf16.xpose.msra.mxu0 0
    %4909 = vmatprep.subr.bf16.mxu0 0
    %4910 = vmatpush1.bf16.xpose.msra.mxu0 0
    %4911 = vmatprep.subr.bf16.mxu0 0
    %4912 = vmatpush1.bf16.xpose.msra.mxu0 0
    %4913 = vmatprep.mubr.bf16.mxu0 %v4622
    %4914 = vmatmul.mubr.bf16.gmra.mrb[0].mxu0 %v4621
    %v4915 = vpop.f32.mrb[0].mxu0
    %v4916 = vadd.f32 %v4873, %v4915
    %v4917 = vpop.f32.mrb[0].mxu0
    %v4918 = vadd.f32 %v4875, %v4917
    %v4919 = vpop.f32.mrb[0].mxu0
    %v4920 = vadd.f32 %v4877, %v4919
    %v4921 = vpop.f32.mrb[0].mxu0
    %v4922 = vadd.f32 %v4879, %v4921
    %4923 = vdwg.mxu0
    %v4924 = vadd.f32 %v4465, %v4916
    %v4925 = vadd.f32 %v4466, %v4918
    %v4926 = vadd.f32 %v4467, %v4920
    %v4927 = vadd.f32 %v4468, %v4922
    %v4928 = vld [vmem:[#allocation3 + $0x1c0] sm:$0xff]
    %v4929 = vld [vmem:[#allocation3 + $0x1c8] sm:$0xff]
    %v4930 = vld [vmem:[#allocation3 + $0x1d0] sm:$0xff]
    %v4931 = vld [vmem:[#allocation3 + $0x1d8] sm:$0xff]
    %v4932 = vld [vmem:[#allocation3 + $0x1e0] sm:$0xff]
    %v4933 = vld [vmem:[#allocation3 + $0x1e8] sm:$0xff]
    %v4934 = vld [vmem:[#allocation3 + $0x1f0] sm:$0xff]
    %v4935 = vld [vmem:[#allocation3 + $0x1f8] sm:$0xff]
    %v4936 = vld [vmem:[#allocation3 + $0x200] sm:$0xff]
    %v4937 = vld [vmem:[#allocation3 + $0x208] sm:$0xff]
    %v4938 = vld [vmem:[#allocation3 + $0x210] sm:$0xff]
    %v4939 = vld [vmem:[#allocation3 + $0x218] sm:$0xff]
    %v4940 = vld [vmem:[#allocation3 + $0x220] sm:$0xff]
    %v4941 = vld [vmem:[#allocation3 + $0x228] sm:$0xff]
    %v4942 = vld [vmem:[#allocation3 + $0x230] sm:$0xff]
    %v4943 = vld [vmem:[#allocation3 + $0x238] sm:$0xff]
    %v4944 = vld [vmem:[#allocation3 + $0x240] sm:$0xff]
    %v4945 = vld [vmem:[#allocation3 + $0x248] sm:$0xff]
    %v4946 = vld [vmem:[#allocation3 + $0x250] sm:$0xff]
    %v4947 = vld [vmem:[#allocation3 + $0x258] sm:$0xff]
    %v4948 = vld [vmem:[#allocation3 + $0x260] sm:$0xff]
    %v4949 = vld [vmem:[#allocation3 + $0x268] sm:$0xff]
    %v4950 = vld [vmem:[#allocation3 + $0x270] sm:$0xff]
    %v4951 = vld [vmem:[#allocation3 + $0x278] sm:$0xff]
    %v4952 = vld [vmem:[#allocation3 + $0x280] sm:$0xff]
    %v4953 = vld [vmem:[#allocation3 + $0x288] sm:$0xff]
    %v4954 = vld [vmem:[#allocation3 + $0x290] sm:$0xff]
    %v4955 = vld [vmem:[#allocation3 + $0x298] sm:$0xff]
    %v4956 = vld [vmem:[#allocation3 + $0x2a0] sm:$0xff]
    %v4957 = vld [vmem:[#allocation3 + $0x2a8] sm:$0xff]
    %v4958 = vld [vmem:[#allocation3 + $0x2b0] sm:$0xff]
    %v4959 = vld [vmem:[#allocation3 + $0x2b8] sm:$0xff]
    %v4960 = vld [vmem:[#allocation3 + $0x2c0] sm:$0xff]
    %v4961 = vld [vmem:[#allocation3 + $0x2c8] sm:$0xff]
    %v4962 = vld [vmem:[#allocation3 + $0x2d0] sm:$0xff]
    %v4963 = vld [vmem:[#allocation3 + $0x2d8] sm:$0xff]
    %v4964 = vld [vmem:[#allocation3 + $0x2e0] sm:$0xff]
    %v4965 = vld [vmem:[#allocation3 + $0x2e8] sm:$0xff]
    %v4966 = vld [vmem:[#allocation3 + $0x2f0] sm:$0xff]
    %v4967 = vld [vmem:[#allocation3 + $0x2f8] sm:$0xff]
    %v4968 = vld [vmem:[#allocation3 + $0x300] sm:$0xff]
    %v4969 = vld [vmem:[#allocation3 + $0x308] sm:$0xff]
    %v4970 = vld [vmem:[#allocation3 + $0x310] sm:$0xff]
    %v4971 = vld [vmem:[#allocation3 + $0x318] sm:$0xff]
    %v4972 = vld [vmem:[#allocation3 + $0x320] sm:$0xff]
    %v4973 = vld [vmem:[#allocation3 + $0x328] sm:$0xff]
    %v4974 = vld [vmem:[#allocation3 + $0x330] sm:$0xff]
    %v4975 = vld [vmem:[#allocation3 + $0x338] sm:$0xff]
    %v4976 = vld [vmem:[#allocation3 + $0x340] sm:$0xff]
    %v4977 = vld [vmem:[#allocation3 + $0x348] sm:$0xff]
    %v4978 = vld [vmem:[#allocation3 + $0x350] sm:$0xff]
    %v4979 = vld [vmem:[#allocation3 + $0x358] sm:$0xff]
    %v4980 = vld [vmem:[#allocation3 + $0x360] sm:$0xff]
    %v4981 = vld [vmem:[#allocation3 + $0x368] sm:$0xff]
    %v4982 = vld [vmem:[#allocation3 + $0x370] sm:$0xff]
    %v4983 = vld [vmem:[#allocation3 + $0x378] sm:$0xff]
    %v4984 = vld [vmem:[#allocation3 + $0x380] sm:$0xff]
    %v4985 = vld [vmem:[#allocation3 + $0x388] sm:$0xff]
    %v4986 = vld [vmem:[#allocation3 + $0x390] sm:$0xff]
    %v4987 = vld [vmem:[#allocation3 + $0x398] sm:$0xff]
    %v4988 = vld [vmem:[#allocation3 + $0x3a0] sm:$0xff]
    %v4989 = vld [vmem:[#allocation3 + $0x3a8] sm:$0xff]
    %v4990 = vld [vmem:[#allocation3 + $0x3b0] sm:$0xff]
    %v4991 = vld [vmem:[#allocation3 + $0x3b8] sm:$0xff]
    %v4992 = vld [vmem:[#allocation3 + $0x3c0] sm:$0xff]
    %v4993 = vld [vmem:[#allocation3 + $0x3c8] sm:$0xff]
    %v4994 = vld [vmem:[#allocation3 + $0x3d0] sm:$0xff]
    %v4995 = vld [vmem:[#allocation3 + $0x3d8] sm:$0xff]
    %v4996 = vld [vmem:[#allocation3 + $0x3e0] sm:$0xff]
    %v4997 = vld [vmem:[#allocation3 + $0x3e8] sm:$0xff]
    %v4998 = vld [vmem:[#allocation3 + $0x3f0] sm:$0xff]
    %v4999 = vld [vmem:[#allocation3 + $0x3f8] sm:$0xff]
    %v5000 = vld [vmem:[#allocation3 + $0x400] sm:$0xff]
    %v5001 = vld [vmem:[#allocation3 + $0x408] sm:$0xff]
    %v5002 = vld [vmem:[#allocation3 + $0x410] sm:$0xff]
    %v5003 = vld [vmem:[#allocation3 + $0x418] sm:$0xff]
    %v5004 = vld [vmem:[#allocation3 + $0x420] sm:$0xff]
    %v5005 = vld [vmem:[#allocation3 + $0x428] sm:$0xff]
    %v5006 = vld [vmem:[#allocation3 + $0x430] sm:$0xff]
    %v5007 = vld [vmem:[#allocation3 + $0x438] sm:$0xff]
    %v5008 = vld [vmem:[#allocation3 + $0x440] sm:$0xff]
    %v5009 = vld [vmem:[#allocation3 + $0x448] sm:$0xff]
    %v5010 = vld [vmem:[#allocation3 + $0x450] sm:$0xff]
    %v5011 = vld [vmem:[#allocation3 + $0x458] sm:$0xff]
    %v5012 = vld [vmem:[#allocation3 + $0x460] sm:$0xff]
    %v5013 = vld [vmem:[#allocation3 + $0x468] sm:$0xff]
    %v5014 = vld [vmem:[#allocation3 + $0x470] sm:$0xff]
    %v5015 = vld [vmem:[#allocation3 + $0x478] sm:$0xff]
    %v5016 = vld [vmem:[#allocation3 + $0x480] sm:$0xff]
    %v5017 = vld [vmem:[#allocation3 + $0x488] sm:$0xff]
    %v5018 = vld [vmem:[#allocation3 + $0x490] sm:$0xff]
    %v5019 = vld [vmem:[#allocation3 + $0x498] sm:$0xff]
    %v5020 = vld [vmem:[#allocation3 + $0x4a0] sm:$0xff]
    %v5021 = vld [vmem:[#allocation3 + $0x4a8] sm:$0xff]
    %v5022 = vld [vmem:[#allocation3 + $0x4b0] sm:$0xff]
    %v5023 = vld [vmem:[#allocation3 + $0x4b8] sm:$0xff]
    %v5024 = vld [vmem:[#allocation3 + $0x4c0] sm:$0xff]
    %v5025 = vld [vmem:[#allocation3 + $0x4c8] sm:$0xff]
    %v5026 = vld [vmem:[#allocation3 + $0x4d0] sm:$0xff]
    %v5027 = vld [vmem:[#allocation3 + $0x4d8] sm:$0xff]
    %v5028 = vld [vmem:[#allocation3 + $0x4e0] sm:$0xff]
    %v5029 = vld [vmem:[#allocation3 + $0x4e8] sm:$0xff]
    %v5030 = vld [vmem:[#allocation3 + $0x4f0] sm:$0xff]
    %v5031 = vld [vmem:[#allocation3 + $0x4f8] sm:$0xff]
    %v5032 = vld [vmem:[#allocation3 + $0x500] sm:$0xff]
    %v5033 = vld [vmem:[#allocation3 + $0x508] sm:$0xff]
    %v5034 = vld [vmem:[#allocation3 + $0x510] sm:$0xff]
    %v5035 = vld [vmem:[#allocation3 + $0x518] sm:$0xff]
    %v5036 = vld [vmem:[#allocation3 + $0x520] sm:$0xff]
    %v5037 = vld [vmem:[#allocation3 + $0x528] sm:$0xff]
    %v5038 = vld [vmem:[#allocation3 + $0x530] sm:$0xff]
    %v5039 = vld [vmem:[#allocation3 + $0x538] sm:$0xff]
    %v5040 = vld [vmem:[#allocation3 + $0x540] sm:$0xff]
    %v5041 = vld [vmem:[#allocation3 + $0x548] sm:$0xff]
    %v5042 = vld [vmem:[#allocation3 + $0x550] sm:$0xff]
    %v5043 = vld [vmem:[#allocation3 + $0x558] sm:$0xff]
    %v5044 = vld [vmem:[#allocation3 + $0x560] sm:$0xff]
    %v5045 = vld [vmem:[#allocation3 + $0x568] sm:$0xff]
    %v5046 = vld [vmem:[#allocation3 + $0x570] sm:$0xff]
    %v5047 = vld [vmem:[#allocation3 + $0x578] sm:$0xff]
    %v5048 = vld [vmem:[#allocation3 + $0x580] sm:$0xff]
    %v5049 = vld [vmem:[#allocation3 + $0x588] sm:$0xff]
    %v5050 = vld [vmem:[#allocation3 + $0x590] sm:$0xff]
    %v5051 = vld [vmem:[#allocation3 + $0x598] sm:$0xff]
    %v5052 = vld [vmem:[#allocation3 + $0x5a0] sm:$0xff]
    %v5053 = vld [vmem:[#allocation3 + $0x5a8] sm:$0xff]
    %v5054 = vld [vmem:[#allocation3 + $0x5b0] sm:$0xff]
    %v5055 = vld [vmem:[#allocation3 + $0x5b8] sm:$0xff]
    %v5056 = vld [vmem:[#allocation3 + $0x5c0] sm:$0xff]
    %v5057 = vld [vmem:[#allocation3 + $0x5c8] sm:$0xff]
    %v5058 = vld [vmem:[#allocation3 + $0x5d0] sm:$0xff]
    %v5059 = vld [vmem:[#allocation3 + $0x5d8] sm:$0xff]
    %v5060 = vld [vmem:[#allocation3 + $0x5e0] sm:$0xff]
    %v5061 = vld [vmem:[#allocation3 + $0x5e8] sm:$0xff]
    %v5062 = vld [vmem:[#allocation3 + $0x5f0] sm:$0xff]
    %v5063 = vld [vmem:[#allocation3 + $0x5f8] sm:$0xff]
    %v5064 = vld [vmem:[#allocation3 + $0x600] sm:$0xff]
    %v5065 = vld [vmem:[#allocation3 + $0x608] sm:$0xff]
    %v5066 = vld [vmem:[#allocation3 + $0x610] sm:$0xff]
    %v5067 = vld [vmem:[#allocation3 + $0x618] sm:$0xff]
    %v5068 = vld [vmem:[#allocation2 + $0x1c0] sm:$0xff]
    %v5069 = vld [vmem:[#allocation2 + $0x1c8] sm:$0xff]
    %v5070 = vld [vmem:[#allocation2 + $0x1d0] sm:$0xff]
    %v5071 = vld [vmem:[#allocation2 + $0x1d8] sm:$0xff]
    %v5072 = vld [vmem:[#allocation2 + $0x1e0] sm:$0xff]
    %v5073 = vld [vmem:[#allocation2 + $0x1e8] sm:$0xff]
    %v5074 = vld [vmem:[#allocation2 + $0x1f0] sm:$0xff]
    %v5075 = vld [vmem:[#allocation2 + $0x1f8] sm:$0xff]
    %v5076 = vld [vmem:[#allocation2 + $0x200] sm:$0xff]
    %v5077 = vld [vmem:[#allocation2 + $0x208] sm:$0xff]
    %v5078 = vld [vmem:[#allocation2 + $0x210] sm:$0xff]
    %v5079 = vld [vmem:[#allocation2 + $0x218] sm:$0xff]
    %v5080 = vld [vmem:[#allocation2 + $0x220] sm:$0xff]
    %v5081 = vld [vmem:[#allocation2 + $0x228] sm:$0xff]
    %5082 = vmatprep.subr.bf16.mxu0 %v4929
    %5083 = vmatpush1.bf16.xpose.msra.mxu0 %v4928
    %5084 = vmatprep.subr.bf16.mxu0 %v4943
    %5085 = vmatpush1.bf16.xpose.msra.mxu0 %v4942
    %5086 = vmatprep.subr.bf16.mxu0 %v4957
    %5087 = vmatpush1.bf16.xpose.msra.mxu0 %v4956
    %5088 = vmatprep.subr.bf16.mxu0 %v4971
    %5089 = vmatpush1.bf16.xpose.msra.mxu0 %v4970
    %5090 = vmatprep.subr.bf16.mxu0 %v4985
    %5091 = vmatpush1.bf16.xpose.msra.mxu0 %v4984
    %5092 = vmatprep.subr.bf16.mxu0 %v4999
    %5093 = vmatpush1.bf16.xpose.msra.mxu0 %v4998
    %5094 = vmatprep.subr.bf16.mxu0 %v5013
    %5095 = vmatpush1.bf16.xpose.msra.mxu0 %v5012
    %5096 = vmatprep.subr.bf16.mxu0 %v5027
    %5097 = vmatpush1.bf16.xpose.msra.mxu0 %v5026
    %5098 = vmatprep.subr.bf16.mxu0 %v5041
    %5099 = vmatpush1.bf16.xpose.msra.mxu0 %v5040
    %5100 = vmatprep.subr.bf16.mxu0 %v5055
    %5101 = vmatpush1.bf16.xpose.msra.mxu0 %v5054
    %5102 = vmatprep.subr.bf16.mxu0 0
    %5103 = vmatpush1.bf16.xpose.msra.mxu0 0
    %5104 = vmatprep.subr.bf16.mxu0 0
    %5105 = vmatpush1.bf16.xpose.msra.mxu0 0
    %5106 = vmatprep.subr.bf16.mxu0 0
    %5107 = vmatpush1.bf16.xpose.msra.mxu0 0
    %5108 = vmatprep.subr.bf16.mxu0 0
    %5109 = vmatpush1.bf16.xpose.msra.mxu0 0
    %5110 = vmatprep.subr.bf16.mxu0 0
    %5111 = vmatpush1.bf16.xpose.msra.mxu0 0
    %5112 = vmatprep.subr.bf16.mxu0 0
    %5113 = vmatpush1.bf16.xpose.msra.mxu0 0
    %5114 = vmatprep.mubr.bf16.mxu0 %v5069
    %5115 = vmatmul.mubr.bf16.gmra.mrb[0].mxu0 %v5068
    %v5116 = vpop.f32.mrb[0].mxu0
    %v5117 = vadd.f32 0.0, %v5116
    %v5118 = vpop.f32.mrb[0].mxu0
    %v5119 = vadd.f32 0.0, %v5118
    %v5120 = vpop.f32.mrb[0].mxu0
    %v5121 = vadd.f32 0.0, %v5120
    %v5122 = vpop.f32.mrb[0].mxu0
    %v5123 = vadd.f32 0.0, %v5122
    %5124 = vdwg.mxu0
    %5125 = vmatprep.subr.bf16.mxu0 %v4931
    %5126 = vmatpush1.bf16.xpose.msra.mxu0 %v4930
    %5127 = vmatprep.subr.bf16.mxu0 %v4945
    %5128 = vmatpush1.bf16.xpose.msra.mxu0 %v4944
    %5129 = vmatprep.subr.bf16.mxu0 %v4959
    %5130 = vmatpush1.bf16.xpose.msra.mxu0 %v4958
    %5131 = vmatprep.subr.bf16.mxu0 %v4973
    %5132 = vmatpush1.bf16.xpose.msra.mxu0 %v4972
    %5133 = vmatprep.subr.bf16.mxu0 %v4987
    %5134 = vmatpush1.bf16.xpose.msra.mxu0 %v4986
    %5135 = vmatprep.subr.bf16.mxu0 %v5001
    %5136 = vmatpush1.bf16.xpose.msra.mxu0 %v5000
    %5137 = vmatprep.subr.bf16.mxu0 %v5015
    %5138 = vmatpush1.bf16.xpose.msra.mxu0 %v5014
    %5139 = vmatprep.subr.bf16.mxu0 %v5029
    %5140 = vmatpush1.bf16.xpose.msra.mxu0 %v5028
    %5141 = vmatprep.subr.bf16.mxu0 %v5043
    %5142 = vmatpush1.bf16.xpose.msra.mxu0 %v5042
    %5143 = vmatprep.subr.bf16.mxu0 %v5057
    %5144 = vmatpush1.bf16.xpose.msra.mxu0 %v5056
    %5145 = vmatprep.subr.bf16.mxu0 0
    %5146 = vmatpush1.bf16.xpose.msra.mxu0 0
    %5147 = vmatprep.subr.bf16.mxu0 0
    %5148 = vmatpush1.bf16.xpose.msra.mxu0 0
    %5149 = vmatprep.subr.bf16.mxu0 0
    %5150 = vmatpush1.bf16.xpose.msra.mxu0 0
    %5151 = vmatprep.subr.bf16.mxu0 0
    %5152 = vmatpush1.bf16.xpose.msra.mxu0 0
    %5153 = vmatprep.subr.bf16.mxu0 0
    %5154 = vmatpush1.bf16.xpose.msra.mxu0 0
    %5155 = vmatprep.subr.bf16.mxu0 0
    %5156 = vmatpush1.bf16.xpose.msra.mxu0 0
    %5157 = vmatprep.mubr.bf16.mxu0 %v5071
    %5158 = vmatmul.mubr.bf16.gmra.mrb[0].mxu0 %v5070
    %v5159 = vpop.f32.mrb[0].mxu0
    %v5160 = vadd.f32 %v5117, %v5159
    %v5161 = vpop.f32.mrb[0].mxu0
    %v5162 = vadd.f32 %v5119, %v5161
    %v5163 = vpop.f32.mrb[0].mxu0
    %v5164 = vadd.f32 %v5121, %v5163
    %v5165 = vpop.f32.mrb[0].mxu0
    %v5166 = vadd.f32 %v5123, %v5165
    %5167 = vdwg.mxu0
    %5168 = vmatprep.subr.bf16.mxu0 %v4933
    %5169 = vmatpush1.bf16.xpose.msra.mxu0 %v4932
    %5170 = vmatprep.subr.bf16.mxu0 %v4947
    %5171 = vmatpush1.bf16.xpose.msra.mxu0 %v4946
    %5172 = vmatprep.subr.bf16.mxu0 %v4961
    %5173 = vmatpush1.bf16.xpose.msra.mxu0 %v4960
    %5174 = vmatprep.subr.bf16.mxu0 %v4975
    %5175 = vmatpush1.bf16.xpose.msra.mxu0 %v4974
    %5176 = vmatprep.subr.bf16.mxu0 %v4989
    %5177 = vmatpush1.bf16.xpose.msra.mxu0 %v4988
    %5178 = vmatprep.subr.bf16.mxu0 %v5003
    %5179 = vmatpush1.bf16.xpose.msra.mxu0 %v5002
    %5180 = vmatprep.subr.bf16.mxu0 %v5017
    %5181 = vmatpush1.bf16.xpose.msra.mxu0 %v5016
    %5182 = vmatprep.subr.bf16.mxu0 %v5031
    %5183 = vmatpush1.bf16.xpose.msra.mxu0 %v5030
    %5184 = vmatprep.subr.bf16.mxu0 %v5045
    %5185 = vmatpush1.bf16.xpose.msra.mxu0 %v5044
    %5186 = vmatprep.subr.bf16.mxu0 %v5059
    %5187 = vmatpush1.bf16.xpose.msra.mxu0 %v5058
    %5188 = vmatprep.subr.bf16.mxu0 0
    %5189 = vmatpush1.bf16.xpose.msra.mxu0 0
    %5190 = vmatprep.subr.bf16.mxu0 0
    %5191 = vmatpush1.bf16.xpose.msra.mxu0 0
    %5192 = vmatprep.subr.bf16.mxu0 0
    %5193 = vmatpush1.bf16.xpose.msra.mxu0 0
    %5194 = vmatprep.subr.bf16.mxu0 0
    %5195 = vmatpush1.bf16.xpose.msra.mxu0 0
    %5196 = vmatprep.subr.bf16.mxu0 0
    %5197 = vmatpush1.bf16.xpose.msra.mxu0 0
    %5198 = vmatprep.subr.bf16.mxu0 0
    %5199 = vmatpush1.bf16.xpose.msra.mxu0 0
    %5200 = vmatprep.mubr.bf16.mxu0 %v5073
    %5201 = vmatmul.mubr.bf16.gmra.mrb[0].mxu0 %v5072
    %v5202 = vpop.f32.mrb[0].mxu0
    %v5203 = vadd.f32 %v5160, %v5202
    %v5204 = vpop.f32.mrb[0].mxu0
    %v5205 = vadd.f32 %v5162, %v5204
    %v5206 = vpop.f32.mrb[0].mxu0
    %v5207 = vadd.f32 %v5164, %v5206
    %v5208 = vpop.f32.mrb[0].mxu0
    %v5209 = vadd.f32 %v5166, %v5208
    %5210 = vdwg.mxu0
    %5211 = vmatprep.subr.bf16.mxu0 %v4935
    %5212 = vmatpush1.bf16.xpose.msra.mxu0 %v4934
    %5213 = vmatprep.subr.bf16.mxu0 %v4949
    %5214 = vmatpush1.bf16.xpose.msra.mxu0 %v4948
    %5215 = vmatprep.subr.bf16.mxu0 %v4963
    %5216 = vmatpush1.bf16.xpose.msra.mxu0 %v4962
    %5217 = vmatprep.subr.bf16.mxu0 %v4977
    %5218 = vmatpush1.bf16.xpose.msra.mxu0 %v4976
    %5219 = vmatprep.subr.bf16.mxu0 %v4991
    %5220 = vmatpush1.bf16.xpose.msra.mxu0 %v4990
    %5221 = vmatprep.subr.bf16.mxu0 %v5005
    %5222 = vmatpush1.bf16.xpose.msra.mxu0 %v5004
    %5223 = vmatprep.subr.bf16.mxu0 %v5019
    %5224 = vmatpush1.bf16.xpose.msra.mxu0 %v5018
    %5225 = vmatprep.subr.bf16.mxu0 %v5033
    %5226 = vmatpush1.bf16.xpose.msra.mxu0 %v5032
    %5227 = vmatprep.subr.bf16.mxu0 %v5047
    %5228 = vmatpush1.bf16.xpose.msra.mxu0 %v5046
    %5229 = vmatprep.subr.bf16.mxu0 %v5061
    %5230 = vmatpush1.bf16.xpose.msra.mxu0 %v5060
    %5231 = vmatprep.subr.bf16.mxu0 0
    %5232 = vmatpush1.bf16.xpose.msra.mxu0 0
    %5233 = vmatprep.subr.bf16.mxu0 0
    %5234 = vmatpush1.bf16.xpose.msra.mxu0 0
    %5235 = vmatprep.subr.bf16.mxu0 0
    %5236 = vmatpush1.bf16.xpose.msra.mxu0 0
    %5237 = vmatprep.subr.bf16.mxu0 0
    %5238 = vmatpush1.bf16.xpose.msra.mxu0 0
    %5239 = vmatprep.subr.bf16.mxu0 0
    %5240 = vmatpush1.bf16.xpose.msra.mxu0 0
    %5241 = vmatprep.subr.bf16.mxu0 0
    %5242 = vmatpush1.bf16.xpose.msra.mxu0 0
    %5243 = vmatprep.mubr.bf16.mxu0 %v5075
    %5244 = vmatmul.mubr.bf16.gmra.mrb[0].mxu0 %v5074
    %v5245 = vpop.f32.mrb[0].mxu0
    %v5246 = vadd.f32 %v5203, %v5245
    %v5247 = vpop.f32.mrb[0].mxu0
    %v5248 = vadd.f32 %v5205, %v5247
    %v5249 = vpop.f32.mrb[0].mxu0
    %v5250 = vadd.f32 %v5207, %v5249
    %v5251 = vpop.f32.mrb[0].mxu0
    %v5252 = vadd.f32 %v5209, %v5251
    %5253 = vdwg.mxu0
    %5254 = vmatprep.subr.bf16.mxu0 %v4937
    %5255 = vmatpush1.bf16.xpose.msra.mxu0 %v4936
    %5256 = vmatprep.subr.bf16.mxu0 %v4951
    %5257 = vmatpush1.bf16.xpose.msra.mxu0 %v4950
    %5258 = vmatprep.subr.bf16.mxu0 %v4965
    %5259 = vmatpush1.bf16.xpose.msra.mxu0 %v4964
    %5260 = vmatprep.subr.bf16.mxu0 %v4979
    %5261 = vmatpush1.bf16.xpose.msra.mxu0 %v4978
    %5262 = vmatprep.subr.bf16.mxu0 %v4993
    %5263 = vmatpush1.bf16.xpose.msra.mxu0 %v4992
    %5264 = vmatprep.subr.bf16.mxu0 %v5007
    %5265 = vmatpush1.bf16.xpose.msra.mxu0 %v5006
    %5266 = vmatprep.subr.bf16.mxu0 %v5021
    %5267 = vmatpush1.bf16.xpose.msra.mxu0 %v5020
    %5268 = vmatprep.subr.bf16.mxu0 %v5035
    %5269 = vmatpush1.bf16.xpose.msra.mxu0 %v5034
    %5270 = vmatprep.subr.bf16.mxu0 %v5049
    %5271 = vmatpush1.bf16.xpose.msra.mxu0 %v5048
    %5272 = vmatprep.subr.bf16.mxu0 %v5063
    %5273 = vmatpush1.bf16.xpose.msra.mxu0 %v5062
    %5274 = vmatprep.subr.bf16.mxu0 0
    %5275 = vmatpush1.bf16.xpose.msra.mxu0 0
    %5276 = vmatprep.subr.bf16.mxu0 0
    %5277 = vmatpush1.bf16.xpose.msra.mxu0 0
    %5278 = vmatprep.subr.bf16.mxu0 0
    %5279 = vmatpush1.bf16.xpose.msra.mxu0 0
    %5280 = vmatprep.subr.bf16.mxu0 0
    %5281 = vmatpush1.bf16.xpose.msra.mxu0 0
    %5282 = vmatprep.subr.bf16.mxu0 0
    %5283 = vmatpush1.bf16.xpose.msra.mxu0 0
    %5284 = vmatprep.subr.bf16.mxu0 0
    %5285 = vmatpush1.bf16.xpose.msra.mxu0 0
    %5286 = vmatprep.mubr.bf16.mxu0 %v5077
    %5287 = vmatmul.mubr.bf16.gmra.mrb[0].mxu0 %v5076
    %v5288 = vpop.f32.mrb[0].mxu0
    %v5289 = vadd.f32 %v5246, %v5288
    %v5290 = vpop.f32.mrb[0].mxu0
    %v5291 = vadd.f32 %v5248, %v5290
    %v5292 = vpop.f32.mrb[0].mxu0
    %v5293 = vadd.f32 %v5250, %v5292
    %v5294 = vpop.f32.mrb[0].mxu0
    %v5295 = vadd.f32 %v5252, %v5294
    %5296 = vdwg.mxu0
    %5297 = vmatprep.subr.bf16.mxu0 %v4939
    %5298 = vmatpush1.bf16.xpose.msra.mxu0 %v4938
    %5299 = vmatprep.subr.bf16.mxu0 %v4953
    %5300 = vmatpush1.bf16.xpose.msra.mxu0 %v4952
    %5301 = vmatprep.subr.bf16.mxu0 %v4967
    %5302 = vmatpush1.bf16.xpose.msra.mxu0 %v4966
    %5303 = vmatprep.subr.bf16.mxu0 %v4981
    %5304 = vmatpush1.bf16.xpose.msra.mxu0 %v4980
    %5305 = vmatprep.subr.bf16.mxu0 %v4995
    %5306 = vmatpush1.bf16.xpose.msra.mxu0 %v4994
    %5307 = vmatprep.subr.bf16.mxu0 %v5009
    %5308 = vmatpush1.bf16.xpose.msra.mxu0 %v5008
    %5309 = vmatprep.subr.bf16.mxu0 %v5023
    %5310 = vmatpush1.bf16.xpose.msra.mxu0 %v5022
    %5311 = vmatprep.subr.bf16.mxu0 %v5037
    %5312 = vmatpush1.bf16.xpose.msra.mxu0 %v5036
    %5313 = vmatprep.subr.bf16.mxu0 %v5051
    %5314 = vmatpush1.bf16.xpose.msra.mxu0 %v5050
    %5315 = vmatprep.subr.bf16.mxu0 %v5065
    %5316 = vmatpush1.bf16.xpose.msra.mxu0 %v5064
    %5317 = vmatprep.subr.bf16.mxu0 0
    %5318 = vmatpush1.bf16.xpose.msra.mxu0 0
    %5319 = vmatprep.subr.bf16.mxu0 0
    %5320 = vmatpush1.bf16.xpose.msra.mxu0 0
    %5321 = vmatprep.subr.bf16.mxu0 0
    %5322 = vmatpush1.bf16.xpose.msra.mxu0 0
    %5323 = vmatprep.subr.bf16.mxu0 0
    %5324 = vmatpush1.bf16.xpose.msra.mxu0 0
    %5325 = vmatprep.subr.bf16.mxu0 0
    %5326 = vmatpush1.bf16.xpose.msra.mxu0 0
    %5327 = vmatprep.subr.bf16.mxu0 0
    %5328 = vmatpush1.bf16.xpose.msra.mxu0 0
    %5329 = vmatprep.mubr.bf16.mxu0 %v5079
    %5330 = vmatmul.mubr.bf16.gmra.mrb[0].mxu0 %v5078
    %v5331 = vpop.f32.mrb[0].mxu0
    %v5332 = vadd.f32 %v5289, %v5331
    %v5333 = vpop.f32.mrb[0].mxu0
    %v5334 = vadd.f32 %v5291, %v5333
    %v5335 = vpop.f32.mrb[0].mxu0
    %v5336 = vadd.f32 %v5293, %v5335
    %v5337 = vpop.f32.mrb[0].mxu0
    %v5338 = vadd.f32 %v5295, %v5337
    %5339 = vdwg.mxu0
    %5340 = vmatprep.subr.bf16.mxu0 %v4941
    %5341 = vmatpush1.bf16.xpose.msra.mxu0 %v4940
    %5342 = vmatprep.subr.bf16.mxu0 %v4955
    %5343 = vmatpush1.bf16.xpose.msra.mxu0 %v4954
    %5344 = vmatprep.subr.bf16.mxu0 %v4969
    %5345 = vmatpush1.bf16.xpose.msra.mxu0 %v4968
    %5346 = vmatprep.subr.bf16.mxu0 %v4983
    %5347 = vmatpush1.bf16.xpose.msra.mxu0 %v4982
    %5348 = vmatprep.subr.bf16.mxu0 %v4997
    %5349 = vmatpush1.bf16.xpose.msra.mxu0 %v4996
    %5350 = vmatprep.subr.bf16.mxu0 %v5011
    %5351 = vmatpush1.bf16.xpose.msra.mxu0 %v5010
    %5352 = vmatprep.subr.bf16.mxu0 %v5025
    %5353 = vmatpush1.bf16.xpose.msra.mxu0 %v5024
    %5354 = vmatprep.subr.bf16.mxu0 %v5039
    %5355 = vmatpush1.bf16.xpose.msra.mxu0 %v5038
    %5356 = vmatprep.subr.bf16.mxu0 %v5053
    %5357 = vmatpush1.bf16.xpose.msra.mxu0 %v5052
    %5358 = vmatprep.subr.bf16.mxu0 %v5067
    %5359 = vmatpush1.bf16.xpose.msra.mxu0 %v5066
    %5360 = vmatprep.subr.bf16.mxu0 0
    %5361 = vmatpush1.bf16.xpose.msra.mxu0 0
    %5362 = vmatprep.subr.bf16.mxu0 0
    %5363 = vmatpush1.bf16.xpose.msra.mxu0 0
    %5364 = vmatprep.subr.bf16.mxu0 0
    %5365 = vmatpush1.bf16.xpose.msra.mxu0 0
    %5366 = vmatprep.subr.bf16.mxu0 0
    %5367 = vmatpush1.bf16.xpose.msra.mxu0 0
    %5368 = vmatprep.subr.bf16.mxu0 0
    %5369 = vmatpush1.bf16.xpose.msra.mxu0 0
    %5370 = vmatprep.subr.bf16.mxu0 0
    %5371 = vmatpush1.bf16.xpose.msra.mxu0 0
    %5372 = vmatprep.mubr.bf16.mxu0 %v5081
    %5373 = vmatmul.mubr.bf16.gmra.mrb[0].mxu0 %v5080
    %v5374 = vpop.f32.mrb[0].mxu0
    %v5375 = vadd.f32 %v5332, %v5374
    %v5376 = vpop.f32.mrb[0].mxu0
    %v5377 = vadd.f32 %v5334, %v5376
    %v5378 = vpop.f32.mrb[0].mxu0
    %v5379 = vadd.f32 %v5336, %v5378
    %v5380 = vpop.f32.mrb[0].mxu0
    %v5381 = vadd.f32 %v5338, %v5380
    %5382 = vdwg.mxu0
    %v5383 = vadd.f32 %v4924, %v5375
    %v5384 = vadd.f32 %v4925, %v5377
    %v5385 = vadd.f32 %v4926, %v5379
    %v5386 = vadd.f32 %v4927, %v5381
    %v5387 = vld [vmem:[#allocation3 + $0x230] sm:$0xff]
    %v5388 = vld [vmem:[#allocation3 + $0x238] sm:$0xff]
    %v5389 = vld [vmem:[#allocation3 + $0x240] sm:$0xff]
    %v5390 = vld [vmem:[#allocation3 + $0x248] sm:$0xff]
    %v5391 = vld [vmem:[#allocation3 + $0x250] sm:$0xff]
    %v5392 = vld [vmem:[#allocation3 + $0x258] sm:$0xff]
    %v5393 = vld [vmem:[#allocation3 + $0x260] sm:$0xff]
    %v5394 = vld [vmem:[#allocation3 + $0x268] sm:$0xff]
    %v5395 = vld [vmem:[#allocation3 + $0x270] sm:$0xff]
    %v5396 = vld [vmem:[#allocation3 + $0x278] sm:$0xff]
    %v5397 = vld [vmem:[#allocation3 + $0x280] sm:$0xff]
    %v5398 = vld [vmem:[#allocation3 + $0x288] sm:$0xff]
    %v5399 = vld [vmem:[#allocation3 + $0x290] sm:$0xff]
    %v5400 = vld [vmem:[#allocation3 + $0x298] sm:$0xff]
    %v5401 = vld [vmem:[#allocation3 + $0x2a0] sm:$0xff]
    %v5402 = vld [vmem:[#allocation3 + $0x2a8] sm:$0xff]
    %v5403 = vld [vmem:[#allocation3 + $0x2b0] sm:$0xff]
    %v5404 = vld [vmem:[#allocation3 + $0x2b8] sm:$0xff]
    %v5405 = vld [vmem:[#allocation3 + $0x2c0] sm:$0xff]
    %v5406 = vld [vmem:[#allocation3 + $0x2c8] sm:$0xff]
    %v5407 = vld [vmem:[#allocation3 + $0x2d0] sm:$0xff]
    %v5408 = vld [vmem:[#allocation3 + $0x2d8] sm:$0xff]
    %v5409 = vld [vmem:[#allocation3 + $0x2e0] sm:$0xff]
    %v5410 = vld [vmem:[#allocation3 + $0x2e8] sm:$0xff]
    %v5411 = vld [vmem:[#allocation3 + $0x2f0] sm:$0xff]
    %v5412 = vld [vmem:[#allocation3 + $0x2f8] sm:$0xff]
    %v5413 = vld [vmem:[#allocation3 + $0x300] sm:$0xff]
    %v5414 = vld [vmem:[#allocation3 + $0x308] sm:$0xff]
    %v5415 = vld [vmem:[#allocation3 + $0x310] sm:$0xff]
    %v5416 = vld [vmem:[#allocation3 + $0x318] sm:$0xff]
    %v5417 = vld [vmem:[#allocation3 + $0x320] sm:$0xff]
    %v5418 = vld [vmem:[#allocation3 + $0x328] sm:$0xff]
    %v5419 = vld [vmem:[#allocation3 + $0x330] sm:$0xff]
    %v5420 = vld [vmem:[#allocation3 + $0x338] sm:$0xff]
    %v5421 = vld [vmem:[#allocation3 + $0x340] sm:$0xff]
    %v5422 = vld [vmem:[#allocation3 + $0x348] sm:$0xff]
    %v5423 = vld [vmem:[#allocation3 + $0x350] sm:$0xff]
    %v5424 = vld [vmem:[#allocation3 + $0x358] sm:$0xff]
    %v5425 = vld [vmem:[#allocation3 + $0x360] sm:$0xff]
    %v5426 = vld [vmem:[#allocation3 + $0x368] sm:$0xff]
    %v5427 = vld [vmem:[#allocation3 + $0x370] sm:$0xff]
    %v5428 = vld [vmem:[#allocation3 + $0x378] sm:$0xff]
    %v5429 = vld [vmem:[#allocation3 + $0x380] sm:$0xff]
    %v5430 = vld [vmem:[#allocation3 + $0x388] sm:$0xff]
    %v5431 = vld [vmem:[#allocation3 + $0x390] sm:$0xff]
    %v5432 = vld [vmem:[#allocation3 + $0x398] sm:$0xff]
    %v5433 = vld [vmem:[#allocation3 + $0x3a0] sm:$0xff]
    %v5434 = vld [vmem:[#allocation3 + $0x3a8] sm:$0xff]
    %v5435 = vld [vmem:[#allocation3 + $0x3b0] sm:$0xff]
    %v5436 = vld [vmem:[#allocation3 + $0x3b8] sm:$0xff]
    %v5437 = vld [vmem:[#allocation3 + $0x3c0] sm:$0xff]
    %v5438 = vld [vmem:[#allocation3 + $0x3c8] sm:$0xff]
    %v5439 = vld [vmem:[#allocation3 + $0x3d0] sm:$0xff]
    %v5440 = vld [vmem:[#allocation3 + $0x3d8] sm:$0xff]
    %v5441 = vld [vmem:[#allocation3 + $0x3e0] sm:$0xff]
    %v5442 = vld [vmem:[#allocation3 + $0x3e8] sm:$0xff]
    %v5443 = vld [vmem:[#allocation3 + $0x3f0] sm:$0xff]
    %v5444 = vld [vmem:[#allocation3 + $0x3f8] sm:$0xff]
    %v5445 = vld [vmem:[#allocation3 + $0x400] sm:$0xff]
    %v5446 = vld [vmem:[#allocation3 + $0x408] sm:$0xff]
    %v5447 = vld [vmem:[#allocation3 + $0x410] sm:$0xff]
    %v5448 = vld [vmem:[#allocation3 + $0x418] sm:$0xff]
    %v5449 = vld [vmem:[#allocation3 + $0x420] sm:$0xff]
    %v5450 = vld [vmem:[#allocation3 + $0x428] sm:$0xff]
    %v5451 = vld [vmem:[#allocation3 + $0x430] sm:$0xff]
    %v5452 = vld [vmem:[#allocation3 + $0x438] sm:$0xff]
    %v5453 = vld [vmem:[#allocation3 + $0x440] sm:$0xff]
    %v5454 = vld [vmem:[#allocation3 + $0x448] sm:$0xff]
    %v5455 = vld [vmem:[#allocation3 + $0x450] sm:$0xff]
    %v5456 = vld [vmem:[#allocation3 + $0x458] sm:$0xff]
    %v5457 = vld [vmem:[#allocation3 + $0x460] sm:$0xff]
    %v5458 = vld [vmem:[#allocation3 + $0x468] sm:$0xff]
    %v5459 = vld [vmem:[#allocation3 + $0x470] sm:$0xff]
    %v5460 = vld [vmem:[#allocation3 + $0x478] sm:$0xff]
    %v5461 = vld [vmem:[#allocation3 + $0x480] sm:$0xff]
    %v5462 = vld [vmem:[#allocation3 + $0x488] sm:$0xff]
    %v5463 = vld [vmem:[#allocation3 + $0x490] sm:$0xff]
    %v5464 = vld [vmem:[#allocation3 + $0x498] sm:$0xff]
    %v5465 = vld [vmem:[#allocation3 + $0x4a0] sm:$0xff]
    %v5466 = vld [vmem:[#allocation3 + $0x4a8] sm:$0xff]
    %v5467 = vld [vmem:[#allocation3 + $0x4b0] sm:$0xff]
    %v5468 = vld [vmem:[#allocation3 + $0x4b8] sm:$0xff]
    %v5469 = vld [vmem:[#allocation3 + $0x4c0] sm:$0xff]
    %v5470 = vld [vmem:[#allocation3 + $0x4c8] sm:$0xff]
    %v5471 = vld [vmem:[#allocation3 + $0x4d0] sm:$0xff]
    %v5472 = vld [vmem:[#allocation3 + $0x4d8] sm:$0xff]
    %v5473 = vld [vmem:[#allocation3 + $0x4e0] sm:$0xff]
    %v5474 = vld [vmem:[#allocation3 + $0x4e8] sm:$0xff]
    %v5475 = vld [vmem:[#allocation3 + $0x4f0] sm:$0xff]
    %v5476 = vld [vmem:[#allocation3 + $0x4f8] sm:$0xff]
    %v5477 = vld [vmem:[#allocation3 + $0x500] sm:$0xff]
    %v5478 = vld [vmem:[#allocation3 + $0x508] sm:$0xff]
    %v5479 = vld [vmem:[#allocation3 + $0x510] sm:$0xff]
    %v5480 = vld [vmem:[#allocation3 + $0x518] sm:$0xff]
    %v5481 = vld [vmem:[#allocation3 + $0x520] sm:$0xff]
    %v5482 = vld [vmem:[#allocation3 + $0x528] sm:$0xff]
    %v5483 = vld [vmem:[#allocation3 + $0x530] sm:$0xff]
    %v5484 = vld [vmem:[#allocation3 + $0x538] sm:$0xff]
    %v5485 = vld [vmem:[#allocation3 + $0x540] sm:$0xff]
    %v5486 = vld [vmem:[#allocation3 + $0x548] sm:$0xff]
    %v5487 = vld [vmem:[#allocation3 + $0x550] sm:$0xff]
    %v5488 = vld [vmem:[#allocation3 + $0x558] sm:$0xff]
    %v5489 = vld [vmem:[#allocation3 + $0x560] sm:$0xff]
    %v5490 = vld [vmem:[#allocation3 + $0x568] sm:$0xff]
    %v5491 = vld [vmem:[#allocation3 + $0x570] sm:$0xff]
    %v5492 = vld [vmem:[#allocation3 + $0x578] sm:$0xff]
    %v5493 = vld [vmem:[#allocation3 + $0x580] sm:$0xff]
    %v5494 = vld [vmem:[#allocation3 + $0x588] sm:$0xff]
    %v5495 = vld [vmem:[#allocation3 + $0x590] sm:$0xff]
    %v5496 = vld [vmem:[#allocation3 + $0x598] sm:$0xff]
    %v5497 = vld [vmem:[#allocation3 + $0x5a0] sm:$0xff]
    %v5498 = vld [vmem:[#allocation3 + $0x5a8] sm:$0xff]
    %v5499 = vld [vmem:[#allocation3 + $0x5b0] sm:$0xff]
    %v5500 = vld [vmem:[#allocation3 + $0x5b8] sm:$0xff]
    %v5501 = vld [vmem:[#allocation3 + $0x5c0] sm:$0xff]
    %v5502 = vld [vmem:[#allocation3 + $0x5c8] sm:$0xff]
    %v5503 = vld [vmem:[#allocation3 + $0x5d0] sm:$0xff]
    %v5504 = vld [vmem:[#allocation3 + $0x5d8] sm:$0xff]
    %v5505 = vld [vmem:[#allocation3 + $0x5e0] sm:$0xff]
    %v5506 = vld [vmem:[#allocation3 + $0x5e8] sm:$0xff]
    %v5507 = vld [vmem:[#allocation3 + $0x5f0] sm:$0xff]
    %v5508 = vld [vmem:[#allocation3 + $0x5f8] sm:$0xff]
    %v5509 = vld [vmem:[#allocation3 + $0x600] sm:$0xff]
    %v5510 = vld [vmem:[#allocation3 + $0x608] sm:$0xff]
    %v5511 = vld [vmem:[#allocation3 + $0x610] sm:$0xff]
    %v5512 = vld [vmem:[#allocation3 + $0x618] sm:$0xff]
    %v5513 = vld [vmem:[#allocation3 + $0x620] sm:$0xff]
    %v5514 = vld [vmem:[#allocation3 + $0x628] sm:$0xff]
    %v5515 = vld [vmem:[#allocation3 + $0x630] sm:$0xff]
    %v5516 = vld [vmem:[#allocation3 + $0x638] sm:$0xff]
    %v5517 = vld [vmem:[#allocation3 + $0x640] sm:$0xff]
    %v5518 = vld [vmem:[#allocation3 + $0x648] sm:$0xff]
    %v5519 = vld [vmem:[#allocation3 + $0x650] sm:$0xff]
    %v5520 = vld [vmem:[#allocation3 + $0x658] sm:$0xff]
    %v5521 = vld [vmem:[#allocation3 + $0x660] sm:$0xff]
    %v5522 = vld [vmem:[#allocation3 + $0x668] sm:$0xff]
    %v5523 = vld [vmem:[#allocation3 + $0x670] sm:$0xff]
    %v5524 = vld [vmem:[#allocation3 + $0x678] sm:$0xff]
    %v5525 = vld [vmem:[#allocation3 + $0x680] sm:$0xff]
    %v5526 = vld [vmem:[#allocation3 + $0x688] sm:$0xff]
    %v5527 = vld [vmem:[#allocation2 + $0x230] sm:$0xff]
    %v5528 = vld [vmem:[#allocation2 + $0x238] sm:$0xff]
    %v5529 = vld [vmem:[#allocation2 + $0x240] sm:$0xff]
    %v5530 = vld [vmem:[#allocation2 + $0x248] sm:$0xff]
    %v5531 = vld [vmem:[#allocation2 + $0x250] sm:$0xff]
    %v5532 = vld [vmem:[#allocation2 + $0x258] sm:$0xff]
    %v5533 = vld [vmem:[#allocation2 + $0x260] sm:$0xff]
    %v5534 = vld [vmem:[#allocation2 + $0x268] sm:$0xff]
    %v5535 = vld [vmem:[#allocation2 + $0x270] sm:$0xff]
    %v5536 = vld [vmem:[#allocation2 + $0x278] sm:$0xff]
    %v5537 = vld [vmem:[#allocation2 + $0x280] sm:$0xff]
    %v5538 = vld [vmem:[#allocation2 + $0x288] sm:$0xff]
    %v5539 = vld [vmem:[#allocation2 + $0x290] sm:$0xff]
    %v5540 = vld [vmem:[#allocation2 + $0x298] sm:$0xff]
    %5541 = vmatprep.subr.bf16.mxu0 %v5388
    %5542 = vmatpush1.bf16.xpose.msra.mxu0 %v5387
    %5543 = vmatprep.subr.bf16.mxu0 %v5402
    %5544 = vmatpush1.bf16.xpose.msra.mxu0 %v5401
    %5545 = vmatprep.subr.bf16.mxu0 %v5416
    %5546 = vmatpush1.bf16.xpose.msra.mxu0 %v5415
    %5547 = vmatprep.subr.bf16.mxu0 %v5430
    %5548 = vmatpush1.bf16.xpose.msra.mxu0 %v5429
    %5549 = vmatprep.subr.bf16.mxu0 %v5444
    %5550 = vmatpush1.bf16.xpose.msra.mxu0 %v5443
    %5551 = vmatprep.subr.bf16.mxu0 %v5458
    %5552 = vmatpush1.bf16.xpose.msra.mxu0 %v5457
    %5553 = vmatprep.subr.bf16.mxu0 %v5472
    %5554 = vmatpush1.bf16.xpose.msra.mxu0 %v5471
    %5555 = vmatprep.subr.bf16.mxu0 %v5486
    %5556 = vmatpush1.bf16.xpose.msra.mxu0 %v5485
    %5557 = vmatprep.subr.bf16.mxu0 %v5500
    %5558 = vmatpush1.bf16.xpose.msra.mxu0 %v5499
    %5559 = vmatprep.subr.bf16.mxu0 %v5514
    %5560 = vmatpush1.bf16.xpose.msra.mxu0 %v5513
    %5561 = vmatprep.subr.bf16.mxu0 0
    %5562 = vmatpush1.bf16.xpose.msra.mxu0 0
    %5563 = vmatprep.subr.bf16.mxu0 0
    %5564 = vmatpush1.bf16.xpose.msra.mxu0 0
    %5565 = vmatprep.subr.bf16.mxu0 0
    %5566 = vmatpush1.bf16.xpose.msra.mxu0 0
    %5567 = vmatprep.subr.bf16.mxu0 0
    %5568 = vmatpush1.bf16.xpose.msra.mxu0 0
    %5569 = vmatprep.subr.bf16.mxu0 0
    %5570 = vmatpush1.bf16.xpose.msra.mxu0 0
    %5571 = vmatprep.subr.bf16.mxu0 0
    %5572 = vmatpush1.bf16.xpose.msra.mxu0 0
    %5573 = vmatprep.mubr.bf16.mxu0 %v5528
    %5574 = vmatmul.mubr.bf16.gmra.mrb[0].mxu0 %v5527
    %v5575 = vpop.f32.mrb[0].mxu0
    %v5576 = vadd.f32 0.0, %v5575
    %v5577 = vpop.f32.mrb[0].mxu0
    %v5578 = vadd.f32 0.0, %v5577
    %v5579 = vpop.f32.mrb[0].mxu0
    %v5580 = vadd.f32 0.0, %v5579
    %v5581 = vpop.f32.mrb[0].mxu0
    %v5582 = vadd.f32 0.0, %v5581
    %5583 = vdwg.mxu0
    %5584 = vmatprep.subr.bf16.mxu0 %v5390
    %5585 = vmatpush1.bf16.xpose.msra.mxu0 %v5389
    %5586 = vmatprep.subr.bf16.mxu0 %v5404
    %5587 = vmatpush1.bf16.xpose.msra.mxu0 %v5403
    %5588 = vmatprep.subr.bf16.mxu0 %v5418
    %5589 = vmatpush1.bf16.xpose.msra.mxu0 %v5417
    %5590 = vmatprep.subr.bf16.mxu0 %v5432
    %5591 = vmatpush1.bf16.xpose.msra.mxu0 %v5431
    %5592 = vmatprep.subr.bf16.mxu0 %v5446
    %5593 = vmatpush1.bf16.xpose.msra.mxu0 %v5445
    %5594 = vmatprep.subr.bf16.mxu0 %v5460
    %5595 = vmatpush1.bf16.xpose.msra.mxu0 %v5459
    %5596 = vmatprep.subr.bf16.mxu0 %v5474
    %5597 = vmatpush1.bf16.xpose.msra.mxu0 %v5473
    %5598 = vmatprep.subr.bf16.mxu0 %v5488
    %5599 = vmatpush1.bf16.xpose.msra.mxu0 %v5487
    %5600 = vmatprep.subr.bf16.mxu0 %v5502
    %5601 = vmatpush1.bf16.xpose.msra.mxu0 %v5501
    %5602 = vmatprep.subr.bf16.mxu0 %v5516
    %5603 = vmatpush1.bf16.xpose.msra.mxu0 %v5515
    %5604 = vmatprep.subr.bf16.mxu0 0
    %5605 = vmatpush1.bf16.xpose.msra.mxu0 0
    %5606 = vmatprep.subr.bf16.mxu0 0
    %5607 = vmatpush1.bf16.xpose.msra.mxu0 0
    %5608 = vmatprep.subr.bf16.mxu0 0
    %5609 = vmatpush1.bf16.xpose.msra.mxu0 0
    %5610 = vmatprep.subr.bf16.mxu0 0
    %5611 = vmatpush1.bf16.xpose.msra.mxu0 0
    %5612 = vmatprep.subr.bf16.mxu0 0
    %5613 = vmatpush1.bf16.xpose.msra.mxu0 0
    %5614 = vmatprep.subr.bf16.mxu0 0
    %5615 = vmatpush1.bf16.xpose.msra.mxu0 0
    %5616 = vmatprep.mubr.bf16.mxu0 %v5530
    %5617 = vmatmul.mubr.bf16.gmra.mrb[0].mxu0 %v5529
    %v5618 = vpop.f32.mrb[0].mxu0
    %v5619 = vadd.f32 %v5576, %v5618
    %v5620 = vpop.f32.mrb[0].mxu0
    %v5621 = vadd.f32 %v5578, %v5620
    %v5622 = vpop.f32.mrb[0].mxu0
    %v5623 = vadd.f32 %v5580, %v5622
    %v5624 = vpop.f32.mrb[0].mxu0
    %v5625 = vadd.f32 %v5582, %v5624
    %5626 = vdwg.mxu0
    %5627 = vmatprep.subr.bf16.mxu0 %v5392
    %5628 = vmatpush1.bf16.xpose.msra.mxu0 %v5391
    %5629 = vmatprep.subr.bf16.mxu0 %v5406
    %5630 = vmatpush1.bf16.xpose.msra.mxu0 %v5405
    %5631 = vmatprep.subr.bf16.mxu0 %v5420
    %5632 = vmatpush1.bf16.xpose.msra.mxu0 %v5419
    %5633 = vmatprep.subr.bf16.mxu0 %v5434
    %5634 = vmatpush1.bf16.xpose.msra.mxu0 %v5433
    %5635 = vmatprep.subr.bf16.mxu0 %v5448
    %5636 = vmatpush1.bf16.xpose.msra.mxu0 %v5447
    %5637 = vmatprep.subr.bf16.mxu0 %v5462
    %5638 = vmatpush1.bf16.xpose.msra.mxu0 %v5461
    %5639 = vmatprep.subr.bf16.mxu0 %v5476
    %5640 = vmatpush1.bf16.xpose.msra.mxu0 %v5475
    %5641 = vmatprep.subr.bf16.mxu0 %v5490
    %5642 = vmatpush1.bf16.xpose.msra.mxu0 %v5489
    %5643 = vmatprep.subr.bf16.mxu0 %v5504
    %5644 = vmatpush1.bf16.xpose.msra.mxu0 %v5503
    %5645 = vmatprep.subr.bf16.mxu0 %v5518
    %5646 = vmatpush1.bf16.xpose.msra.mxu0 %v5517
    %5647 = vmatprep.subr.bf16.mxu0 0
    %5648 = vmatpush1.bf16.xpose.msra.mxu0 0
    %5649 = vmatprep.subr.bf16.mxu0 0
    %5650 = vmatpush1.bf16.xpose.msra.mxu0 0
    %5651 = vmatprep.subr.bf16.mxu0 0
    %5652 = vmatpush1.bf16.xpose.msra.mxu0 0
    %5653 = vmatprep.subr.bf16.mxu0 0
    %5654 = vmatpush1.bf16.xpose.msra.mxu0 0
    %5655 = vmatprep.subr.bf16.mxu0 0
    %5656 = vmatpush1.bf16.xpose.msra.mxu0 0
    %5657 = vmatprep.subr.bf16.mxu0 0
    %5658 = vmatpush1.bf16.xpose.msra.mxu0 0
    %5659 = vmatprep.mubr.bf16.mxu0 %v5532
    %5660 = vmatmul.mubr.bf16.gmra.mrb[0].mxu0 %v5531
    %v5661 = vpop.f32.mrb[0].mxu0
    %v5662 = vadd.f32 %v5619, %v5661
    %v5663 = vpop.f32.mrb[0].mxu0
    %v5664 = vadd.f32 %v5621, %v5663
    %v5665 = vpop.f32.mrb[0].mxu0
    %v5666 = vadd.f32 %v5623, %v5665
    %v5667 = vpop.f32.mrb[0].mxu0
    %v5668 = vadd.f32 %v5625, %v5667
    %5669 = vdwg.mxu0
    %5670 = vmatprep.subr.bf16.mxu0 %v5394
    %5671 = vmatpush1.bf16.xpose.msra.mxu0 %v5393
    %5672 = vmatprep.subr.bf16.mxu0 %v5408
    %5673 = vmatpush1.bf16.xpose.msra.mxu0 %v5407
    %5674 = vmatprep.subr.bf16.mxu0 %v5422
    %5675 = vmatpush1.bf16.xpose.msra.mxu0 %v5421
    %5676 = vmatprep.subr.bf16.mxu0 %v5436
    %5677 = vmatpush1.bf16.xpose.msra.mxu0 %v5435
    %5678 = vmatprep.subr.bf16.mxu0 %v5450
    %5679 = vmatpush1.bf16.xpose.msra.mxu0 %v5449
    %5680 = vmatprep.subr.bf16.mxu0 %v5464
    %5681 = vmatpush1.bf16.xpose.msra.mxu0 %v5463
    %5682 = vmatprep.subr.bf16.mxu0 %v5478
    %5683 = vmatpush1.bf16.xpose.msra.mxu0 %v5477
    %5684 = vmatprep.subr.bf16.mxu0 %v5492
    %5685 = vmatpush1.bf16.xpose.msra.mxu0 %v5491
    %5686 = vmatprep.subr.bf16.mxu0 %v5506
    %5687 = vmatpush1.bf16.xpose.msra.mxu0 %v5505
    %5688 = vmatprep.subr.bf16.mxu0 %v5520
    %5689 = vmatpush1.bf16.xpose.msra.mxu0 %v5519
    %5690 = vmatprep.subr.bf16.mxu0 0
    %5691 = vmatpush1.bf16.xpose.msra.mxu0 0
    %5692 = vmatprep.subr.bf16.mxu0 0
    %5693 = vmatpush1.bf16.xpose.msra.mxu0 0
    %5694 = vmatprep.subr.bf16.mxu0 0
    %5695 = vmatpush1.bf16.xpose.msra.mxu0 0
    %5696 = vmatprep.subr.bf16.mxu0 0
    %5697 = vmatpush1.bf16.xpose.msra.mxu0 0
    %5698 = vmatprep.subr.bf16.mxu0 0
    %5699 = vmatpush1.bf16.xpose.msra.mxu0 0
    %5700 = vmatprep.subr.bf16.mxu0 0
    %5701 = vmatpush1.bf16.xpose.msra.mxu0 0
    %5702 = vmatprep.mubr.bf16.mxu0 %v5534
    %5703 = vmatmul.mubr.bf16.gmra.mrb[0].mxu0 %v5533
    %v5704 = vpop.f32.mrb[0].mxu0
    %v5705 = vadd.f32 %v5662, %v5704
    %v5706 = vpop.f32.mrb[0].mxu0
    %v5707 = vadd.f32 %v5664, %v5706
    %v5708 = vpop.f32.mrb[0].mxu0
    %v5709 = vadd.f32 %v5666, %v5708
    %v5710 = vpop.f32.mrb[0].mxu0
    %v5711 = vadd.f32 %v5668, %v5710
    %5712 = vdwg.mxu0
    %5713 = vmatprep.subr.bf16.mxu0 %v5396
    %5714 = vmatpush1.bf16.xpose.msra.mxu0 %v5395
    %5715 = vmatprep.subr.bf16.mxu0 %v5410
    %5716 = vmatpush1.bf16.xpose.msra.mxu0 %v5409
    %5717 = vmatprep.subr.bf16.mxu0 %v5424
    %5718 = vmatpush1.bf16.xpose.msra.mxu0 %v5423
    %5719 = vmatprep.subr.bf16.mxu0 %v5438
    %5720 = vmatpush1.bf16.xpose.msra.mxu0 %v5437
    %5721 = vmatprep.subr.bf16.mxu0 %v5452
    %5722 = vmatpush1.bf16.xpose.msra.mxu0 %v5451
    %5723 = vmatprep.subr.bf16.mxu0 %v5466
    %5724 = vmatpush1.bf16.xpose.msra.mxu0 %v5465
    %5725 = vmatprep.subr.bf16.mxu0 %v5480
    %5726 = vmatpush1.bf16.xpose.msra.mxu0 %v5479
    %5727 = vmatprep.subr.bf16.mxu0 %v5494
    %5728 = vmatpush1.bf16.xpose.msra.mxu0 %v5493
    %5729 = vmatprep.subr.bf16.mxu0 %v5508
    %5730 = vmatpush1.bf16.xpose.msra.mxu0 %v5507
    %5731 = vmatprep.subr.bf16.mxu0 %v5522
    %5732 = vmatpush1.bf16.xpose.msra.mxu0 %v5521
    %5733 = vmatprep.subr.bf16.mxu0 0
    %5734 = vmatpush1.bf16.xpose.msra.mxu0 0
    %5735 = vmatprep.subr.bf16.mxu0 0
    %5736 = vmatpush1.bf16.xpose.msra.mxu0 0
    %5737 = vmatprep.subr.bf16.mxu0 0
    %5738 = vmatpush1.bf16.xpose.msra.mxu0 0
    %5739 = vmatprep.subr.bf16.mxu0 0
    %5740 = vmatpush1.bf16.xpose.msra.mxu0 0
    %5741 = vmatprep.subr.bf16.mxu0 0
    %5742 = vmatpush1.bf16.xpose.msra.mxu0 0
    %5743 = vmatprep.subr.bf16.mxu0 0
    %5744 = vmatpush1.bf16.xpose.msra.mxu0 0
    %5745 = vmatprep.mubr.bf16.mxu0 %v5536
    %5746 = vmatmul.mubr.bf16.gmra.mrb[0].mxu0 %v5535
    %v5747 = vpop.f32.mrb[0].mxu0
    %v5748 = vadd.f32 %v5705, %v5747
    %v5749 = vpop.f32.mrb[0].mxu0
    %v5750 = vadd.f32 %v5707, %v5749
    %v5751 = vpop.f32.mrb[0].mxu0
    %v5752 = vadd.f32 %v5709, %v5751
    %v5753 = vpop.f32.mrb[0].mxu0
    %v5754 = vadd.f32 %v5711, %v5753
    %5755 = vdwg.mxu0
    %5756 = vmatprep.subr.bf16.mxu0 %v5398
    %5757 = vmatpush1.bf16.xpose.msra.mxu0 %v5397
    %5758 = vmatprep.subr.bf16.mxu0 %v5412
    %5759 = vmatpush1.bf16.xpose.msra.mxu0 %v5411
    %5760 = vmatprep.subr.bf16.mxu0 %v5426
    %5761 = vmatpush1.bf16.xpose.msra.mxu0 %v5425
    %5762 = vmatprep.subr.bf16.mxu0 %v5440
    %5763 = vmatpush1.bf16.xpose.msra.mxu0 %v5439
    %5764 = vmatprep.subr.bf16.mxu0 %v5454
    %5765 = vmatpush1.bf16.xpose.msra.mxu0 %v5453
    %5766 = vmatprep.subr.bf16.mxu0 %v5468
    %5767 = vmatpush1.bf16.xpose.msra.mxu0 %v5467
    %5768 = vmatprep.subr.bf16.mxu0 %v5482
    %5769 = vmatpush1.bf16.xpose.msra.mxu0 %v5481
    %5770 = vmatprep.subr.bf16.mxu0 %v5496
    %5771 = vmatpush1.bf16.xpose.msra.mxu0 %v5495
    %5772 = vmatprep.subr.bf16.mxu0 %v5510
    %5773 = vmatpush1.bf16.xpose.msra.mxu0 %v5509
    %5774 = vmatprep.subr.bf16.mxu0 %v5524
    %5775 = vmatpush1.bf16.xpose.msra.mxu0 %v5523
    %5776 = vmatprep.subr.bf16.mxu0 0
    %5777 = vmatpush1.bf16.xpose.msra.mxu0 0
    %5778 = vmatprep.subr.bf16.mxu0 0
    %5779 = vmatpush1.bf16.xpose.msra.mxu0 0
    %5780 = vmatprep.subr.bf16.mxu0 0
    %5781 = vmatpush1.bf16.xpose.msra.mxu0 0
    %5782 = vmatprep.subr.bf16.mxu0 0
    %5783 = vmatpush1.bf16.xpose.msra.mxu0 0
    %5784 = vmatprep.subr.bf16.mxu0 0
    %5785 = vmatpush1.bf16.xpose.msra.mxu0 0
    %5786 = vmatprep.subr.bf16.mxu0 0
    %5787 = vmatpush1.bf16.xpose.msra.mxu0 0
    %5788 = vmatprep.mubr.bf16.mxu0 %v5538
    %5789 = vmatmul.mubr.bf16.gmra.mrb[0].mxu0 %v5537
    %v5790 = vpop.f32.mrb[0].mxu0
    %v5791 = vadd.f32 %v5748, %v5790
    %v5792 = vpop.f32.mrb[0].mxu0
    %v5793 = vadd.f32 %v5750, %v5792
    %v5794 = vpop.f32.mrb[0].mxu0
    %v5795 = vadd.f32 %v5752, %v5794
    %v5796 = vpop.f32.mrb[0].mxu0
    %v5797 = vadd.f32 %v5754, %v5796
    %5798 = vdwg.mxu0
    %5799 = vmatprep.subr.bf16.mxu0 %v5400
    %5800 = vmatpush1.bf16.xpose.msra.mxu0 %v5399
    %5801 = vmatprep.subr.bf16.mxu0 %v5414
    %5802 = vmatpush1.bf16.xpose.msra.mxu0 %v5413
    %5803 = vmatprep.subr.bf16.mxu0 %v5428
    %5804 = vmatpush1.bf16.xpose.msra.mxu0 %v5427
    %5805 = vmatprep.subr.bf16.mxu0 %v5442
    %5806 = vmatpush1.bf16.xpose.msra.mxu0 %v5441
    %5807 = vmatprep.subr.bf16.mxu0 %v5456
    %5808 = vmatpush1.bf16.xpose.msra.mxu0 %v5455
    %5809 = vmatprep.subr.bf16.mxu0 %v5470
    %5810 = vmatpush1.bf16.xpose.msra.mxu0 %v5469
    %5811 = vmatprep.subr.bf16.mxu0 %v5484
    %5812 = vmatpush1.bf16.xpose.msra.mxu0 %v5483
    %5813 = vmatprep.subr.bf16.mxu0 %v5498
    %5814 = vmatpush1.bf16.xpose.msra.mxu0 %v5497
    %5815 = vmatprep.subr.bf16.mxu0 %v5512
    %5816 = vmatpush1.bf16.xpose.msra.mxu0 %v5511
    %5817 = vmatprep.subr.bf16.mxu0 %v5526
    %5818 = vmatpush1.bf16.xpose.msra.mxu0 %v5525
    %5819 = vmatprep.subr.bf16.mxu0 0
    %5820 = vmatpush1.bf16.xpose.msra.mxu0 0
    %5821 = vmatprep.subr.bf16.mxu0 0
    %5822 = vmatpush1.bf16.xpose.msra.mxu0 0
    %5823 = vmatprep.subr.bf16.mxu0 0
    %5824 = vmatpush1.bf16.xpose.msra.mxu0 0
    %5825 = vmatprep.subr.bf16.mxu0 0
    %5826 = vmatpush1.bf16.xpose.msra.mxu0 0
    %5827 = vmatprep.subr.bf16.mxu0 0
    %5828 = vmatpush1.bf16.xpose.msra.mxu0 0
    %5829 = vmatprep.subr.bf16.mxu0 0
    %5830 = vmatpush1.bf16.xpose.msra.mxu0 0
    %5831 = vmatprep.mubr.bf16.mxu0 %v5540
    %5832 = vmatmul.mubr.bf16.gmra.mrb[0].mxu0 %v5539
    %v5833 = vpop.f32.mrb[0].mxu0
    %v5834 = vadd.f32 %v5791, %v5833
    %v5835 = vpop.f32.mrb[0].mxu0
    %v5836 = vadd.f32 %v5793, %v5835
    %v5837 = vpop.f32.mrb[0].mxu0
    %v5838 = vadd.f32 %v5795, %v5837
    %v5839 = vpop.f32.mrb[0].mxu0
    %v5840 = vadd.f32 %v5797, %v5839
    %5841 = vdwg.mxu0
    %v5842 = vadd.f32 %v5383, %v5834
    %v5843 = vadd.f32 %v5384, %v5836
    %v5844 = vadd.f32 %v5385, %v5838
    %v5845 = vadd.f32 %v5386, %v5840
    %v5846 = vld [vmem:[#allocation3 + $0x2a0] sm:$0xff]
    %v5847 = vld [vmem:[#allocation3 + $0x2a8] sm:$0xff]
    %v5848 = vld [vmem:[#allocation3 + $0x2b0] sm:$0xff]
    %v5849 = vld [vmem:[#allocation3 + $0x2b8] sm:$0xff]
    %v5850 = vld [vmem:[#allocation3 + $0x2c0] sm:$0xff]
    %v5851 = vld [vmem:[#allocation3 + $0x2c8] sm:$0xff]
    %v5852 = vld [vmem:[#allocation3 + $0x2d0] sm:$0xff]
    %v5853 = vld [vmem:[#allocation3 + $0x2d8] sm:$0xff]
    %v5854 = vld [vmem:[#allocation3 + $0x2e0] sm:$0xff]
    %v5855 = vld [vmem:[#allocation3 + $0x2e8] sm:$0xff]
    %v5856 = vld [vmem:[#allocation3 + $0x2f0] sm:$0xff]
    %v5857 = vld [vmem:[#allocation3 + $0x2f8] sm:$0xff]
    %v5858 = vld [vmem:[#allocation3 + $0x300] sm:$0xff]
    %v5859 = vld [vmem:[#allocation3 + $0x308] sm:$0xff]
    %v5860 = vld [vmem:[#allocation3 + $0x310] sm:$0xff]
    %v5861 = vld [vmem:[#allocation3 + $0x318] sm:$0xff]
    %v5862 = vld [vmem:[#allocation3 + $0x320] sm:$0xff]
    %v5863 = vld [vmem:[#allocation3 + $0x328] sm:$0xff]
    %v5864 = vld [vmem:[#allocation3 + $0x330] sm:$0xff]
    %v5865 = vld [vmem:[#allocation3 + $0x338] sm:$0xff]
    %v5866 = vld [vmem:[#allocation3 + $0x340] sm:$0xff]
    %v5867 = vld [vmem:[#allocation3 + $0x348] sm:$0xff]
    %v5868 = vld [vmem:[#allocation3 + $0x350] sm:$0xff]
    %v5869 = vld [vmem:[#allocation3 + $0x358] sm:$0xff]
    %v5870 = vld [vmem:[#allocation3 + $0x360] sm:$0xff]
    %v5871 = vld [vmem:[#allocation3 + $0x368] sm:$0xff]
    %v5872 = vld [vmem:[#allocation3 + $0x370] sm:$0xff]
    %v5873 = vld [vmem:[#allocation3 + $0x378] sm:$0xff]
    %v5874 = vld [vmem:[#allocation3 + $0x380] sm:$0xff]
    %v5875 = vld [vmem:[#allocation3 + $0x388] sm:$0xff]
    %v5876 = vld [vmem:[#allocation3 + $0x390] sm:$0xff]
    %v5877 = vld [vmem:[#allocation3 + $0x398] sm:$0xff]
    %v5878 = vld [vmem:[#allocation3 + $0x3a0] sm:$0xff]
    %v5879 = vld [vmem:[#allocation3 + $0x3a8] sm:$0xff]
    %v5880 = vld [vmem:[#allocation3 + $0x3b0] sm:$0xff]
    %v5881 = vld [vmem:[#allocation3 + $0x3b8] sm:$0xff]
    %v5882 = vld [vmem:[#allocation3 + $0x3c0] sm:$0xff]
    %v5883 = vld [vmem:[#allocation3 + $0x3c8] sm:$0xff]
    %v5884 = vld [vmem:[#allocation3 + $0x3d0] sm:$0xff]
    %v5885 = vld [vmem:[#allocation3 + $0x3d8] sm:$0xff]
    %v5886 = vld [vmem:[#allocation3 + $0x3e0] sm:$0xff]
    %v5887 = vld [vmem:[#allocation3 + $0x3e8] sm:$0xff]
    %v5888 = vld [vmem:[#allocation3 + $0x3f0] sm:$0xff]
    %v5889 = vld [vmem:[#allocation3 + $0x3f8] sm:$0xff]
    %v5890 = vld [vmem:[#allocation3 + $0x400] sm:$0xff]
    %v5891 = vld [vmem:[#allocation3 + $0x408] sm:$0xff]
    %v5892 = vld [vmem:[#allocation3 + $0x410] sm:$0xff]
    %v5893 = vld [vmem:[#allocation3 + $0x418] sm:$0xff]
    %v5894 = vld [vmem:[#allocation3 + $0x420] sm:$0xff]
    %v5895 = vld [vmem:[#allocation3 + $0x428] sm:$0xff]
    %v5896 = vld [vmem:[#allocation3 + $0x430] sm:$0xff]
    %v5897 = vld [vmem:[#allocation3 + $0x438] sm:$0xff]
    %v5898 = vld [vmem:[#allocation3 + $0x440] sm:$0xff]
    %v5899 = vld [vmem:[#allocation3 + $0x448] sm:$0xff]
    %v5900 = vld [vmem:[#allocation3 + $0x450] sm:$0xff]
    %v5901 = vld [vmem:[#allocation3 + $0x458] sm:$0xff]
    %v5902 = vld [vmem:[#allocation3 + $0x460] sm:$0xff]
    %v5903 = vld [vmem:[#allocation3 + $0x468] sm:$0xff]
    %v5904 = vld [vmem:[#allocation3 + $0x470] sm:$0xff]
    %v5905 = vld [vmem:[#allocation3 + $0x478] sm:$0xff]
    %v5906 = vld [vmem:[#allocation3 + $0x480] sm:$0xff]
    %v5907 = vld [vmem:[#allocation3 + $0x488] sm:$0xff]
    %v5908 = vld [vmem:[#allocation3 + $0x490] sm:$0xff]
    %v5909 = vld [vmem:[#allocation3 + $0x498] sm:$0xff]
    %v5910 = vld [vmem:[#allocation3 + $0x4a0] sm:$0xff]
    %v5911 = vld [vmem:[#allocation3 + $0x4a8] sm:$0xff]
    %v5912 = vld [vmem:[#allocation3 + $0x4b0] sm:$0xff]
    %v5913 = vld [vmem:[#allocation3 + $0x4b8] sm:$0xff]
    %v5914 = vld [vmem:[#allocation3 + $0x4c0] sm:$0xff]
    %v5915 = vld [vmem:[#allocation3 + $0x4c8] sm:$0xff]
    %v5916 = vld [vmem:[#allocation3 + $0x4d0] sm:$0xff]
    %v5917 = vld [vmem:[#allocation3 + $0x4d8] sm:$0xff]
    %v5918 = vld [vmem:[#allocation3 + $0x4e0] sm:$0xff]
    %v5919 = vld [vmem:[#allocation3 + $0x4e8] sm:$0xff]
    %v5920 = vld [vmem:[#allocation3 + $0x4f0] sm:$0xff]
    %v5921 = vld [vmem:[#allocation3 + $0x4f8] sm:$0xff]
    %v5922 = vld [vmem:[#allocation3 + $0x500] sm:$0xff]
    %v5923 = vld [vmem:[#allocation3 + $0x508] sm:$0xff]
    %v5924 = vld [vmem:[#allocation3 + $0x510] sm:$0xff]
    %v5925 = vld [vmem:[#allocation3 + $0x518] sm:$0xff]
    %v5926 = vld [vmem:[#allocation3 + $0x520] sm:$0xff]
    %v5927 = vld [vmem:[#allocation3 + $0x528] sm:$0xff]
    %v5928 = vld [vmem:[#allocation3 + $0x530] sm:$0xff]
    %v5929 = vld [vmem:[#allocation3 + $0x538] sm:$0xff]
    %v5930 = vld [vmem:[#allocation3 + $0x540] sm:$0xff]
    %v5931 = vld [vmem:[#allocation3 + $0x548] sm:$0xff]
    %v5932 = vld [vmem:[#allocation3 + $0x550] sm:$0xff]
    %v5933 = vld [vmem:[#allocation3 + $0x558] sm:$0xff]
    %v5934 = vld [vmem:[#allocation3 + $0x560] sm:$0xff]
    %v5935 = vld [vmem:[#allocation3 + $0x568] sm:$0xff]
    %v5936 = vld [vmem:[#allocation3 + $0x570] sm:$0xff]
    %v5937 = vld [vmem:[#allocation3 + $0x578] sm:$0xff]
    %v5938 = vld [vmem:[#allocation3 + $0x580] sm:$0xff]
    %v5939 = vld [vmem:[#allocation3 + $0x588] sm:$0xff]
    %v5940 = vld [vmem:[#allocation3 + $0x590] sm:$0xff]
    %v5941 = vld [vmem:[#allocation3 + $0x598] sm:$0xff]
    %v5942 = vld [vmem:[#allocation3 + $0x5a0] sm:$0xff]
    %v5943 = vld [vmem:[#allocation3 + $0x5a8] sm:$0xff]
    %v5944 = vld [vmem:[#allocation3 + $0x5b0] sm:$0xff]
    %v5945 = vld [vmem:[#allocation3 + $0x5b8] sm:$0xff]
    %v5946 = vld [vmem:[#allocation3 + $0x5c0] sm:$0xff]
    %v5947 = vld [vmem:[#allocation3 + $0x5c8] sm:$0xff]
    %v5948 = vld [vmem:[#allocation3 + $0x5d0] sm:$0xff]
    %v5949 = vld [vmem:[#allocation3 + $0x5d8] sm:$0xff]
    %v5950 = vld [vmem:[#allocation3 + $0x5e0] sm:$0xff]
    %v5951 = vld [vmem:[#allocation3 + $0x5e8] sm:$0xff]
    %v5952 = vld [vmem:[#allocation3 + $0x5f0] sm:$0xff]
    %v5953 = vld [vmem:[#allocation3 + $0x5f8] sm:$0xff]
    %v5954 = vld [vmem:[#allocation3 + $0x600] sm:$0xff]
    %v5955 = vld [vmem:[#allocation3 + $0x608] sm:$0xff]
    %v5956 = vld [vmem:[#allocation3 + $0x610] sm:$0xff]
    %v5957 = vld [vmem:[#allocation3 + $0x618] sm:$0xff]
    %v5958 = vld [vmem:[#allocation3 + $0x620] sm:$0xff]
    %v5959 = vld [vmem:[#allocation3 + $0x628] sm:$0xff]
    %v5960 = vld [vmem:[#allocation3 + $0x630] sm:$0xff]
    %v5961 = vld [vmem:[#allocation3 + $0x638] sm:$0xff]
    %v5962 = vld [vmem:[#allocation3 + $0x640] sm:$0xff]
    %v5963 = vld [vmem:[#allocation3 + $0x648] sm:$0xff]
    %v5964 = vld [vmem:[#allocation3 + $0x650] sm:$0xff]
    %v5965 = vld [vmem:[#allocation3 + $0x658] sm:$0xff]
    %v5966 = vld [vmem:[#allocation3 + $0x660] sm:$0xff]
    %v5967 = vld [vmem:[#allocation3 + $0x668] sm:$0xff]
    %v5968 = vld [vmem:[#allocation3 + $0x670] sm:$0xff]
    %v5969 = vld [vmem:[#allocation3 + $0x678] sm:$0xff]
    %v5970 = vld [vmem:[#allocation3 + $0x680] sm:$0xff]
    %v5971 = vld [vmem:[#allocation3 + $0x688] sm:$0xff]
    %v5972 = vld [vmem:[#allocation3 + $0x690] sm:$0xff]
    %v5973 = vld [vmem:[#allocation3 + $0x698] sm:$0xff]
    %v5974 = vld [vmem:[#allocation3 + $0x6a0] sm:$0xff]
    %v5975 = vld [vmem:[#allocation3 + $0x6a8] sm:$0xff]
    %v5976 = vld [vmem:[#allocation3 + $0x6b0] sm:$0xff]
    %v5977 = vld [vmem:[#allocation3 + $0x6b8] sm:$0xff]
    %v5978 = vld [vmem:[#allocation3 + $0x6c0] sm:$0xff]
    %v5979 = vld [vmem:[#allocation3 + $0x6c8] sm:$0xff]
    %v5980 = vld [vmem:[#allocation3 + $0x6d0] sm:$0xff]
    %v5981 = vld [vmem:[#allocation3 + $0x6d8] sm:$0xff]
    %v5982 = vld [vmem:[#allocation3 + $0x6e0] sm:$0xff]
    %v5983 = vld [vmem:[#allocation3 + $0x6e8] sm:$0xff]
    %v5984 = vld [vmem:[#allocation3 + $0x6f0] sm:$0xff]
    %v5985 = vld [vmem:[#allocation3 + $0x6f8] sm:$0xff]
    %v5986 = vld [vmem:[#allocation2 + $0x2a0] sm:$0xff]
    %v5987 = vld [vmem:[#allocation2 + $0x2a8] sm:$0xff]
    %v5988 = vld [vmem:[#allocation2 + $0x2b0] sm:$0xff]
    %v5989 = vld [vmem:[#allocation2 + $0x2b8] sm:$0xff]
    %v5990 = vld [vmem:[#allocation2 + $0x2c0] sm:$0xff]
    %v5991 = vld [vmem:[#allocation2 + $0x2c8] sm:$0xff]
    %v5992 = vld [vmem:[#allocation2 + $0x2d0] sm:$0xff]
    %v5993 = vld [vmem:[#allocation2 + $0x2d8] sm:$0xff]
    %v5994 = vld [vmem:[#allocation2 + $0x2e0] sm:$0xff]
    %v5995 = vld [vmem:[#allocation2 + $0x2e8] sm:$0xff]
    %v5996 = vld [vmem:[#allocation2 + $0x2f0] sm:$0xff]
    %v5997 = vld [vmem:[#allocation2 + $0x2f8] sm:$0xff]
    %v5998 = vld [vmem:[#allocation2 + $0x300] sm:$0xff]
    %v5999 = vld [vmem:[#allocation2 + $0x308] sm:$0xff]
    %6000 = vmatprep.subr.bf16.mxu0 %v5847
    %6001 = vmatpush1.bf16.xpose.msra.mxu0 %v5846
    %6002 = vmatprep.subr.bf16.mxu0 %v5861
    %6003 = vmatpush1.bf16.xpose.msra.mxu0 %v5860
    %6004 = vmatprep.subr.bf16.mxu0 %v5875
    %6005 = vmatpush1.bf16.xpose.msra.mxu0 %v5874
    %6006 = vmatprep.subr.bf16.mxu0 %v5889
    %6007 = vmatpush1.bf16.xpose.msra.mxu0 %v5888
    %6008 = vmatprep.subr.bf16.mxu0 %v5903
    %6009 = vmatpush1.bf16.xpose.msra.mxu0 %v5902
    %6010 = vmatprep.subr.bf16.mxu0 %v5917
    %6011 = vmatpush1.bf16.xpose.msra.mxu0 %v5916
    %6012 = vmatprep.subr.bf16.mxu0 %v5931
    %6013 = vmatpush1.bf16.xpose.msra.mxu0 %v5930
    %6014 = vmatprep.subr.bf16.mxu0 %v5945
    %6015 = vmatpush1.bf16.xpose.msra.mxu0 %v5944
    %6016 = vmatprep.subr.bf16.mxu0 %v5959
    %6017 = vmatpush1.bf16.xpose.msra.mxu0 %v5958
    %6018 = vmatprep.subr.bf16.mxu0 %v5973
    %6019 = vmatpush1.bf16.xpose.msra.mxu0 %v5972
    %6020 = vmatprep.subr.bf16.mxu0 0
    %6021 = vmatpush1.bf16.xpose.msra.mxu0 0
    %6022 = vmatprep.subr.bf16.mxu0 0
    %6023 = vmatpush1.bf16.xpose.msra.mxu0 0
    %6024 = vmatprep.subr.bf16.mxu0 0
    %6025 = vmatpush1.bf16.xpose.msra.mxu0 0
    %6026 = vmatprep.subr.bf16.mxu0 0
    %6027 = vmatpush1.bf16.xpose.msra.mxu0 0
    %6028 = vmatprep.subr.bf16.mxu0 0
    %6029 = vmatpush1.bf16.xpose.msra.mxu0 0
    %6030 = vmatprep.subr.bf16.mxu0 0
    %6031 = vmatpush1.bf16.xpose.msra.mxu0 0
    %6032 = vmatprep.mubr.bf16.mxu0 %v5987
    %6033 = vmatmul.mubr.bf16.gmra.mrb[0].mxu0 %v5986
    %v6034 = vpop.f32.mrb[0].mxu0
    %v6035 = vadd.f32 0.0, %v6034
    %v6036 = vpop.f32.mrb[0].mxu0
    %v6037 = vadd.f32 0.0, %v6036
    %v6038 = vpop.f32.mrb[0].mxu0
    %v6039 = vadd.f32 0.0, %v6038
    %v6040 = vpop.f32.mrb[0].mxu0
    %v6041 = vadd.f32 0.0, %v6040
    %6042 = vdwg.mxu0
    %6043 = vmatprep.subr.bf16.mxu0 %v5849
    %6044 = vmatpush1.bf16.xpose.msra.mxu0 %v5848
    %6045 = vmatprep.subr.bf16.mxu0 %v5863
    %6046 = vmatpush1.bf16.xpose.msra.mxu0 %v5862
    %6047 = vmatprep.subr.bf16.mxu0 %v5877
    %6048 = vmatpush1.bf16.xpose.msra.mxu0 %v5876
    %6049 = vmatprep.subr.bf16.mxu0 %v5891
    %6050 = vmatpush1.bf16.xpose.msra.mxu0 %v5890
    %6051 = vmatprep.subr.bf16.mxu0 %v5905
    %6052 = vmatpush1.bf16.xpose.msra.mxu0 %v5904
    %6053 = vmatprep.subr.bf16.mxu0 %v5919
    %6054 = vmatpush1.bf16.xpose.msra.mxu0 %v5918
    %6055 = vmatprep.subr.bf16.mxu0 %v5933
    %6056 = vmatpush1.bf16.xpose.msra.mxu0 %v5932
    %6057 = vmatprep.subr.bf16.mxu0 %v5947
    %6058 = vmatpush1.bf16.xpose.msra.mxu0 %v5946
    %6059 = vmatprep.subr.bf16.mxu0 %v5961
    %6060 = vmatpush1.bf16.xpose.msra.mxu0 %v5960
    %6061 = vmatprep.subr.bf16.mxu0 %v5975
    %6062 = vmatpush1.bf16.xpose.msra.mxu0 %v5974
    %6063 = vmatprep.subr.bf16.mxu0 0
    %6064 = vmatpush1.bf16.xpose.msra.mxu0 0
    %6065 = vmatprep.subr.bf16.mxu0 0
    %6066 = vmatpush1.bf16.xpose.msra.mxu0 0
    %6067 = vmatprep.subr.bf16.mxu0 0
    %6068 = vmatpush1.bf16.xpose.msra.mxu0 0
    %6069 = vmatprep.subr.bf16.mxu0 0
    %6070 = vmatpush1.bf16.xpose.msra.mxu0 0
    %6071 = vmatprep.subr.bf16.mxu0 0
    %6072 = vmatpush1.bf16.xpose.msra.mxu0 0
    %6073 = vmatprep.subr.bf16.mxu0 0
    %6074 = vmatpush1.bf16.xpose.msra.mxu0 0
    %6075 = vmatprep.mubr.bf16.mxu0 %v5989
    %6076 = vmatmul.mubr.bf16.gmra.mrb[0].mxu0 %v5988
    %v6077 = vpop.f32.mrb[0].mxu0
    %v6078 = vadd.f32 %v6035, %v6077
    %v6079 = vpop.f32.mrb[0].mxu0
    %v6080 = vadd.f32 %v6037, %v6079
    %v6081 = vpop.f32.mrb[0].mxu0
    %v6082 = vadd.f32 %v6039, %v6081
    %v6083 = vpop.f32.mrb[0].mxu0
    %v6084 = vadd.f32 %v6041, %v6083
    %6085 = vdwg.mxu0
    %6086 = vmatprep.subr.bf16.mxu0 %v5851
    %6087 = vmatpush1.bf16.xpose.msra.mxu0 %v5850
    %6088 = vmatprep.subr.bf16.mxu0 %v5865
    %6089 = vmatpush1.bf16.xpose.msra.mxu0 %v5864
    %6090 = vmatprep.subr.bf16.mxu0 %v5879
    %6091 = vmatpush1.bf16.xpose.msra.mxu0 %v5878
    %6092 = vmatprep.subr.bf16.mxu0 %v5893
    %6093 = vmatpush1.bf16.xpose.msra.mxu0 %v5892
    %6094 = vmatprep.subr.bf16.mxu0 %v5907
    %6095 = vmatpush1.bf16.xpose.msra.mxu0 %v5906
    %6096 = vmatprep.subr.bf16.mxu0 %v5921
    %6097 = vmatpush1.bf16.xpose.msra.mxu0 %v5920
    %6098 = vmatprep.subr.bf16.mxu0 %v5935
    %6099 = vmatpush1.bf16.xpose.msra.mxu0 %v5934
    %6100 = vmatprep.subr.bf16.mxu0 %v5949
    %6101 = vmatpush1.bf16.xpose.msra.mxu0 %v5948
    %6102 = vmatprep.subr.bf16.mxu0 %v5963
    %6103 = vmatpush1.bf16.xpose.msra.mxu0 %v5962
    %6104 = vmatprep.subr.bf16.mxu0 %v5977
    %6105 = vmatpush1.bf16.xpose.msra.mxu0 %v5976
    %6106 = vmatprep.subr.bf16.mxu0 0
    %6107 = vmatpush1.bf16.xpose.msra.mxu0 0
    %6108 = vmatprep.subr.bf16.mxu0 0
    %6109 = vmatpush1.bf16.xpose.msra.mxu0 0
    %6110 = vmatprep.subr.bf16.mxu0 0
    %6111 = vmatpush1.bf16.xpose.msra.mxu0 0
    %6112 = vmatprep.subr.bf16.mxu0 0
    %6113 = vmatpush1.bf16.xpose.msra.mxu0 0
    %6114 = vmatprep.subr.bf16.mxu0 0
    %6115 = vmatpush1.bf16.xpose.msra.mxu0 0
    %6116 = vmatprep.subr.bf16.mxu0 0
    %6117 = vmatpush1.bf16.xpose.msra.mxu0 0
    %6118 = vmatprep.mubr.bf16.mxu0 %v5991
    %6119 = vmatmul.mubr.bf16.gmra.mrb[0].mxu0 %v5990
    %v6120 = vpop.f32.mrb[0].mxu0
    %v6121 = vadd.f32 %v6078, %v6120
    %v6122 = vpop.f32.mrb[0].mxu0
    %v6123 = vadd.f32 %v6080, %v6122
    %v6124 = vpop.f32.mrb[0].mxu0
    %v6125 = vadd.f32 %v6082, %v6124
    %v6126 = vpop.f32.mrb[0].mxu0
    %v6127 = vadd.f32 %v6084, %v6126
    %6128 = vdwg.mxu0
    %6129 = vmatprep.subr.bf16.mxu0 %v5853
    %6130 = vmatpush1.bf16.xpose.msra.mxu0 %v5852
    %6131 = vmatprep.subr.bf16.mxu0 %v5867
    %6132 = vmatpush1.bf16.xpose.msra.mxu0 %v5866
    %6133 = vmatprep.subr.bf16.mxu0 %v5881
    %6134 = vmatpush1.bf16.xpose.msra.mxu0 %v5880
    %6135 = vmatprep.subr.bf16.mxu0 %v5895
    %6136 = vmatpush1.bf16.xpose.msra.mxu0 %v5894
    %6137 = vmatprep.subr.bf16.mxu0 %v5909
    %6138 = vmatpush1.bf16.xpose.msra.mxu0 %v5908
    %6139 = vmatprep.subr.bf16.mxu0 %v5923
    %6140 = vmatpush1.bf16.xpose.msra.mxu0 %v5922
    %6141 = vmatprep.subr.bf16.mxu0 %v5937
    %6142 = vmatpush1.bf16.xpose.msra.mxu0 %v5936
    %6143 = vmatprep.subr.bf16.mxu0 %v5951
    %6144 = vmatpush1.bf16.xpose.msra.mxu0 %v5950
    %6145 = vmatprep.subr.bf16.mxu0 %v5965
    %6146 = vmatpush1.bf16.xpose.msra.mxu0 %v5964
    %6147 = vmatprep.subr.bf16.mxu0 %v5979
    %6148 = vmatpush1.bf16.xpose.msra.mxu0 %v5978
    %6149 = vmatprep.subr.bf16.mxu0 0
    %6150 = vmatpush1.bf16.xpose.msra.mxu0 0
    %6151 = vmatprep.subr.bf16.mxu0 0
    %6152 = vmatpush1.bf16.xpose.msra.mxu0 0
    %6153 = vmatprep.subr.bf16.mxu0 0
    %6154 = vmatpush1.bf16.xpose.msra.mxu0 0
    %6155 = vmatprep.subr.bf16.mxu0 0
    %6156 = vmatpush1.bf16.xpose.msra.mxu0 0
    %6157 = vmatprep.subr.bf16.mxu0 0
    %6158 = vmatpush1.bf16.xpose.msra.mxu0 0
    %6159 = vmatprep.subr.bf16.mxu0 0
    %6160 = vmatpush1.bf16.xpose.msra.mxu0 0
    %6161 = vmatprep.mubr.bf16.mxu0 %v5993
    %6162 = vmatmul.mubr.bf16.gmra.mrb[0].mxu0 %v5992
    %v6163 = vpop.f32.mrb[0].mxu0
    %v6164 = vadd.f32 %v6121, %v6163
    %v6165 = vpop.f32.mrb[0].mxu0
    %v6166 = vadd.f32 %v6123, %v6165
    %v6167 = vpop.f32.mrb[0].mxu0
    %v6168 = vadd.f32 %v6125, %v6167
    %v6169 = vpop.f32.mrb[0].mxu0
    %v6170 = vadd.f32 %v6127, %v6169
    %6171 = vdwg.mxu0
    %6172 = vmatprep.subr.bf16.mxu0 %v5855
    %6173 = vmatpush1.bf16.xpose.msra.mxu0 %v5854
    %6174 = vmatprep.subr.bf16.mxu0 %v5869
    %6175 = vmatpush1.bf16.xpose.msra.mxu0 %v5868
    %6176 = vmatprep.subr.bf16.mxu0 %v5883
    %6177 = vmatpush1.bf16.xpose.msra.mxu0 %v5882
    %6178 = vmatprep.subr.bf16.mxu0 %v5897
    %6179 = vmatpush1.bf16.xpose.msra.mxu0 %v5896
    %6180 = vmatprep.subr.bf16.mxu0 %v5911
    %6181 = vmatpush1.bf16.xpose.msra.mxu0 %v5910
    %6182 = vmatprep.subr.bf16.mxu0 %v5925
    %6183 = vmatpush1.bf16.xpose.msra.mxu0 %v5924
    %6184 = vmatprep.subr.bf16.mxu0 %v5939
    %6185 = vmatpush1.bf16.xpose.msra.mxu0 %v5938
    %6186 = vmatprep.subr.bf16.mxu0 %v5953
    %6187 = vmatpush1.bf16.xpose.msra.mxu0 %v5952
    %6188 = vmatprep.subr.bf16.mxu0 %v5967
    %6189 = vmatpush1.bf16.xpose.msra.mxu0 %v5966
    %6190 = vmatprep.subr.bf16.mxu0 %v5981
    %6191 = vmatpush1.bf16.xpose.msra.mxu0 %v5980
    %6192 = vmatprep.subr.bf16.mxu0 0
    %6193 = vmatpush1.bf16.xpose.msra.mxu0 0
    %6194 = vmatprep.subr.bf16.mxu0 0
    %6195 = vmatpush1.bf16.xpose.msra.mxu0 0
    %6196 = vmatprep.subr.bf16.mxu0 0
    %6197 = vmatpush1.bf16.xpose.msra.mxu0 0
    %6198 = vmatprep.subr.bf16.mxu0 0
    %6199 = vmatpush1.bf16.xpose.msra.mxu0 0
    %6200 = vmatprep.subr.bf16.mxu0 0
    %6201 = vmatpush1.bf16.xpose.msra.mxu0 0
    %6202 = vmatprep.subr.bf16.mxu0 0
    %6203 = vmatpush1.bf16.xpose.msra.mxu0 0
    %6204 = vmatprep.mubr.bf16.mxu0 %v5995
    %6205 = vmatmul.mubr.bf16.gmra.mrb[0].mxu0 %v5994
    %v6206 = vpop.f32.mrb[0].mxu0
    %v6207 = vadd.f32 %v6164, %v6206
    %v6208 = vpop.f32.mrb[0].mxu0
    %v6209 = vadd.f32 %v6166, %v6208
    %v6210 = vpop.f32.mrb[0].mxu0
    %v6211 = vadd.f32 %v6168, %v6210
    %v6212 = vpop.f32.mrb[0].mxu0
    %v6213 = vadd.f32 %v6170, %v6212
    %6214 = vdwg.mxu0
    %6215 = vmatprep.subr.bf16.mxu0 %v5857
    %6216 = vmatpush1.bf16.xpose.msra.mxu0 %v5856
    %6217 = vmatprep.subr.bf16.mxu0 %v5871
    %6218 = vmatpush1.bf16.xpose.msra.mxu0 %v5870
    %6219 = vmatprep.subr.bf16.mxu0 %v5885
    %6220 = vmatpush1.bf16.xpose.msra.mxu0 %v5884
    %6221 = vmatprep.subr.bf16.mxu0 %v5899
    %6222 = vmatpush1.bf16.xpose.msra.mxu0 %v5898
    %6223 = vmatprep.subr.bf16.mxu0 %v5913
    %6224 = vmatpush1.bf16.xpose.msra.mxu0 %v5912
    %6225 = vmatprep.subr.bf16.mxu0 %v5927
    %6226 = vmatpush1.bf16.xpose.msra.mxu0 %v5926
    %6227 = vmatprep.subr.bf16.mxu0 %v5941
    %6228 = vmatpush1.bf16.xpose.msra.mxu0 %v5940
    %6229 = vmatprep.subr.bf16.mxu0 %v5955
    %6230 = vmatpush1.bf16.xpose.msra.mxu0 %v5954
    %6231 = vmatprep.subr.bf16.mxu0 %v5969
    %6232 = vmatpush1.bf16.xpose.msra.mxu0 %v5968
    %6233 = vmatprep.subr.bf16.mxu0 %v5983
    %6234 = vmatpush1.bf16.xpose.msra.mxu0 %v5982
    %6235 = vmatprep.subr.bf16.mxu0 0
    %6236 = vmatpush1.bf16.xpose.msra.mxu0 0
    %6237 = vmatprep.subr.bf16.mxu0 0
    %6238 = vmatpush1.bf16.xpose.msra.mxu0 0
    %6239 = vmatprep.subr.bf16.mxu0 0
    %6240 = vmatpush1.bf16.xpose.msra.mxu0 0
    %6241 = vmatprep.subr.bf16.mxu0 0
    %6242 = vmatpush1.bf16.xpose.msra.mxu0 0
    %6243 = vmatprep.subr.bf16.mxu0 0
    %6244 = vmatpush1.bf16.xpose.msra.mxu0 0
    %6245 = vmatprep.subr.bf16.mxu0 0
    %6246 = vmatpush1.bf16.xpose.msra.mxu0 0
    %6247 = vmatprep.mubr.bf16.mxu0 %v5997
    %6248 = vmatmul.mubr.bf16.gmra.mrb[0].mxu0 %v5996
    %v6249 = vpop.f32.mrb[0].mxu0
    %v6250 = vadd.f32 %v6207, %v6249
    %v6251 = vpop.f32.mrb[0].mxu0
    %v6252 = vadd.f32 %v6209, %v6251
    %v6253 = vpop.f32.mrb[0].mxu0
    %v6254 = vadd.f32 %v6211, %v6253
    %v6255 = vpop.f32.mrb[0].mxu0
    %v6256 = vadd.f32 %v6213, %v6255
    %6257 = vdwg.mxu0
    %6258 = vmatprep.subr.bf16.mxu0 %v5859
    %6259 = vmatpush1.bf16.xpose.msra.mxu0 %v5858
    %6260 = vmatprep.subr.bf16.mxu0 %v5873
    %6261 = vmatpush1.bf16.xpose.msra.mxu0 %v5872
    %6262 = vmatprep.subr.bf16.mxu0 %v5887
    %6263 = vmatpush1.bf16.xpose.msra.mxu0 %v5886
    %6264 = vmatprep.subr.bf16.mxu0 %v5901
    %6265 = vmatpush1.bf16.xpose.msra.mxu0 %v5900
    %6266 = vmatprep.subr.bf16.mxu0 %v5915
    %6267 = vmatpush1.bf16.xpose.msra.mxu0 %v5914
    %6268 = vmatprep.subr.bf16.mxu0 %v5929
    %6269 = vmatpush1.bf16.xpose.msra.mxu0 %v5928
    %6270 = vmatprep.subr.bf16.mxu0 %v5943
    %6271 = vmatpush1.bf16.xpose.msra.mxu0 %v5942
    %6272 = vmatprep.subr.bf16.mxu0 %v5957
    %6273 = vmatpush1.bf16.xpose.msra.mxu0 %v5956
    %6274 = vmatprep.subr.bf16.mxu0 %v5971
    %6275 = vmatpush1.bf16.xpose.msra.mxu0 %v5970
    %6276 = vmatprep.subr.bf16.mxu0 %v5985
    %6277 = vmatpush1.bf16.xpose.msra.mxu0 %v5984
    %6278 = vmatprep.subr.bf16.mxu0 0
    %6279 = vmatpush1.bf16.xpose.msra.mxu0 0
    %6280 = vmatprep.subr.bf16.mxu0 0
    %6281 = vmatpush1.bf16.xpose.msra.mxu0 0
    %6282 = vmatprep.subr.bf16.mxu0 0
    %6283 = vmatpush1.bf16.xpose.msra.mxu0 0
    %6284 = vmatprep.subr.bf16.mxu0 0
    %6285 = vmatpush1.bf16.xpose.msra.mxu0 0
    %6286 = vmatprep.subr.bf16.mxu0 0
    %6287 = vmatpush1.bf16.xpose.msra.mxu0 0
    %6288 = vmatprep.subr.bf16.mxu0 0
    %6289 = vmatpush1.bf16.xpose.msra.mxu0 0
    %6290 = vmatprep.mubr.bf16.mxu0 %v5999
    %6291 = vmatmul.mubr.bf16.gmra.mrb[0].mxu0 %v5998
    %v6292 = vpop.f32.mrb[0].mxu0
    %v6293 = vadd.f32 %v6250, %v6292
    %v6294 = vpop.f32.mrb[0].mxu0
    %v6295 = vadd.f32 %v6252, %v6294
    %v6296 = vpop.f32.mrb[0].mxu0
    %v6297 = vadd.f32 %v6254, %v6296
    %v6298 = vpop.f32.mrb[0].mxu0
    %v6299 = vadd.f32 %v6256, %v6298
    %6300 = vdwg.mxu0
    %v6301 = vadd.f32 %v5842, %v6293
    %v6302 = vadd.f32 %v5843, %v6295
    %v6303 = vadd.f32 %v5844, %v6297
    %v6304 = vadd.f32 %v5845, %v6299
    %v6305 = vld [vmem:[%s3] sm:$0xff]
    %v6306 = vld [vmem:[%s3 + $0x8] sm:$0xff]
    %6308 = vset.pattern.permute.xlu0 0
    %6309 = vperm.xlu0 %6308, %v6305
    %v6310 = vpop.permute.xlu0 %6309
    %6313 = vset.pattern.permute.xlu0 0
    %6314 = vperm.xlu0 %6313, %v6306
    %v6315 = vpop.permute.xlu0 %6314
    %v6317 = vadd.f32 %v6301, %v6310
    %v6318 = vadd.f32 %v6302, %v6310
    %v6319 = vadd.f32 %v6303, %v6315
    %v6320 = vadd.f32 %v6304, %v6315
    %v6321 = vadd.f32 %v6317, 3.0
    %v6322 = vadd.f32 %v6318, 3.0
    %v6323 = vadd.f32 %v6319, 3.0
    %v6324 = vadd.f32 %v6320, 3.0
    %v6325 = vmax.f32 %v6321, 0.0
    %v6326 = vmax.f32 %v6322, 0.0
    %v6327 = vmax.f32 %v6323, 0.0
    %v6328 = vmax.f32 %v6324, 0.0
    %v6329 = vmin.f32 %v6325, 6.0
    %v6330 = vmin.f32 %v6326, 6.0
    %v6331 = vmin.f32 %v6327, 6.0
    %v6332 = vmin.f32 %v6328, 6.0
    %v6333 = vmul.f32 %v6317, %v6329
    %v6334 = vmul.f32 %v6318, %v6330
    %v6335 = vmul.f32 %v6319, %v6331
    %v6336 = vmul.f32 %v6320, %v6332
    %v6337 = vmul.f32 %v6333, 0.16666667
    %v6338 = vmul.f32 %v6334, 0.16666667
    %v6339 = vmul.f32 %v6335, 0.16666667
    %v6340 = vmul.f32 %v6336, 0.16666667
    %6341 = vst [vmem:[#allocation8] sm:$0xff] %v6337
    %vm6342 = vcmask 261120
    %6343 = vst.msk [vmem:[#allocation8 + $0x8] sm:$0xff] %vm6342, %v6338
    %6344 = vst [vmem:[#allocation8 + $0x10] sm:$0xff] %v6339
    %6345 = vst.msk [vmem:[#allocation8 + $0x18] sm:$0xff] %vm6342, %v6340
    // Predicated region
    $region18: #{tpu_custom_call.1} parent=1 // pred_check
      _
    $region19: #{tpu_custom_call.1} parent=1 // pred_check_branch
      %6347 = sbr.rel (0) target = $region21
    $region20: #{tpu_custom_call.1} parent=1 // pred_region
      %s6349 = ssub.s32 512, 512
      %6350 = vsyncadd [#allocation7], %s6349
      %s6351 = sshll.u32 [#allocation8], 4
      %s6352 = int_to_ptr.vmem [resolvable:$true] %s6351
      %6357 = dma.vmem_to_hbm [thread:$0]  %s6352, 512, %s4, [#allocation7], 256, 256, 16
    $region21: #{tpu_custom_call.1} parent=1 // pred_fallthru
      _
    // Predicated region
    $region22: #{tpu_custom_call.1} parent=1 // pred_check
      _
    $region23: #{tpu_custom_call.1} parent=1 // pred_check_branch
      %6359 = sbr.rel (0) target = $region25
    $region24: #{tpu_custom_call.1} parent=1 // pred_region
      %6360 = dma.done [#allocation7], 512
    $region25: #{tpu_custom_call.1} parent=1 // pred_fallthru
      _
    %6361 = vsyncpa [#allocation6], 1
    %6362 = vsyncpa [#allocation7], 1
  %6363 = vsyncmov [#allocation4]
  %s6364 = vpop.sfrf %6363
  %p6365 = scmp.eq.s32.totalorder %s6364, 0
  %p6366 = pneg %p6365
  %6368 = shalt.err (%p6366)

</llo_original>
